<compile_context>
chip_gen: v6e
topology: v6e:2x2x1
jax: 0.10.0
libtpu: 0.0.40
codegen_flags: <defaults>
</compile_context>

<pallas_src>
import jax
import jax.numpy as jnp
from jax.experimental import pallas as pl
from jax.experimental.pallas import tpu as pltpu

# ----------------------------- configuration -------------------------------
B = 2              # batch
IN_CH = 3          # image channels
IMG = 32           # image spatial size
PATCH = 4          # patch size
HP = WP = IMG // PATCH          # 8 x 8 token grid
S = HP * WP                     # 64 image tokens
C = 32             # embedding dim
MLP = 64           # MLP hidden dim
TEXT_DIM = 64      # text feature dim
NUM_CAT = 4        # number of categories
CLIP_DIM = 64      # clip / image vector dim
CUP = 8            # upscaled mask channels
NP = 2             # number of prompt points
T_TOK = 4 + NP + 5              # 11 decoder tokens ([iou,mask,cat,clip]+sparse)
PD_IMG = PATCH * PATCH * IN_CH  # 48
PD_MASK = PATCH * PATCH         # 16
UP_DIM = 2 * 2 * CUP            # 32
HEAD1_DIM = 3 * C + CLIP_DIM    # 160 : [iou1 | hyp1 | cat1 | clip]
HEAD2_DIM = 1 + CUP + NUM_CAT   # 13  : [iou2 | hyp2 | cat2] (block diagonal)

_F32 = jnp.float32
_BF16 = jnp.bfloat16


# ----------------------------- in-kernel helpers ----------------------------
def _mm(x, w_bf16, b=None):
    """bf16 MXU matmul with f32 accumulation (+ optional f32 bias)."""
    y = jnp.dot(x.astype(_BF16), w_bf16, preferred_element_type=_F32)
    return y if b is None else y + b


def _ln(x, g, b):
    m = jnp.mean(x, axis=-1, keepdims=True)
    v = jnp.mean(jnp.square(x - m), axis=-1, keepdims=True)
    return (x - m) * jax.lax.rsqrt(v + 1e-6) * g + b


def _softmax_attn(q, k, v, scale):
    """Single-head attention; scores/softmax in f32, MXU operands in bf16."""
    s = jax.lax.dot_general(q.astype(_BF16), k.astype(_BF16),
                            (((1,), (1,)), ((), ())),
                            preferred_element_type=_F32) * scale
    s = s - jnp.max(s, axis=-1, keepdims=True)
    p = jnp.exp(s)
    p = p * pl.reciprocal(jnp.sum(p, axis=-1, keepdims=True), approx=True)
    return jnp.dot(p.astype(_BF16), v.astype(_BF16),
                   preferred_element_type=_F32)


# ----------------------------- BlockSpec helpers -----------------------------
def _batched_spec(arr):
    # (B, X, Y) array -> per-grid-step block (1, X, Y); last two dims full.
    return pl.BlockSpec((1,) + tuple(arr.shape[1:]), lambda b: (b, 0, 0))


def _shared_spec(arr):
    # weight / constant, same full block for every grid step (stays in VMEM).
    assert arr.ndim == 2
    return pl.BlockSpec(tuple(arr.shape), lambda b: (0, 0))


def _out_spec(shape):
    return pl.BlockSpec((1,) + tuple(shape), lambda b: (b, 0, 0))


# ============================ image encoder kernel ===========================
_ENC_WEIGHTS = [
    "pos_embed", "patch_w", "patch_b",
    "enc_ln1_g", "enc_ln1_b", "enc_qkv_w", "enc_qkv_b", "enc_o_w", "enc_o_b",
    "enc_ln2_g", "enc_ln2_b", "enc_mlp1_w", "enc_mlp1_b",
    "enc_mlp2_w", "enc_mlp2_b", "neck_ln_g", "neck_ln_b",
]


def _encoder_kernel(patches_ref, *refs):
    w = {n: refs[i][...] for i, n in enumerate(_ENC_WEIGHTS)}   # hoisted loads
    out_ref = refs[len(_ENC_WEIGHTS)]
    scale = 1.0 / (C ** 0.5)

    x = patches_ref[0]                                           # (S, 48) f32
    tok = _mm(x, w["patch_w"], w["patch_b"]) + w["pos_embed"]    # patch embed

    # --- attention block (fused QKV) ---
    h = _ln(tok, w["enc_ln1_g"], w["enc_ln1_b"])
    qkv = _mm(h, w["enc_qkv_w"], w["enc_qkv_b"])                 # (S, 3C)
    a = _softmax_attn(qkv[:, :C], qkv[:, C:2 * C], qkv[:, 2 * C:], scale)
    tok = tok + _mm(a, w["enc_o_w"], w["enc_o_b"])

    # --- MLP block ---
    h = _ln(tok, w["enc_ln2_g"], w["enc_ln2_b"])
    h = jax.nn.gelu(_mm(h, w["enc_mlp1_w"], w["enc_mlp1_b"]))
    h = _mm(h, w["enc_mlp2_w"], w["enc_mlp2_b"])
    tok = tok + h

    out_ref[0] = _ln(tok, w["neck_ln_g"], w["neck_ln_b"])


def image_encoder(image_nchw, packed):
    Bx = image_nchw.shape[0]
    patches = _patchify(jnp.transpose(image_nchw, (0, 2, 3, 1)), PATCH)
    patches = patches.astype(_F32)                               # (B, S, 48)
    weights = [packed[n] for n in _ENC_WEIGHTS]
    return pl.pallas_call(
        _encoder_kernel,
        out_shape=jax.ShapeDtypeStruct((Bx, S, C), _F32),
        grid=(Bx,),
        in_specs=[_batched_spec(patches)] + [_shared_spec(a) for a in weights],
        out_specs=_out_spec((S, C)),
        compiler_params=pltpu.CompilerParams(
            dimension_semantics=("parallel",)),
    )(patches, *weights)                                         # (B, S, C) tokens


# ============================ prompt encoder kernel ==========================
_PROMPT_WEIGHTS = ["text_w", "text_b", "crop_w", "crop_b", "mask_w", "mask_b"]


def _prompt_kernel(text_ref, crop_ref, maskp_ref, feat_ref, *refs):
    w = {n: refs[i][...] for i, n in enumerate(_PROMPT_WEIGHTS)}
    txt_ref, crop_out_ref, dense_ref = refs[len(_PROMPT_WEIGHTS):]

    txt_ref[0] = _mm(text_ref[0], w["text_w"], w["text_b"])        # (1, C)
    ce = _mm(crop_ref[0], w["crop_w"], w["crop_b"])                # (16, C)
    crop_out_ref[0] = jnp.mean(ce, axis=0, keepdims=True)          # (1, C)
    dense_ref[0] = (_mm(maskp_ref[0], w["mask_w"], w["mask_b"])
                    + feat_ref[0])                                 # (S, C)


def prompt_encoder(points, boxes, masks, features, crops, text_features,
                   category_idx, packed):
    Bx = points.shape[0]
    # Tiny lane-sparse ops stay in plain JAX (pure launch overhead as kernels).
    pt = _pe_encode(points, packed) + packed["point_embed"][None]          # (B,NP,C)
    box = _pe_encode(boxes.reshape(Bx, 2, 2), packed) + packed["corner_embed"][None]
    cat = jnp.take(packed["cat_table"], category_idx, axis=0)[:, None, :]  # (B,1,C)

    crop_patches = _patchify(jnp.transpose(crops, (0, 2, 3, 1)), PATCH).astype(_F32)
    mask_patches = _patchify(jnp.transpose(masks, (0, 2, 3, 1)), PATCH).astype(_F32)
    feat_tok = jnp.transpose(features, (0, 2, 3, 1)).reshape(Bx, S, C).astype(_F32)
    text_in = text_features[:, None, :].astype(_F32)                       # (B,1,TEXT)

    batched = [text_in, crop_patches, mask_patches, feat_tok]
    weights = [packed[n] for n in _PROMPT_WEIGHTS]
    txt, crop_emb, dense = pl.pallas_call(
        _prompt_kernel,
        out_shape=(jax.ShapeDtypeStruct((Bx, 1, C), _F32),
                   jax.ShapeDtypeStruct((Bx, 1, C), _F32),
                   jax.ShapeDtypeStruct((Bx, S, C), _F32)),
        grid=(Bx,),
        in_specs=[_batched_spec(a) for a in batched]
                 + [_shared_spec(a) for a in weights],
        out_specs=(_out_spec((1, C)), _out_spec((1, C)), _out_spec((S, C))),
        compiler_params=pltpu.CompilerParams(
            dimension_semantics=("parallel",)),
    )(*batched, *weights)

    sparse = jnp.concatenate([pt, box, txt, crop_emb, cat], axis=1)  # (B, NP+5, C)
    return sparse, dense                                             # dense: (B, S, C)


# ============================ mask decoder kernel ============================
_DEC_WEIGHTS = [
    "image_pe",
    "dec_sa_qkv_w", "dec_sa_qkv_b", "dec_sa_o_w", "dec_sa_o_b",
    "dec_ln1_g", "dec_ln1_b",
    "dec_t2i_q_w", "dec_t2i_q_b", "dec_t2i_k_w", "dec_t2i_k_b",
    "dec_t2i_v_w", "dec_t2i_v_b", "dec_t2i_o_w", "dec_t2i_o_b",
    "dec_ln2_g", "dec_ln2_b",
    "dec_mlp1_w", "dec_mlp1_b", "dec_mlp2_w", "dec_mlp2_b",
    "dec_ln3_g", "dec_ln3_b",
    "dec_i2t_q_w", "dec_i2t_q_b", "dec_i2t_kv_w", "dec_i2t_kv_b",
    "dec_i2t_o_w", "dec_i2t_o_b",
    "dec_ln4_g", "dec_ln4_b",
    "up_w", "up_b", "up_sel",
    "head1_w", "head1_b", "head2_w", "head2_b",
    "imgv_w", "imgv_b",
]


def _decoder_kernel(tok_ref, img_ref, dense_ref, *refs):
    w = {n: refs[i][...] for i, n in enumerate(_DEC_WEIGHTS)}   # hoisted loads
    low_ref, iou_ref, cat_ref, clip_ref, imgv_ref = refs[len(_DEC_WEIGHTS):]
    scale = 1.0 / (C ** 0.5)

    tokens = tok_ref[0]                       # (T_TOK, C)
    src = img_ref[0] + dense_ref[0]           # (S, C)
    pos = w["image_pe"]                       # (S, C)
    src_pos = src + pos

    # 1) token self-attention (fused QKV)
    qkv = _mm(tokens, w["dec_sa_qkv_w"], w["dec_sa_qkv_b"])
    a = _softmax_attn(qkv[:, :C], qkv[:, C:2 * C], qkv[:, 2 * C:], scale)
    tokens = tokens + _mm(a, w["dec_sa_o_w"], w["dec_sa_o_b"])
    tokens = _ln(tokens, w["dec_ln1_g"], w["dec_ln1_b"])

    # 2) cross attention: tokens -> image
    q = _mm(tokens, w["dec_t2i_q_w"], w["dec_t2i_q_b"])
    k = _mm(src_pos, w["dec_t2i_k_w"], w["dec_t2i_k_b"])
    v = _mm(src, w["dec_t2i_v_w"], w["dec_t2i_v_b"])
    a = _softmax_attn(q, k, v, scale)
    tokens = tokens + _mm(a, w["dec_t2i_o_w"], w["dec_t2i_o_b"])
    tokens = _ln(tokens, w["dec_ln2_g"], w["dec_ln2_b"])

    # 3) token MLP
    h = jnp.maximum(_mm(tokens, w["dec_mlp1_w"], w["dec_mlp1_b"]), 0.0)
    h = _mm(h, w["dec_mlp2_w"], w["dec_mlp2_b"])
    tokens = _ln(tokens + h, w["dec_ln3_g"], w["dec_ln3_b"])

    # 4) cross attention: image -> tokens (fused KV)
    q = _mm(src_pos, w["dec_i2t_q_w"], w["dec_i2t_q_b"])
    kv = _mm(tokens, w["dec_i2t_kv_w"], w["dec_i2t_kv_b"])       # (T, 2C)
    a = _softmax_attn(q, kv[:, :C], kv[:, C:], scale)
    src = src + _mm(a, w["dec_i2t_o_w"], w["dec_i2t_o_b"])
    src = _ln(src, w["dec_ln4_g"], w["dec_ln4_b"])

    # ---- output heads: two fused matmuls + image-vector matmul ----
    tok4 = tokens[0:4, :]                                        # [iou,mask,cat,clip]
    h1 = _mm(tok4, w["head1_w"], w["head1_b"])                   # (4, 160)
    h2 = _mm(jnp.maximum(h1[:, 0:3 * C], 0.0),
             w["head2_w"], w["head2_b"])                         # (4, 13) block-diag
    iou_ref[0] = h2[0:1, 0:1]                                    # iou2(relu(iou1(t0)))
    cat_ref[0] = h2[2:3, 1 + CUP:1 + CUP + NUM_CAT]              # cat2(relu(cat1(t2)))
    clip_ref[0] = h1[3:4, 3 * C:3 * C + CLIP_DIM]                # clip(t3), no relu
    imgv_ref[0] = _mm(jnp.mean(src, axis=0, keepdims=True),
                      w["imgv_w"], w["imgv_b"])                  # (1, CLIP_DIM)

    # ---- hyper-network mask: VPU multiply + constant-selector matmul ----
    hyper = h2[1:2, 1:1 + CUP]                                   # hyp2(relu(hyp1(t1)))
    up = jax.nn.gelu(_mm(src, w["up_w"], w["up_b"]))             # (S, 2*2*CUP)
    prods = up * jnp.tile(hyper, (1, 4))                         # broadcast multiply
    low_ref[0] = jnp.dot(prods.astype(_BF16), w["up_sel"],
                         preferred_element_type=_F32)            # (S, 4)


def mask_decoder(image_tok, sparse, dense_tok, packed):
    Bx = image_tok.shape[0]
    out_tok = jnp.broadcast_to(packed["out_tokens"][None], (Bx, 4, C))
    tokens = jnp.concatenate([out_tok, sparse], axis=1).astype(_F32)   # (B, T_TOK, C)

    batched = [tokens, image_tok.astype(_F32), dense_tok.astype(_F32)]
    weights = [packed[n] for n in _DEC_WEIGHTS]
    low4, iou, cat, clip, imgv = pl.pallas_call(
        _decoder_kernel,
        out_shape=(jax.ShapeDtypeStruct((Bx, S, 4), _F32),
                   jax.ShapeDtypeStruct((Bx, 1, 1), _F32),
                   jax.ShapeDtypeStruct((Bx, 1, NUM_CAT), _F32),
                   jax.ShapeDtypeStruct((Bx, 1, CLIP_DIM), _F32),
                   jax.ShapeDtypeStruct((Bx, 1, CLIP_DIM), _F32)),
        grid=(Bx,),
        in_specs=[_batched_spec(a) for a in batched]
                 + [_shared_spec(a) for a in weights],
        out_specs=(_out_spec((S, 4)), _out_spec((1, 1)),
                   _out_spec((1, NUM_CAT)), _out_spec((1, CLIP_DIM)),
                   _out_spec((1, CLIP_DIM))),
        compiler_params=pltpu.CompilerParams(
            dimension_semantics=("parallel",)),
    )(*batched, *weights)

    # (B,S,4) -> (B,HP,WP,2,2) -> (B,HP,2,WP,2) -> (B,1,2HP,2WP)   (tiny glue)
    low = low4.reshape(Bx, HP, WP, 2, 2)
    low_res_masks = jnp.transpose(low, (0, 1, 3, 2, 4)).reshape(
        Bx, 1, 2 * HP, 2 * WP)
    return (low_res_masks, iou.reshape(Bx, 1), cat.reshape(Bx, NUM_CAT),
            clip.reshape(Bx, CLIP_DIM), imgv.reshape(Bx, CLIP_DIM))


# ----------------------------- plain-JAX glue -------------------------------
def _patchify(x_nhwc, patch):
    Bx, H, W, Cx = x_nhwc.shape
    hp, wp = H // patch, W // patch
    x = x_nhwc.reshape(Bx, hp, patch, wp, patch, Cx)
    x = jnp.transpose(x, (0, 1, 3, 2, 4, 5))
    return x.reshape(Bx, hp * wp, patch * patch * Cx)


def _pe_encode(coords01, p):
    # K=2 matmul + sin/cos: pure launch overhead as a kernel -> plain JAX.
    flat = coords01.reshape(-1, 2).astype(_F32)
    proj = 2.0 * jnp.pi * ((2.0 * flat - 1.0) @ p["pe_gauss"])
    pe = jnp.concatenate([jnp.sin(proj), jnp.cos(proj)], axis=-1)
    return pe.reshape(coords01.shape[:-1] + (C,))


def get_dense_pe_tokens(p):
    ys = (jnp.arange(HP, dtype=_F32) + 0.5) / HP
    xs = (jnp.arange(WP, dtype=_F32) + 0.5) / WP
    gy, gx = jnp.meshgrid(ys, xs, indexing="ij")
    coords = jnp.stack([gx, gy], axis=-1)
    return _pe_encode(coords, p).reshape(S, C)


# ----------------------------- parameters -----------------------------------
def init_params(key):
    ks = iter(jax.random.split(key, 64))

    def w(shape, scale=0.02):
        return (scale * jax.random.normal(next(ks), shape)).astype(_F32)

    zeros = lambda s: jnp.zeros(s, _F32)
    ones = lambda s: jnp.ones(s, _F32)

    p = {}
    # ---- image encoder (tiny ViT-style) ----
    p["patch_w"] = w((PD_IMG, C)); p["patch_b"] = zeros((C,))
    p["pos_embed"] = w((S, C))
    for n in ("enc_q", "enc_k", "enc_v", "enc_o"):
        p[n + "_w"] = w((C, C)); p[n + "_b"] = zeros((C,))
    p["enc_mlp1_w"] = w((C, MLP)); p["enc_mlp1_b"] = zeros((MLP,))
    p["enc_mlp2_w"] = w((MLP, C)); p["enc_mlp2_b"] = zeros((C,))
    for n in ("enc_ln1", "enc_ln2", "neck_ln"):
        p[n + "_g"] = ones((C,)); p[n + "_b"] = zeros((C,))
    # ---- prompt encoder ----
    p["pe_gauss"] = w((2, C // 2), scale=1.0)
    p["point_embed"] = w((1, C))
    p["corner_embed"] = w((2, C))
    p["text_w"] = w((TEXT_DIM, C)); p["text_b"] = zeros((C,))
    p["crop_w"] = w((PD_IMG, C)); p["crop_b"] = zeros((C,))
    p["cat_table"] = w((NUM_CAT, C))
    p["mask_w"] = w((PD_MASK, C)); p["mask_b"] = zeros((C,))
    # ---- mask decoder (single two-way block) ----
    p["out_tokens"] = w((4, C))
    for n in ("dec_sa_q", "dec_sa_k", "dec_sa_v", "dec_sa_o",
              "dec_t2i_q", "dec_t2i_k", "dec_t2i_v", "dec_t2i_o",
              "dec_i2t_q", "dec_i2t_k", "dec_i2t_v", "dec_i2t_o"):
        p[n + "_w"] = w((C, C)); p[n + "_b"] = zeros((C,))
    p["dec_mlp1_w"] = w((C, MLP)); p["dec_mlp1_b"] = zeros((MLP,))
    p["dec_mlp2_w"] = w((MLP, C)); p["dec_mlp2_b"] = zeros((C,))
    for n in ("dec_ln1", "dec_ln2", "dec_ln3", "dec_ln4"):
        p[n + "_g"] = ones((C,)); p[n + "_b"] = zeros((C,))
    p["up_w"] = w((C, UP_DIM)); p["up_b"] = zeros((UP_DIM,))
    p["hyp1_w"] = w((C, C)); p["hyp1_b"] = zeros((C,))
    p["hyp2_w"] = w((C, CUP)); p["hyp2_b"] = zeros((CUP,))
    p["iou1_w"] = w((C, C)); p["iou1_b"] = zeros((C,))
    p["iou2_w"] = w((C, 1)); p["iou2_b"] = zeros((1,))
    p["cat1_w"] = w((C, C)); p["cat1_b"] = zeros((C,))
    p["cat2_w"] = w((C, NUM_CAT)); p["cat2_b"] = zeros((NUM_CAT,))
    p["clip_w"] = w((C, CLIP_DIM)); p["clip_b"] = zeros((CLIP_DIM,))
    p["imgv_w"] = w((C, CLIP_DIM)); p["imgv_b"] = zeros((CLIP_DIM,))
    return p


def pack_params(p):
    """Build kernel-ready params: fused QKV/KV/head weights, bf16 MXU weights,
    f32 biases / LN params reshaped to (1, N)."""
    bf = lambda x: x.astype(_BF16)
    row = lambda x: x.reshape(1, -1).astype(_F32)

    q = {}
    # ---- image encoder ----
    q["pos_embed"] = p["pos_embed"].astype(_F32)
    q["patch_w"] = bf(p["patch_w"]); q["patch_b"] = row(p["patch_b"])
    q["enc_qkv_w"] = bf(jnp.concatenate(
        [p["enc_q_w"], p["enc_k_w"], p["enc_v_w"]], axis=1))
    q["enc_qkv_b"] = row(jnp.concatenate(
        [p["enc_q_b"], p["enc_k_b"], p["enc_v_b"]], axis=0))
    q["enc_o_w"] = bf(p["enc_o_w"]); q["enc_o_b"] = row(p["enc_o_b"])
    q["enc_mlp1_w"] = bf(p["enc_mlp1_w"]); q["enc_mlp1_b"] = row(p["enc_mlp1_b"])
    q["enc_mlp2_w"] = bf(p["enc_mlp2_w"]); q["enc_mlp2_b"] = row(p["enc_mlp2_b"])
    for n in ("enc_ln1", "enc_ln2", "neck_ln"):
        q[n + "_g"] = row(p[n + "_g"]); q[n + "_b"] = row(p[n + "_b"])
    # ---- prompt encoder ----
    q["pe_gauss"] = p["pe_gauss"].astype(_F32)
    q["point_embed"] = p["point_embed"].astype(_F32)
    q["corner_embed"] = p["corner_embed"].astype(_F32)
    q["cat_table"] = p["cat_table"].astype(_F32)
    q["text_w"] = bf(p["text_w"]); q["text_b"] = row(p["text_b"])
    q["crop_w"] = bf(p["crop_w"]); q["crop_b"] = row(p["crop_b"])
    q["mask_w"] = bf(p["mask_w"]); q["mask_b"] = row(p["mask_b"])
    q["image_pe"] = get_dense_pe_tokens(p)                       # (S, C), constant
    # ---- mask decoder ----
    q["out_tokens"] = p["out_tokens"].astype(_F32)
    q["dec_sa_qkv_w"] = bf(jnp.concatenate(
        [p["dec_sa_q_w"], p["dec_sa_k_w"], p["dec_sa_v_w"]], axis=1))
    q["dec_sa_qkv_b"] = row(jnp.concatenate(
        [p["dec_sa_q_b"], p["dec_sa_k_b"], p["dec_sa_v_b"]], axis=0))
    q["dec_sa_o_w"] = bf(p["dec_sa_o_w"]); q["dec_sa_o_b"] = row(p["dec_sa_o_b"])
    for n in ("dec_t2i_q", "dec_t2i_k", "dec_t2i_v", "dec_t2i_o",
              "dec_i2t_q", "dec_i2t_o"):
        q[n + "_w"] = bf(p[n + "_w"]); q[n + "_b"] = row(p[n + "_b"])
    q["dec_i2t_kv_w"] = bf(jnp.concatenate(
        [p["dec_i2t_k_w"], p["dec_i2t_v_w"]], axis=1))
    q["dec_i2t_kv_b"] = row(jnp.concatenate(
        [p["dec_i2t_k_b"], p["dec_i2t_v_b"]], axis=0))
    q["dec_mlp1_w"] = bf(p["dec_mlp1_w"]); q["dec_mlp1_b"] = row(p["dec_mlp1_b"])
    q["dec_mlp2_w"] = bf(p["dec_mlp2_w"]); q["dec_mlp2_b"] = row(p["dec_mlp2_b"])
    for n in ("dec_ln1", "dec_ln2", "dec_ln3", "dec_ln4"):
        q[n + "_g"] = row(p[n + "_g"]); q[n + "_b"] = row(p[n + "_b"])
    q["up_w"] = bf(p["up_w"]); q["up_b"] = row(p["up_b"])
    # fused first-stage heads: cols [0:32]=iou1, [32:64]=hyp1, [64:96]=cat1, [96:160]=clip
    q["head1_w"] = bf(jnp.concatenate(
        [p["iou1_w"], p["hyp1_w"], p["cat1_w"], p["clip_w"]], axis=1))
    q["head1_b"] = row(jnp.concatenate(
        [p["iou1_b"], p["hyp1_b"], p["cat1_b"], p["clip_b"]], axis=0))
    # block-diagonal second stage: rows[0:32]->col 0 (iou2), rows[32:64]->cols 1:9
    # (hyp2), rows[64:96]->cols 9:13 (cat2)
    h2w = jnp.zeros((3 * C, HEAD2_DIM), _F32)
    h2w = h2w.at[0:C, 0:1].set(p["iou2_w"])
    h2w = h2w.at[C:2 * C, 1:1 + CUP].set(p["hyp2_w"])
    h2w = h2w.at[2 * C:3 * C, 1 + CUP:].set(p["cat2_w"])
    q["head2_w"] = bf(h2w)
    q["head2_b"] = row(jnp.concatenate(
        [p["iou2_b"], p["hyp2_b"], p["cat2_b"]], axis=0))
    q["imgv_w"] = bf(p["imgv_w"]); q["imgv_b"] = row(p["imgv_b"])
    # constant selector summing each CUP-wide group of the (2,2,CUP) upscale cols
    sel = jnp.zeros((UP_DIM, 4), _F32)
    for j in range(4):
        sel = sel.at[j * CUP:(j + 1) * CUP, j].set(1.0)
    q["up_sel"] = bf(sel)
    return q


# ----------------------------- MedSAM_Lite forward ---------------------------
@jax.jit
def medsam_lite_forward(packed, image, points, boxes, masks, features,
                        crops, text_features, category_idx):
    image_tok = image_encoder(image, packed)                       # (B, S, C)
    sparse, dense_tok = prompt_encoder(points, boxes, masks, features, crops,
                                       text_features, category_idx, packed)
    return mask_decoder(image_tok, sparse, dense_tok, packed)


# ----------------------------- main ------------------------------------------
if __name__ == "__main__":
    base_params = init_params(jax.random.PRNGKey(1234))
    packed = pack_params(base_params)

    key = jax.random.PRNGKey(0)
    k = jax.random.split(key, 8)
    image = jax.random.normal(k[0], (B, IN_CH, IMG, IMG), jnp.float32)
    points = jax.random.uniform(k[1], (B, NP, 2), jnp.float32)
    boxes = jax.random.uniform(k[2], (B, 4), jnp.float32)
    masks = jax.random.normal(k[3], (B, 1, IMG, IMG), jnp.float32)
    features = jax.random.normal(k[4], (B, C, HP, WP), jnp.float32)
    crops = jax.random.normal(k[5], (B, IN_CH, 16, 16), jnp.float32)
    text_features = jax.random.normal(k[6], (B, TEXT_DIM), jnp.float32)
    category_idx = jax.random.randint(k[7], (B,), 0, NUM_CAT, jnp.int32)

    outs = medsam_lite_forward(packed, image, points, boxes, masks,
                               features, crops, text_features, category_idx)
    jax.block_until_ready(outs)

    low_res_masks, iou_pred, cat_pred, clip_vec, img_vec = outs
    assert low_res_masks.shape == (B, 1, 2 * HP, 2 * WP)
    assert iou_pred.shape == (B, 1)
    assert cat_pred.shape == (B, NUM_CAT)
    assert clip_vec.shape == (B, CLIP_DIM)
    assert img_vec.shape == (B, CLIP_DIM)
    assert all(bool(jnp.all(jnp.isfinite(o))) for o in outs)
    print("KERNEL_OK")
</pallas_src>

<mosaic_0001>
module attributes {stable_mosaic.version = 11 : i64} {
  func.func @_prompt_kernel(%arg0: i32, %arg1: memref<1x1x64xf32, #tpu.memory_space<vmem>>, %arg2: memref<1x16x48xf32, #tpu.memory_space<vmem>>, %arg3: memref<1x64x16xf32, #tpu.memory_space<vmem>>, %arg4: memref<1x64x32xf32, #tpu.memory_space<vmem>>, %arg5: memref<64x32xbf16, #tpu.memory_space<vmem>>, %arg6: memref<1x32xf32, #tpu.memory_space<vmem>>, %arg7: memref<48x32xbf16, #tpu.memory_space<vmem>>, %arg8: memref<1x32xf32, #tpu.memory_space<vmem>>, %arg9: memref<16x32xbf16, #tpu.memory_space<vmem>>, %arg10: memref<1x32xf32, #tpu.memory_space<vmem>>, %arg11: memref<1x1x32xf32, #tpu.memory_space<vmem>>, %arg12: memref<1x1x32xf32, #tpu.memory_space<vmem>>, %arg13: memref<1x64x32xf32, #tpu.memory_space<vmem>>) attributes {dimension_semantics = [#tpu.dimension_semantics<parallel>], iteration_bounds = array<i64: 2>, scalar_prefetch = 0 : i64, scratch_operands = 0 : i64, tpu.core_type = #tpu.core_type<tc>, window_params = [{transform_indices = @transform_0, window_bounds = array<i64: 1, 1, 64>}, {transform_indices = @transform_1, window_bounds = array<i64: 1, 16, 48>}, {transform_indices = @transform_2, window_bounds = array<i64: 1, 64, 16>}, {transform_indices = @transform_3, window_bounds = array<i64: 1, 64, 32>}, {pipeline_mode = #tpu.pipeline_mode<synchronous>, transform_indices = @transform_4, window_bounds = array<i64: 64, 32>}, {pipeline_mode = #tpu.pipeline_mode<synchronous>, transform_indices = @transform_5, window_bounds = array<i64: 1, 32>}, {pipeline_mode = #tpu.pipeline_mode<synchronous>, transform_indices = @transform_6, window_bounds = array<i64: 48, 32>}, {pipeline_mode = #tpu.pipeline_mode<synchronous>, transform_indices = @transform_7, window_bounds = array<i64: 1, 32>}, {pipeline_mode = #tpu.pipeline_mode<synchronous>, transform_indices = @transform_8, window_bounds = array<i64: 16, 32>}, {pipeline_mode = #tpu.pipeline_mode<synchronous>, transform_indices = @transform_9, window_bounds = array<i64: 1, 32>}, {transform_indices = @transform_10, window_bounds = array<i64: 1, 1, 32>}, {transform_indices = @transform_11, window_bounds = array<i64: 1, 1, 32>}, {transform_indices = @transform_12, window_bounds = array<i64: 1, 64, 32>}]} {
    %c0 = arith.constant 0 : index
    %c0_0 = arith.constant 0 : index
    %0 = vector.load %arg5[%c0, %c0_0] : memref<64x32xbf16, #tpu.memory_space<vmem>>, vector<64x32xbf16>
    %c0_1 = arith.constant 0 : index
    %c0_2 = arith.constant 0 : index
    %1 = vector.load %arg6[%c0_1, %c0_2] : memref<1x32xf32, #tpu.memory_space<vmem>>, vector<1x32xf32>
    %c0_3 = arith.constant 0 : index
    %c0_4 = arith.constant 0 : index
    %2 = vector.load %arg7[%c0_3, %c0_4] : memref<48x32xbf16, #tpu.memory_space<vmem>>, vector<48x32xbf16>
    %c0_5 = arith.constant 0 : index
    %c0_6 = arith.constant 0 : index
    %3 = vector.load %arg8[%c0_5, %c0_6] : memref<1x32xf32, #tpu.memory_space<vmem>>, vector<1x32xf32>
    %c0_7 = arith.constant 0 : index
    %c0_8 = arith.constant 0 : index
    %4 = vector.load %arg9[%c0_7, %c0_8] : memref<16x32xbf16, #tpu.memory_space<vmem>>, vector<16x32xbf16>
    %c0_9 = arith.constant 0 : index
    %c0_10 = arith.constant 0 : index
    %5 = vector.load %arg10[%c0_9, %c0_10] : memref<1x32xf32, #tpu.memory_space<vmem>>, vector<1x32xf32>
    %c0_11 = arith.constant 0 : index
    %c0_12 = arith.constant 0 : index
    %c0_13 = arith.constant 0 : index
    %6 = vector.load %arg1[%c0_11, %c0_12, %c0_13] : memref<1x1x64xf32, #tpu.memory_space<vmem>>, vector<1x1x64xf32>
    %7 = vector.shape_cast %6 : vector<1x1x64xf32> to vector<1x64xf32>
    %8 = arith.truncf %7 : vector<1x64xf32> to vector<1x64xbf16>
    %cst = arith.constant dense<0.000000e+00> : vector<1x32xf32>
    %9 = tpu.matmul %8, %0, %cst {dimension_numbers = #tpu.dot_dimension_numbers<[1], [0], [0], [1], [0, 0, 1, 1], [], []>} : vector<1x64xbf16>, vector<64x32xbf16>, vector<1x32xf32> -> vector<1x32xf32>
    %10 = arith.addf %9, %1 : vector<1x32xf32>
    %c0_14 = arith.constant 0 : index
    %c0_15 = arith.constant 0 : index
    %c0_16 = arith.constant 0 : index
    %11 = vector.load %arg11[%c0_14, %c0_15, %c0_16] : memref<1x1x32xf32, #tpu.memory_space<vmem>>, vector<1x1x32xf32>
    %12 = vector.shape_cast %11 : vector<1x1x32xf32> to vector<1x32xf32>
    %13 = vector.shape_cast %10 : vector<1x32xf32> to vector<1x1x32xf32>
    tpu.vector_store %arg11[%c0_14, %c0_15, %c0_16], %13 {strides = array<i32>} : memref<1x1x32xf32, #tpu.memory_space<vmem>>, vector<1x1x32xf32>,
    %c0_17 = arith.constant 0 : index
    %c0_18 = arith.constant 0 : index
    %c0_19 = arith.constant 0 : index
    %14 = vector.load %arg2[%c0_17, %c0_18, %c0_19] : memref<1x16x48xf32, #tpu.memory_space<vmem>>, vector<1x16x48xf32>
    %15 = vector.shape_cast %14 : vector<1x16x48xf32> to vector<16x48xf32>
    %16 = arith.truncf %15 : vector<16x48xf32> to vector<16x48xbf16>
    %cst_20 = arith.constant dense<0.000000e+00> : vector<16x32xf32>
    %17 = tpu.matmul %16, %2, %cst_20 {dimension_numbers = #tpu.dot_dimension_numbers<[1], [0], [0], [1], [0, 0, 1, 1], [], []>} : vector<16x48xbf16>, vector<48x32xbf16>, vector<16x32xf32> -> vector<16x32xf32>
    %18 = vector.broadcast %3 : vector<1x32xf32> to vector<16x32xf32>
    %19 = arith.addf %17, %18 : vector<16x32xf32>
    %cst_21 = arith.constant dense<0.000000e+00> : vector<32xf32>
    %20 = vector.multi_reduction <add>, %19, %cst_21 [0] : vector<16x32xf32> to vector<32xf32>
    %21 = vector.shape_cast %20 : vector<32xf32> to vector<1x32xf32>
    %cst_22 = arith.constant 1.600000e+01 : f32
    %22 = vector.broadcast %cst_22 : f32 to vector<1x32xf32>
    %23 = arith.divf %21, %22 : vector<1x32xf32>
    %c0_23 = arith.constant 0 : index
    %c0_24 = arith.constant 0 : index
    %c0_25 = arith.constant 0 : index
    %24 = vector.load %arg12[%c0_23, %c0_24, %c0_25] : memref<1x1x32xf32, #tpu.memory_space<vmem>>, vector<1x1x32xf32>
    %25 = vector.shape_cast %24 : vector<1x1x32xf32> to vector<1x32xf32>
    %26 = vector.shape_cast %23 : vector<1x32xf32> to vector<1x1x32xf32>
    tpu.vector_store %arg12[%c0_23, %c0_24, %c0_25], %26 {strides = array<i32>} : memref<1x1x32xf32, #tpu.memory_space<vmem>>, vector<1x1x32xf32>,
    %c0_26 = arith.constant 0 : index
    %c0_27 = arith.constant 0 : index
    %c0_28 = arith.constant 0 : index
    %27 = vector.load %arg3[%c0_26, %c0_27, %c0_28] : memref<1x64x16xf32, #tpu.memory_space<vmem>>, vector<1x64x16xf32>
    %28 = vector.shape_cast %27 : vector<1x64x16xf32> to vector<64x16xf32>
    %29 = arith.truncf %28 : vector<64x16xf32> to vector<64x16xbf16>
    %cst_29 = arith.constant dense<0.000000e+00> : vector<64x32xf32>
    %30 = tpu.matmul %29, %4, %cst_29 {dimension_numbers = #tpu.dot_dimension_numbers<[1], [0], [0], [1], [0, 0, 1, 1], [], []>} : vector<64x16xbf16>, vector<16x32xbf16>, vector<64x32xf32> -> vector<64x32xf32>
    %31 = vector.broadcast %5 : vector<1x32xf32> to vector<64x32xf32>
    %32 = arith.addf %30, %31 : vector<64x32xf32>
    %c0_30 = arith.constant 0 : index
    %c0_31 = arith.constant 0 : index
    %c0_32 = arith.constant 0 : index
    %33 = vector.load %arg4[%c0_30, %c0_31, %c0_32] : memref<1x64x32xf32, #tpu.memory_space<vmem>>, vector<1x64x32xf32>
    %34 = vector.shape_cast %33 : vector<1x64x32xf32> to vector<64x32xf32>
    %35 = arith.addf %32, %34 : vector<64x32xf32>
    %c0_33 = arith.constant 0 : index
    %c0_34 = arith.constant 0 : index
    %c0_35 = arith.constant 0 : index
    %36 = vector.load %arg13[%c0_33, %c0_34, %c0_35] : memref<1x64x32xf32, #tpu.memory_space<vmem>>, vector<1x64x32xf32>
    %37 = vector.shape_cast %36 : vector<1x64x32xf32> to vector<64x32xf32>
    %38 = vector.shape_cast %35 : vector<64x32xf32> to vector<1x64x32xf32>
    tpu.vector_store %arg13[%c0_33, %c0_34, %c0_35], %38 {strides = array<i32>} : memref<1x64x32xf32, #tpu.memory_space<vmem>>, vector<1x64x32xf32>,
    return
  }
  func.func @transform_0(%arg0: i32) -> (i32, i32, i32) {
    %c0_i32 = arith.constant 0 : i32
    %c0_i32_0 = arith.constant 0 : i32
    %c0_i32_1 = arith.constant 0 : i32
    return %arg0, %c0_i32, %c0_i32_0 : i32, i32, i32
  }
  func.func @transform_1(%arg0: i32) -> (i32, i32, i32) {
    %c0_i32 = arith.constant 0 : i32
    %c0_i32_0 = arith.constant 0 : i32
    %c0_i32_1 = arith.constant 0 : i32
    return %arg0, %c0_i32, %c0_i32_0 : i32, i32, i32
  }
  func.func @transform_2(%arg0: i32) -> (i32, i32, i32) {
    %c0_i32 = arith.constant 0 : i32
    %c0_i32_0 = arith.constant 0 : i32
    %c0_i32_1 = arith.constant 0 : i32
    return %arg0, %c0_i32, %c0_i32_0 : i32, i32, i32
  }
  func.func @transform_3(%arg0: i32) -> (i32, i32, i32) {
    %c0_i32 = arith.constant 0 : i32
    %c0_i32_0 = arith.constant 0 : i32
    %c0_i32_1 = arith.constant 0 : i32
    return %arg0, %c0_i32, %c0_i32_0 : i32, i32, i32
  }
  func.func @transform_4(%arg0: i32) -> (i32, i32) {
    %c0_i32 = arith.constant 0 : i32
    %c0_i32_0 = arith.constant 0 : i32
    %c0_i32_1 = arith.constant 0 : i32
    return %c0_i32, %c0_i32_0 : i32, i32
  }
  func.func @transform_5(%arg0: i32) -> (i32, i32) {
    %c0_i32 = arith.constant 0 : i32
    %c0_i32_0 = arith.constant 0 : i32
    %c0_i32_1 = arith.constant 0 : i32
    return %c0_i32, %c0_i32_0 : i32, i32
  }
  func.func @transform_6(%arg0: i32) -> (i32, i32) {
    %c0_i32 = arith.constant 0 : i32
    %c0_i32_0 = arith.constant 0 : i32
    %c0_i32_1 = arith.constant 0 : i32
    return %c0_i32, %c0_i32_0 : i32, i32
  }
  func.func @transform_7(%arg0: i32) -> (i32, i32) {
    %c0_i32 = arith.constant 0 : i32
    %c0_i32_0 = arith.constant 0 : i32
    %c0_i32_1 = arith.constant 0 : i32
    return %c0_i32, %c0_i32_0 : i32, i32
  }
  func.func @transform_8(%arg0: i32) -> (i32, i32) {
    %c0_i32 = arith.constant 0 : i32
    %c0_i32_0 = arith.constant 0 : i32
    %c0_i32_1 = arith.constant 0 : i32
    return %c0_i32, %c0_i32_0 : i32, i32
  }
  func.func @transform_9(%arg0: i32) -> (i32, i32) {
    %c0_i32 = arith.constant 0 : i32
    %c0_i32_0 = arith.constant 0 : i32
    %c0_i32_1 = arith.constant 0 : i32
    return %c0_i32, %c0_i32_0 : i32, i32
  }
  func.func @transform_10(%arg0: i32) -> (i32, i32, i32) {
    %c0_i32 = arith.constant 0 : i32
    %c0_i32_0 = arith.constant 0 : i32
    %c0_i32_1 = arith.constant 0 : i32
    return %arg0, %c0_i32, %c0_i32_0 : i32, i32, i32
  }
  func.func @transform_11(%arg0: i32) -> (i32, i32, i32) {
    %c0_i32 = arith.constant 0 : i32
    %c0_i32_0 = arith.constant 0 : i32
    %c0_i32_1 = arith.constant 0 : i32
    return %arg0, %c0_i32, %c0_i32_0 : i32, i32, i32
  }
  func.func @transform_12(%arg0: i32) -> (i32, i32, i32) {
    %c0_i32 = arith.constant 0 : i32
    %c0_i32_0 = arith.constant 0 : i32
    %c0_i32_1 = arith.constant 0 : i32
    return %arg0, %c0_i32, %c0_i32_0 : i32, i32, i32
  }
}

module attributes {stable_mosaic.version = 11 : i64} {
  func.func @_encoder_kernel(%arg0: i32, %arg1: memref<1x64x48xf32, #tpu.memory_space<vmem>>, %arg2: memref<64x32xf32, #tpu.memory_space<vmem>>, %arg3: memref<48x32xbf16, #tpu.memory_space<vmem>>, %arg4: memref<1x32xf32, #tpu.memory_space<vmem>>, %arg5: memref<1x32xf32, #tpu.memory_space<vmem>>, %arg6: memref<1x32xf32, #tpu.memory_space<vmem>>, %arg7: memref<32x96xbf16, #tpu.memory_space<vmem>>, %arg8: memref<1x96xf32, #tpu.memory_space<vmem>>, %arg9: memref<32x32xbf16, #tpu.memory_space<vmem>>, %arg10: memref<1x32xf32, #tpu.memory_space<vmem>>, %arg11: memref<1x32xf32, #tpu.memory_space<vmem>>, %arg12: memref<1x32xf32, #tpu.memory_space<vmem>>, %arg13: memref<32x64xbf16, #tpu.memory_space<vmem>>, %arg14: memref<1x64xf32, #tpu.memory_space<vmem>>, %arg15: memref<64x32xbf16, #tpu.memory_space<vmem>>, %arg16: memref<1x32xf32, #tpu.memory_space<vmem>>, %arg17: memref<1x32xf32, #tpu.memory_space<vmem>>, %arg18: memref<1x32xf32, #tpu.memory_space<vmem>>, %arg19: memref<1x64x32xf32, #tpu.memory_space<vmem>>) attributes {dimension_semantics = [#tpu.dimension_semantics<parallel>], iteration_bounds = array<i64: 2>, scalar_prefetch = 0 : i64, scratch_operands = 0 : i64, tpu.core_type = #tpu.core_type<tc>, window_params = [{transform_indices = @transform_0, window_bounds = array<i64: 1, 64, 48>}, {pipeline_mode = #tpu.pipeline_mode<synchronous>, transform_indices = @transform_1, window_bounds = array<i64: 64, 32>}, {pipeline_mode = #tpu.pipeline_mode<synchronous>, transform_indices = @transform_2, window_bounds = array<i64: 48, 32>}, {pipeline_mode = #tpu.pipeline_mode<synchronous>, transform_indices = @transform_3, window_bounds = array<i64: 1, 32>}, {pipeline_mode = #tpu.pipeline_mode<synchronous>, transform_indices = @transform_4, window_bounds = array<i64: 1, 32>}, {pipeline_mode = #tpu.pipeline_mode<synchronous>, transform_indices = @transform_5, window_bounds = array<i64: 1, 32>}, {pipeline_mode = #tpu.pipeline_mode<synchronous>, transform_indices = @transform_6, window_bounds = array<i64: 32, 96>}, {pipeline_mode = #tpu.pipeline_mode<synchronous>, transform_indices = @transform_7, window_bounds = array<i64: 1, 96>}, {pipeline_mode = #tpu.pipeline_mode<synchronous>, transform_indices = @transform_8, window_bounds = array<i64: 32, 32>}, {pipeline_mode = #tpu.pipeline_mode<synchronous>, transform_indices = @transform_9, window_bounds = array<i64: 1, 32>}, {pipeline_mode = #tpu.pipeline_mode<synchronous>, transform_indices = @transform_10, window_bounds = array<i64: 1, 32>}, {pipeline_mode = #tpu.pipeline_mode<synchronous>, transform_indices = @transform_11, window_bounds = array<i64: 1, 32>}, {pipeline_mode = #tpu.pipeline_mode<synchronous>, transform_indices = @transform_12, window_bounds = array<i64: 32, 64>}, {pipeline_mode = #tpu.pipeline_mode<synchronous>, transform_indices = @transform_13, window_bounds = array<i64: 1, 64>}, {pipeline_mode = #tpu.pipeline_mode<synchronous>, transform_indices = @transform_14, window_bounds = array<i64: 64, 32>}, {pipeline_mode = #tpu.pipeline_mode<synchronous>, transform_indices = @transform_15, window_bounds = array<i64: 1, 32>}, {pipeline_mode = #tpu.pipeline_mode<synchronous>, transform_indices = @transform_16, window_bounds = array<i64: 1, 32>}, {pipeline_mode = #tpu.pipeline_mode<synchronous>, transform_indices = @transform_17, window_bounds = array<i64: 1, 32>}, {transform_indices = @transform_18, window_bounds = array<i64: 1, 64, 32>}]} {
    %c0 = arith.constant 0 : index
    %c0_0 = arith.constant 0 : index
    %0 = vector.load %arg2[%c0, %c0_0] : memref<64x32xf32, #tpu.memory_space<vmem>>, vector<64x32xf32>
    %c0_1 = arith.constant 0 : index
    %c0_2 = arith.constant 0 : index
    %1 = vector.load %arg3[%c0_1, %c0_2] : memref<48x32xbf16, #tpu.memory_space<vmem>>, vector<48x32xbf16>
    %c0_3 = arith.constant 0 : index
    %c0_4 = arith.constant 0 : index
    %2 = vector.load %arg4[%c0_3, %c0_4] : memref<1x32xf32, #tpu.memory_space<vmem>>, vector<1x32xf32>
    %c0_5 = arith.constant 0 : index
    %c0_6 = arith.constant 0 : index
    %3 = vector.load %arg5[%c0_5, %c0_6] : memref<1x32xf32, #tpu.memory_space<vmem>>, vector<1x32xf32>
    %c0_7 = arith.constant 0 : index
    %c0_8 = arith.constant 0 : index
    %4 = vector.load %arg6[%c0_7, %c0_8] : memref<1x32xf32, #tpu.memory_space<vmem>>, vector<1x32xf32>
    %c0_9 = arith.constant 0 : index
    %c0_10 = arith.constant 0 : index
    %5 = vector.load %arg7[%c0_9, %c0_10] : memref<32x96xbf16, #tpu.memory_space<vmem>>, vector<32x96xbf16>
    %c0_11 = arith.constant 0 : index
    %c0_12 = arith.constant 0 : index
    %6 = vector.load %arg8[%c0_11, %c0_12] : memref<1x96xf32, #tpu.memory_space<vmem>>, vector<1x96xf32>
    %c0_13 = arith.constant 0 : index
    %c0_14 = arith.constant 0 : index
    %7 = vector.load %arg9[%c0_13, %c0_14] : memref<32x32xbf16, #tpu.memory_space<vmem>>, vector<32x32xbf16>
    %c0_15 = arith.constant 0 : index
    %c0_16 = arith.constant 0 : index
    %8 = vector.load %arg10[%c0_15, %c0_16] : memref<1x32xf32, #tpu.memory_space<vmem>>, vector<1x32xf32>
    %c0_17 = arith.constant 0 : index
    %c0_18 = arith.constant 0 : index
    %9 = vector.load %arg11[%c0_17, %c0_18] : memref<1x32xf32, #tpu.memory_space<vmem>>, vector<1x32xf32>
    %c0_19 = arith.constant 0 : index
    %c0_20 = arith.constant 0 : index
    %10 = vector.load %arg12[%c0_19, %c0_20] : memref<1x32xf32, #tpu.memory_space<vmem>>, vector<1x32xf32>
    %c0_21 = arith.constant 0 : index
    %c0_22 = arith.constant 0 : index
    %11 = vector.load %arg13[%c0_21, %c0_22] : memref<32x64xbf16, #tpu.memory_space<vmem>>, vector<32x64xbf16>
    %c0_23 = arith.constant 0 : index
    %c0_24 = arith.constant 0 : index
    %12 = vector.load %arg14[%c0_23, %c0_24] : memref<1x64xf32, #tpu.memory_space<vmem>>, vector<1x64xf32>
    %c0_25 = arith.constant 0 : index
    %c0_26 = arith.constant 0 : index
    %13 = vector.load %arg15[%c0_25, %c0_26] : memref<64x32xbf16, #tpu.memory_space<vmem>>, vector<64x32xbf16>
    %c0_27 = arith.constant 0 : index
    %c0_28 = arith.constant 0 : index
    %14 = vector.load %arg16[%c0_27, %c0_28] : memref<1x32xf32, #tpu.memory_space<vmem>>, vector<1x32xf32>
    %c0_29 = arith.constant 0 : index
    %c0_30 = arith.constant 0 : index
    %15 = vector.load %arg17[%c0_29, %c0_30] : memref<1x32xf32, #tpu.memory_space<vmem>>, vector<1x32xf32>
    %c0_31 = arith.constant 0 : index
    %c0_32 = arith.constant 0 : index
    %16 = vector.load %arg18[%c0_31, %c0_32] : memref<1x32xf32, #tpu.memory_space<vmem>>, vector<1x32xf32>
    %c0_33 = arith.constant 0 : index
    %c0_34 = arith.constant 0 : index
    %c0_35 = arith.constant 0 : index
    %17 = vector.load %arg1[%c0_33, %c0_34, %c0_35] : memref<1x64x48xf32, #tpu.memory_space<vmem>>, vector<1x64x48xf32>
    %18 = vector.shape_cast %17 : vector<1x64x48xf32> to vector<64x48xf32>
    %19 = arith.truncf %18 : vector<64x48xf32> to vector<64x48xbf16>
    %cst = arith.constant dense<0.000000e+00> : vector<64x32xf32>
    %20 = tpu.matmul %19, %1, %cst {dimension_numbers = #tpu.dot_dimension_numbers<[1], [0], [0], [1], [0, 0, 1, 1], [], []>} : vector<64x48xbf16>, vector<48x32xbf16>, vector<64x32xf32> -> vector<64x32xf32>
    %21 = vector.broadcast %2 : vector<1x32xf32> to vector<64x32xf32>
    %22 = arith.addf %20, %21 : vector<64x32xf32>
    %23 = arith.addf %22, %0 : vector<64x32xf32>
    %cst_36 = arith.constant dense<0.000000e+00> : vector<64xf32>
    %24 = vector.multi_reduction <add>, %23, %cst_36 [1] : vector<64x32xf32> to vector<64xf32>
    %25 = vector.shape_cast %24 : vector<64xf32> to vector<64x1xf32>
    %cst_37 = arith.constant 3.200000e+01 : f32
    %26 = vector.broadcast %cst_37 : f32 to vector<64x1xf32>
    %27 = arith.divf %25, %26 : vector<64x1xf32>
    %28 = vector.broadcast %27 : vector<64x1xf32> to vector<64x32xf32>
    %29 = arith.subf %23, %28 : vector<64x32xf32>
    %30 = arith.mulf %29, %29 : vector<64x32xf32>
    %cst_38 = arith.constant dense<0.000000e+00> : vector<64xf32>
    %31 = vector.multi_reduction <add>, %30, %cst_38 [1] : vector<64x32xf32> to vector<64xf32>
    %32 = vector.shape_cast %31 : vector<64xf32> to vector<64x1xf32>
    %cst_39 = arith.constant 3.200000e+01 : f32
    %33 = vector.broadcast %cst_39 : f32 to vector<64x1xf32>
    %34 = arith.divf %32, %33 : vector<64x1xf32>
    %35 = vector.broadcast %27 : vector<64x1xf32> to vector<64x32xf32>
    %36 = arith.subf %23, %35 : vector<64x32xf32>
    %cst_40 = arith.constant 9.99999997E-7 : f32
    %37 = vector.broadcast %cst_40 : f32 to vector<64x1xf32>
    %38 = arith.addf %34, %37 : vector<64x1xf32>
    %39 = math.rsqrt %38 : vector<64x1xf32>
    %40 = vector.broadcast %39 : vector<64x1xf32> to vector<64x32xf32>
    %41 = arith.mulf %36, %40 : vector<64x32xf32>
    %42 = vector.broadcast %3 : vector<1x32xf32> to vector<64x32xf32>
    %43 = arith.mulf %41, %42 : vector<64x32xf32>
    %44 = vector.broadcast %4 : vector<1x32xf32> to vector<64x32xf32>
    %45 = arith.addf %43, %44 : vector<64x32xf32>
    %46 = arith.truncf %45 : vector<64x32xf32> to vector<64x32xbf16>
    %cst_41 = arith.constant dense<0.000000e+00> : vector<64x96xf32>
    %47 = tpu.matmul %46, %5, %cst_41 {dimension_numbers = #tpu.dot_dimension_numbers<[1], [0], [0], [1], [0, 0, 1, 1], [], []>} : vector<64x32xbf16>, vector<32x96xbf16>, vector<64x96xf32> -> vector<64x96xf32>
    %48 = vector.broadcast %6 : vector<1x96xf32> to vector<64x96xf32>
    %49 = arith.addf %47, %48 : vector<64x96xf32>
    %50 = vector.extract_strided_slice %49 {offsets = [0, 0], sizes = [64, 32], strides = [1, 1]} : vector<64x96xf32> to vector<64x32xf32>
    %51 = vector.extract_strided_slice %49 {offsets = [0, 32], sizes = [64, 32], strides = [1, 1]} : vector<64x96xf32> to vector<64x32xf32>
    %52 = vector.extract_strided_slice %49 {offsets = [0, 64], sizes = [64, 32], strides = [1, 1]} : vector<64x96xf32> to vector<64x32xf32>
    %53 = arith.truncf %50 : vector<64x32xf32> to vector<64x32xbf16>
    %54 = arith.truncf %51 : vector<64x32xf32> to vector<64x32xbf16>
    %cst_42 = arith.constant dense<0.000000e+00> : vector<64x64xf32>
    %55 = tpu.matmul %53, %54, %cst_42 {dimension_numbers = #tpu.dot_dimension_numbers<[1], [1], [0], [0], [0, 0, 1, 0], [], []>} : vector<64x32xbf16>, vector<64x32xbf16>, vector<64x64xf32> -> vector<64x64xf32>
    %cst_43 = arith.constant 0.176776692 : f32
    %56 = vector.broadcast %cst_43 : f32 to vector<64x64xf32>
    %57 = arith.mulf %55, %56 : vector<64x64xf32>
    %cst_44 = arith.constant dense<0xFF800000> : vector<64xf32>
    %58 = vector.multi_reduction <maximumf>, %57, %cst_44 [1] : vector<64x64xf32> to vector<64xf32>
    %59 = vector.shape_cast %58 : vector<64xf32> to vector<64x1xf32>
    %60 = vector.broadcast %59 : vector<64x1xf32> to vector<64x64xf32>
    %61 = arith.subf %57, %60 : vector<64x64xf32>
    %62 = math.exp %61 : vector<64x64xf32>
    %cst_45 = arith.constant dense<0.000000e+00> : vector<64xf32>
    %63 = vector.multi_reduction <add>, %62, %cst_45 [1] : vector<64x64xf32> to vector<64xf32>
    %64 = vector.shape_cast %63 : vector<64xf32> to vector<64x1xf32>
    %65 = tpu.reciprocal %64 {approx = true} : vector<64x1xf32> -> vector<64x1xf32>
    %66 = vector.broadcast %65 : vector<64x1xf32> to vector<64x64xf32>
    %67 = arith.mulf %62, %66 : vector<64x64xf32>
    %68 = arith.truncf %67 : vector<64x64xf32> to vector<64x64xbf16>
    %69 = arith.truncf %52 : vector<64x32xf32> to vector<64x32xbf16>
    %cst_46 = arith.constant dense<0.000000e+00> : vector<64x32xf32>
    %70 = tpu.matmul %68, %69, %cst_46 {dimension_numbers = #tpu.dot_dimension_numbers<[1], [0], [0], [1], [0, 0, 1, 1], [], []>} : vector<64x64xbf16>, vector<64x32xbf16>, vector<64x32xf32> -> vector<64x32xf32>
    %71 = arith.truncf %70 : vector<64x32xf32> to vector<64x32xbf16>
    %cst_47 = arith.constant dense<0.000000e+00> : vector<64x32xf32>
    %72 = tpu.matmul %71, %7, %cst_47 {dimension_numbers = #tpu.dot_dimension_numbers<[1], [0], [0], [1], [0, 0, 1, 1], [], []>} : vector<64x32xbf16>, vector<32x32xbf16>, vector<64x32xf32> -> vector<64x32xf32>
    %73 = vector.broadcast %8 : vector<1x32xf32> to vector<64x32xf32>
    %74 = arith.addf %72, %73 : vector<64x32xf32>
    %75 = arith.addf %23, %74 : vector<64x32xf32>
    %cst_48 = arith.constant dense<0.000000e+00> : vector<64xf32>
    %76 = vector.multi_reduction <add>, %75, %cst_48 [1] : vector<64x32xf32> to vector<64xf32>
    %77 = vector.shape_cast %76 : vector<64xf32> to vector<64x1xf32>
    %cst_49 = arith.constant 3.200000e+01 : f32
    %78 = vector.broadcast %cst_49 : f32 to vector<64x1xf32>
    %79 = arith.divf %77, %78 : vector<64x1xf32>
    %80 = vector.broadcast %79 : vector<64x1xf32> to vector<64x32xf32>
    %81 = arith.subf %75, %80 : vector<64x32xf32>
    %82 = arith.mulf %81, %81 : vector<64x32xf32>
    %cst_50 = arith.constant dense<0.000000e+00> : vector<64xf32>
    %83 = vector.multi_reduction <add>, %82, %cst_50 [1] : vector<64x32xf32> to vector<64xf32>
    %84 = vector.shape_cast %83 : vector<64xf32> to vector<64x1xf32>
    %cst_51 = arith.constant 3.200000e+01 : f32
    %85 = vector.broadcast %cst_51 : f32 to vector<64x1xf32>
    %86 = arith.divf %84, %85 : vector<64x1xf32>
    %87 = vector.broadcast %79 : vector<64x1xf32> to vector<64x32xf32>
    %88 = arith.subf %75, %87 : vector<64x32xf32>
    %cst_52 = arith.constant 9.99999997E-7 : f32
    %89 = vector.broadcast %cst_52 : f32 to vector<64x1xf32>
    %90 = arith.addf %86, %89 : vector<64x1xf32>
    %91 = math.rsqrt %90 : vector<64x1xf32>
    %92 = vector.broadcast %91 : vector<64x1xf32> to vector<64x32xf32>
    %93 = arith.mulf %88, %92 : vector<64x32xf32>
    %94 = vector.broadcast %9 : vector<1x32xf32> to vector<64x32xf32>
    %95 = arith.mulf %93, %94 : vector<64x32xf32>
    %96 = vector.broadcast %10 : vector<1x32xf32> to vector<64x32xf32>
    %97 = arith.addf %95, %96 : vector<64x32xf32>
    %98 = arith.truncf %97 : vector<64x32xf32> to vector<64x32xbf16>
    %cst_53 = arith.constant dense<0.000000e+00> : vector<64x64xf32>
    %99 = tpu.matmul %98, %11, %cst_53 {dimension_numbers = #tpu.dot_dimension_numbers<[1], [0], [0], [1], [0, 0, 1, 1], [], []>} : vector<64x32xbf16>, vector<32x64xbf16>, vector<64x64xf32> -> vector<64x64xf32>
    %100 = vector.broadcast %12 : vector<1x64xf32> to vector<64x64xf32>
    %101 = arith.addf %99, %100 : vector<64x64xf32>
    %102 = arith.mulf %101, %101 : vector<64x64xf32>
    %103 = arith.mulf %101, %102 : vector<64x64xf32>
    %cst_54 = arith.constant 4.471500e-02 : f32
    %104 = vector.broadcast %cst_54 : f32 to vector<64x64xf32>
    %105 = arith.mulf %104, %103 : vector<64x64xf32>
    %106 = arith.addf %101, %105 : vector<64x64xf32>
    %cst_55 = arith.constant 0.797884583 : f32
    %107 = vector.broadcast %cst_55 : f32 to vector<64x64xf32>
    %108 = arith.mulf %107, %106 : vector<64x64xf32>
    %109 = math.tanh %108 : vector<64x64xf32>
    %cst_56 = arith.constant 1.000000e+00 : f32
    %110 = vector.broadcast %cst_56 : f32 to vector<64x64xf32>
    %111 = arith.addf %110, %109 : vector<64x64xf32>
    %cst_57 = arith.constant 5.000000e-01 : f32
    %112 = vector.broadcast %cst_57 : f32 to vector<64x64xf32>
    %113 = arith.mulf %112, %111 : vector<64x64xf32>
    %114 = arith.mulf %101, %113 : vector<64x64xf32>
    %115 = arith.truncf %114 : vector<64x64xf32> to vector<64x64xbf16>
    %cst_58 = arith.constant dense<0.000000e+00> : vector<64x32xf32>
    %116 = tpu.matmul %115, %13, %cst_58 {dimension_numbers = #tpu.dot_dimension_numbers<[1], [0], [0], [1], [0, 0, 1, 1], [], []>} : vector<64x64xbf16>, vector<64x32xbf16>, vector<64x32xf32> -> vector<64x32xf32>
    %117 = vector.broadcast %14 : vector<1x32xf32> to vector<64x32xf32>
    %118 = arith.addf %116, %117 : vector<64x32xf32>
    %119 = arith.addf %75, %118 : vector<64x32xf32>
    %cst_59 = arith.constant dense<0.000000e+00> : vector<64xf32>
    %120 = vector.multi_reduction <add>, %119, %cst_59 [1] : vector<64x32xf32> to vector<64xf32>
    %121 = vector.shape_cast %120 : vector<64xf32> to vector<64x1xf32>
    %cst_60 = arith.constant 3.200000e+01 : f32
    %122 = vector.broadcast %cst_60 : f32 to vector<64x1xf32>
    %123 = arith.divf %121, %122 : vector<64x1xf32>
    %124 = vector.broadcast %123 : vector<64x1xf32> to vector<64x32xf32>
    %125 = arith.subf %119, %124 : vector<64x32xf32>
    %126 = arith.mulf %125, %125 : vector<64x32xf32>
    %cst_61 = arith.constant dense<0.000000e+00> : vector<64xf32>
    %127 = vector.multi_reduction <add>, %126, %cst_61 [1] : vector<64x32xf32> to vector<64xf32>
    %128 = vector.shape_cast %127 : vector<64xf32> to vector<64x1xf32>
    %cst_62 = arith.constant 3.200000e+01 : f32
    %129 = vector.broadcast %cst_62 : f32 to vector<64x1xf32>
    %130 = arith.divf %128, %129 : vector<64x1xf32>
    %131 = vector.broadcast %123 : vector<64x1xf32> to vector<64x32xf32>
    %132 = arith.subf %119, %131 : vector<64x32xf32>
    %cst_63 = arith.constant 9.99999997E-7 : f32
    %133 = vector.broadcast %cst_63 : f32 to vector<64x1xf32>
    %134 = arith.addf %130, %133 : vector<64x1xf32>
    %135 = math.rsqrt %134 : vector<64x1xf32>
    %136 = vector.broadcast %135 : vector<64x1xf32> to vector<64x32xf32>
    %137 = arith.mulf %132, %136 : vector<64x32xf32>
    %138 = vector.broadcast %15 : vector<1x32xf32> to vector<64x32xf32>
    %139 = arith.mulf %137, %138 : vector<64x32xf32>
    %140 = vector.broadcast %16 : vector<1x32xf32> to vector<64x32xf32>
    %141 = arith.addf %139, %140 : vector<64x32xf32>
    %c0_64 = arith.constant 0 : index
    %c0_65 = arith.constant 0 : index
    %c0_66 = arith.constant 0 : index
    %142 = vector.load %arg19[%c0_64, %c0_65, %c0_66] : memref<1x64x32xf32, #tpu.memory_space<vmem>>, vector<1x64x32xf32>
    %143 = vector.shape_cast %142 : vector<1x64x32xf32> to vector<64x32xf32>
    %144 = vector.shape_cast %141 : vector<64x32xf32> to vector<1x64x32xf32>
    tpu.vector_store %arg19[%c0_64, %c0_65, %c0_66], %144 {strides = array<i32>} : memref<1x64x32xf32, #tpu.memory_space<vmem>>, vector<1x64x32xf32>,
    return
  }
  func.func @transform_0(%arg0: i32) -> (i32, i32, i32) {
    %c0_i32 = arith.constant 0 : i32
    %c0_i32_0 = arith.constant 0 : i32
    %c0_i32_1 = arith.constant 0 : i32
    return %arg0, %c0_i32, %c0_i32_0 : i32, i32, i32
  }
  func.func @transform_1(%arg0: i32) -> (i32, i32) {
    %c0_i32 = arith.constant 0 : i32
    %c0_i32_0 = arith.constant 0 : i32
    %c0_i32_1 = arith.constant 0 : i32
    return %c0_i32, %c0_i32_0 : i32, i32
  }
  func.func @transform_2(%arg0: i32) -> (i32, i32) {
    %c0_i32 = arith.constant 0 : i32
    %c0_i32_0 = arith.constant 0 : i32
    %c0_i32_1 = arith.constant 0 : i32
    return %c0_i32, %c0_i32_0 : i32, i32
  }
  func.func @transform_3(%arg0: i32) -> (i32, i32) {
    %c0_i32 = arith.constant 0 : i32
    %c0_i32_0 = arith.constant 0 : i32
    %c0_i32_1 = arith.constant 0 : i32
    return %c0_i32, %c0_i32_0 : i32, i32
  }
  func.func @transform_4(%arg0: i32) -> (i32, i32) {
    %c0_i32 = arith.constant 0 : i32
    %c0_i32_0 = arith.constant 0 : i32
    %c0_i32_1 = arith.constant 0 : i32
    return %c0_i32, %c0_i32_0 : i32, i32
  }
  func.func @transform_5(%arg0: i32) -> (i32, i32) {
    %c0_i32 = arith.constant 0 : i32
    %c0_i32_0 = arith.constant 0 : i32
    %c0_i32_1 = arith.constant 0 : i32
    return %c0_i32, %c0_i32_0 : i32, i32
  }
  func.func @transform_6(%arg0: i32) -> (i32, i32) {
    %c0_i32 = arith.constant 0 : i32
    %c0_i32_0 = arith.constant 0 : i32
    %c0_i32_1 = arith.constant 0 : i32
    return %c0_i32, %c0_i32_0 : i32, i32
  }
  func.func @transform_7(%arg0: i32) -> (i32, i32) {
    %c0_i32 = arith.constant 0 : i32
    %c0_i32_0 = arith.constant 0 : i32
    %c0_i32_1 = arith.constant 0 : i32
    return %c0_i32, %c0_i32_0 : i32, i32
  }
  func.func @transform_8(%arg0: i32) -> (i32, i32) {
    %c0_i32 = arith.constant 0 : i32
    %c0_i32_0 = arith.constant 0 : i32
    %c0_i32_1 = arith.constant 0 : i32
    return %c0_i32, %c0_i32_0 : i32, i32
  }
  func.func @transform_9(%arg0: i32) -> (i32, i32) {
    %c0_i32 = arith.constant 0 : i32
    %c0_i32_0 = arith.constant 0 : i32
    %c0_i32_1 = arith.constant 0 : i32
    return %c0_i32, %c0_i32_0 : i32, i32
  }
  func.func @transform_10(%arg0: i32) -> (i32, i32) {
    %c0_i32 = arith.constant 0 : i32
    %c0_i32_0 = arith.constant 0 : i32
    %c0_i32_1 = arith.constant 0 : i32
    return %c0_i32, %c0_i32_0 : i32, i32
  }
  func.func @transform_11(%arg0: i32) -> (i32, i32) {
    %c0_i32 = arith.constant 0 : i32
    %c0_i32_0 = arith.constant 0 : i32
    %c0_i32_1 = arith.constant 0 : i32
    return %c0_i32, %c0_i32_0 : i32, i32
  }
  func.func @transform_12(%arg0: i32) -> (i32, i32) {
    %c0_i32 = arith.constant 0 : i32
    %c0_i32_0 = arith.constant 0 : i32
    %c0_i32_1 = arith.constant 0 : i32
    return %c0_i32, %c0_i32_0 : i32, i32
  }
  func.func @transform_13(%arg0: i32) -> (i32, i32) {
    %c0_i32 = arith.constant 0 : i32
    %c0_i32_0 = arith.constant 0 : i32
    %c0_i32_1 = arith.constant 0 : i32
    return %c0_i32, %c0_i32_0 : i32, i32
  }
  func.func @transform_14(%arg0: i32) -> (i32, i32) {
    %c0_i32 = arith.constant 0 : i32
    %c0_i32_0 = arith.constant 0 : i32
    %c0_i32_1 = arith.constant 0 : i32
    return %c0_i32, %c0_i32_0 : i32, i32
  }
  func.func @transform_15(%arg0: i32) -> (i32, i32) {
    %c0_i32 = arith.constant 0 : i32
    %c0_i32_0 = arith.constant 0 : i32
    %c0_i32_1 = arith.constant 0 : i32
    return %c0_i32, %c0_i32_0 : i32, i32
  }
  func.func @transform_16(%arg0: i32) -> (i32, i32) {
    %c0_i32 = arith.constant 0 : i32
    %c0_i32_0 = arith.constant 0 : i32
    %c0_i32_1 = arith.constant 0 : i32
    return %c0_i32, %c0_i32_0 : i32, i32
  }
  func.func @transform_17(%arg0: i32) -> (i32, i32) {
    %c0_i32 = arith.constant 0 : i32
    %c0_i32_0 = arith.constant 0 : i32
    %c0_i32_1 = arith.constant 0 : i32
    return %c0_i32, %c0_i32_0 : i32, i32
  }
  func.func @transform_18(%arg0: i32) -> (i32, i32, i32) {
    %c0_i32 = arith.constant 0 : i32
    %c0_i32_0 = arith.constant 0 : i32
    %c0_i32_1 = arith.constant 0 : i32
    return %arg0, %c0_i32, %c0_i32_0 : i32, i32, i32
  }
}

module attributes {stable_mosaic.version = 11 : i64} {
  func.func @_decoder_kernel(%arg0: i32, %arg1: memref<1x11x32xf32, #tpu.memory_space<vmem>>, %arg2: memref<1x64x32xf32, #tpu.memory_space<vmem>>, %arg3: memref<1x64x32xf32, #tpu.memory_space<vmem>>, %arg4: memref<64x32xf32, #tpu.memory_space<vmem>>, %arg5: memref<32x96xbf16, #tpu.memory_space<vmem>>, %arg6: memref<1x96xf32, #tpu.memory_space<vmem>>, %arg7: memref<32x32xbf16, #tpu.memory_space<vmem>>, %arg8: memref<1x32xf32, #tpu.memory_space<vmem>>, %arg9: memref<1x32xf32, #tpu.memory_space<vmem>>, %arg10: memref<1x32xf32, #tpu.memory_space<vmem>>, %arg11: memref<32x32xbf16, #tpu.memory_space<vmem>>, %arg12: memref<1x32xf32, #tpu.memory_space<vmem>>, %arg13: memref<32x32xbf16, #tpu.memory_space<vmem>>, %arg14: memref<1x32xf32, #tpu.memory_space<vmem>>, %arg15: memref<32x32xbf16, #tpu.memory_space<vmem>>, %arg16: memref<1x32xf32, #tpu.memory_space<vmem>>, %arg17: memref<32x32xbf16, #tpu.memory_space<vmem>>, %arg18: memref<1x32xf32, #tpu.memory_space<vmem>>, %arg19: memref<1x32xf32, #tpu.memory_space<vmem>>, %arg20: memref<1x32xf32, #tpu.memory_space<vmem>>, %arg21: memref<32x64xbf16, #tpu.memory_space<vmem>>, %arg22: memref<1x64xf32, #tpu.memory_space<vmem>>, %arg23: memref<64x32xbf16, #tpu.memory_space<vmem>>, %arg24: memref<1x32xf32, #tpu.memory_space<vmem>>, %arg25: memref<1x32xf32, #tpu.memory_space<vmem>>, %arg26: memref<1x32xf32, #tpu.memory_space<vmem>>, %arg27: memref<32x32xbf16, #tpu.memory_space<vmem>>, %arg28: memref<1x32xf32, #tpu.memory_space<vmem>>, %arg29: memref<32x64xbf16, #tpu.memory_space<vmem>>, %arg30: memref<1x64xf32, #tpu.memory_space<vmem>>, %arg31: memref<32x32xbf16, #tpu.memory_space<vmem>>, %arg32: memref<1x32xf32, #tpu.memory_space<vmem>>, %arg33: memref<1x32xf32, #tpu.memory_space<vmem>>, %arg34: memref<1x32xf32, #tpu.memory_space<vmem>>, %arg35: memref<32x32xbf16, #tpu.memory_space<vmem>>, %arg36: memref<1x32xf32, #tpu.memory_space<vmem>>, %arg37: memref<32x4xbf16, #tpu.memory_space<vmem>>, %arg38: memref<32x160xbf16, #tpu.memory_space<vmem>>, %arg39: memref<1x160xf32, #tpu.memory_space<vmem>>, %arg40: memref<96x13xbf16, #tpu.memory_space<vmem>>, %arg41: memref<1x13xf32, #tpu.memory_space<vmem>>, %arg42: memref<32x64xbf16, #tpu.memory_space<vmem>>, %arg43: memref<1x64xf32, #tpu.memory_space<vmem>>, %arg44: memref<1x64x4xf32, #tpu.memory_space<vmem>>, %arg45: memref<1x1x1xf32, #tpu.memory_space<vmem>>, %arg46: memref<1x1x4xf32, #tpu.memory_space<vmem>>, %arg47: memref<1x1x64xf32, #tpu.memory_space<vmem>>, %arg48: memref<1x1x64xf32, #tpu.memory_space<vmem>>) attributes {dimension_semantics = [#tpu.dimension_semantics<parallel>], iteration_bounds = array<i64: 2>, scalar_prefetch = 0 : i64, scratch_operands = 0 : i64, tpu.core_type = #tpu.core_type<tc>, window_params = [{transform_indices = @transform_0, window_bounds = array<i64: 1, 11, 32>}, {transform_indices = @transform_1, window_bounds = array<i64: 1, 64, 32>}, {transform_indices = @transform_2, window_bounds = array<i64: 1, 64, 32>}, {pipeline_mode = #tpu.pipeline_mode<synchronous>, transform_indices = @transform_3, window_bounds = array<i64: 64, 32>}, {pipeline_mode = #tpu.pipeline_mode<synchronous>, transform_indices = @transform_4, window_bounds = array<i64: 32, 96>}, {pipeline_mode = #tpu.pipeline_mode<synchronous>, transform_indices = @transform_5, window_bounds = array<i64: 1, 96>}, {pipeline_mode = #tpu.pipeline_mode<synchronous>, transform_indices = @transform_6, window_bounds = array<i64: 32, 32>}, {pipeline_mode = #tpu.pipeline_mode<synchronous>, transform_indices = @transform_7, window_bounds = array<i64: 1, 32>}, {pipeline_mode = #tpu.pipeline_mode<synchronous>, transform_indices = @transform_8, window_bounds = array<i64: 1, 32>}, {pipeline_mode = #tpu.pipeline_mode<synchronous>, transform_indices = @transform_9, window_bounds = array<i64: 1, 32>}, {pipeline_mode = #tpu.pipeline_mode<synchronous>, transform_indices = @transform_10, window_bounds = array<i64: 32, 32>}, {pipeline_mode = #tpu.pipeline_mode<synchronous>, transform_indices = @transform_11, window_bounds = array<i64: 1, 32>}, {pipeline_mode = #tpu.pipeline_mode<synchronous>, transform_indices = @transform_12, window_bounds = array<i64: 32, 32>}, {pipeline_mode = #tpu.pipeline_mode<synchronous>, transform_indices = @transform_13, window_bounds = array<i64: 1, 32>}, {pipeline_mode = #tpu.pipeline_mode<synchronous>, transform_indices = @transform_14, window_bounds = array<i64: 32, 32>}, {pipeline_mode = #tpu.pipeline_mode<synchronous>, transform_indices = @transform_15, window_bounds = array<i64: 1, 32>}, {pipeline_mode = #tpu.pipeline_mode<synchronous>, transform_indices = @transform_16, window_bounds = array<i64: 32, 32>}, {pipeline_mode = #tpu.pipeline_mode<synchronous>, transform_indices = @transform_17, window_bounds = array<i64: 1, 32>}, {pipeline_mode = #tpu.pipeline_mode<synchronous>, transform_indices = @transform_18, window_bounds = array<i64: 1, 32>}, {pipeline_mode = #tpu.pipeline_mode<synchronous>, transform_indices = @transform_19, window_bounds = array<i64: 1, 32>}, {pipeline_mode = #tpu.pipeline_mode<synchronous>, transform_indices = @transform_20, window_bounds = array<i64: 32, 64>}, {pipeline_mode = #tpu.pipeline_mode<synchronous>, transform_indices = @transform_21, window_bounds = array<i64: 1, 64>}, {pipeline_mode = #tpu.pipeline_mode<synchronous>, transform_indices = @transform_22, window_bounds = array<i64: 64, 32>}, {pipeline_mode = #tpu.pipeline_mode<synchronous>, transform_indices = @transform_23, window_bounds = array<i64: 1, 32>}, {pipeline_mode = #tpu.pipeline_mode<synchronous>, transform_indices = @transform_24, window_bounds = array<i64: 1, 32>}, {pipeline_mode = #tpu.pipeline_mode<synchronous>, transform_indices = @transform_25, window_bounds = array<i64: 1, 32>}, {pipeline_mode = #tpu.pipeline_mode<synchronous>, transform_indices = @transform_26, window_bounds = array<i64: 32, 32>}, {pipeline_mode = #tpu.pipeline_mode<synchronous>, transform_indices = @transform_27, window_bounds = array<i64: 1, 32>}, {pipeline_mode = #tpu.pipeline_mode<synchronous>, transform_indices = @transform_28, window_bounds = array<i64: 32, 64>}, {pipeline_mode = #tpu.pipeline_mode<synchronous>, transform_indices = @transform_29, window_bounds = array<i64: 1, 64>}, {pipeline_mode = #tpu.pipeline_mode<synchronous>, transform_indices = @transform_30, window_bounds = array<i64: 32, 32>}, {pipeline_mode = #tpu.pipeline_mode<synchronous>, transform_indices = @transform_31, window_bounds = array<i64: 1, 32>}, {pipeline_mode = #tpu.pipeline_mode<synchronous>, transform_indices = @transform_32, window_bounds = array<i64: 1, 32>}, {pipeline_mode = #tpu.pipeline_mode<synchronous>, transform_indices = @transform_33, window_bounds = array<i64: 1, 32>}, {pipeline_mode = #tpu.pipeline_mode<synchronous>, transform_indices = @transform_34, window_bounds = array<i64: 32, 32>}, {pipeline_mode = #tpu.pipeline_mode<synchronous>, transform_indices = @transform_35, window_bounds = array<i64: 1, 32>}, {pipeline_mode = #tpu.pipeline_mode<synchronous>, transform_indices = @transform_36, window_bounds = array<i64: 32, 4>}, {pipeline_mode = #tpu.pipeline_mode<synchronous>, transform_indices = @transform_37, window_bounds = array<i64: 32, 160>}, {pipeline_mode = #tpu.pipeline_mode<synchronous>, transform_indices = @transform_38, window_bounds = array<i64: 1, 160>}, {pipeline_mode = #tpu.pipeline_mode<synchronous>, transform_indices = @transform_39, window_bounds = array<i64: 96, 13>}, {pipeline_mode = #tpu.pipeline_mode<synchronous>, transform_indices = @transform_40, window_bounds = array<i64: 1, 13>}, {pipeline_mode = #tpu.pipeline_mode<synchronous>, transform_indices = @transform_41, window_bounds = array<i64: 32, 64>}, {pipeline_mode = #tpu.pipeline_mode<synchronous>, transform_indices = @transform_42, window_bounds = array<i64: 1, 64>}, {transform_indices = @transform_43, window_bounds = array<i64: 1, 64, 4>}, {transform_indices = @transform_44, window_bounds = array<i64: 1, 1, 1>}, {transform_indices = @transform_45, window_bounds = array<i64: 1, 1, 4>}, {transform_indices = @transform_46, window_bounds = array<i64: 1, 1, 64>}, {transform_indices = @transform_47, window_bounds = array<i64: 1, 1, 64>}]} {
    %c0 = arith.constant 0 : index
    %c0_0 = arith.constant 0 : index
    %0 = vector.load %arg4[%c0, %c0_0] : memref<64x32xf32, #tpu.memory_space<vmem>>, vector<64x32xf32>
    %c0_1 = arith.constant 0 : index
    %c0_2 = arith.constant 0 : index
    %1 = vector.load %arg5[%c0_1, %c0_2] : memref<32x96xbf16, #tpu.memory_space<vmem>>, vector<32x96xbf16>
    %c0_3 = arith.constant 0 : index
    %c0_4 = arith.constant 0 : index
    %2 = vector.load %arg6[%c0_3, %c0_4] : memref<1x96xf32, #tpu.memory_space<vmem>>, vector<1x96xf32>
    %c0_5 = arith.constant 0 : index
    %c0_6 = arith.constant 0 : index
    %3 = vector.load %arg7[%c0_5, %c0_6] : memref<32x32xbf16, #tpu.memory_space<vmem>>, vector<32x32xbf16>
    %c0_7 = arith.constant 0 : index
    %c0_8 = arith.constant 0 : index
    %4 = vector.load %arg8[%c0_7, %c0_8] : memref<1x32xf32, #tpu.memory_space<vmem>>, vector<1x32xf32>
    %c0_9 = arith.constant 0 : index
    %c0_10 = arith.constant 0 : index
    %5 = vector.load %arg9[%c0_9, %c0_10] : memref<1x32xf32, #tpu.memory_space<vmem>>, vector<1x32xf32>
    %c0_11 = arith.constant 0 : index
    %c0_12 = arith.constant 0 : index
    %6 = vector.load %arg10[%c0_11, %c0_12] : memref<1x32xf32, #tpu.memory_space<vmem>>, vector<1x32xf32>
    %c0_13 = arith.constant 0 : index
    %c0_14 = arith.constant 0 : index
    %7 = vector.load %arg11[%c0_13, %c0_14] : memref<32x32xbf16, #tpu.memory_space<vmem>>, vector<32x32xbf16>
    %c0_15 = arith.constant 0 : index
    %c0_16 = arith.constant 0 : index
    %8 = vector.load %arg12[%c0_15, %c0_16] : memref<1x32xf32, #tpu.memory_space<vmem>>, vector<1x32xf32>
    %c0_17 = arith.constant 0 : index
    %c0_18 = arith.constant 0 : index
    %9 = vector.load %arg13[%c0_17, %c0_18] : memref<32x32xbf16, #tpu.memory_space<vmem>>, vector<32x32xbf16>
    %c0_19 = arith.constant 0 : index
    %c0_20 = arith.constant 0 : index
    %10 = vector.load %arg14[%c0_19, %c0_20] : memref<1x32xf32, #tpu.memory_space<vmem>>, vector<1x32xf32>
    %c0_21 = arith.constant 0 : index
    %c0_22 = arith.constant 0 : index
    %11 = vector.load %arg15[%c0_21, %c0_22] : memref<32x32xbf16, #tpu.memory_space<vmem>>, vector<32x32xbf16>
    %c0_23 = arith.constant 0 : index
    %c0_24 = arith.constant 0 : index
    %12 = vector.load %arg16[%c0_23, %c0_24] : memref<1x32xf32, #tpu.memory_space<vmem>>, vector<1x32xf32>
    %c0_25 = arith.constant 0 : index
    %c0_26 = arith.constant 0 : index
    %13 = vector.load %arg17[%c0_25, %c0_26] : memref<32x32xbf16, #tpu.memory_space<vmem>>, vector<32x32xbf16>
    %c0_27 = arith.constant 0 : index
    %c0_28 = arith.constant 0 : index
    %14 = vector.load %arg18[%c0_27, %c0_28] : memref<1x32xf32, #tpu.memory_space<vmem>>, vector<1x32xf32>
    %c0_29 = arith.constant 0 : index
    %c0_30 = arith.constant 0 : index
    %15 = vector.load %arg19[%c0_29, %c0_30] : memref<1x32xf32, #tpu.memory_space<vmem>>, vector<1x32xf32>
    %c0_31 = arith.constant 0 : index
    %c0_32 = arith.constant 0 : index
    %16 = vector.load %arg20[%c0_31, %c0_32] : memref<1x32xf32, #tpu.memory_space<vmem>>, vector<1x32xf32>
    %c0_33 = arith.constant 0 : index
    %c0_34 = arith.constant 0 : index
    %17 = vector.load %arg21[%c0_33, %c0_34] : memref<32x64xbf16, #tpu.memory_space<vmem>>, vector<32x64xbf16>
    %c0_35 = arith.constant 0 : index
    %c0_36 = arith.constant 0 : index
    %18 = vector.load %arg22[%c0_35, %c0_36] : memref<1x64xf32, #tpu.memory_space<vmem>>, vector<1x64xf32>
    %c0_37 = arith.constant 0 : index
    %c0_38 = arith.constant 0 : index
    %19 = vector.load %arg23[%c0_37, %c0_38] : memref<64x32xbf16, #tpu.memory_space<vmem>>, vector<64x32xbf16>
    %c0_39 = arith.constant 0 : index
    %c0_40 = arith.constant 0 : index
    %20 = vector.load %arg24[%c0_39, %c0_40] : memref<1x32xf32, #tpu.memory_space<vmem>>, vector<1x32xf32>
    %c0_41 = arith.constant 0 : index
    %c0_42 = arith.constant 0 : index
    %21 = vector.load %arg25[%c0_41, %c0_42] : memref<1x32xf32, #tpu.memory_space<vmem>>, vector<1x32xf32>
    %c0_43 = arith.constant 0 : index
    %c0_44 = arith.constant 0 : index
    %22 = vector.load %arg26[%c0_43, %c0_44] : memref<1x32xf32, #tpu.memory_space<vmem>>, vector<1x32xf32>
    %c0_45 = arith.constant 0 : index
    %c0_46 = arith.constant 0 : index
    %23 = vector.load %arg27[%c0_45, %c0_46] : memref<32x32xbf16, #tpu.memory_space<vmem>>, vector<32x32xbf16>
    %c0_47 = arith.constant 0 : index
    %c0_48 = arith.constant 0 : index
    %24 = vector.load %arg28[%c0_47, %c0_48] : memref<1x32xf32, #tpu.memory_space<vmem>>, vector<1x32xf32>
    %c0_49 = arith.constant 0 : index
    %c0_50 = arith.constant 0 : index
    %25 = vector.load %arg29[%c0_49, %c0_50] : memref<32x64xbf16, #tpu.memory_space<vmem>>, vector<32x64xbf16>
    %c0_51 = arith.constant 0 : index
    %c0_52 = arith.constant 0 : index
    %26 = vector.load %arg30[%c0_51, %c0_52] : memref<1x64xf32, #tpu.memory_space<vmem>>, vector<1x64xf32>
    %c0_53 = arith.constant 0 : index
    %c0_54 = arith.constant 0 : index
    %27 = vector.load %arg31[%c0_53, %c0_54] : memref<32x32xbf16, #tpu.memory_space<vmem>>, vector<32x32xbf16>
    %c0_55 = arith.constant 0 : index
    %c0_56 = arith.constant 0 : index
    %28 = vector.load %arg32[%c0_55, %c0_56] : memref<1x32xf32, #tpu.memory_space<vmem>>, vector<1x32xf32>
    %c0_57 = arith.constant 0 : index
    %c0_58 = arith.constant 0 : index
    %29 = vector.load %arg33[%c0_57, %c0_58] : memref<1x32xf32, #tpu.memory_space<vmem>>, vector<1x32xf32>
    %c0_59 = arith.constant 0 : index
    %c0_60 = arith.constant 0 : index
    %30 = vector.load %arg34[%c0_59, %c0_60] : memref<1x32xf32, #tpu.memory_space<vmem>>, vector<1x32xf32>
    %c0_61 = arith.constant 0 : index
    %c0_62 = arith.constant 0 : index
    %31 = vector.load %arg35[%c0_61, %c0_62] : memref<32x32xbf16, #tpu.memory_space<vmem>>, vector<32x32xbf16>
    %c0_63 = arith.constant 0 : index
    %c0_64 = arith.constant 0 : index
    %32 = vector.load %arg36[%c0_63, %c0_64] : memref<1x32xf32, #tpu.memory_space<vmem>>, vector<1x32xf32>
    %c0_65 = arith.constant 0 : index
    %c0_66 = arith.constant 0 : index
    %33 = vector.load %arg37[%c0_65, %c0_66] : memref<32x4xbf16, #tpu.memory_space<vmem>>, vector<32x4xbf16>
    %c0_67 = arith.constant 0 : index
    %c0_68 = arith.constant 0 : index
    %34 = vector.load %arg38[%c0_67, %c0_68] : memref<32x160xbf16, #tpu.memory_space<vmem>>, vector<32x160xbf16>
    %c0_69 = arith.constant 0 : index
    %c0_70 = arith.constant 0 : index
    %35 = vector.load %arg39[%c0_69, %c0_70] : memref<1x160xf32, #tpu.memory_space<vmem>>, vector<1x160xf32>
    %c0_71 = arith.constant 0 : index
    %c0_72 = arith.constant 0 : index
    %36 = vector.load %arg40[%c0_71, %c0_72] : memref<96x13xbf16, #tpu.memory_space<vmem>>, vector<96x13xbf16>
    %c0_73 = arith.constant 0 : index
    %c0_74 = arith.constant 0 : index
    %37 = vector.load %arg41[%c0_73, %c0_74] : memref<1x13xf32, #tpu.memory_space<vmem>>, vector<1x13xf32>
    %c0_75 = arith.constant 0 : index
    %c0_76 = arith.constant 0 : index
    %38 = vector.load %arg42[%c0_75, %c0_76] : memref<32x64xbf16, #tpu.memory_space<vmem>>, vector<32x64xbf16>
    %c0_77 = arith.constant 0 : index
    %c0_78 = arith.constant 0 : index
    %39 = vector.load %arg43[%c0_77, %c0_78] : memref<1x64xf32, #tpu.memory_space<vmem>>, vector<1x64xf32>
    %c0_79 = arith.constant 0 : index
    %c0_80 = arith.constant 0 : index
    %c0_81 = arith.constant 0 : index
    %40 = vector.load %arg1[%c0_79, %c0_80, %c0_81] : memref<1x11x32xf32, #tpu.memory_space<vmem>>, vector<1x11x32xf32>
    %41 = vector.shape_cast %40 : vector<1x11x32xf32> to vector<11x32xf32>
    %c0_82 = arith.constant 0 : index
    %c0_83 = arith.constant 0 : index
    %c0_84 = arith.constant 0 : index
    %42 = vector.load %arg2[%c0_82, %c0_83, %c0_84] : memref<1x64x32xf32, #tpu.memory_space<vmem>>, vector<1x64x32xf32>
    %43 = vector.shape_cast %42 : vector<1x64x32xf32> to vector<64x32xf32>
    %c0_85 = arith.constant 0 : index
    %c0_86 = arith.constant 0 : index
    %c0_87 = arith.constant 0 : index
    %44 = vector.load %arg3[%c0_85, %c0_86, %c0_87] : memref<1x64x32xf32, #tpu.memory_space<vmem>>, vector<1x64x32xf32>
    %45 = vector.shape_cast %44 : vector<1x64x32xf32> to vector<64x32xf32>
    %46 = arith.addf %43, %45 : vector<64x32xf32>
    %47 = arith.addf %46, %0 : vector<64x32xf32>
    %48 = arith.truncf %41 : vector<11x32xf32> to vector<11x32xbf16>
    %cst = arith.constant dense<0.000000e+00> : vector<11x96xf32>
    %49 = tpu.matmul %48, %1, %cst {dimension_numbers = #tpu.dot_dimension_numbers<[1], [0], [0], [1], [0, 0, 1, 1], [], []>} : vector<11x32xbf16>, vector<32x96xbf16>, vector<11x96xf32> -> vector<11x96xf32>
    %50 = vector.broadcast %2 : vector<1x96xf32> to vector<11x96xf32>
    %51 = arith.addf %49, %50 : vector<11x96xf32>
    %52 = vector.extract_strided_slice %51 {offsets = [0, 0], sizes = [11, 32], strides = [1, 1]} : vector<11x96xf32> to vector<11x32xf32>
    %53 = vector.extract_strided_slice %51 {offsets = [0, 32], sizes = [11, 32], strides = [1, 1]} : vector<11x96xf32> to vector<11x32xf32>
    %54 = vector.extract_strided_slice %51 {offsets = [0, 64], sizes = [11, 32], strides = [1, 1]} : vector<11x96xf32> to vector<11x32xf32>
    %55 = arith.truncf %52 : vector<11x32xf32> to vector<11x32xbf16>
    %56 = arith.truncf %53 : vector<11x32xf32> to vector<11x32xbf16>
    %cst_88 = arith.constant dense<0.000000e+00> : vector<11x11xf32>
    %57 = tpu.matmul %55, %56, %cst_88 {dimension_numbers = #tpu.dot_dimension_numbers<[1], [1], [0], [0], [0, 0, 1, 0], [], []>} : vector<11x32xbf16>, vector<11x32xbf16>, vector<11x11xf32> -> vector<11x11xf32>
    %cst_89 = arith.constant 0.176776692 : f32
    %58 = vector.broadcast %cst_89 : f32 to vector<11x11xf32>
    %59 = arith.mulf %57, %58 : vector<11x11xf32>
    %cst_90 = arith.constant dense<0xFF800000> : vector<11xf32>
    %60 = vector.multi_reduction <maximumf>, %59, %cst_90 [1] : vector<11x11xf32> to vector<11xf32>
    %61 = vector.shape_cast %60 : vector<11xf32> to vector<11x1xf32>
    %62 = vector.broadcast %61 : vector<11x1xf32> to vector<11x11xf32>
    %63 = arith.subf %59, %62 : vector<11x11xf32>
    %64 = math.exp %63 : vector<11x11xf32>
    %cst_91 = arith.constant dense<0.000000e+00> : vector<11xf32>
    %65 = vector.multi_reduction <add>, %64, %cst_91 [1] : vector<11x11xf32> to vector<11xf32>
    %66 = vector.shape_cast %65 : vector<11xf32> to vector<11x1xf32>
    %67 = tpu.reciprocal %66 {approx = true} : vector<11x1xf32> -> vector<11x1xf32>
    %68 = vector.broadcast %67 : vector<11x1xf32> to vector<11x11xf32>
    %69 = arith.mulf %64, %68 : vector<11x11xf32>
    %70 = arith.truncf %69 : vector<11x11xf32> to vector<11x11xbf16>
    %71 = arith.truncf %54 : vector<11x32xf32> to vector<11x32xbf16>
    %cst_92 = arith.constant dense<0.000000e+00> : vector<11x32xf32>
    %72 = tpu.matmul %70, %71, %cst_92 {dimension_numbers = #tpu.dot_dimension_numbers<[1], [0], [0], [1], [0, 0, 1, 1], [], []>} : vector<11x11xbf16>, vector<11x32xbf16>, vector<11x32xf32> -> vector<11x32xf32>
    %73 = arith.truncf %72 : vector<11x32xf32> to vector<11x32xbf16>
    %cst_93 = arith.constant dense<0.000000e+00> : vector<11x32xf32>
    %74 = tpu.matmul %73, %3, %cst_93 {dimension_numbers = #tpu.dot_dimension_numbers<[1], [0], [0], [1], [0, 0, 1, 1], [], []>} : vector<11x32xbf16>, vector<32x32xbf16>, vector<11x32xf32> -> vector<11x32xf32>
    %75 = vector.broadcast %4 : vector<1x32xf32> to vector<11x32xf32>
    %76 = arith.addf %74, %75 : vector<11x32xf32>
    %77 = arith.addf %41, %76 : vector<11x32xf32>
    %cst_94 = arith.constant dense<0.000000e+00> : vector<11xf32>
    %78 = vector.multi_reduction <add>, %77, %cst_94 [1] : vector<11x32xf32> to vector<11xf32>
    %79 = vector.shape_cast %78 : vector<11xf32> to vector<11x1xf32>
    %cst_95 = arith.constant 3.200000e+01 : f32
    %80 = vector.broadcast %cst_95 : f32 to vector<11x1xf32>
    %81 = arith.divf %79, %80 : vector<11x1xf32>
    %82 = vector.broadcast %81 : vector<11x1xf32> to vector<11x32xf32>
    %83 = arith.subf %77, %82 : vector<11x32xf32>
    %84 = arith.mulf %83, %83 : vector<11x32xf32>
    %cst_96 = arith.constant dense<0.000000e+00> : vector<11xf32>
    %85 = vector.multi_reduction <add>, %84, %cst_96 [1] : vector<11x32xf32> to vector<11xf32>
    %86 = vector.shape_cast %85 : vector<11xf32> to vector<11x1xf32>
    %cst_97 = arith.constant 3.200000e+01 : f32
    %87 = vector.broadcast %cst_97 : f32 to vector<11x1xf32>
    %88 = arith.divf %86, %87 : vector<11x1xf32>
    %89 = vector.broadcast %81 : vector<11x1xf32> to vector<11x32xf32>
    %90 = arith.subf %77, %89 : vector<11x32xf32>
    %cst_98 = arith.constant 9.99999997E-7 : f32
    %91 = vector.broadcast %cst_98 : f32 to vector<11x1xf32>
    %92 = arith.addf %88, %91 : vector<11x1xf32>
    %93 = math.rsqrt %92 : vector<11x1xf32>
    %94 = vector.broadcast %93 : vector<11x1xf32> to vector<11x32xf32>
    %95 = arith.mulf %90, %94 : vector<11x32xf32>
    %96 = vector.broadcast %5 : vector<1x32xf32> to vector<11x32xf32>
    %97 = arith.mulf %95, %96 : vector<11x32xf32>
    %98 = vector.broadcast %6 : vector<1x32xf32> to vector<11x32xf32>
    %99 = arith.addf %97, %98 : vector<11x32xf32>
    %100 = arith.truncf %99 : vector<11x32xf32> to vector<11x32xbf16>
    %cst_99 = arith.constant dense<0.000000e+00> : vector<11x32xf32>
    %101 = tpu.matmul %100, %7, %cst_99 {dimension_numbers = #tpu.dot_dimension_numbers<[1], [0], [0], [1], [0, 0, 1, 1], [], []>} : vector<11x32xbf16>, vector<32x32xbf16>, vector<11x32xf32> -> vector<11x32xf32>
    %102 = vector.broadcast %8 : vector<1x32xf32> to vector<11x32xf32>
    %103 = arith.addf %101, %102 : vector<11x32xf32>
    %104 = arith.truncf %47 : vector<64x32xf32> to vector<64x32xbf16>
    %cst_100 = arith.constant dense<0.000000e+00> : vector<64x32xf32>
    %105 = tpu.matmul %104, %9, %cst_100 {dimension_numbers = #tpu.dot_dimension_numbers<[1], [0], [0], [1], [0, 0, 1, 1], [], []>} : vector<64x32xbf16>, vector<32x32xbf16>, vector<64x32xf32> -> vector<64x32xf32>
    %106 = vector.broadcast %10 : vector<1x32xf32> to vector<64x32xf32>
    %107 = arith.addf %105, %106 : vector<64x32xf32>
    %108 = arith.truncf %46 : vector<64x32xf32> to vector<64x32xbf16>
    %cst_101 = arith.constant dense<0.000000e+00> : vector<64x32xf32>
    %109 = tpu.matmul %108, %11, %cst_101 {dimension_numbers = #tpu.dot_dimension_numbers<[1], [0], [0], [1], [0, 0, 1, 1], [], []>} : vector<64x32xbf16>, vector<32x32xbf16>, vector<64x32xf32> -> vector<64x32xf32>
    %110 = vector.broadcast %12 : vector<1x32xf32> to vector<64x32xf32>
    %111 = arith.addf %109, %110 : vector<64x32xf32>
    %112 = arith.truncf %103 : vector<11x32xf32> to vector<11x32xbf16>
    %113 = arith.truncf %107 : vector<64x32xf32> to vector<64x32xbf16>
    %cst_102 = arith.constant dense<0.000000e+00> : vector<11x64xf32>
    %114 = tpu.matmul %112, %113, %cst_102 {dimension_numbers = #tpu.dot_dimension_numbers<[1], [1], [0], [0], [0, 0, 1, 0], [], []>} : vector<11x32xbf16>, vector<64x32xbf16>, vector<11x64xf32> -> vector<11x64xf32>
    %cst_103 = arith.constant 0.176776692 : f32
    %115 = vector.broadcast %cst_103 : f32 to vector<11x64xf32>
    %116 = arith.mulf %114, %115 : vector<11x64xf32>
    %cst_104 = arith.constant dense<0xFF800000> : vector<11xf32>
    %117 = vector.multi_reduction <maximumf>, %116, %cst_104 [1] : vector<11x64xf32> to vector<11xf32>
    %118 = vector.shape_cast %117 : vector<11xf32> to vector<11x1xf32>
    %119 = vector.broadcast %118 : vector<11x1xf32> to vector<11x64xf32>
    %120 = arith.subf %116, %119 : vector<11x64xf32>
    %121 = math.exp %120 : vector<11x64xf32>
    %cst_105 = arith.constant dense<0.000000e+00> : vector<11xf32>
    %122 = vector.multi_reduction <add>, %121, %cst_105 [1] : vector<11x64xf32> to vector<11xf32>
    %123 = vector.shape_cast %122 : vector<11xf32> to vector<11x1xf32>
    %124 = tpu.reciprocal %123 {approx = true} : vector<11x1xf32> -> vector<11x1xf32>
    %125 = vector.broadcast %124 : vector<11x1xf32> to vector<11x64xf32>
    %126 = arith.mulf %121, %125 : vector<11x64xf32>
    %127 = arith.truncf %126 : vector<11x64xf32> to vector<11x64xbf16>
    %128 = arith.truncf %111 : vector<64x32xf32> to vector<64x32xbf16>
    %cst_106 = arith.constant dense<0.000000e+00> : vector<11x32xf32>
    %129 = tpu.matmul %127, %128, %cst_106 {dimension_numbers = #tpu.dot_dimension_numbers<[1], [0], [0], [1], [0, 0, 1, 1], [], []>} : vector<11x64xbf16>, vector<64x32xbf16>, vector<11x32xf32> -> vector<11x32xf32>
    %130 = arith.truncf %129 : vector<11x32xf32> to vector<11x32xbf16>
    %cst_107 = arith.constant dense<0.000000e+00> : vector<11x32xf32>
    %131 = tpu.matmul %130, %13, %cst_107 {dimension_numbers = #tpu.dot_dimension_numbers<[1], [0], [0], [1], [0, 0, 1, 1], [], []>} : vector<11x32xbf16>, vector<32x32xbf16>, vector<11x32xf32> -> vector<11x32xf32>
    %132 = vector.broadcast %14 : vector<1x32xf32> to vector<11x32xf32>
    %133 = arith.addf %131, %132 : vector<11x32xf32>
    %134 = arith.addf %99, %133 : vector<11x32xf32>
    %cst_108 = arith.constant dense<0.000000e+00> : vector<11xf32>
    %135 = vector.multi_reduction <add>, %134, %cst_108 [1] : vector<11x32xf32> to vector<11xf32>
    %136 = vector.shape_cast %135 : vector<11xf32> to vector<11x1xf32>
    %cst_109 = arith.constant 3.200000e+01 : f32
    %137 = vector.broadcast %cst_109 : f32 to vector<11x1xf32>
    %138 = arith.divf %136, %137 : vector<11x1xf32>
    %139 = vector.broadcast %138 : vector<11x1xf32> to vector<11x32xf32>
    %140 = arith.subf %134, %139 : vector<11x32xf32>
    %141 = arith.mulf %140, %140 : vector<11x32xf32>
    %cst_110 = arith.constant dense<0.000000e+00> : vector<11xf32>
    %142 = vector.multi_reduction <add>, %141, %cst_110 [1] : vector<11x32xf32> to vector<11xf32>
    %143 = vector.shape_cast %142 : vector<11xf32> to vector<11x1xf32>
    %cst_111 = arith.constant 3.200000e+01 : f32
    %144 = vector.broadcast %cst_111 : f32 to vector<11x1xf32>
    %145 = arith.divf %143, %144 : vector<11x1xf32>
    %146 = vector.broadcast %138 : vector<11x1xf32> to vector<11x32xf32>
    %147 = arith.subf %134, %146 : vector<11x32xf32>
    %cst_112 = arith.constant 9.99999997E-7 : f32
    %148 = vector.broadcast %cst_112 : f32 to vector<11x1xf32>
    %149 = arith.addf %145, %148 : vector<11x1xf32>
    %150 = math.rsqrt %149 : vector<11x1xf32>
    %151 = vector.broadcast %150 : vector<11x1xf32> to vector<11x32xf32>
    %152 = arith.mulf %147, %151 : vector<11x32xf32>
    %153 = vector.broadcast %15 : vector<1x32xf32> to vector<11x32xf32>
    %154 = arith.mulf %152, %153 : vector<11x32xf32>
    %155 = vector.broadcast %16 : vector<1x32xf32> to vector<11x32xf32>
    %156 = arith.addf %154, %155 : vector<11x32xf32>
    %157 = arith.truncf %156 : vector<11x32xf32> to vector<11x32xbf16>
    %cst_113 = arith.constant dense<0.000000e+00> : vector<11x64xf32>
    %158 = tpu.matmul %157, %17, %cst_113 {dimension_numbers = #tpu.dot_dimension_numbers<[1], [0], [0], [1], [0, 0, 1, 1], [], []>} : vector<11x32xbf16>, vector<32x64xbf16>, vector<11x64xf32> -> vector<11x64xf32>
    %159 = vector.broadcast %18 : vector<1x64xf32> to vector<11x64xf32>
    %160 = arith.addf %158, %159 : vector<11x64xf32>
    %cst_114 = arith.constant 0.000000e+00 : f32
    %161 = vector.broadcast %cst_114 : f32 to vector<11x64xf32>
    %162 = arith.maximumf %160, %161 : vector<11x64xf32>
    %163 = arith.truncf %162 : vector<11x64xf32> to vector<11x64xbf16>
    %cst_115 = arith.constant dense<0.000000e+00> : vector<11x32xf32>
    %164 = tpu.matmul %163, %19, %cst_115 {dimension_numbers = #tpu.dot_dimension_numbers<[1], [0], [0], [1], [0, 0, 1, 1], [], []>} : vector<11x64xbf16>, vector<64x32xbf16>, vector<11x32xf32> -> vector<11x32xf32>
    %165 = vector.broadcast %20 : vector<1x32xf32> to vector<11x32xf32>
    %166 = arith.addf %164, %165 : vector<11x32xf32>
    %167 = arith.addf %156, %166 : vector<11x32xf32>
    %cst_116 = arith.constant dense<0.000000e+00> : vector<11xf32>
    %168 = vector.multi_reduction <add>, %167, %cst_116 [1] : vector<11x32xf32> to vector<11xf32>
    %169 = vector.shape_cast %168 : vector<11xf32> to vector<11x1xf32>
    %cst_117 = arith.constant 3.200000e+01 : f32
    %170 = vector.broadcast %cst_117 : f32 to vector<11x1xf32>
    %171 = arith.divf %169, %170 : vector<11x1xf32>
    %172 = vector.broadcast %171 : vector<11x1xf32> to vector<11x32xf32>
    %173 = arith.subf %167, %172 : vector<11x32xf32>
    %174 = arith.mulf %173, %173 : vector<11x32xf32>
    %cst_118 = arith.constant dense<0.000000e+00> : vector<11xf32>
    %175 = vector.multi_reduction <add>, %174, %cst_118 [1] : vector<11x32xf32> to vector<11xf32>
    %176 = vector.shape_cast %175 : vector<11xf32> to vector<11x1xf32>
    %cst_119 = arith.constant 3.200000e+01 : f32
    %177 = vector.broadcast %cst_119 : f32 to vector<11x1xf32>
    %178 = arith.divf %176, %177 : vector<11x1xf32>
    %179 = vector.broadcast %171 : vector<11x1xf32> to vector<11x32xf32>
    %180 = arith.subf %167, %179 : vector<11x32xf32>
    %cst_120 = arith.constant 9.99999997E-7 : f32
    %181 = vector.broadcast %cst_120 : f32 to vector<11x1xf32>
    %182 = arith.addf %178, %181 : vector<11x1xf32>
    %183 = math.rsqrt %182 : vector<11x1xf32>
    %184 = vector.broadcast %183 : vector<11x1xf32> to vector<11x32xf32>
    %185 = arith.mulf %180, %184 : vector<11x32xf32>
    %186 = vector.broadcast %21 : vector<1x32xf32> to vector<11x32xf32>
    %187 = arith.mulf %185, %186 : vector<11x32xf32>
    %188 = vector.broadcast %22 : vector<1x32xf32> to vector<11x32xf32>
    %189 = arith.addf %187, %188 : vector<11x32xf32>
    %190 = arith.truncf %47 : vector<64x32xf32> to vector<64x32xbf16>
    %cst_121 = arith.constant dense<0.000000e+00> : vector<64x32xf32>
    %191 = tpu.matmul %190, %23, %cst_121 {dimension_numbers = #tpu.dot_dimension_numbers<[1], [0], [0], [1], [0, 0, 1, 1], [], []>} : vector<64x32xbf16>, vector<32x32xbf16>, vector<64x32xf32> -> vector<64x32xf32>
    %192 = vector.broadcast %24 : vector<1x32xf32> to vector<64x32xf32>
    %193 = arith.addf %191, %192 : vector<64x32xf32>
    %194 = arith.truncf %189 : vector<11x32xf32> to vector<11x32xbf16>
    %cst_122 = arith.constant dense<0.000000e+00> : vector<11x64xf32>
    %195 = tpu.matmul %194, %25, %cst_122 {dimension_numbers = #tpu.dot_dimension_numbers<[1], [0], [0], [1], [0, 0, 1, 1], [], []>} : vector<11x32xbf16>, vector<32x64xbf16>, vector<11x64xf32> -> vector<11x64xf32>
    %196 = vector.broadcast %26 : vector<1x64xf32> to vector<11x64xf32>
    %197 = arith.addf %195, %196 : vector<11x64xf32>
    %198 = vector.extract_strided_slice %197 {offsets = [0, 0], sizes = [11, 32], strides = [1, 1]} : vector<11x64xf32> to vector<11x32xf32>
    %199 = vector.extract_strided_slice %197 {offsets = [0, 32], sizes = [11, 32], strides = [1, 1]} : vector<11x64xf32> to vector<11x32xf32>
    %200 = arith.truncf %193 : vector<64x32xf32> to vector<64x32xbf16>
    %201 = arith.truncf %198 : vector<11x32xf32> to vector<11x32xbf16>
    %cst_123 = arith.constant dense<0.000000e+00> : vector<64x11xf32>
    %202 = tpu.matmul %200, %201, %cst_123 {dimension_numbers = #tpu.dot_dimension_numbers<[1], [1], [0], [0], [0, 0, 1, 0], [], []>} : vector<64x32xbf16>, vector<11x32xbf16>, vector<64x11xf32> -> vector<64x11xf32>
    %cst_124 = arith.constant 0.176776692 : f32
    %203 = vector.broadcast %cst_124 : f32 to vector<64x11xf32>
    %204 = arith.mulf %202, %203 : vector<64x11xf32>
    %cst_125 = arith.constant dense<0xFF800000> : vector<64xf32>
    %205 = vector.multi_reduction <maximumf>, %204, %cst_125 [1] : vector<64x11xf32> to vector<64xf32>
    %206 = vector.shape_cast %205 : vector<64xf32> to vector<64x1xf32>
    %207 = vector.broadcast %206 : vector<64x1xf32> to vector<64x11xf32>
    %208 = arith.subf %204, %207 : vector<64x11xf32>
    %209 = math.exp %208 : vector<64x11xf32>
    %cst_126 = arith.constant dense<0.000000e+00> : vector<64xf32>
    %210 = vector.multi_reduction <add>, %209, %cst_126 [1] : vector<64x11xf32> to vector<64xf32>
    %211 = vector.shape_cast %210 : vector<64xf32> to vector<64x1xf32>
    %212 = tpu.reciprocal %211 {approx = true} : vector<64x1xf32> -> vector<64x1xf32>
    %213 = vector.broadcast %212 : vector<64x1xf32> to vector<64x11xf32>
    %214 = arith.mulf %209, %213 : vector<64x11xf32>
    %215 = arith.truncf %214 : vector<64x11xf32> to vector<64x11xbf16>
    %216 = arith.truncf %199 : vector<11x32xf32> to vector<11x32xbf16>
    %cst_127 = arith.constant dense<0.000000e+00> : vector<64x32xf32>
    %217 = tpu.matmul %215, %216, %cst_127 {dimension_numbers = #tpu.dot_dimension_numbers<[1], [0], [0], [1], [0, 0, 1, 1], [], []>} : vector<64x11xbf16>, vector<11x32xbf16>, vector<64x32xf32> -> vector<64x32xf32>
    %218 = arith.truncf %217 : vector<64x32xf32> to vector<64x32xbf16>
    %cst_128 = arith.constant dense<0.000000e+00> : vector<64x32xf32>
    %219 = tpu.matmul %218, %27, %cst_128 {dimension_numbers = #tpu.dot_dimension_numbers<[1], [0], [0], [1], [0, 0, 1, 1], [], []>} : vector<64x32xbf16>, vector<32x32xbf16>, vector<64x32xf32> -> vector<64x32xf32>
    %220 = vector.broadcast %28 : vector<1x32xf32> to vector<64x32xf32>
    %221 = arith.addf %219, %220 : vector<64x32xf32>
    %222 = arith.addf %46, %221 : vector<64x32xf32>
    %cst_129 = arith.constant dense<0.000000e+00> : vector<64xf32>
    %223 = vector.multi_reduction <add>, %222, %cst_129 [1] : vector<64x32xf32> to vector<64xf32>
    %224 = vector.shape_cast %223 : vector<64xf32> to vector<64x1xf32>
    %cst_130 = arith.constant 3.200000e+01 : f32
    %225 = vector.broadcast %cst_130 : f32 to vector<64x1xf32>
    %226 = arith.divf %224, %225 : vector<64x1xf32>
    %227 = vector.broadcast %226 : vector<64x1xf32> to vector<64x32xf32>
    %228 = arith.subf %222, %227 : vector<64x32xf32>
    %229 = arith.mulf %228, %228 : vector<64x32xf32>
    %cst_131 = arith.constant dense<0.000000e+00> : vector<64xf32>
    %230 = vector.multi_reduction <add>, %229, %cst_131 [1] : vector<64x32xf32> to vector<64xf32>
    %231 = vector.shape_cast %230 : vector<64xf32> to vector<64x1xf32>
    %cst_132 = arith.constant 3.200000e+01 : f32
    %232 = vector.broadcast %cst_132 : f32 to vector<64x1xf32>
    %233 = arith.divf %231, %232 : vector<64x1xf32>
    %234 = vector.broadcast %226 : vector<64x1xf32> to vector<64x32xf32>
    %235 = arith.subf %222, %234 : vector<64x32xf32>
    %cst_133 = arith.constant 9.99999997E-7 : f32
    %236 = vector.broadcast %cst_133 : f32 to vector<64x1xf32>
    %237 = arith.addf %233, %236 : vector<64x1xf32>
    %238 = math.rsqrt %237 : vector<64x1xf32>
    %239 = vector.broadcast %238 : vector<64x1xf32> to vector<64x32xf32>
    %240 = arith.mulf %235, %239 : vector<64x32xf32>
    %241 = vector.broadcast %29 : vector<1x32xf32> to vector<64x32xf32>
    %242 = arith.mulf %240, %241 : vector<64x32xf32>
    %243 = vector.broadcast %30 : vector<1x32xf32> to vector<64x32xf32>
    %244 = arith.addf %242, %243 : vector<64x32xf32>
    %245 = vector.extract_strided_slice %189 {offsets = [0, 0], sizes = [4, 32], strides = [1, 1]} : vector<11x32xf32> to vector<4x32xf32>
    %246 = arith.truncf %245 : vector<4x32xf32> to vector<4x32xbf16>
    %cst_134 = arith.constant dense<0.000000e+00> : vector<4x160xf32>
    %247 = tpu.matmul %246, %34, %cst_134 {dimension_numbers = #tpu.dot_dimension_numbers<[1], [0], [0], [1], [0, 0, 1, 1], [], []>} : vector<4x32xbf16>, vector<32x160xbf16>, vector<4x160xf32> -> vector<4x160xf32>
    %248 = vector.broadcast %35 : vector<1x160xf32> to vector<4x160xf32>
    %249 = arith.addf %247, %248 : vector<4x160xf32>
    %250 = vector.extract_strided_slice %249 {offsets = [0, 0], sizes = [4, 96], strides = [1, 1]} : vector<4x160xf32> to vector<4x96xf32>
    %cst_135 = arith.constant 0.000000e+00 : f32
    %251 = vector.broadcast %cst_135 : f32 to vector<4x96xf32>
    %252 = arith.maximumf %250, %251 : vector<4x96xf32>
    %253 = arith.truncf %252 : vector<4x96xf32> to vector<4x96xbf16>
    %cst_136 = arith.constant dense<0.000000e+00> : vector<4x13xf32>
    %254 = tpu.matmul %253, %36, %cst_136 {dimension_numbers = #tpu.dot_dimension_numbers<[1], [0], [0], [1], [0, 0, 1, 1], [], []>} : vector<4x96xbf16>, vector<96x13xbf16>, vector<4x13xf32> -> vector<4x13xf32>
    %255 = vector.broadcast %37 : vector<1x13xf32> to vector<4x13xf32>
    %256 = arith.addf %254, %255 : vector<4x13xf32>
    %257 = vector.extract_strided_slice %256 {offsets = [0, 0], sizes = [1, 1], strides = [1, 1]} : vector<4x13xf32> to vector<1x1xf32>
    %c0_137 = arith.constant 0 : index
    %c0_138 = arith.constant 0 : index
    %c0_139 = arith.constant 0 : index
    %258 = vector.load %arg45[%c0_137, %c0_138, %c0_139] : memref<1x1x1xf32, #tpu.memory_space<vmem>>, vector<1x1x1xf32>
    %259 = vector.shape_cast %258 : vector<1x1x1xf32> to vector<1x1xf32>
    %260 = vector.shape_cast %257 : vector<1x1xf32> to vector<1x1x1xf32>
    tpu.vector_store %arg45[%c0_137, %c0_138, %c0_139], %260 {strides = array<i32>} : memref<1x1x1xf32, #tpu.memory_space<vmem>>, vector<1x1x1xf32>,
    %261 = vector.extract_strided_slice %256 {offsets = [2, 9], sizes = [1, 4], strides = [1, 1]} : vector<4x13xf32> to vector<1x4xf32>
    %c0_140 = arith.constant 0 : index
    %c0_141 = arith.constant 0 : index
    %c0_142 = arith.constant 0 : index
    %262 = vector.load %arg46[%c0_140, %c0_141, %c0_142] : memref<1x1x4xf32, #tpu.memory_space<vmem>>, vector<1x1x4xf32>
    %263 = vector.shape_cast %262 : vector<1x1x4xf32> to vector<1x4xf32>
    %264 = vector.shape_cast %261 : vector<1x4xf32> to vector<1x1x4xf32>
    tpu.vector_store %arg46[%c0_140, %c0_141, %c0_142], %264 {strides = array<i32>} : memref<1x1x4xf32, #tpu.memory_space<vmem>>, vector<1x1x4xf32>,
    %265 = vector.extract_strided_slice %249 {offsets = [3, 96], sizes = [1, 64], strides = [1, 1]} : vector<4x160xf32> to vector<1x64xf32>
    %c0_143 = arith.constant 0 : index
    %c0_144 = arith.constant 0 : index
    %c0_145 = arith.constant 0 : index
    %266 = vector.load %arg47[%c0_143, %c0_144, %c0_145] : memref<1x1x64xf32, #tpu.memory_space<vmem>>, vector<1x1x64xf32>
    %267 = vector.shape_cast %266 : vector<1x1x64xf32> to vector<1x64xf32>
    %268 = vector.shape_cast %265 : vector<1x64xf32> to vector<1x1x64xf32>
    tpu.vector_store %arg47[%c0_143, %c0_144, %c0_145], %268 {strides = array<i32>} : memref<1x1x64xf32, #tpu.memory_space<vmem>>, vector<1x1x64xf32>,
    %cst_146 = arith.constant dense<0.000000e+00> : vector<32xf32>
    %269 = vector.multi_reduction <add>, %244, %cst_146 [0] : vector<64x32xf32> to vector<32xf32>
    %270 = vector.shape_cast %269 : vector<32xf32> to vector<1x32xf32>
    %cst_147 = arith.constant 6.400000e+01 : f32
    %271 = vector.broadcast %cst_147 : f32 to vector<1x32xf32>
    %272 = arith.divf %270, %271 : vector<1x32xf32>
    %273 = arith.truncf %272 : vector<1x32xf32> to vector<1x32xbf16>
    %cst_148 = arith.constant dense<0.000000e+00> : vector<1x64xf32>
    %274 = tpu.matmul %273, %38, %cst_148 {dimension_numbers = #tpu.dot_dimension_numbers<[1], [0], [0], [1], [0, 0, 1, 1], [], []>} : vector<1x32xbf16>, vector<32x64xbf16>, vector<1x64xf32> -> vector<1x64xf32>
    %275 = arith.addf %274, %39 : vector<1x64xf32>
    %c0_149 = arith.constant 0 : index
    %c0_150 = arith.constant 0 : index
    %c0_151 = arith.constant 0 : index
    %276 = vector.load %arg48[%c0_149, %c0_150, %c0_151] : memref<1x1x64xf32, #tpu.memory_space<vmem>>, vector<1x1x64xf32>
    %277 = vector.shape_cast %276 : vector<1x1x64xf32> to vector<1x64xf32>
    %278 = vector.shape_cast %275 : vector<1x64xf32> to vector<1x1x64xf32>
    tpu.vector_store %arg48[%c0_149, %c0_150, %c0_151], %278 {strides = array<i32>} : memref<1x1x64xf32, #tpu.memory_space<vmem>>, vector<1x1x64xf32>,
    %279 = vector.extract_strided_slice %256 {offsets = [1, 1], sizes = [1, 8], strides = [1, 1]} : vector<4x13xf32> to vector<1x8xf32>
    %280 = arith.truncf %244 : vector<64x32xf32> to vector<64x32xbf16>
    %cst_152 = arith.constant dense<0.000000e+00> : vector<64x32xf32>
    %281 = tpu.matmul %280, %31, %cst_152 {dimension_numbers = #tpu.dot_dimension_numbers<[1], [0], [0], [1], [0, 0, 1, 1], [], []>} : vector<64x32xbf16>, vector<32x32xbf16>, vector<64x32xf32> -> vector<64x32xf32>
    %282 = vector.broadcast %32 : vector<1x32xf32> to vector<64x32xf32>
    %283 = arith.addf %281, %282 : vector<64x32xf32>
    %284 = arith.mulf %283, %283 : vector<64x32xf32>
    %285 = arith.mulf %283, %284 : vector<64x32xf32>
    %cst_153 = arith.constant 4.471500e-02 : f32
    %286 = vector.broadcast %cst_153 : f32 to vector<64x32xf32>
    %287 = arith.mulf %286, %285 : vector<64x32xf32>
    %288 = arith.addf %283, %287 : vector<64x32xf32>
    %cst_154 = arith.constant 0.797884583 : f32
    %289 = vector.broadcast %cst_154 : f32 to vector<64x32xf32>
    %290 = arith.mulf %289, %288 : vector<64x32xf32>
    %291 = math.tanh %290 : vector<64x32xf32>
    %cst_155 = arith.constant 1.000000e+00 : f32
    %292 = vector.broadcast %cst_155 : f32 to vector<64x32xf32>
    %293 = arith.addf %292, %291 : vector<64x32xf32>
    %cst_156 = arith.constant 5.000000e-01 : f32
    %294 = vector.broadcast %cst_156 : f32 to vector<64x32xf32>
    %295 = arith.mulf %294, %293 : vector<64x32xf32>
    %296 = arith.mulf %283, %295 : vector<64x32xf32>
    %297 = tpu.concatenate %279, %279, %279, %279 in 1 : vector<1x8xf32>, vector<1x8xf32>, vector<1x8xf32>, vector<1x8xf32> -> vector<1x32xf32>
    %298 = vector.broadcast %297 : vector<1x32xf32> to vector<64x32xf32>
    %299 = arith.mulf %296, %298 : vector<64x32xf32>
    %300 = arith.truncf %299 : vector<64x32xf32> to vector<64x32xbf16>
    %cst_157 = arith.constant dense<0.000000e+00> : vector<64x4xf32>
    %301 = tpu.matmul %300, %33, %cst_157 {dimension_numbers = #tpu.dot_dimension_numbers<[1], [0], [0], [1], [0, 0, 1, 1], [], []>} : vector<64x32xbf16>, vector<32x4xbf16>, vector<64x4xf32> -> vector<64x4xf32>
    %c0_158 = arith.constant 0 : index
    %c0_159 = arith.constant 0 : index
    %c0_160 = arith.constant 0 : index
    %302 = vector.load %arg44[%c0_158, %c0_159, %c0_160] : memref<1x64x4xf32, #tpu.memory_space<vmem>>, vector<1x64x4xf32>
    %303 = vector.shape_cast %302 : vector<1x64x4xf32> to vector<64x4xf32>
    %304 = vector.shape_cast %301 : vector<64x4xf32> to vector<1x64x4xf32>
    tpu.vector_store %arg44[%c0_158, %c0_159, %c0_160], %304 {strides = array<i32>} : memref<1x64x4xf32, #tpu.memory_space<vmem>>, vector<1x64x4xf32>,
    return
  }
  func.func @transform_0(%arg0: i32) -> (i32, i32, i32) {
    %c0_i32 = arith.constant 0 : i32
    %c0_i32_0 = arith.constant 0 : i32
    %c0_i32_1 = arith.constant 0 : i32
    return %arg0, %c0_i32, %c0_i32_0 : i32, i32, i32
  }
  func.func @transform_1(%arg0: i32) -> (i32, i32, i32) {
    %c0_i32 = arith.constant 0 : i32
    %c0_i32_0 = arith.constant 0 : i32
    %c0_i32_1 = arith.constant 0 : i32
    return %arg0, %c0_i32, %c0_i32_0 : i32, i32, i32
  }
  func.func @transform_2(%arg0: i32) -> (i32, i32, i32) {
    %c0_i32 = arith.constant 0 : i32
    %c0_i32_0 = arith.constant 0 : i32
    %c0_i32_1 = arith.constant 0 : i32
    return %arg0, %c0_i32, %c0_i32_0 : i32, i32, i32
  }
  func.func @transform_3(%arg0: i32) -> (i32, i32) {
    %c0_i32 = arith.constant 0 : i32
    %c0_i32_0 = arith.constant 0 : i32
    %c0_i32_1 = arith.constant 0 : i32
    return %c0_i32, %c0_i32_0 : i32, i32
  }
  func.func @transform_4(%arg0: i32) -> (i32, i32) {
    %c0_i32 = arith.constant 0 : i32
    %c0_i32_0 = arith.constant 0 : i32
    %c0_i32_1 = arith.constant 0 : i32
    return %c0_i32, %c0_i32_0 : i32, i32
  }
  func.func @transform_5(%arg0: i32) -> (i32, i32) {
    %c0_i32 = arith.constant 0 : i32
    %c0_i32_0 = arith.constant 0 : i32
    %c0_i32_1 = arith.constant 0 : i32
    return %c0_i32, %c0_i32_0 : i32, i32
  }
  func.func @transform_6(%arg0: i32) -> (i32, i32) {
    %c0_i32 = arith.constant 0 : i32
    %c0_i32_0 = arith.constant 0 : i32
    %c0_i32_1 = arith.constant 0 : i32
    return %c0_i32, %c0_i32_0 : i32, i32
  }
  func.func @transform_7(%arg0: i32) -> (i32, i32) {
    %c0_i32 = arith.constant 0 : i32
    %c0_i32_0 = arith.constant 0 : i32
    %c0_i32_1 = arith.constant 0 : i32
    return %c0_i32, %c0_i32_0 : i32, i32
  }
  func.func @transform_8(%arg0: i32) -> (i32, i32) {
    %c0_i32 = arith.constant 0 : i32
    %c0_i32_0 = arith.constant 0 : i32
    %c0_i32_1 = arith.constant 0 : i32
    return %c0_i32, %c0_i32_0 : i32, i32
  }
  func.func @transform_9(%arg0: i32) -> (i32, i32) {
    %c0_i32 = arith.constant 0 : i32
    %c0_i32_0 = arith.constant 0 : i32
    %c0_i32_1 = arith.constant 0 : i32
    return %c0_i32, %c0_i32_0 : i32, i32
  }
  func.func @transform_10(%arg0: i32) -> (i32, i32) {
    %c0_i32 = arith.constant 0 : i32
    %c0_i32_0 = arith.constant 0 : i32
    %c0_i32_1 = arith.constant 0 : i32
    return %c0_i32, %c0_i32_0 : i32, i32
  }
  func.func @transform_11(%arg0: i32) -> (i32, i32) {
    %c0_i32 = arith.constant 0 : i32
    %c0_i32_0 = arith.constant 0 : i32
    %c0_i32_1 = arith.constant 0 : i32
    return %c0_i32, %c0_i32_0 : i32, i32
  }
  func.func @transform_12(%arg0: i32) -> (i32, i32) {
    %c0_i32 = arith.constant 0 : i32
    %c0_i32_0 = arith.constant 0 : i32
    %c0_i32_1 = arith.constant 0 : i32
    return %c0_i32, %c0_i32_0 : i32, i32
  }
  func.func @transform_13(%arg0: i32) -> (i32, i32) {
    %c0_i32 = arith.constant 0 : i32
    %c0_i32_0 = arith.constant 0 : i32
    %c0_i32_1 = arith.constant 0 : i32
    return %c0_i32, %c0_i32_0 : i32, i32
  }
  func.func @transform_14(%arg0: i32) -> (i32, i32) {
    %c0_i32 = arith.constant 0 : i32
    %c0_i32_0 = arith.constant 0 : i32
    %c0_i32_1 = arith.constant 0 : i32
    return %c0_i32, %c0_i32_0 : i32, i32
  }
  func.func @transform_15(%arg0: i32) -> (i32, i32) {
    %c0_i32 = arith.constant 0 : i32
    %c0_i32_0 = arith.constant 0 : i32
    %c0_i32_1 = arith.constant 0 : i32
    return %c0_i32, %c0_i32_0 : i32, i32
  }
  func.func @transform_16(%arg0: i32) -> (i32, i32) {
    %c0_i32 = arith.constant 0 : i32
    %c0_i32_0 = arith.constant 0 : i32
    %c0_i32_1 = arith.constant 0 : i32
    return %c0_i32, %c0_i32_0 : i32, i32
  }
  func.func @transform_17(%arg0: i32) -> (i32, i32) {
    %c0_i32 = arith.constant 0 : i32
    %c0_i32_0 = arith.constant 0 : i32
    %c0_i32_1 = arith.constant 0 : i32
    return %c0_i32, %c0_i32_0 : i32, i32
  }
  func.func @transform_18(%arg0: i32) -> (i32, i32) {
    %c0_i32 = arith.constant 0 : i32
    %c0_i32_0 = arith.constant 0 : i32
    %c0_i32_1 = arith.constant 0 : i32
    return %c0_i32, %c0_i32_0 : i32, i32
  }
  func.func @transform_19(%arg0: i32) -> (i32, i32) {
    %c0_i32 = arith.constant 0 : i32
    %c0_i32_0 = arith.constant 0 : i32
    %c0_i32_1 = arith.constant 0 : i32
    return %c0_i32, %c0_i32_0 : i32, i32
  }
  func.func @transform_20(%arg0: i32) -> (i32, i32) {
    %c0_i32 = arith.constant 0 : i32
    %c0_i32_0 = arith.constant 0 : i32
    %c0_i32_1 = arith.constant 0 : i32
    return %c0_i32, %c0_i32_0 : i32, i32
  }
  func.func @transform_21(%arg0: i32) -> (i32, i32) {
    %c0_i32 = arith.constant 0 : i32
    %c0_i32_0 = arith.constant 0 : i32
    %c0_i32_1 = arith.constant 0 : i32
    return %c0_i32, %c0_i32_0 : i32, i32
  }
  func.func @transform_22(%arg0: i32) -> (i32, i32) {
    %c0_i32 = arith.constant 0 : i32
    %c0_i32_0 = arith.constant 0 : i32
    %c0_i32_1 = arith.constant 0 : i32
    return %c0_i32, %c0_i32_0 : i32, i32
  }
  func.func @transform_23(%arg0: i32) -> (i32, i32) {
    %c0_i32 = arith.constant 0 : i32
    %c0_i32_0 = arith.constant 0 : i32
    %c0_i32_1 = arith.constant 0 : i32
    return %c0_i32, %c0_i32_0 : i32, i32
  }
  func.func @transform_24(%arg0: i32) -> (i32, i32) {
    %c0_i32 = arith.constant 0 : i32
    %c0_i32_0 = arith.constant 0 : i32
    %c0_i32_1 = arith.constant 0 : i32
    return %c0_i32, %c0_i32_0 : i32, i32
  }
  func.func @transform_25(%arg0: i32) -> (i32, i32) {
    %c0_i32 = arith.constant 0 : i32
    %c0_i32_0 = arith.constant 0 : i32
    %c0_i32_1 = arith.constant 0 : i32
    return %c0_i32, %c0_i32_0 : i32, i32
  }
  func.func @transform_26(%arg0: i32) -> (i32, i32) {
    %c0_i32 = arith.constant 0 : i32
    %c0_i32_0 = arith.constant 0 : i32
    %c0_i32_1 = arith.constant 0 : i32
    return %c0_i32, %c0_i32_0 : i32, i32
  }
  func.func @transform_27(%arg0: i32) -> (i32, i32) {
    %c0_i32 = arith.constant 0 : i32
    %c0_i32_0 = arith.constant 0 : i32
    %c0_i32_1 = arith.constant 0 : i32
    return %c0_i32, %c0_i32_0 : i32, i32
  }
  func.func @transform_28(%arg0: i32) -> (i32, i32) {
    %c0_i32 = arith.constant 0 : i32
    %c0_i32_0 = arith.constant 0 : i32
    %c0_i32_1 = arith.constant 0 : i32
    return %c0_i32, %c0_i32_0 : i32, i32
  }
  func.func @transform_29(%arg0: i32) -> (i32, i32) {
    %c0_i32 = arith.constant 0 : i32
    %c0_i32_0 = arith.constant 0 : i32
    %c0_i32_1 = arith.constant 0 : i32
    return %c0_i32, %c0_i32_0 : i32, i32
  }
  func.func @transform_30(%arg0: i32) -> (i32, i32) {
    %c0_i32 = arith.constant 0 : i32
    %c0_i32_0 = arith.constant 0 : i32
    %c0_i32_1 = arith.constant 0 : i32
    return %c0_i32, %c0_i32_0 : i32, i32
  }
  func.func @transform_31(%arg0: i32) -> (i32, i32) {
    %c0_i32 = arith.constant 0 : i32
    %c0_i32_0 = arith.constant 0 : i32
    %c0_i32_1 = arith.constant 0 : i32
    return %c0_i32, %c0_i32_0 : i32, i32
  }
  func.func @transform_32(%arg0: i32) -> (i32, i32) {
    %c0_i32 = arith.constant 0 : i32
    %c0_i32_0 = arith.constant 0 : i32
    %c0_i32_1 = arith.constant 0 : i32
    return %c0_i32, %c0_i32_0 : i32, i32
  }
  func.func @transform_33(%arg0: i32) -> (i32, i32) {
    %c0_i32 = arith.constant 0 : i32
    %c0_i32_0 = arith.constant 0 : i32
    %c0_i32_1 = arith.constant 0 : i32
    return %c0_i32, %c0_i32_0 : i32, i32
  }
  func.func @transform_34(%arg0: i32) -> (i32, i32) {
    %c0_i32 = arith.constant 0 : i32
    %c0_i32_0 = arith.constant 0 : i32
    %c0_i32_1 = arith.constant 0 : i32
    return %c0_i32, %c0_i32_0 : i32, i32
  }
  func.func @transform_35(%arg0: i32) -> (i32, i32) {
    %c0_i32 = arith.constant 0 : i32
    %c0_i32_0 = arith.constant 0 : i32
    %c0_i32_1 = arith.constant 0 : i32
    return %c0_i32, %c0_i32_0 : i32, i32
  }
  func.func @transform_36(%arg0: i32) -> (i32, i32) {
    %c0_i32 = arith.constant 0 : i32
    %c0_i32_0 = arith.constant 0 : i32
    %c0_i32_1 = arith.constant 0 : i32
    return %c0_i32, %c0_i32_0 : i32, i32
  }
  func.func @transform_37(%arg0: i32) -> (i32, i32) {
    %c0_i32 = arith.constant 0 : i32
    %c0_i32_0 = arith.constant 0 : i32
    %c0_i32_1 = arith.constant 0 : i32
    return %c0_i32, %c0_i32_0 : i32, i32
  }
  func.func @transform_38(%arg0: i32) -> (i32, i32) {
    %c0_i32 = arith.constant 0 : i32
    %c0_i32_0 = arith.constant 0 : i32
    %c0_i32_1 = arith.constant 0 : i32
    return %c0_i32, %c0_i32_0 : i32, i32
  }
  func.func @transform_39(%arg0: i32) -> (i32, i32) {
    %c0_i32 = arith.constant 0 : i32
    %c0_i32_0 = arith.constant 0 : i32
    %c0_i32_1 = arith.constant 0 : i32
    return %c0_i32, %c0_i32_0 : i32, i32
  }
  func.func @transform_40(%arg0: i32) -> (i32, i32) {
    %c0_i32 = arith.constant 0 : i32
    %c0_i32_0 = arith.constant 0 : i32
    %c0_i32_1 = arith.constant 0 : i32
    return %c0_i32, %c0_i32_0 : i32, i32
  }
  func.func @transform_41(%arg0: i32) -> (i32, i32) {
    %c0_i32 = arith.constant 0 : i32
    %c0_i32_0 = arith.constant 0 : i32
    %c0_i32_1 = arith.constant 0 : i32
    return %c0_i32, %c0_i32_0 : i32, i32
  }
  func.func @transform_42(%arg0: i32) -> (i32, i32) {
    %c0_i32 = arith.constant 0 : i32
    %c0_i32_0 = arith.constant 0 : i32
    %c0_i32_1 = arith.constant 0 : i32
    return %c0_i32, %c0_i32_0 : i32, i32
  }
  func.func @transform_43(%arg0: i32) -> (i32, i32, i32) {
    %c0_i32 = arith.constant 0 : i32
    %c0_i32_0 = arith.constant 0 : i32
    %c0_i32_1 = arith.constant 0 : i32
    return %arg0, %c0_i32, %c0_i32_0 : i32, i32, i32
  }
  func.func @transform_44(%arg0: i32) -> (i32, i32, i32) {
    %c0_i32 = arith.constant 0 : i32
    %c0_i32_0 = arith.constant 0 : i32
    %c0_i32_1 = arith.constant 0 : i32
    return %arg0, %c0_i32, %c0_i32_0 : i32, i32, i32
  }
  func.func @transform_45(%arg0: i32) -> (i32, i32, i32) {
    %c0_i32 = arith.constant 0 : i32
    %c0_i32_0 = arith.constant 0 : i32
    %c0_i32_1 = arith.constant 0 : i32
    return %arg0, %c0_i32, %c0_i32_0 : i32, i32, i32
  }
  func.func @transform_46(%arg0: i32) -> (i32, i32, i32) {
    %c0_i32 = arith.constant 0 : i32
    %c0_i32_0 = arith.constant 0 : i32
    %c0_i32_1 = arith.constant 0 : i32
    return %arg0, %c0_i32, %c0_i32_0 : i32, i32, i32
  }
  func.func @transform_47(%arg0: i32) -> (i32, i32, i32) {
    %c0_i32 = arith.constant 0 : i32
    %c0_i32_0 = arith.constant 0 : i32
    %c0_i32_1 = arith.constant 0 : i32
    return %arg0, %c0_i32, %c0_i32_0 : i32, i32, i32
  }
}

</mosaic_0001>

<llo_original>
// kernel: medsam_lite_forward.4
$region0: #{medsam_lite_forward.4}
  #allocation0 [shape = 'u32[]', space=smem, size = 0x4, offset = 0x4, fixed_abs, tag = 'smem constant byte address 0x4 - core index']
  #allocation1 [shape = 'u32[144,128]{1,0:T(1,128)}', space=vmem, size = 0x12000, scoped, tag = 'internal scratch']
  %s0 = inlined_call_operand.vmem [shape: f32[2,1,64], index: 0, kind: input, shape index: {}]
  %s1 = inlined_call_operand.vmem [shape: f32[2,16,48], index: 1, kind: input, shape index: {}]
  %s2 = inlined_call_operand.vmem [shape: f32[2,64,16], index: 2, kind: input, shape index: {}]
  %s3 = inlined_call_operand.vmem [shape: f32[2,64,32], index: 3, kind: input, shape index: {}]
  %s4 = inlined_call_operand.vmem [shape: bf16[64,32], index: 4, kind: input, shape index: {}]
  %s5 = inlined_call_operand.vmem [shape: f32[1,32], index: 5, kind: input, shape index: {}]
  %s6 = inlined_call_operand.vmem [shape: bf16[48,32], index: 6, kind: input, shape index: {}]
  %s7 = inlined_call_operand.vmem [shape: f32[1,32], index: 7, kind: input, shape index: {}]
  %s8 = inlined_call_operand.vmem [shape: bf16[16,32], index: 8, kind: input, shape index: {}]
  %s9 = inlined_call_operand.vmem [shape: f32[1,32], index: 9, kind: input, shape index: {}]
  %s10 = inlined_call_operand.vmem [shape: f32[2,1,32], index: 10, kind: output, shape index: {0}]
  %s11 = inlined_call_operand.vmem [shape: f32[2,1,32], index: 11, kind: output, shape index: {1}]
  %s12 = inlined_call_operand.vmem [shape: f32[2,64,32], index: 12, kind: output, shape index: {2}]
  %13 = xla_tuple %s10, %s11, %s12
  %s14 = sld [smem:[#allocation0]]
  $region89: #{medsam_lite_forward.4} parent=0
    _
  %s16 = ssub.s32 1, %s14
  %s17 = scalar_select 0, %s16, %s14
  loop: start=0, step=1, limit=4
  $region2: #{medsam_lite_forward.4} parent=0 // loop_pre_header
    _
  $region3: #{medsam_lite_forward.4} parent=0 // loop_header
    %s19 = sphi 0, %s23
    %p20 = scmp.ge.s32.totalorder %s19, 4
    %s29 = sphi 0, %s31
    %s32 = sphi 0, %s29
    %s33 = sphi 0, %s32
    %s49 = sphi 0, %s33
    %s55 = sphi 0, %s57
    %s58 = sphi 0, %s55
    %s59 = sphi 0, %s58
    %s75 = sphi 0, %s59
    %s81 = sphi 0, %s83
    %s84 = sphi 0, %s81
    %s85 = sphi 0, %s84
    %s101 = sphi 0, %s85
    %s107 = sphi 0, %s109
    %s110 = sphi 0, %s107
    %s111 = sphi 0, %s110
    %s127 = sphi 0, %s111
    %s131 = sphi 0, %s131
    %s133 = sphi 0, %s131
    %s134 = sphi 0, %s133
    %s148 = sphi 0, %s134
    %s152 = sphi 0, %s152
    %s154 = sphi 0, %s152
    %s155 = sphi 0, %s154
    %s169 = sphi 0, %s155
    %s173 = sphi 0, %s173
    %s175 = sphi 0, %s173
    %s176 = sphi 0, %s175
    %s190 = sphi 0, %s176
    %s194 = sphi 0, %s194
    %s196 = sphi 0, %s194
    %s197 = sphi 0, %s196
    %s211 = sphi 0, %s197
    %s215 = sphi 0, %s215
    %s217 = sphi 0, %s215
    %s218 = sphi 0, %s217
    %s232 = sphi 0, %s218
    %s236 = sphi 0, %s236
    %s238 = sphi 0, %s236
    %s239 = sphi 0, %s238
    %s253 = sphi 0, %s239
    %s259 = sphi 0, %s261
    %s262 = sphi 0, %s259
    %s263 = sphi 0, %s262
    %s279 = sphi 0, %s263
    %s285 = sphi 0, %s287
    %s288 = sphi 0, %s285
    %s289 = sphi 0, %s288
    %s305 = sphi 0, %s289
    %s311 = sphi 0, %s313
    %s314 = sphi 0, %s311
    %s315 = sphi 0, %s314
    %s331 = sphi 0, %s315
  $region4: #{medsam_lite_forward.4} parent=0 // loop_header_branch
    %22 = sbr.rel (%p20) target = $region8
  $region5: #{medsam_lite_forward.4} parent=0 // loop_body
    %s24 = ssub.s32 %s19, 1
    %s25 = ssub.s32 %s19, 2
    %s26 = sadd.s32 %s19, 1
    %s27 = ssub.s32 %s19, %s26
    %p28 = scmp.eq.s32.totalorder %s27, 0
    %s30 = sadd.s32 %s29, 1
    %s31 = scalar_select %p28, %s29, %s30
    %p34 = pneg %p28
    %p35 = scmp.eq.s32.totalorder %s19, 1
    %p36 = por %p34, %p35
    %p37 = scmp.ne.s32.totalorder %s29, %s32
    %p38 = scmp.eq.s32.totalorder %s19, 0
    %p39 = por %p37, %p38
    %p40 = scmp.ne.s32.totalorder %s29, %s32
    %p41 = scmp.eq.s32.totalorder %s24, 1
    %p42 = por %p40, %p41
    %p43 = scmp.ne.s32.totalorder %s32, %s33
    %p44 = scmp.eq.s32.totalorder %s24, 0
    %p45 = por %p43, %p44
    %p46 = scmp.ne.s32.totalorder %s32, %s33
    %p47 = scmp.eq.s32.totalorder %s25, 1
    %p48 = por %p46, %p47
    %p50 = scmp.ne.s32.totalorder %s33, %s49
    %p51 = scmp.eq.s32.totalorder %s25, 0
    %p52 = por %p50, %p51
    %s53 = ssub.s32 %s19, %s26
    %p54 = scmp.eq.s32.totalorder %s53, 0
    %s56 = sadd.s32 %s55, 1
    %s57 = scalar_select %p54, %s55, %s56
    %p60 = pneg %p54
    %p61 = scmp.eq.s32.totalorder %s19, 1
    %p62 = por %p60, %p61
    %p63 = scmp.ne.s32.totalorder %s55, %s58
    %p64 = scmp.eq.s32.totalorder %s19, 0
    %p65 = por %p63, %p64
    %p66 = scmp.ne.s32.totalorder %s55, %s58
    %p67 = scmp.eq.s32.totalorder %s24, 1
    %p68 = por %p66, %p67
    %p69 = scmp.ne.s32.totalorder %s58, %s59
    %p70 = scmp.eq.s32.totalorder %s24, 0
    %p71 = por %p69, %p70
    %p72 = scmp.ne.s32.totalorder %s58, %s59
    %p73 = scmp.eq.s32.totalorder %s25, 1
    %p74 = por %p72, %p73
    %p76 = scmp.ne.s32.totalorder %s59, %s75
    %p77 = scmp.eq.s32.totalorder %s25, 0
    %p78 = por %p76, %p77
    %s79 = ssub.s32 %s19, %s26
    %p80 = scmp.eq.s32.totalorder %s79, 0
    %s82 = sadd.s32 %s81, 1
    %s83 = scalar_select %p80, %s81, %s82
    %p86 = pneg %p80
    %p87 = scmp.eq.s32.totalorder %s19, 1
    %p88 = por %p86, %p87
    %p89 = scmp.ne.s32.totalorder %s81, %s84
    %p90 = scmp.eq.s32.totalorder %s19, 0
    %p91 = por %p89, %p90
    %p92 = scmp.ne.s32.totalorder %s81, %s84
    %p93 = scmp.eq.s32.totalorder %s24, 1
    %p94 = por %p92, %p93
    %p95 = scmp.ne.s32.totalorder %s84, %s85
    %p96 = scmp.eq.s32.totalorder %s24, 0
    %p97 = por %p95, %p96
    %p98 = scmp.ne.s32.totalorder %s84, %s85
    %p99 = scmp.eq.s32.totalorder %s25, 1
    %p100 = por %p98, %p99
    %p102 = scmp.ne.s32.totalorder %s85, %s101
    %p103 = scmp.eq.s32.totalorder %s25, 0
    %p104 = por %p102, %p103
    %s105 = ssub.s32 %s19, %s26
    %p106 = scmp.eq.s32.totalorder %s105, 0
    %s108 = sadd.s32 %s107, 1
    %s109 = scalar_select %p106, %s107, %s108
    %p112 = pneg %p106
    %p113 = scmp.eq.s32.totalorder %s19, 1
    %p114 = por %p112, %p113
    %p115 = scmp.ne.s32.totalorder %s107, %s110
    %p116 = scmp.eq.s32.totalorder %s19, 0
    %p117 = por %p115, %p116
    %p118 = scmp.ne.s32.totalorder %s107, %s110
    %p119 = scmp.eq.s32.totalorder %s24, 1
    %p120 = por %p118, %p119
    %p121 = scmp.ne.s32.totalorder %s110, %s111
    %p122 = scmp.eq.s32.totalorder %s24, 0
    %p123 = por %p121, %p122
    %p124 = scmp.ne.s32.totalorder %s110, %s111
    %p125 = scmp.eq.s32.totalorder %s25, 1
    %p126 = por %p124, %p125
    %p128 = scmp.ne.s32.totalorder %s111, %s127
    %p129 = scmp.eq.s32.totalorder %s25, 0
    %p130 = por %p128, %p129
    %s132 = sadd.s32 %s131, 1
    %p135 = scmp.eq.s32.totalorder %s19, 1
    %p136 = scmp.ne.s32.totalorder %s131, %s133
    %p137 = scmp.eq.s32.totalorder %s19, 0
    %p138 = por %p136, %p137
    %p139 = scmp.ne.s32.totalorder %s131, %s133
    %p140 = scmp.eq.s32.totalorder %s24, 1
    %p141 = por %p139, %p140
    %p142 = scmp.ne.s32.totalorder %s133, %s134
    %p143 = scmp.eq.s32.totalorder %s24, 0
    %p144 = por %p142, %p143
    %p145 = scmp.ne.s32.totalorder %s133, %s134
    %p146 = scmp.eq.s32.totalorder %s25, 1
    %p147 = por %p145, %p146
    %p149 = scmp.ne.s32.totalorder %s134, %s148
    %p150 = scmp.eq.s32.totalorder %s25, 0
    %p151 = por %p149, %p150
    %s153 = sadd.s32 %s152, 1
    %p156 = scmp.eq.s32.totalorder %s19, 1
    %p157 = scmp.ne.s32.totalorder %s152, %s154
    %p158 = scmp.eq.s32.totalorder %s19, 0
    %p159 = por %p157, %p158
    %p160 = scmp.ne.s32.totalorder %s152, %s154
    %p161 = scmp.eq.s32.totalorder %s24, 1
    %p162 = por %p160, %p161
    %p163 = scmp.ne.s32.totalorder %s154, %s155
    %p164 = scmp.eq.s32.totalorder %s24, 0
    %p165 = por %p163, %p164
    %p166 = scmp.ne.s32.totalorder %s154, %s155
    %p167 = scmp.eq.s32.totalorder %s25, 1
    %p168 = por %p166, %p167
    %p170 = scmp.ne.s32.totalorder %s155, %s169
    %p171 = scmp.eq.s32.totalorder %s25, 0
    %p172 = por %p170, %p171
    %s174 = sadd.s32 %s173, 1
    %p177 = scmp.eq.s32.totalorder %s19, 1
    %p178 = scmp.ne.s32.totalorder %s173, %s175
    %p179 = scmp.eq.s32.totalorder %s19, 0
    %p180 = por %p178, %p179
    %p181 = scmp.ne.s32.totalorder %s173, %s175
    %p182 = scmp.eq.s32.totalorder %s24, 1
    %p183 = por %p181, %p182
    %p184 = scmp.ne.s32.totalorder %s175, %s176
    %p185 = scmp.eq.s32.totalorder %s24, 0
    %p186 = por %p184, %p185
    %p187 = scmp.ne.s32.totalorder %s175, %s176
    %p188 = scmp.eq.s32.totalorder %s25, 1
    %p189 = por %p187, %p188
    %p191 = scmp.ne.s32.totalorder %s176, %s190
    %p192 = scmp.eq.s32.totalorder %s25, 0
    %p193 = por %p191, %p192
    %s195 = sadd.s32 %s194, 1
    %p198 = scmp.eq.s32.totalorder %s19, 1
    %p199 = scmp.ne.s32.totalorder %s194, %s196
    %p200 = scmp.eq.s32.totalorder %s19, 0
    %p201 = por %p199, %p200
    %p202 = scmp.ne.s32.totalorder %s194, %s196
    %p203 = scmp.eq.s32.totalorder %s24, 1
    %p204 = por %p202, %p203
    %p205 = scmp.ne.s32.totalorder %s196, %s197
    %p206 = scmp.eq.s32.totalorder %s24, 0
    %p207 = por %p205, %p206
    %p208 = scmp.ne.s32.totalorder %s196, %s197
    %p209 = scmp.eq.s32.totalorder %s25, 1
    %p210 = por %p208, %p209
    %p212 = scmp.ne.s32.totalorder %s197, %s211
    %p213 = scmp.eq.s32.totalorder %s25, 0
    %p214 = por %p212, %p213
    %s216 = sadd.s32 %s215, 1
    %p219 = scmp.eq.s32.totalorder %s19, 1
    %p220 = scmp.ne.s32.totalorder %s215, %s217
    %p221 = scmp.eq.s32.totalorder %s19, 0
    %p222 = por %p220, %p221
    %p223 = scmp.ne.s32.totalorder %s215, %s217
    %p224 = scmp.eq.s32.totalorder %s24, 1
    %p225 = por %p223, %p224
    %p226 = scmp.ne.s32.totalorder %s217, %s218
    %p227 = scmp.eq.s32.totalorder %s24, 0
    %p228 = por %p226, %p227
    %p229 = scmp.ne.s32.totalorder %s217, %s218
    %p230 = scmp.eq.s32.totalorder %s25, 1
    %p231 = por %p229, %p230
    %p233 = scmp.ne.s32.totalorder %s218, %s232
    %p234 = scmp.eq.s32.totalorder %s25, 0
    %p235 = por %p233, %p234
    %s237 = sadd.s32 %s236, 1
    %p240 = scmp.eq.s32.totalorder %s19, 1
    %p241 = scmp.ne.s32.totalorder %s236, %s238
    %p242 = scmp.eq.s32.totalorder %s19, 0
    %p243 = por %p241, %p242
    %p244 = scmp.ne.s32.totalorder %s236, %s238
    %p245 = scmp.eq.s32.totalorder %s24, 1
    %p246 = por %p244, %p245
    %p247 = scmp.ne.s32.totalorder %s238, %s239
    %p248 = scmp.eq.s32.totalorder %s24, 0
    %p249 = por %p247, %p248
    %p250 = scmp.ne.s32.totalorder %s238, %s239
    %p251 = scmp.eq.s32.totalorder %s25, 1
    %p252 = por %p250, %p251
    %p254 = scmp.ne.s32.totalorder %s239, %s253
    %p255 = scmp.eq.s32.totalorder %s25, 0
    %p256 = por %p254, %p255
    %s257 = ssub.s32 %s19, %s26
    %p258 = scmp.eq.s32.totalorder %s257, 0
    %s260 = sadd.s32 %s259, 1
    %s261 = scalar_select %p258, %s259, %s260
    %p264 = pneg %p258
    %p265 = scmp.eq.s32.totalorder %s19, 1
    %p266 = por %p264, %p265
    %p267 = scmp.ne.s32.totalorder %s259, %s262
    %p268 = scmp.eq.s32.totalorder %s19, 0
    %p269 = por %p267, %p268
    %p270 = scmp.ne.s32.totalorder %s259, %s262
    %p271 = scmp.eq.s32.totalorder %s24, 1
    %p272 = por %p270, %p271
    %p273 = scmp.ne.s32.totalorder %s262, %s263
    %p274 = scmp.eq.s32.totalorder %s24, 0
    %p275 = por %p273, %p274
    %p276 = scmp.ne.s32.totalorder %s262, %s263
    %p277 = scmp.eq.s32.totalorder %s25, 1
    %p278 = por %p276, %p277
    %p280 = scmp.ne.s32.totalorder %s263, %s279
    %p281 = scmp.eq.s32.totalorder %s25, 0
    %p282 = por %p280, %p281
    %s283 = ssub.s32 %s19, %s26
    %p284 = scmp.eq.s32.totalorder %s283, 0
    %s286 = sadd.s32 %s285, 1
    %s287 = scalar_select %p284, %s285, %s286
    %p290 = pneg %p284
    %p291 = scmp.eq.s32.totalorder %s19, 1
    %p292 = por %p290, %p291
    %p293 = scmp.ne.s32.totalorder %s285, %s288
    %p294 = scmp.eq.s32.totalorder %s19, 0
    %p295 = por %p293, %p294
    %p296 = scmp.ne.s32.totalorder %s285, %s288
    %p297 = scmp.eq.s32.totalorder %s24, 1
    %p298 = por %p296, %p297
    %p299 = scmp.ne.s32.totalorder %s288, %s289
    %p300 = scmp.eq.s32.totalorder %s24, 0
    %p301 = por %p299, %p300
    %p302 = scmp.ne.s32.totalorder %s288, %s289
    %p303 = scmp.eq.s32.totalorder %s25, 1
    %p304 = por %p302, %p303
    %p306 = scmp.ne.s32.totalorder %s289, %s305
    %p307 = scmp.eq.s32.totalorder %s25, 0
    %p308 = por %p306, %p307
    %s309 = ssub.s32 %s19, %s26
    %p310 = scmp.eq.s32.totalorder %s309, 0
    %s312 = sadd.s32 %s311, 1
    %s313 = scalar_select %p310, %s311, %s312
    %p316 = pneg %p310
    %p317 = scmp.eq.s32.totalorder %s19, 1
    %p318 = por %p316, %p317
    %p319 = scmp.ne.s32.totalorder %s311, %s314
    %p320 = scmp.eq.s32.totalorder %s19, 0
    %p321 = por %p319, %p320
    %p322 = scmp.ne.s32.totalorder %s311, %s314
    %p323 = scmp.eq.s32.totalorder %s24, 1
    %p324 = por %p322, %p323
    %p325 = scmp.ne.s32.totalorder %s314, %s315
    %p326 = scmp.eq.s32.totalorder %s24, 0
    %p327 = por %p325, %p326
    %p328 = scmp.ne.s32.totalorder %s314, %s315
    %p329 = scmp.eq.s32.totalorder %s25, 1
    %p330 = por %p328, %p329
    %p332 = scmp.ne.s32.totalorder %s315, %s331
    %p333 = scmp.eq.s32.totalorder %s25, 0
    %p334 = por %p332, %p333
    %p335 = scmp.le.s32.totalorder 1, %s19
    %p336 = scmp.lt.s32.totalorder %s19, 3
    %p337 = pnand %p335, %p336
    %p338 = pneg %p337
    // Predicated region
    $region9: #{medsam_lite_forward.4} parent=5 // pred_check
      _
    $region10: #{medsam_lite_forward.4} parent=5 // pred_check_branch
      %340 = sbr.rel (%p337) target = $region12
    $region11: #{medsam_lite_forward.4} parent=5 // pred_region
      %s341 = ssub.s32 %s19, 1
      // Predicated region
      $region13: #{medsam_lite_forward.4} parent=11 // pred_check
        %p342 = pneg %p144
      $region14: #{medsam_lite_forward.4} parent=11 // pred_check_branch
        %344 = sbr.rel (%p342) target = $region16
      $region15: #{medsam_lite_forward.4} parent=11 // pred_region
        _
      $region16: #{medsam_lite_forward.4} parent=11 // pred_fallthru
        _
      // Predicated region
      $region17: #{medsam_lite_forward.4} parent=11 // pred_check
        %p345 = pneg %p165
      $region18: #{medsam_lite_forward.4} parent=11 // pred_check_branch
        %347 = sbr.rel (%p345) target = $region20
      $region19: #{medsam_lite_forward.4} parent=11 // pred_region
        _
      $region20: #{medsam_lite_forward.4} parent=11 // pred_fallthru
        _
      // Predicated region
      $region21: #{medsam_lite_forward.4} parent=11 // pred_check
        %p348 = pneg %p186
      $region22: #{medsam_lite_forward.4} parent=11 // pred_check_branch
        %350 = sbr.rel (%p348) target = $region24
      $region23: #{medsam_lite_forward.4} parent=11 // pred_region
        _
      $region24: #{medsam_lite_forward.4} parent=11 // pred_fallthru
        _
      // Predicated region
      $region25: #{medsam_lite_forward.4} parent=11 // pred_check
        %p351 = pneg %p207
      $region26: #{medsam_lite_forward.4} parent=11 // pred_check_branch
        %353 = sbr.rel (%p351) target = $region28
      $region27: #{medsam_lite_forward.4} parent=11 // pred_region
        _
      $region28: #{medsam_lite_forward.4} parent=11 // pred_fallthru
        _
      // Predicated region
      $region29: #{medsam_lite_forward.4} parent=11 // pred_check
        %p354 = pneg %p228
      $region30: #{medsam_lite_forward.4} parent=11 // pred_check_branch
        %356 = sbr.rel (%p354) target = $region32
      $region31: #{medsam_lite_forward.4} parent=11 // pred_region
        _
      $region32: #{medsam_lite_forward.4} parent=11 // pred_fallthru
        _
      // Predicated region
      $region33: #{medsam_lite_forward.4} parent=11 // pred_check
        %p357 = pneg %p249
      $region34: #{medsam_lite_forward.4} parent=11 // pred_check_branch
        %359 = sbr.rel (%p357) target = $region36
      $region35: #{medsam_lite_forward.4} parent=11 // pred_region
        _
      $region36: #{medsam_lite_forward.4} parent=11 // pred_fallthru
        _
    $region12: #{medsam_lite_forward.4} parent=5 // pred_fallthru
      _
    %p360 = scmp.lt.s32.totalorder %s19, 2
    // Predicated region
    $region37: #{medsam_lite_forward.4} parent=5 // pred_check
      %p361 = pneg %p360
    $region38: #{medsam_lite_forward.4} parent=5 // pred_check_branch
      %363 = sbr.rel (%p361) target = $region40
    $region39: #{medsam_lite_forward.4} parent=5 // pred_region
      // Predicated region
      $region41: #{medsam_lite_forward.4} parent=39 // pred_check
        %p364 = pneg %p39
      $region42: #{medsam_lite_forward.4} parent=39 // pred_check_branch
        %366 = sbr.rel (%p364) target = $region44
      $region43: #{medsam_lite_forward.4} parent=39 // pred_region
        %p367 = scmp.lt.s32.totalorder %s19, 1
        %s368 = scalar_select %p367, %s19, 1
        %s369 = scalar_lea.vmem %s0, %s368
      $region44: #{medsam_lite_forward.4} parent=39 // pred_fallthru
        _
      // Predicated region
      $region45: #{medsam_lite_forward.4} parent=39 // pred_check
        %p370 = pneg %p65
      $region46: #{medsam_lite_forward.4} parent=39 // pred_check_branch
        %372 = sbr.rel (%p370) target = $region48
      $region47: #{medsam_lite_forward.4} parent=39 // pred_region
        %p373 = scmp.lt.s32.totalorder %s19, 1
        %s374 = scalar_select %p373, %s19, 1
        %s375 = smul.addr %s374, 2
        %s376 = smul.addr %s375, 8
        %s377 = scalar_lea.vmem %s1, %s376
      $region48: #{medsam_lite_forward.4} parent=39 // pred_fallthru
        _
      // Predicated region
      $region49: #{medsam_lite_forward.4} parent=39 // pred_check
        %p378 = pneg %p91
      $region50: #{medsam_lite_forward.4} parent=39 // pred_check_branch
        %380 = sbr.rel (%p378) target = $region52
      $region51: #{medsam_lite_forward.4} parent=39 // pred_region
        %p381 = scmp.lt.s32.totalorder %s19, 1
        %s382 = scalar_select %p381, %s19, 1
        %s383 = smul.addr %s382, 8
        %s384 = smul.addr %s383, 8
        %s385 = scalar_lea.vmem %s2, %s384
      $region52: #{medsam_lite_forward.4} parent=39 // pred_fallthru
        _
      // Predicated region
      $region53: #{medsam_lite_forward.4} parent=39 // pred_check
        %p386 = pneg %p117
      $region54: #{medsam_lite_forward.4} parent=39 // pred_check_branch
        %388 = sbr.rel (%p386) target = $region56
      $region55: #{medsam_lite_forward.4} parent=39 // pred_region
        %p389 = scmp.lt.s32.totalorder %s19, 1
        %s390 = scalar_select %p389, %s19, 1
        %s391 = smul.addr %s390, 8
        %s392 = smul.addr %s391, 8
        %s393 = scalar_lea.vmem %s3, %s392
      $region56: #{medsam_lite_forward.4} parent=39 // pred_fallthru
        _
    $region40: #{medsam_lite_forward.4} parent=5 // pred_fallthru
      _
    %p394 = scmp.le.s32.totalorder 1, %s19
    %p395 = scmp.lt.s32.totalorder %s19, 3
    %p396 = pnand %p394, %p395
    %p397 = pneg %p396
    // Predicated region
    $region57: #{medsam_lite_forward.4} parent=5 // pred_check
      _
    $region58: #{medsam_lite_forward.4} parent=5 // pred_check_branch
      %399 = sbr.rel (%p396) target = $region60
    $region59: #{medsam_lite_forward.4} parent=5 // pred_region
      %s400 = ssub.s32 %s19, 1
      %p401 = scmp.lt.s32.totalorder %s24, 1
      %s402 = scalar_select %p401, %s24, 1
      %s403 = scalar_lea.vmem %s0, %s402
      %p404 = pneg %p45
      %p405 = pneg %p42
      %p406 = scmp.lt.s32.totalorder %s24, 1
      %s407 = scalar_select %p406, %s24, 1
      %s408 = smul.addr %s407, 2
      %s409 = smul.addr %s408, 8
      %s410 = scalar_lea.vmem %s1, %s409
      %p411 = pneg %p71
      %p412 = pneg %p68
      %p413 = scmp.lt.s32.totalorder %s24, 1
      %s414 = scalar_select %p413, %s24, 1
      %s415 = smul.addr %s414, 8
      %s416 = smul.addr %s415, 8
      %s417 = scalar_lea.vmem %s2, %s416
      %p418 = pneg %p97
      %p419 = pneg %p94
      %p420 = scmp.lt.s32.totalorder %s24, 1
      %s421 = scalar_select %p420, %s24, 1
      %s422 = smul.addr %s421, 8
      %s423 = smul.addr %s422, 8
      %s424 = scalar_lea.vmem %s3, %s423
      %p425 = pneg %p123
      %p426 = pneg %p120
      %p427 = pneg %p144
      %p428 = pneg %p141
      %p429 = pneg %p165
      %p430 = pneg %p162
      %p431 = pneg %p186
      %p432 = pneg %p183
      %p433 = pneg %p207
      %p434 = pneg %p204
      %p435 = pneg %p228
      %p436 = pneg %p225
      %p437 = pneg %p249
      %p438 = pneg %p246
      %p439 = pneg %p275
      %p440 = pneg %p272
      %p441 = scmp.lt.s32.totalorder %s24, 1
      %s442 = scalar_select %p441, %s24, 1
      %s443 = scalar_lea.vmem %s10, %s442
      %p444 = pneg %p301
      %p445 = pneg %p298
      %p446 = scmp.lt.s32.totalorder %s24, 1
      %s447 = scalar_select %p446, %s24, 1
      %s448 = scalar_lea.vmem %s11, %s447
      %p449 = pneg %p327
      %p450 = pneg %p324
      %p451 = scmp.lt.s32.totalorder %s24, 1
      %s452 = scalar_select %p451, %s24, 1
      %s453 = smul.addr %s452, 8
      %s454 = smul.addr %s453, 8
      %s455 = scalar_lea.vmem %s12, %s454
      %p456 = scmp.lt.s32.totalorder %s24, 1
      %s457 = scalar_select %p456, %s24, 1
      %s458 = scalar_lea.vmem %s0, %s457
      %p459 = scmp.lt.s32.totalorder %s24, 1
      %s460 = scalar_select %p459, %s24, 1
      %s461 = smul.addr %s460, 2
      %s462 = smul.addr %s461, 8
      %s463 = scalar_lea.vmem %s1, %s462
      %p464 = scmp.lt.s32.totalorder %s24, 1
      %s465 = scalar_select %p464, %s24, 1
      %s466 = smul.addr %s465, 8
      %s467 = smul.addr %s466, 8
      %s468 = scalar_lea.vmem %s2, %s467
      %p469 = scmp.lt.s32.totalorder %s24, 1
      %s470 = scalar_select %p469, %s24, 1
      %s471 = smul.addr %s470, 8
      %s472 = smul.addr %s471, 8
      %s473 = scalar_lea.vmem %s3, %s472
      %p474 = scmp.lt.s32.totalorder %s24, 1
      %s475 = scalar_select %p474, %s24, 1
      %s476 = scalar_lea.vmem %s10, %s475
      %p477 = scmp.lt.s32.totalorder %s24, 1
      %s478 = scalar_select %p477, %s24, 1
      %s479 = scalar_lea.vmem %s11, %s478
      %p480 = scmp.lt.s32.totalorder %s24, 1
      %s481 = scalar_select %p480, %s24, 1
      %s482 = smul.addr %s481, 8
      %s483 = smul.addr %s482, 8
      %s484 = scalar_lea.vmem %s12, %s483
      %v486 = vld [vmem:[%s4] sm:$0xf]
      %v487 = vld [vmem:[%s4 + $0x4] sm:$0xf]
      %v488 = vld [vmem:[%s4 + $0x8] sm:$0xf]
      %v489 = vld [vmem:[%s4 + $0xc] sm:$0xf]
      %v490 = vld [vmem:[%s4 + $0x10] sm:$0xf]
      %v491 = vld [vmem:[%s4 + $0x14] sm:$0xf]
      %v492 = vld [vmem:[%s4 + $0x18] sm:$0xf]
      %v493 = vld [vmem:[%s4 + $0x1c] sm:$0xf]
      %v494 = vld [vmem:[%s5] sm:$0x1]
      %v495 = vld [vmem:[%s6] sm:$0xf]
      %v496 = vld [vmem:[%s6 + $0x4] sm:$0xf]
      %v497 = vld [vmem:[%s6 + $0x8] sm:$0xf]
      %v498 = vld [vmem:[%s6 + $0xc] sm:$0xf]
      %v499 = vld [vmem:[%s6 + $0x10] sm:$0xf]
      %v500 = vld [vmem:[%s6 + $0x14] sm:$0xf]
      %v501 = vld [vmem:[%s7] sm:$0x1]
      %v502 = vld [vmem:[%s8] sm:$0xf]
      %v503 = vld [vmem:[%s8 + $0x4] sm:$0xf]
      %v504 = vld [vmem:[%s9] sm:$0x1]
      %v505 = vld [vmem:[%s458] sm:$0x1]
      %v506 = vpack.c.bf16 %v505, %v505
      %v515 = vunpack.c.l.b16 %v486
      %v516 = vunpack.c.l.b16 %v487
      %v517 = vunpack.c.l.b16 %v488
      %v518 = vunpack.c.l.b16 %v489
      %v519 = vunpack.c.l.b16 %v490
      %v520 = vunpack.c.l.b16 %v491
      %v521 = vunpack.c.l.b16 %v492
      %v522 = vunpack.c.l.b16 %v493
      %v523 = vpack.c.b16 %v516, %v515
      %v524 = vpack.c.b16 %v518, %v517
      %v525 = vpack.c.b16 %v520, %v519
      %v526 = vpack.c.b16 %v522, %v521
      %vm531 = vcmask 523264
      %v533 = vsel %vm531, %v506, 0
      %535 = vmatprep.subr.bf16.mxu0 0
      %536 = vmatpush1.bf16.msra.mxu0 0
      %537 = vmatprep.subr.bf16.mxu0 0
      %538 = vmatpush1.bf16.msra.mxu0 0
      %539 = vmatprep.subr.bf16.mxu0 0
      %540 = vmatpush1.bf16.msra.mxu0 0
      %541 = vmatprep.subr.bf16.mxu0 0
      %542 = vmatpush1.bf16.msra.mxu0 0
      %543 = vmatprep.subr.bf16.mxu0 0
      %544 = vmatpush1.bf16.msra.mxu0 %v526
      %545 = vmatprep.subr.bf16.mxu0 0
      %546 = vmatpush1.bf16.msra.mxu0 %v525
      %547 = vmatprep.subr.bf16.mxu0 0
      %548 = vmatpush1.bf16.msra.mxu0 %v524
      %549 = vmatprep.subr.bf16.mxu0 0
      %550 = vmatpush1.bf16.msra.mxu0 %v523
      %551 = vmatprep.subr.bf16.mxu0 0
      %552 = vmatpush2.bf16.msra.mxu0 0
      %553 = vmatprep.subr.bf16.mxu0 0
      %554 = vmatpush2.bf16.msra.mxu0 0
      %555 = vmatprep.subr.bf16.mxu0 0
      %556 = vmatpush2.bf16.msra.mxu0 0
      %557 = vmatprep.subr.bf16.mxu0 0
      %558 = vmatpush2.bf16.msra.mxu0 0
      %559 = vmatprep.subr.bf16.mxu0 0
      %560 = vmatpush2.bf16.msra.mxu0 0
      %561 = vmatprep.subr.bf16.mxu0 0
      %562 = vmatpush2.bf16.msra.mxu0 0
      %563 = vmatprep.subr.bf16.mxu0 0
      %564 = vmatpush2.bf16.msra.mxu0 0
      %565 = vmatprep.subr.bf16.mxu0 0
      %566 = vmatpush2.bf16.msra.mxu0 0
      %567 = vmatprep.mubr.bf16.mxu0 0
      %568 = vmatmul.mubr.bf16.gmra.mxu0 %v533
      %v569 = vpop.f32.mrf.mxu0
      %v570 = vadd.f32 %v494, %v569
      %v571 = vpop.f32.mrf.mxu0
      %v572 = vpop.f32.mrf.mxu0
      %v573 = vpop.f32.mrf.mxu0
      %574 = vdwg.mxu0
      %vm575 = vcmask 253952
      %576 = vst.msk [vmem:[%s476] sm:$0x1] %vm575, %v570
      %v577 = vld [vmem:[%s463] sm:$0xff]
      %v578 = vld [vmem:[%s463 + $0x8] sm:$0xff]
      %v579 = vpack.c.bf16 %v578, %v577
      %v581 = vlaneseq
      %v582 = vshrl.u32 %v581, 7
      %v583 = vsub.s32 0, %v582
      %v584 = vrot.slane %v501, %v583
      %v592 = vunpack.c.l.b16 %v495
      %v593 = vunpack.c.l.b16 %v496
      %v594 = vunpack.c.l.b16 %v497
      %v595 = vunpack.c.l.b16 %v498
      %v596 = vunpack.c.l.b16 %v499
      %v597 = vunpack.c.l.b16 %v500
      %v598 = vpack.c.b16 %v593, %v592
      %v599 = vpack.c.b16 %v595, %v594
      %v600 = vpack.c.b16 %v597, %v596
      %vm604 = vcmask 392192
      %v606 = vsel %vm604, %v579, 0
      %608 = vmatprep.subr.bf16.mxu0 0
      %609 = vmatpush1.bf16.msra.mxu0 0
      %610 = vmatprep.subr.bf16.mxu0 0
      %611 = vmatpush1.bf16.msra.mxu0 0
      %612 = vmatprep.subr.bf16.mxu0 0
      %613 = vmatpush1.bf16.msra.mxu0 0
      %614 = vmatprep.subr.bf16.mxu0 0
      %615 = vmatpush1.bf16.msra.mxu0 0
      %616 = vmatprep.subr.bf16.mxu0 0
      %617 = vmatpush1.bf16.msra.mxu0 0
      %618 = vmatprep.subr.bf16.mxu0 0
      %619 = vmatpush1.bf16.msra.mxu0 %v600
      %620 = vmatprep.subr.bf16.mxu0 0
      %621 = vmatpush1.bf16.msra.mxu0 %v599
      %622 = vmatprep.subr.bf16.mxu0 0
      %623 = vmatpush1.bf16.msra.mxu0 %v598
      %624 = vmatprep.subr.bf16.mxu0 0
      %625 = vmatpush2.bf16.msra.mxu0 0
      %626 = vmatprep.subr.bf16.mxu0 0
      %627 = vmatpush2.bf16.msra.mxu0 0
      %628 = vmatprep.subr.bf16.mxu0 0
      %629 = vmatpush2.bf16.msra.mxu0 0
      %630 = vmatprep.subr.bf16.mxu0 0
      %631 = vmatpush2.bf16.msra.mxu0 0
      %632 = vmatprep.subr.bf16.mxu0 0
      %633 = vmatpush2.bf16.msra.mxu0 0
      %634 = vmatprep.subr.bf16.mxu0 0
      %635 = vmatpush2.bf16.msra.mxu0 0
      %636 = vmatprep.subr.bf16.mxu0 0
      %637 = vmatpush2.bf16.msra.mxu0 0
      %638 = vmatprep.subr.bf16.mxu0 0
      %639 = vmatpush2.bf16.msra.mxu0 0
      %640 = vmatprep.mubr.bf16.mxu0 0
      %641 = vmatmul.mubr.bf16.gmra.mxu0 %v606
      %v642 = vpop.f32.mrf.mxu0
      %v643 = vadd.f32 %v584, %v642
      %v644 = vpop.f32.mrf.mxu0
      %v645 = vpop.f32.mrf.mxu0
      %v646 = vadd.f32 %v584, %v645
      %v647 = vpop.f32.mrf.mxu0
      %648 = vdwg.mxu0
      %vm649 = vcmask 261120
      %v650 = vsel %vm649, %v643, 0.0
      %v651 = vsel %vm649, %v646, 0.0
      %v652 = vadd.f32 %v650, %v651
      %v653 = vrot.slane %v652, 4
      %v654 = vadd.f32 %v652, %v653
      %v655 = vrot.slane %v654, 2
      %v656 = vadd.f32 %v654, %v655
      %v657 = vrot.slane %v656, 1
      %v658 = vadd.f32 %v656, %v657
      %v659 = vrcp.pop 16.0
      %v660 = vmul.f32 %v658, %v659
      %661 = vst.msk [vmem:[%s479] sm:$0x1] %vm575, %v660
      %v662 = vld [vmem:[%s468] sm:$0xff]
      %v663 = vld [vmem:[%s468 + $0x8] sm:$0xff]
      %v664 = vld [vmem:[%s468 + $0x10] sm:$0xff]
      %v665 = vld [vmem:[%s468 + $0x18] sm:$0xff]
      %v666 = vld [vmem:[%s468 + $0x20] sm:$0xff]
      %v667 = vld [vmem:[%s468 + $0x28] sm:$0xff]
      %v668 = vld [vmem:[%s468 + $0x30] sm:$0xff]
      %v669 = vld [vmem:[%s468 + $0x38] sm:$0xff]
      %v670 = vpack.c.bf16 %v663, %v662
      %v671 = vpack.c.bf16 %v665, %v664
      %v672 = vpack.c.bf16 %v667, %v666
      %v673 = vpack.c.bf16 %v669, %v668
      %v675 = vlaneseq
      %v676 = vshrl.u32 %v675, 7
      %v677 = vsub.s32 0, %v676
      %v678 = vrot.slane %v504, %v677
      %v682 = vunpack.c.l.b16 %v502
      %v683 = vunpack.c.l.b16 %v503
      %v684 = vpack.c.b16 %v683, %v682
      %vm686 = vcmask 130048
      %v688 = vsel %vm686, %v670, 0
      %v691 = vsel %vm686, %v671, 0
      %v694 = vsel %vm686, %v672, 0
      %v697 = vsel %vm686, %v673, 0
      %699 = vmatprep.subr.bf16.mxu0 0
      %700 = vmatpush1.bf16.msra.mxu0 0
      %701 = vmatprep.subr.bf16.mxu0 0
      %702 = vmatpush1.bf16.msra.mxu0 0
      %703 = vmatprep.subr.bf16.mxu0 0
      %704 = vmatpush1.bf16.msra.mxu0 0
      %705 = vmatprep.subr.bf16.mxu0 0
      %706 = vmatpush1.bf16.msra.mxu0 0
      %707 = vmatprep.subr.bf16.mxu0 0
      %708 = vmatpush1.bf16.msra.mxu0 0
      %709 = vmatprep.subr.bf16.mxu0 0
      %710 = vmatpush1.bf16.msra.mxu0 0
      %711 = vmatprep.subr.bf16.mxu0 0
      %712 = vmatpush1.bf16.msra.mxu0 0
      %713 = vmatprep.subr.bf16.mxu0 0
      %714 = vmatpush1.bf16.msra.mxu0 %v684
      %715 = vmatprep.subr.bf16.mxu0 0
      %716 = vmatpush2.bf16.msra.mxu0 0
      %717 = vmatprep.subr.bf16.mxu0 0
      %718 = vmatpush2.bf16.msra.mxu0 0
      %719 = vmatprep.subr.bf16.mxu0 0
      %720 = vmatpush2.bf16.msra.mxu0 0
      %721 = vmatprep.subr.bf16.mxu0 0
      %722 = vmatpush2.bf16.msra.mxu0 0
      %723 = vmatprep.subr.bf16.mxu0 0
      %724 = vmatpush2.bf16.msra.mxu0 0
      %725 = vmatprep.subr.bf16.mxu0 0
      %726 = vmatpush2.bf16.msra.mxu0 0
      %727 = vmatprep.subr.bf16.mxu0 0
      %728 = vmatpush2.bf16.msra.mxu0 0
      %729 = vmatprep.subr.bf16.mxu0 0
      %730 = vmatpush2.bf16.msra.mxu0 0
      %731 = vmatprep.mubr.bf16.mxu0 0
      %732 = vmatmul.mubr.bf16.gmra.mxu0 %v688
      %v733 = vpop.f32.mrf.mxu0
      %v734 = vadd.f32 %v678, %v733
      %v735 = vpop.f32.mrf.mxu0
      %v736 = vpop.f32.mrf.mxu0
      %v737 = vadd.f32 %v678, %v736
      %v738 = vpop.f32.mrf.mxu0
      %739 = vmatprep.mubr.bf16.mxu0 0
      %740 = vmatmul.mubr.bf16.gmra.mxu0 %v691
      %v741 = vpop.f32.mrf.mxu0
      %v742 = vadd.f32 %v678, %v741
      %v743 = vpop.f32.mrf.mxu0
      %v744 = vpop.f32.mrf.mxu0
      %v745 = vadd.f32 %v678, %v744
      %v746 = vpop.f32.mrf.mxu0
      %747 = vmatprep.mubr.bf16.mxu0 0
      %748 = vmatmul.mubr.bf16.gmra.mxu0 %v694
      %v749 = vpop.f32.mrf.mxu0
      %v750 = vadd.f32 %v678, %v749
      %v751 = vpop.f32.mrf.mxu0
      %v752 = vpop.f32.mrf.mxu0
      %v753 = vadd.f32 %v678, %v752
      %v754 = vpop.f32.mrf.mxu0
      %755 = vmatprep.mubr.bf16.mxu0 0
      %756 = vmatmul.mubr.bf16.gmra.mxu0 %v697
      %v757 = vpop.f32.mrf.mxu0
      %v758 = vadd.f32 %v678, %v757
      %v759 = vpop.f32.mrf.mxu0
      %v760 = vpop.f32.mrf.mxu0
      %v761 = vadd.f32 %v678, %v760
      %v762 = vpop.f32.mrf.mxu0
      %763 = vdwg.mxu0
      %v764 = vld [vmem:[%s473] sm:$0xff]
      %v765 = vld [vmem:[%s473 + $0x8] sm:$0xff]
      %v766 = vld [vmem:[%s473 + $0x10] sm:$0xff]
      %v767 = vld [vmem:[%s473 + $0x18] sm:$0xff]
      %v768 = vld [vmem:[%s473 + $0x20] sm:$0xff]
      %v769 = vld [vmem:[%s473 + $0x28] sm:$0xff]
      %v770 = vld [vmem:[%s473 + $0x30] sm:$0xff]
      %v771 = vld [vmem:[%s473 + $0x38] sm:$0xff]
      %v772 = vadd.f32 %v734, %v764
      %v773 = vadd.f32 %v737, %v765
      %v774 = vadd.f32 %v742, %v766
      %v775 = vadd.f32 %v745, %v767
      %v776 = vadd.f32 %v750, %v768
      %v777 = vadd.f32 %v753, %v769
      %v778 = vadd.f32 %v758, %v770
      %v779 = vadd.f32 %v761, %v771
      %780 = vst.msk [vmem:[%s484] sm:$0xff] %vm649, %v772
      %781 = vst.msk [vmem:[%s484 + $0x8] sm:$0xff] %vm649, %v773
      %782 = vst.msk [vmem:[%s484 + $0x10] sm:$0xff] %vm649, %v774
      %783 = vst.msk [vmem:[%s484 + $0x18] sm:$0xff] %vm649, %v775
      %784 = vst.msk [vmem:[%s484 + $0x20] sm:$0xff] %vm649, %v776
      %785 = vst.msk [vmem:[%s484 + $0x28] sm:$0xff] %vm649, %v777
      %786 = vst.msk [vmem:[%s484 + $0x30] sm:$0xff] %vm649, %v778
      %787 = vst.msk [vmem:[%s484 + $0x38] sm:$0xff] %vm649, %v779
      %p788 = scmp.lt.s32.totalorder %s24, 1
      %s789 = scalar_select %p788, %s24, 1
      %s790 = scalar_lea.vmem %s10, %s789
      %p791 = scmp.lt.s32.totalorder %s24, 1
      %s792 = scalar_select %p791, %s24, 1
      %s793 = scalar_lea.vmem %s11, %s792
      %p794 = scmp.lt.s32.totalorder %s24, 1
      %s795 = scalar_select %p794, %s24, 1
      %s796 = smul.addr %s795, 8
      %s797 = smul.addr %s796, 8
      %s798 = scalar_lea.vmem %s12, %s797
      // Predicated region
      $region61: #{medsam_lite_forward.4} parent=59 // pred_check
        %p799 = pneg %p272
      $region62: #{medsam_lite_forward.4} parent=59 // pred_check_branch
        %801 = sbr.rel (%p799) target = $region64
      $region63: #{medsam_lite_forward.4} parent=59 // pred_region
        _
      $region64: #{medsam_lite_forward.4} parent=59 // pred_fallthru
        _
      // Predicated region
      $region65: #{medsam_lite_forward.4} parent=59 // pred_check
        %p802 = pneg %p298
      $region66: #{medsam_lite_forward.4} parent=59 // pred_check_branch
        %804 = sbr.rel (%p802) target = $region68
      $region67: #{medsam_lite_forward.4} parent=59 // pred_region
        _
      $region68: #{medsam_lite_forward.4} parent=59 // pred_fallthru
        _
      // Predicated region
      $region69: #{medsam_lite_forward.4} parent=59 // pred_check
        %p805 = pneg %p324
      $region70: #{medsam_lite_forward.4} parent=59 // pred_check_branch
        %807 = sbr.rel (%p805) target = $region72
      $region71: #{medsam_lite_forward.4} parent=59 // pred_region
        _
      $region72: #{medsam_lite_forward.4} parent=59 // pred_fallthru
        _
    $region60: #{medsam_lite_forward.4} parent=5 // pred_fallthru
      _
    %p808 = scmp.le.s32.totalorder 2, %s19
    // Predicated region
    $region73: #{medsam_lite_forward.4} parent=5 // pred_check
      %p809 = pneg %p808
    $region74: #{medsam_lite_forward.4} parent=5 // pred_check_branch
      %811 = sbr.rel (%p809) target = $region76
    $region75: #{medsam_lite_forward.4} parent=5 // pred_region
      %s812 = ssub.s32 %s19, 2
      // Predicated region
      $region77: #{medsam_lite_forward.4} parent=75 // pred_check
        %p813 = pneg %p278
      $region78: #{medsam_lite_forward.4} parent=75 // pred_check_branch
        %815 = sbr.rel (%p813) target = $region80
      $region79: #{medsam_lite_forward.4} parent=75 // pred_region
        %p816 = scmp.lt.s32.totalorder %s25, 1
        %s817 = scalar_select %p816, %s25, 1
        %s818 = scalar_lea.vmem %s10, %s817
      $region80: #{medsam_lite_forward.4} parent=75 // pred_fallthru
        _
      // Predicated region
      $region81: #{medsam_lite_forward.4} parent=75 // pred_check
        %p819 = pneg %p304
      $region82: #{medsam_lite_forward.4} parent=75 // pred_check_branch
        %821 = sbr.rel (%p819) target = $region84
      $region83: #{medsam_lite_forward.4} parent=75 // pred_region
        %p822 = scmp.lt.s32.totalorder %s25, 1
        %s823 = scalar_select %p822, %s25, 1
        %s824 = scalar_lea.vmem %s11, %s823
      $region84: #{medsam_lite_forward.4} parent=75 // pred_fallthru
        _
      // Predicated region
      $region85: #{medsam_lite_forward.4} parent=75 // pred_check
        %p825 = pneg %p330
      $region86: #{medsam_lite_forward.4} parent=75 // pred_check_branch
        %827 = sbr.rel (%p825) target = $region88
      $region87: #{medsam_lite_forward.4} parent=75 // pred_region
        %p828 = scmp.lt.s32.totalorder %s25, 1
        %s829 = scalar_select %p828, %s25, 1
        %s830 = smul.addr %s829, 8
        %s831 = smul.addr %s830, 8
        %s832 = scalar_lea.vmem %s12, %s831
      $region88: #{medsam_lite_forward.4} parent=75 // pred_fallthru
        _
    $region76: #{medsam_lite_forward.4} parent=5 // pred_fallthru
      _
  $region6: #{medsam_lite_forward.4} parent=0 // loop_footer
    %s23 = sadd.s32 1, %s19
  $region7: #{medsam_lite_forward.4} parent=0 // loop_footer_branch
    %18 = sbr.rel target = $region3
  $region8: #{medsam_lite_forward.4} parent=0 // loop_exit
    _

// kernel: medsam_lite_forward.3
$region0: #{medsam_lite_forward.3}
  #allocation0 [shape = 'u32[]', space=smem, size = 0x4, offset = 0x4, fixed_abs, tag = 'smem constant byte address 0x4 - core index']
  #allocation1 [shape = 'u32[144,128]{1,0:T(1,128)}', space=vmem, size = 0x12000, scoped, tag = 'internal scratch']
  %s0 = inlined_call_operand.vmem [shape: f32[2,64,48], index: 0, kind: input, shape index: {}]
  %s1 = inlined_call_operand.vmem [shape: f32[64,32], index: 1, kind: input, shape index: {}]
  %s2 = inlined_call_operand.vmem [shape: bf16[48,32], index: 2, kind: input, shape index: {}]
  %s3 = inlined_call_operand.vmem [shape: f32[1,32], index: 3, kind: input, shape index: {}]
  %s4 = inlined_call_operand.vmem [shape: f32[1,32], index: 4, kind: input, shape index: {}]
  %s5 = inlined_call_operand.vmem [shape: f32[1,32], index: 5, kind: input, shape index: {}]
  %s6 = inlined_call_operand.vmem [shape: bf16[32,96], index: 6, kind: input, shape index: {}]
  %s7 = inlined_call_operand.vmem [shape: f32[1,96], index: 7, kind: input, shape index: {}]
  %s8 = inlined_call_operand.vmem [shape: bf16[32,32], index: 8, kind: input, shape index: {}]
  %s9 = inlined_call_operand.vmem [shape: f32[1,32], index: 9, kind: input, shape index: {}]
  %s10 = inlined_call_operand.vmem [shape: f32[1,32], index: 10, kind: input, shape index: {}]
  %s11 = inlined_call_operand.vmem [shape: f32[1,32], index: 11, kind: input, shape index: {}]
  %s12 = inlined_call_operand.vmem [shape: bf16[32,64], index: 12, kind: input, shape index: {}]
  %s13 = inlined_call_operand.vmem [shape: f32[1,64], index: 13, kind: input, shape index: {}]
  %s14 = inlined_call_operand.vmem [shape: bf16[64,32], index: 14, kind: input, shape index: {}]
  %s15 = inlined_call_operand.vmem [shape: f32[1,32], index: 15, kind: input, shape index: {}]
  %s16 = inlined_call_operand.vmem [shape: f32[1,32], index: 16, kind: input, shape index: {}]
  %s17 = inlined_call_operand.vmem [shape: f32[1,32], index: 17, kind: input, shape index: {}]
  %s18 = inlined_call_operand.vmem [shape: f32[2,64,32], index: 18, kind: output, shape index: {}]
  %s19 = sld [smem:[#allocation0]]
  $region105: #{medsam_lite_forward.3} parent=0
    _
  %s21 = ssub.s32 1, %s19
  %s22 = scalar_select 0, %s21, %s19
  loop: start=0, step=1, limit=4
  $region2: #{medsam_lite_forward.3} parent=0 // loop_pre_header
    _
  $region3: #{medsam_lite_forward.3} parent=0 // loop_header
    %s24 = sphi 0, %s28
    %p25 = scmp.ge.s32.totalorder %s24, 4
    %s34 = sphi 0, %s36
    %s37 = sphi 0, %s34
    %s38 = sphi 0, %s37
    %s54 = sphi 0, %s38
    %s58 = sphi 0, %s58
    %s60 = sphi 0, %s58
    %s61 = sphi 0, %s60
    %s75 = sphi 0, %s61
    %s79 = sphi 0, %s79
    %s81 = sphi 0, %s79
    %s82 = sphi 0, %s81
    %s96 = sphi 0, %s82
    %s100 = sphi 0, %s100
    %s102 = sphi 0, %s100
    %s103 = sphi 0, %s102
    %s117 = sphi 0, %s103
    %s121 = sphi 0, %s121
    %s123 = sphi 0, %s121
    %s124 = sphi 0, %s123
    %s138 = sphi 0, %s124
    %s142 = sphi 0, %s142
    %s144 = sphi 0, %s142
    %s145 = sphi 0, %s144
    %s159 = sphi 0, %s145
    %s163 = sphi 0, %s163
    %s165 = sphi 0, %s163
    %s166 = sphi 0, %s165
    %s180 = sphi 0, %s166
    %s184 = sphi 0, %s184
    %s186 = sphi 0, %s184
    %s187 = sphi 0, %s186
    %s201 = sphi 0, %s187
    %s205 = sphi 0, %s205
    %s207 = sphi 0, %s205
    %s208 = sphi 0, %s207
    %s222 = sphi 0, %s208
    %s226 = sphi 0, %s226
    %s228 = sphi 0, %s226
    %s229 = sphi 0, %s228
    %s243 = sphi 0, %s229
    %s247 = sphi 0, %s247
    %s249 = sphi 0, %s247
    %s250 = sphi 0, %s249
    %s264 = sphi 0, %s250
    %s268 = sphi 0, %s268
    %s270 = sphi 0, %s268
    %s271 = sphi 0, %s270
    %s285 = sphi 0, %s271
    %s289 = sphi 0, %s289
    %s291 = sphi 0, %s289
    %s292 = sphi 0, %s291
    %s306 = sphi 0, %s292
    %s310 = sphi 0, %s310
    %s312 = sphi 0, %s310
    %s313 = sphi 0, %s312
    %s327 = sphi 0, %s313
    %s331 = sphi 0, %s331
    %s333 = sphi 0, %s331
    %s334 = sphi 0, %s333
    %s348 = sphi 0, %s334
    %s352 = sphi 0, %s352
    %s354 = sphi 0, %s352
    %s355 = sphi 0, %s354
    %s369 = sphi 0, %s355
    %s373 = sphi 0, %s373
    %s375 = sphi 0, %s373
    %s376 = sphi 0, %s375
    %s390 = sphi 0, %s376
    %s394 = sphi 0, %s394
    %s396 = sphi 0, %s394
    %s397 = sphi 0, %s396
    %s411 = sphi 0, %s397
    %s417 = sphi 0, %s419
    %s420 = sphi 0, %s417
    %s421 = sphi 0, %s420
    %s437 = sphi 0, %s421
  $region4: #{medsam_lite_forward.3} parent=0 // loop_header_branch
    %27 = sbr.rel (%p25) target = $region8
  $region5: #{medsam_lite_forward.3} parent=0 // loop_body
    %s29 = ssub.s32 %s24, 1
    %s30 = ssub.s32 %s24, 2
    %s31 = sadd.s32 %s24, 1
    %s32 = ssub.s32 %s24, %s31
    %p33 = scmp.eq.s32.totalorder %s32, 0
    %s35 = sadd.s32 %s34, 1
    %s36 = scalar_select %p33, %s34, %s35
    %p39 = pneg %p33
    %p40 = scmp.eq.s32.totalorder %s24, 1
    %p41 = por %p39, %p40
    %p42 = scmp.ne.s32.totalorder %s34, %s37
    %p43 = scmp.eq.s32.totalorder %s24, 0
    %p44 = por %p42, %p43
    %p45 = scmp.ne.s32.totalorder %s34, %s37
    %p46 = scmp.eq.s32.totalorder %s29, 1
    %p47 = por %p45, %p46
    %p48 = scmp.ne.s32.totalorder %s37, %s38
    %p49 = scmp.eq.s32.totalorder %s29, 0
    %p50 = por %p48, %p49
    %p51 = scmp.ne.s32.totalorder %s37, %s38
    %p52 = scmp.eq.s32.totalorder %s30, 1
    %p53 = por %p51, %p52
    %p55 = scmp.ne.s32.totalorder %s38, %s54
    %p56 = scmp.eq.s32.totalorder %s30, 0
    %p57 = por %p55, %p56
    %s59 = sadd.s32 %s58, 1
    %p62 = scmp.eq.s32.totalorder %s24, 1
    %p63 = scmp.ne.s32.totalorder %s58, %s60
    %p64 = scmp.eq.s32.totalorder %s24, 0
    %p65 = por %p63, %p64
    %p66 = scmp.ne.s32.totalorder %s58, %s60
    %p67 = scmp.eq.s32.totalorder %s29, 1
    %p68 = por %p66, %p67
    %p69 = scmp.ne.s32.totalorder %s60, %s61
    %p70 = scmp.eq.s32.totalorder %s29, 0
    %p71 = por %p69, %p70
    %p72 = scmp.ne.s32.totalorder %s60, %s61
    %p73 = scmp.eq.s32.totalorder %s30, 1
    %p74 = por %p72, %p73
    %p76 = scmp.ne.s32.totalorder %s61, %s75
    %p77 = scmp.eq.s32.totalorder %s30, 0
    %p78 = por %p76, %p77
    %s80 = sadd.s32 %s79, 1
    %p83 = scmp.eq.s32.totalorder %s24, 1
    %p84 = scmp.ne.s32.totalorder %s79, %s81
    %p85 = scmp.eq.s32.totalorder %s24, 0
    %p86 = por %p84, %p85
    %p87 = scmp.ne.s32.totalorder %s79, %s81
    %p88 = scmp.eq.s32.totalorder %s29, 1
    %p89 = por %p87, %p88
    %p90 = scmp.ne.s32.totalorder %s81, %s82
    %p91 = scmp.eq.s32.totalorder %s29, 0
    %p92 = por %p90, %p91
    %p93 = scmp.ne.s32.totalorder %s81, %s82
    %p94 = scmp.eq.s32.totalorder %s30, 1
    %p95 = por %p93, %p94
    %p97 = scmp.ne.s32.totalorder %s82, %s96
    %p98 = scmp.eq.s32.totalorder %s30, 0
    %p99 = por %p97, %p98
    %s101 = sadd.s32 %s100, 1
    %p104 = scmp.eq.s32.totalorder %s24, 1
    %p105 = scmp.ne.s32.totalorder %s100, %s102
    %p106 = scmp.eq.s32.totalorder %s24, 0
    %p107 = por %p105, %p106
    %p108 = scmp.ne.s32.totalorder %s100, %s102
    %p109 = scmp.eq.s32.totalorder %s29, 1
    %p110 = por %p108, %p109
    %p111 = scmp.ne.s32.totalorder %s102, %s103
    %p112 = scmp.eq.s32.totalorder %s29, 0
    %p113 = por %p111, %p112
    %p114 = scmp.ne.s32.totalorder %s102, %s103
    %p115 = scmp.eq.s32.totalorder %s30, 1
    %p116 = por %p114, %p115
    %p118 = scmp.ne.s32.totalorder %s103, %s117
    %p119 = scmp.eq.s32.totalorder %s30, 0
    %p120 = por %p118, %p119
    %s122 = sadd.s32 %s121, 1
    %p125 = scmp.eq.s32.totalorder %s24, 1
    %p126 = scmp.ne.s32.totalorder %s121, %s123
    %p127 = scmp.eq.s32.totalorder %s24, 0
    %p128 = por %p126, %p127
    %p129 = scmp.ne.s32.totalorder %s121, %s123
    %p130 = scmp.eq.s32.totalorder %s29, 1
    %p131 = por %p129, %p130
    %p132 = scmp.ne.s32.totalorder %s123, %s124
    %p133 = scmp.eq.s32.totalorder %s29, 0
    %p134 = por %p132, %p133
    %p135 = scmp.ne.s32.totalorder %s123, %s124
    %p136 = scmp.eq.s32.totalorder %s30, 1
    %p137 = por %p135, %p136
    %p139 = scmp.ne.s32.totalorder %s124, %s138
    %p140 = scmp.eq.s32.totalorder %s30, 0
    %p141 = por %p139, %p140
    %s143 = sadd.s32 %s142, 1
    %p146 = scmp.eq.s32.totalorder %s24, 1
    %p147 = scmp.ne.s32.totalorder %s142, %s144
    %p148 = scmp.eq.s32.totalorder %s24, 0
    %p149 = por %p147, %p148
    %p150 = scmp.ne.s32.totalorder %s142, %s144
    %p151 = scmp.eq.s32.totalorder %s29, 1
    %p152 = por %p150, %p151
    %p153 = scmp.ne.s32.totalorder %s144, %s145
    %p154 = scmp.eq.s32.totalorder %s29, 0
    %p155 = por %p153, %p154
    %p156 = scmp.ne.s32.totalorder %s144, %s145
    %p157 = scmp.eq.s32.totalorder %s30, 1
    %p158 = por %p156, %p157
    %p160 = scmp.ne.s32.totalorder %s145, %s159
    %p161 = scmp.eq.s32.totalorder %s30, 0
    %p162 = por %p160, %p161
    %s164 = sadd.s32 %s163, 1
    %p167 = scmp.eq.s32.totalorder %s24, 1
    %p168 = scmp.ne.s32.totalorder %s163, %s165
    %p169 = scmp.eq.s32.totalorder %s24, 0
    %p170 = por %p168, %p169
    %p171 = scmp.ne.s32.totalorder %s163, %s165
    %p172 = scmp.eq.s32.totalorder %s29, 1
    %p173 = por %p171, %p172
    %p174 = scmp.ne.s32.totalorder %s165, %s166
    %p175 = scmp.eq.s32.totalorder %s29, 0
    %p176 = por %p174, %p175
    %p177 = scmp.ne.s32.totalorder %s165, %s166
    %p178 = scmp.eq.s32.totalorder %s30, 1
    %p179 = por %p177, %p178
    %p181 = scmp.ne.s32.totalorder %s166, %s180
    %p182 = scmp.eq.s32.totalorder %s30, 0
    %p183 = por %p181, %p182
    %s185 = sadd.s32 %s184, 1
    %p188 = scmp.eq.s32.totalorder %s24, 1
    %p189 = scmp.ne.s32.totalorder %s184, %s186
    %p190 = scmp.eq.s32.totalorder %s24, 0
    %p191 = por %p189, %p190
    %p192 = scmp.ne.s32.totalorder %s184, %s186
    %p193 = scmp.eq.s32.totalorder %s29, 1
    %p194 = por %p192, %p193
    %p195 = scmp.ne.s32.totalorder %s186, %s187
    %p196 = scmp.eq.s32.totalorder %s29, 0
    %p197 = por %p195, %p196
    %p198 = scmp.ne.s32.totalorder %s186, %s187
    %p199 = scmp.eq.s32.totalorder %s30, 1
    %p200 = por %p198, %p199
    %p202 = scmp.ne.s32.totalorder %s187, %s201
    %p203 = scmp.eq.s32.totalorder %s30, 0
    %p204 = por %p202, %p203
    %s206 = sadd.s32 %s205, 1
    %p209 = scmp.eq.s32.totalorder %s24, 1
    %p210 = scmp.ne.s32.totalorder %s205, %s207
    %p211 = scmp.eq.s32.totalorder %s24, 0
    %p212 = por %p210, %p211
    %p213 = scmp.ne.s32.totalorder %s205, %s207
    %p214 = scmp.eq.s32.totalorder %s29, 1
    %p215 = por %p213, %p214
    %p216 = scmp.ne.s32.totalorder %s207, %s208
    %p217 = scmp.eq.s32.totalorder %s29, 0
    %p218 = por %p216, %p217
    %p219 = scmp.ne.s32.totalorder %s207, %s208
    %p220 = scmp.eq.s32.totalorder %s30, 1
    %p221 = por %p219, %p220
    %p223 = scmp.ne.s32.totalorder %s208, %s222
    %p224 = scmp.eq.s32.totalorder %s30, 0
    %p225 = por %p223, %p224
    %s227 = sadd.s32 %s226, 1
    %p230 = scmp.eq.s32.totalorder %s24, 1
    %p231 = scmp.ne.s32.totalorder %s226, %s228
    %p232 = scmp.eq.s32.totalorder %s24, 0
    %p233 = por %p231, %p232
    %p234 = scmp.ne.s32.totalorder %s226, %s228
    %p235 = scmp.eq.s32.totalorder %s29, 1
    %p236 = por %p234, %p235
    %p237 = scmp.ne.s32.totalorder %s228, %s229
    %p238 = scmp.eq.s32.totalorder %s29, 0
    %p239 = por %p237, %p238
    %p240 = scmp.ne.s32.totalorder %s228, %s229
    %p241 = scmp.eq.s32.totalorder %s30, 1
    %p242 = por %p240, %p241
    %p244 = scmp.ne.s32.totalorder %s229, %s243
    %p245 = scmp.eq.s32.totalorder %s30, 0
    %p246 = por %p244, %p245
    %s248 = sadd.s32 %s247, 1
    %p251 = scmp.eq.s32.totalorder %s24, 1
    %p252 = scmp.ne.s32.totalorder %s247, %s249
    %p253 = scmp.eq.s32.totalorder %s24, 0
    %p254 = por %p252, %p253
    %p255 = scmp.ne.s32.totalorder %s247, %s249
    %p256 = scmp.eq.s32.totalorder %s29, 1
    %p257 = por %p255, %p256
    %p258 = scmp.ne.s32.totalorder %s249, %s250
    %p259 = scmp.eq.s32.totalorder %s29, 0
    %p260 = por %p258, %p259
    %p261 = scmp.ne.s32.totalorder %s249, %s250
    %p262 = scmp.eq.s32.totalorder %s30, 1
    %p263 = por %p261, %p262
    %p265 = scmp.ne.s32.totalorder %s250, %s264
    %p266 = scmp.eq.s32.totalorder %s30, 0
    %p267 = por %p265, %p266
    %s269 = sadd.s32 %s268, 1
    %p272 = scmp.eq.s32.totalorder %s24, 1
    %p273 = scmp.ne.s32.totalorder %s268, %s270
    %p274 = scmp.eq.s32.totalorder %s24, 0
    %p275 = por %p273, %p274
    %p276 = scmp.ne.s32.totalorder %s268, %s270
    %p277 = scmp.eq.s32.totalorder %s29, 1
    %p278 = por %p276, %p277
    %p279 = scmp.ne.s32.totalorder %s270, %s271
    %p280 = scmp.eq.s32.totalorder %s29, 0
    %p281 = por %p279, %p280
    %p282 = scmp.ne.s32.totalorder %s270, %s271
    %p283 = scmp.eq.s32.totalorder %s30, 1
    %p284 = por %p282, %p283
    %p286 = scmp.ne.s32.totalorder %s271, %s285
    %p287 = scmp.eq.s32.totalorder %s30, 0
    %p288 = por %p286, %p287
    %s290 = sadd.s32 %s289, 1
    %p293 = scmp.eq.s32.totalorder %s24, 1
    %p294 = scmp.ne.s32.totalorder %s289, %s291
    %p295 = scmp.eq.s32.totalorder %s24, 0
    %p296 = por %p294, %p295
    %p297 = scmp.ne.s32.totalorder %s289, %s291
    %p298 = scmp.eq.s32.totalorder %s29, 1
    %p299 = por %p297, %p298
    %p300 = scmp.ne.s32.totalorder %s291, %s292
    %p301 = scmp.eq.s32.totalorder %s29, 0
    %p302 = por %p300, %p301
    %p303 = scmp.ne.s32.totalorder %s291, %s292
    %p304 = scmp.eq.s32.totalorder %s30, 1
    %p305 = por %p303, %p304
    %p307 = scmp.ne.s32.totalorder %s292, %s306
    %p308 = scmp.eq.s32.totalorder %s30, 0
    %p309 = por %p307, %p308
    %s311 = sadd.s32 %s310, 1
    %p314 = scmp.eq.s32.totalorder %s24, 1
    %p315 = scmp.ne.s32.totalorder %s310, %s312
    %p316 = scmp.eq.s32.totalorder %s24, 0
    %p317 = por %p315, %p316
    %p318 = scmp.ne.s32.totalorder %s310, %s312
    %p319 = scmp.eq.s32.totalorder %s29, 1
    %p320 = por %p318, %p319
    %p321 = scmp.ne.s32.totalorder %s312, %s313
    %p322 = scmp.eq.s32.totalorder %s29, 0
    %p323 = por %p321, %p322
    %p324 = scmp.ne.s32.totalorder %s312, %s313
    %p325 = scmp.eq.s32.totalorder %s30, 1
    %p326 = por %p324, %p325
    %p328 = scmp.ne.s32.totalorder %s313, %s327
    %p329 = scmp.eq.s32.totalorder %s30, 0
    %p330 = por %p328, %p329
    %s332 = sadd.s32 %s331, 1
    %p335 = scmp.eq.s32.totalorder %s24, 1
    %p336 = scmp.ne.s32.totalorder %s331, %s333
    %p337 = scmp.eq.s32.totalorder %s24, 0
    %p338 = por %p336, %p337
    %p339 = scmp.ne.s32.totalorder %s331, %s333
    %p340 = scmp.eq.s32.totalorder %s29, 1
    %p341 = por %p339, %p340
    %p342 = scmp.ne.s32.totalorder %s333, %s334
    %p343 = scmp.eq.s32.totalorder %s29, 0
    %p344 = por %p342, %p343
    %p345 = scmp.ne.s32.totalorder %s333, %s334
    %p346 = scmp.eq.s32.totalorder %s30, 1
    %p347 = por %p345, %p346
    %p349 = scmp.ne.s32.totalorder %s334, %s348
    %p350 = scmp.eq.s32.totalorder %s30, 0
    %p351 = por %p349, %p350
    %s353 = sadd.s32 %s352, 1
    %p356 = scmp.eq.s32.totalorder %s24, 1
    %p357 = scmp.ne.s32.totalorder %s352, %s354
    %p358 = scmp.eq.s32.totalorder %s24, 0
    %p359 = por %p357, %p358
    %p360 = scmp.ne.s32.totalorder %s352, %s354
    %p361 = scmp.eq.s32.totalorder %s29, 1
    %p362 = por %p360, %p361
    %p363 = scmp.ne.s32.totalorder %s354, %s355
    %p364 = scmp.eq.s32.totalorder %s29, 0
    %p365 = por %p363, %p364
    %p366 = scmp.ne.s32.totalorder %s354, %s355
    %p367 = scmp.eq.s32.totalorder %s30, 1
    %p368 = por %p366, %p367
    %p370 = scmp.ne.s32.totalorder %s355, %s369
    %p371 = scmp.eq.s32.totalorder %s30, 0
    %p372 = por %p370, %p371
    %s374 = sadd.s32 %s373, 1
    %p377 = scmp.eq.s32.totalorder %s24, 1
    %p378 = scmp.ne.s32.totalorder %s373, %s375
    %p379 = scmp.eq.s32.totalorder %s24, 0
    %p380 = por %p378, %p379
    %p381 = scmp.ne.s32.totalorder %s373, %s375
    %p382 = scmp.eq.s32.totalorder %s29, 1
    %p383 = por %p381, %p382
    %p384 = scmp.ne.s32.totalorder %s375, %s376
    %p385 = scmp.eq.s32.totalorder %s29, 0
    %p386 = por %p384, %p385
    %p387 = scmp.ne.s32.totalorder %s375, %s376
    %p388 = scmp.eq.s32.totalorder %s30, 1
    %p389 = por %p387, %p388
    %p391 = scmp.ne.s32.totalorder %s376, %s390
    %p392 = scmp.eq.s32.totalorder %s30, 0
    %p393 = por %p391, %p392
    %s395 = sadd.s32 %s394, 1
    %p398 = scmp.eq.s32.totalorder %s24, 1
    %p399 = scmp.ne.s32.totalorder %s394, %s396
    %p400 = scmp.eq.s32.totalorder %s24, 0
    %p401 = por %p399, %p400
    %p402 = scmp.ne.s32.totalorder %s394, %s396
    %p403 = scmp.eq.s32.totalorder %s29, 1
    %p404 = por %p402, %p403
    %p405 = scmp.ne.s32.totalorder %s396, %s397
    %p406 = scmp.eq.s32.totalorder %s29, 0
    %p407 = por %p405, %p406
    %p408 = scmp.ne.s32.totalorder %s396, %s397
    %p409 = scmp.eq.s32.totalorder %s30, 1
    %p410 = por %p408, %p409
    %p412 = scmp.ne.s32.totalorder %s397, %s411
    %p413 = scmp.eq.s32.totalorder %s30, 0
    %p414 = por %p412, %p413
    %s415 = ssub.s32 %s24, %s31
    %p416 = scmp.eq.s32.totalorder %s415, 0
    %s418 = sadd.s32 %s417, 1
    %s419 = scalar_select %p416, %s417, %s418
    %p422 = pneg %p416
    %p423 = scmp.eq.s32.totalorder %s24, 1
    %p424 = por %p422, %p423
    %p425 = scmp.ne.s32.totalorder %s417, %s420
    %p426 = scmp.eq.s32.totalorder %s24, 0
    %p427 = por %p425, %p426
    %p428 = scmp.ne.s32.totalorder %s417, %s420
    %p429 = scmp.eq.s32.totalorder %s29, 1
    %p430 = por %p428, %p429
    %p431 = scmp.ne.s32.totalorder %s420, %s421
    %p432 = scmp.eq.s32.totalorder %s29, 0
    %p433 = por %p431, %p432
    %p434 = scmp.ne.s32.totalorder %s420, %s421
    %p435 = scmp.eq.s32.totalorder %s30, 1
    %p436 = por %p434, %p435
    %p438 = scmp.ne.s32.totalorder %s421, %s437
    %p439 = scmp.eq.s32.totalorder %s30, 0
    %p440 = por %p438, %p439
    %p441 = scmp.le.s32.totalorder 1, %s24
    %p442 = scmp.lt.s32.totalorder %s24, 3
    %p443 = pnand %p441, %p442
    %p444 = pneg %p443
    // Predicated region
    $region9: #{medsam_lite_forward.3} parent=5 // pred_check
      _
    $region10: #{medsam_lite_forward.3} parent=5 // pred_check_branch
      %446 = sbr.rel (%p443) target = $region12
    $region11: #{medsam_lite_forward.3} parent=5 // pred_region
      %s447 = ssub.s32 %s24, 1
      // Predicated region
      $region13: #{medsam_lite_forward.3} parent=11 // pred_check
        %p448 = pneg %p71
      $region14: #{medsam_lite_forward.3} parent=11 // pred_check_branch
        %450 = sbr.rel (%p448) target = $region16
      $region15: #{medsam_lite_forward.3} parent=11 // pred_region
        _
      $region16: #{medsam_lite_forward.3} parent=11 // pred_fallthru
        _
      // Predicated region
      $region17: #{medsam_lite_forward.3} parent=11 // pred_check
        %p451 = pneg %p92
      $region18: #{medsam_lite_forward.3} parent=11 // pred_check_branch
        %453 = sbr.rel (%p451) target = $region20
      $region19: #{medsam_lite_forward.3} parent=11 // pred_region
        _
      $region20: #{medsam_lite_forward.3} parent=11 // pred_fallthru
        _
      // Predicated region
      $region21: #{medsam_lite_forward.3} parent=11 // pred_check
        %p454 = pneg %p113
      $region22: #{medsam_lite_forward.3} parent=11 // pred_check_branch
        %456 = sbr.rel (%p454) target = $region24
      $region23: #{medsam_lite_forward.3} parent=11 // pred_region
        _
      $region24: #{medsam_lite_forward.3} parent=11 // pred_fallthru
        _
      // Predicated region
      $region25: #{medsam_lite_forward.3} parent=11 // pred_check
        %p457 = pneg %p134
      $region26: #{medsam_lite_forward.3} parent=11 // pred_check_branch
        %459 = sbr.rel (%p457) target = $region28
      $region27: #{medsam_lite_forward.3} parent=11 // pred_region
        _
      $region28: #{medsam_lite_forward.3} parent=11 // pred_fallthru
        _
      // Predicated region
      $region29: #{medsam_lite_forward.3} parent=11 // pred_check
        %p460 = pneg %p155
      $region30: #{medsam_lite_forward.3} parent=11 // pred_check_branch
        %462 = sbr.rel (%p460) target = $region32
      $region31: #{medsam_lite_forward.3} parent=11 // pred_region
        _
      $region32: #{medsam_lite_forward.3} parent=11 // pred_fallthru
        _
      // Predicated region
      $region33: #{medsam_lite_forward.3} parent=11 // pred_check
        %p463 = pneg %p176
      $region34: #{medsam_lite_forward.3} parent=11 // pred_check_branch
        %465 = sbr.rel (%p463) target = $region36
      $region35: #{medsam_lite_forward.3} parent=11 // pred_region
        _
      $region36: #{medsam_lite_forward.3} parent=11 // pred_fallthru
        _
      // Predicated region
      $region37: #{medsam_lite_forward.3} parent=11 // pred_check
        %p466 = pneg %p197
      $region38: #{medsam_lite_forward.3} parent=11 // pred_check_branch
        %468 = sbr.rel (%p466) target = $region40
      $region39: #{medsam_lite_forward.3} parent=11 // pred_region
        _
      $region40: #{medsam_lite_forward.3} parent=11 // pred_fallthru
        _
      // Predicated region
      $region41: #{medsam_lite_forward.3} parent=11 // pred_check
        %p469 = pneg %p218
      $region42: #{medsam_lite_forward.3} parent=11 // pred_check_branch
        %471 = sbr.rel (%p469) target = $region44
      $region43: #{medsam_lite_forward.3} parent=11 // pred_region
        _
      $region44: #{medsam_lite_forward.3} parent=11 // pred_fallthru
        _
      // Predicated region
      $region45: #{medsam_lite_forward.3} parent=11 // pred_check
        %p472 = pneg %p239
      $region46: #{medsam_lite_forward.3} parent=11 // pred_check_branch
        %474 = sbr.rel (%p472) target = $region48
      $region47: #{medsam_lite_forward.3} parent=11 // pred_region
        _
      $region48: #{medsam_lite_forward.3} parent=11 // pred_fallthru
        _
      // Predicated region
      $region49: #{medsam_lite_forward.3} parent=11 // pred_check
        %p475 = pneg %p260
      $region50: #{medsam_lite_forward.3} parent=11 // pred_check_branch
        %477 = sbr.rel (%p475) target = $region52
      $region51: #{medsam_lite_forward.3} parent=11 // pred_region
        _
      $region52: #{medsam_lite_forward.3} parent=11 // pred_fallthru
        _
      // Predicated region
      $region53: #{medsam_lite_forward.3} parent=11 // pred_check
        %p478 = pneg %p281
      $region54: #{medsam_lite_forward.3} parent=11 // pred_check_branch
        %480 = sbr.rel (%p478) target = $region56
      $region55: #{medsam_lite_forward.3} parent=11 // pred_region
        _
      $region56: #{medsam_lite_forward.3} parent=11 // pred_fallthru
        _
      // Predicated region
      $region57: #{medsam_lite_forward.3} parent=11 // pred_check
        %p481 = pneg %p302
      $region58: #{medsam_lite_forward.3} parent=11 // pred_check_branch
        %483 = sbr.rel (%p481) target = $region60
      $region59: #{medsam_lite_forward.3} parent=11 // pred_region
        _
      $region60: #{medsam_lite_forward.3} parent=11 // pred_fallthru
        _
      // Predicated region
      $region61: #{medsam_lite_forward.3} parent=11 // pred_check
        %p484 = pneg %p323
      $region62: #{medsam_lite_forward.3} parent=11 // pred_check_branch
        %486 = sbr.rel (%p484) target = $region64
      $region63: #{medsam_lite_forward.3} parent=11 // pred_region
        _
      $region64: #{medsam_lite_forward.3} parent=11 // pred_fallthru
        _
      // Predicated region
      $region65: #{medsam_lite_forward.3} parent=11 // pred_check
        %p487 = pneg %p344
      $region66: #{medsam_lite_forward.3} parent=11 // pred_check_branch
        %489 = sbr.rel (%p487) target = $region68
      $region67: #{medsam_lite_forward.3} parent=11 // pred_region
        _
      $region68: #{medsam_lite_forward.3} parent=11 // pred_fallthru
        _
      // Predicated region
      $region69: #{medsam_lite_forward.3} parent=11 // pred_check
        %p490 = pneg %p365
      $region70: #{medsam_lite_forward.3} parent=11 // pred_check_branch
        %492 = sbr.rel (%p490) target = $region72
      $region71: #{medsam_lite_forward.3} parent=11 // pred_region
        _
      $region72: #{medsam_lite_forward.3} parent=11 // pred_fallthru
        _
      // Predicated region
      $region73: #{medsam_lite_forward.3} parent=11 // pred_check
        %p493 = pneg %p386
      $region74: #{medsam_lite_forward.3} parent=11 // pred_check_branch
        %495 = sbr.rel (%p493) target = $region76
      $region75: #{medsam_lite_forward.3} parent=11 // pred_region
        _
      $region76: #{medsam_lite_forward.3} parent=11 // pred_fallthru
        _
      // Predicated region
      $region77: #{medsam_lite_forward.3} parent=11 // pred_check
        %p496 = pneg %p407
      $region78: #{medsam_lite_forward.3} parent=11 // pred_check_branch
        %498 = sbr.rel (%p496) target = $region80
      $region79: #{medsam_lite_forward.3} parent=11 // pred_region
        _
      $region80: #{medsam_lite_forward.3} parent=11 // pred_fallthru
        _
    $region12: #{medsam_lite_forward.3} parent=5 // pred_fallthru
      _
    %p499 = scmp.lt.s32.totalorder %s24, 2
    // Predicated region
    $region81: #{medsam_lite_forward.3} parent=5 // pred_check
      %p500 = pneg %p499
    $region82: #{medsam_lite_forward.3} parent=5 // pred_check_branch
      %502 = sbr.rel (%p500) target = $region84
    $region83: #{medsam_lite_forward.3} parent=5 // pred_region
      // Predicated region
      $region85: #{medsam_lite_forward.3} parent=83 // pred_check
        %p503 = pneg %p44
      $region86: #{medsam_lite_forward.3} parent=83 // pred_check_branch
        %505 = sbr.rel (%p503) target = $region88
      $region87: #{medsam_lite_forward.3} parent=83 // pred_region
        %p506 = scmp.lt.s32.totalorder %s24, 1
        %s507 = scalar_select %p506, %s24, 1
        %s508 = smul.addr %s507, 8
        %s509 = smul.addr %s508, 8
        %s510 = scalar_lea.vmem %s0, %s509
      $region88: #{medsam_lite_forward.3} parent=83 // pred_fallthru
        _
    $region84: #{medsam_lite_forward.3} parent=5 // pred_fallthru
      _
    %p511 = scmp.le.s32.totalorder 1, %s24
    %p512 = scmp.lt.s32.totalorder %s24, 3
    %p513 = pnand %p511, %p512
    %p514 = pneg %p513
    // Predicated region
    $region89: #{medsam_lite_forward.3} parent=5 // pred_check
      _
    $region90: #{medsam_lite_forward.3} parent=5 // pred_check_branch
      %516 = sbr.rel (%p513) target = $region92
    $region91: #{medsam_lite_forward.3} parent=5 // pred_region
      %s517 = ssub.s32 %s24, 1
      %p518 = scmp.lt.s32.totalorder %s29, 1
      %s519 = scalar_select %p518, %s29, 1
      %s520 = smul.addr %s519, 8
      %s521 = smul.addr %s520, 8
      %s522 = scalar_lea.vmem %s0, %s521
      %p523 = pneg %p50
      %p524 = pneg %p47
      %p525 = pneg %p71
      %p526 = pneg %p68
      %p527 = pneg %p92
      %p528 = pneg %p89
      %p529 = pneg %p113
      %p530 = pneg %p110
      %p531 = pneg %p134
      %p532 = pneg %p131
      %p533 = pneg %p155
      %p534 = pneg %p152
      %p535 = pneg %p176
      %p536 = pneg %p173
      %p537 = pneg %p197
      %p538 = pneg %p194
      %p539 = pneg %p218
      %p540 = pneg %p215
      %p541 = pneg %p239
      %p542 = pneg %p236
      %p543 = pneg %p260
      %p544 = pneg %p257
      %p545 = pneg %p281
      %p546 = pneg %p278
      %p547 = pneg %p302
      %p548 = pneg %p299
      %p549 = pneg %p323
      %p550 = pneg %p320
      %p551 = pneg %p344
      %p552 = pneg %p341
      %p553 = pneg %p365
      %p554 = pneg %p362
      %p555 = pneg %p386
      %p556 = pneg %p383
      %p557 = pneg %p407
      %p558 = pneg %p404
      %p559 = pneg %p433
      %p560 = pneg %p430
      %p561 = scmp.lt.s32.totalorder %s29, 1
      %s562 = scalar_select %p561, %s29, 1
      %s563 = smul.addr %s562, 8
      %s564 = smul.addr %s563, 8
      %s565 = scalar_lea.vmem %s18, %s564
      %p566 = scmp.lt.s32.totalorder %s29, 1
      %s567 = scalar_select %p566, %s29, 1
      %s568 = smul.addr %s567, 8
      %s569 = smul.addr %s568, 8
      %s570 = scalar_lea.vmem %s0, %s569
      %p571 = scmp.lt.s32.totalorder %s29, 1
      %s572 = scalar_select %p571, %s29, 1
      %s573 = smul.addr %s572, 8
      %s574 = smul.addr %s573, 8
      %s575 = scalar_lea.vmem %s18, %s574
      %v577 = vld [vmem:[%s1] sm:$0xff]
      %v578 = vld [vmem:[%s1 + $0x8] sm:$0xff]
      %v579 = vld [vmem:[%s1 + $0x10] sm:$0xff]
      %v580 = vld [vmem:[%s1 + $0x18] sm:$0xff]
      %v581 = vld [vmem:[%s1 + $0x20] sm:$0xff]
      %v582 = vld [vmem:[%s1 + $0x28] sm:$0xff]
      %v583 = vld [vmem:[%s1 + $0x30] sm:$0xff]
      %v584 = vld [vmem:[%s1 + $0x38] sm:$0xff]
      %v585 = vld [vmem:[%s2] sm:$0xf]
      %v586 = vld [vmem:[%s2 + $0x4] sm:$0xf]
      %v587 = vld [vmem:[%s2 + $0x8] sm:$0xf]
      %v588 = vld [vmem:[%s2 + $0xc] sm:$0xf]
      %v589 = vld [vmem:[%s2 + $0x10] sm:$0xf]
      %v590 = vld [vmem:[%s2 + $0x14] sm:$0xf]
      %v591 = vld [vmem:[%s3] sm:$0x1]
      %v592 = vld [vmem:[%s4] sm:$0x1]
      %v593 = vld [vmem:[%s5] sm:$0x1]
      %v594 = vld [vmem:[%s6] sm:$0xf]
      %v595 = vld [vmem:[%s6 + $0x4] sm:$0xf]
      %v596 = vld [vmem:[%s6 + $0x8] sm:$0xf]
      %v597 = vld [vmem:[%s6 + $0xc] sm:$0xf]
      %v598 = vld [vmem:[%s7] sm:$0x1]
      %v599 = vld [vmem:[%s8] sm:$0xf]
      %v600 = vld [vmem:[%s8 + $0x4] sm:$0xf]
      %v601 = vld [vmem:[%s8 + $0x8] sm:$0xf]
      %v602 = vld [vmem:[%s8 + $0xc] sm:$0xf]
      %v603 = vld [vmem:[%s9] sm:$0x1]
      %v604 = vld [vmem:[%s10] sm:$0x1]
      %v605 = vld [vmem:[%s11] sm:$0x1]
      %v606 = vld [vmem:[%s12] sm:$0xf]
      %v607 = vld [vmem:[%s12 + $0x4] sm:$0xf]
      %v608 = vld [vmem:[%s12 + $0x8] sm:$0xf]
      %v609 = vld [vmem:[%s12 + $0xc] sm:$0xf]
      %v610 = vld [vmem:[%s13] sm:$0x1]
      %v611 = vld [vmem:[%s14] sm:$0xf]
      %v612 = vld [vmem:[%s14 + $0x4] sm:$0xf]
      %v613 = vld [vmem:[%s14 + $0x8] sm:$0xf]
      %v614 = vld [vmem:[%s14 + $0xc] sm:$0xf]
      %v615 = vld [vmem:[%s14 + $0x10] sm:$0xf]
      %v616 = vld [vmem:[%s14 + $0x14] sm:$0xf]
      %v617 = vld [vmem:[%s14 + $0x18] sm:$0xf]
      %v618 = vld [vmem:[%s14 + $0x1c] sm:$0xf]
      %v619 = vld [vmem:[%s15] sm:$0x1]
      %v620 = vld [vmem:[%s16] sm:$0x1]
      %v621 = vld [vmem:[%s17] sm:$0x1]
      %v622 = vld [vmem:[%s570] sm:$0xff]
      %v623 = vld [vmem:[%s570 + $0x8] sm:$0xff]
      %v624 = vld [vmem:[%s570 + $0x10] sm:$0xff]
      %v625 = vld [vmem:[%s570 + $0x18] sm:$0xff]
      %v626 = vld [vmem:[%s570 + $0x20] sm:$0xff]
      %v627 = vld [vmem:[%s570 + $0x28] sm:$0xff]
      %v628 = vld [vmem:[%s570 + $0x30] sm:$0xff]
      %v629 = vld [vmem:[%s570 + $0x38] sm:$0xff]
      %v630 = vpack.c.bf16 %v623, %v622
      %v631 = vpack.c.bf16 %v625, %v624
      %v632 = vpack.c.bf16 %v627, %v626
      %v633 = vpack.c.bf16 %v629, %v628
      %v635 = vlaneseq
      %v636 = vshrl.u32 %v635, 7
      %v637 = vsub.s32 0, %v636
      %v638 = vrot.slane %v591, %v637
      %v646 = vunpack.c.l.b16 %v585
      %v647 = vunpack.c.l.b16 %v586
      %v648 = vunpack.c.l.b16 %v587
      %v649 = vunpack.c.l.b16 %v588
      %v650 = vunpack.c.l.b16 %v589
      %v651 = vunpack.c.l.b16 %v590
      %v652 = vpack.c.b16 %v647, %v646
      %v653 = vpack.c.b16 %v649, %v648
      %v654 = vpack.c.b16 %v651, %v650
      %vm658 = vcmask 392192
      %v660 = vsel %vm658, %v630, 0
      %v663 = vsel %vm658, %v631, 0
      %v666 = vsel %vm658, %v632, 0
      %v669 = vsel %vm658, %v633, 0
      %671 = vmatprep.subr.bf16.mxu0 0
      %672 = vmatpush1.bf16.msra.mxu0 0
      %673 = vmatprep.subr.bf16.mxu0 0
      %674 = vmatpush1.bf16.msra.mxu0 0
      %675 = vmatprep.subr.bf16.mxu0 0
      %676 = vmatpush1.bf16.msra.mxu0 0
      %677 = vmatprep.subr.bf16.mxu0 0
      %678 = vmatpush1.bf16.msra.mxu0 0
      %679 = vmatprep.subr.bf16.mxu0 0
      %680 = vmatpush1.bf16.msra.mxu0 0
      %681 = vmatprep.subr.bf16.mxu0 0
      %682 = vmatpush1.bf16.msra.mxu0 %v654
      %683 = vmatprep.subr.bf16.mxu0 0
      %684 = vmatpush1.bf16.msra.mxu0 %v653
      %685 = vmatprep.subr.bf16.mxu0 0
      %686 = vmatpush1.bf16.msra.mxu0 %v652
      %687 = vmatprep.subr.bf16.mxu0 0
      %688 = vmatpush2.bf16.msra.mxu0 0
      %689 = vmatprep.subr.bf16.mxu0 0
      %690 = vmatpush2.bf16.msra.mxu0 0
      %691 = vmatprep.subr.bf16.mxu0 0
      %692 = vmatpush2.bf16.msra.mxu0 0
      %693 = vmatprep.subr.bf16.mxu0 0
      %694 = vmatpush2.bf16.msra.mxu0 0
      %695 = vmatprep.subr.bf16.mxu0 0
      %696 = vmatpush2.bf16.msra.mxu0 0
      %697 = vmatprep.subr.bf16.mxu0 0
      %698 = vmatpush2.bf16.msra.mxu0 0
      %699 = vmatprep.subr.bf16.mxu0 0
      %700 = vmatpush2.bf16.msra.mxu0 0
      %701 = vmatprep.subr.bf16.mxu0 0
      %702 = vmatpush2.bf16.msra.mxu0 0
      %703 = vmatprep.mubr.bf16.mxu0 0
      %704 = vmatmul.mubr.bf16.gmra.mxu0 %v660
      %v705 = vpop.f32.mrf.mxu0
      %v706 = vadd.f32 %v638, %v705
      %v707 = vpop.f32.mrf.mxu0
      %v708 = vpop.f32.mrf.mxu0
      %v709 = vadd.f32 %v638, %v708
      %v710 = vpop.f32.mrf.mxu0
      %711 = vmatprep.mubr.bf16.mxu0 0
      %712 = vmatmul.mubr.bf16.gmra.mxu0 %v663
      %v713 = vpop.f32.mrf.mxu0
      %v714 = vadd.f32 %v638, %v713
      %v715 = vpop.f32.mrf.mxu0
      %v716 = vpop.f32.mrf.mxu0
      %v717 = vadd.f32 %v638, %v716
      %v718 = vpop.f32.mrf.mxu0
      %719 = vmatprep.mubr.bf16.mxu0 0
      %720 = vmatmul.mubr.bf16.gmra.mxu0 %v666
      %v721 = vpop.f32.mrf.mxu0
      %v722 = vadd.f32 %v638, %v721
      %v723 = vpop.f32.mrf.mxu0
      %v724 = vpop.f32.mrf.mxu0
      %v725 = vadd.f32 %v638, %v724
      %v726 = vpop.f32.mrf.mxu0
      %727 = vmatprep.mubr.bf16.mxu0 0
      %728 = vmatmul.mubr.bf16.gmra.mxu0 %v669
      %v729 = vpop.f32.mrf.mxu0
      %v730 = vadd.f32 %v638, %v729
      %v731 = vpop.f32.mrf.mxu0
      %v732 = vpop.f32.mrf.mxu0
      %v733 = vadd.f32 %v638, %v732
      %v734 = vpop.f32.mrf.mxu0
      %735 = vdwg.mxu0
      %v736 = vadd.f32 %v706, %v577
      %v737 = vadd.f32 %v709, %v578
      %v738 = vadd.f32 %v714, %v579
      %v739 = vadd.f32 %v717, %v580
      %v740 = vadd.f32 %v722, %v581
      %v741 = vadd.f32 %v725, %v582
      %v742 = vadd.f32 %v730, %v583
      %v743 = vadd.f32 %v733, %v584
      %vm744 = vcmask 261120
      %v745 = vsel %vm744, %v736, 0.0
      %746 = vadd.xlane.f32.xlu0 %v745
      %v747 = vpop.xlane.xlu0 %746
      %v748 = vsel %vm744, %v737, 0.0
      %749 = vadd.xlane.f32.xlu0 %v748
      %v750 = vpop.xlane.xlu0 %749
      %v751 = vsel %vm744, %v738, 0.0
      %752 = vadd.xlane.f32.xlu0 %v751
      %v753 = vpop.xlane.xlu0 %752
      %v754 = vsel %vm744, %v739, 0.0
      %755 = vadd.xlane.f32.xlu0 %v754
      %v756 = vpop.xlane.xlu0 %755
      %v757 = vsel %vm744, %v740, 0.0
      %758 = vadd.xlane.f32.xlu0 %v757
      %v759 = vpop.xlane.xlu0 %758
      %v760 = vsel %vm744, %v741, 0.0
      %761 = vadd.xlane.f32.xlu0 %v760
      %v762 = vpop.xlane.xlu0 %761
      %v763 = vsel %vm744, %v742, 0.0
      %764 = vadd.xlane.f32.xlu0 %v763
      %v765 = vpop.xlane.xlu0 %764
      %v766 = vsel %vm744, %v743, 0.0
      %767 = vadd.xlane.f32.xlu0 %v766
      %v768 = vpop.xlane.xlu0 %767
      %v769 = vrcp.pop 32.0
      %v770 = vmul.f32 %v747, %v769
      %v771 = vmul.f32 %v750, %v769
      %v772 = vmul.f32 %v753, %v769
      %v773 = vmul.f32 %v756, %v769
      %v774 = vmul.f32 %v759, %v769
      %v775 = vmul.f32 %v762, %v769
      %v776 = vmul.f32 %v765, %v769
      %v777 = vmul.f32 %v768, %v769
      %v778 = vsub.f32 %v736, %v770
      %v779 = vsub.f32 %v737, %v771
      %v780 = vsub.f32 %v738, %v772
      %v781 = vsub.f32 %v739, %v773
      %v782 = vsub.f32 %v740, %v774
      %v783 = vsub.f32 %v741, %v775
      %v784 = vsub.f32 %v742, %v776
      %v785 = vsub.f32 %v743, %v777
      %v786 = vmul.f32 %v778, %v778
      %v787 = vmul.f32 %v779, %v779
      %v788 = vmul.f32 %v780, %v780
      %v789 = vmul.f32 %v781, %v781
      %v790 = vmul.f32 %v782, %v782
      %v791 = vmul.f32 %v783, %v783
      %v792 = vmul.f32 %v784, %v784
      %v793 = vmul.f32 %v785, %v785
      %v794 = vsel %vm744, %v786, 0.0
      %795 = vadd.xlane.f32.xlu0 %v794
      %v796 = vpop.xlane.xlu0 %795
      %v797 = vsel %vm744, %v787, 0.0
      %798 = vadd.xlane.f32.xlu0 %v797
      %v799 = vpop.xlane.xlu0 %798
      %v800 = vsel %vm744, %v788, 0.0
      %801 = vadd.xlane.f32.xlu0 %v800
      %v802 = vpop.xlane.xlu0 %801
      %v803 = vsel %vm744, %v789, 0.0
      %804 = vadd.xlane.f32.xlu0 %v803
      %v805 = vpop.xlane.xlu0 %804
      %v806 = vsel %vm744, %v790, 0.0
      %807 = vadd.xlane.f32.xlu0 %v806
      %v808 = vpop.xlane.xlu0 %807
      %v809 = vsel %vm744, %v791, 0.0
      %810 = vadd.xlane.f32.xlu0 %v809
      %v811 = vpop.xlane.xlu0 %810
      %v812 = vsel %vm744, %v792, 0.0
      %813 = vadd.xlane.f32.xlu0 %v812
      %v814 = vpop.xlane.xlu0 %813
      %v815 = vsel %vm744, %v793, 0.0
      %816 = vadd.xlane.f32.xlu0 %v815
      %v817 = vpop.xlane.xlu0 %816
      %v818 = vmul.f32 %v796, %v769
      %v819 = vmul.f32 %v799, %v769
      %v820 = vmul.f32 %v802, %v769
      %v821 = vmul.f32 %v805, %v769
      %v822 = vmul.f32 %v808, %v769
      %v823 = vmul.f32 %v811, %v769
      %v824 = vmul.f32 %v814, %v769
      %v825 = vmul.f32 %v817, %v769
      %v826 = vadd.f32 %v818, 1e-06
      %v827 = vadd.f32 %v819, 1e-06
      %v828 = vadd.f32 %v820, 1e-06
      %v829 = vadd.f32 %v821, 1e-06
      %v830 = vadd.f32 %v822, 1e-06
      %v831 = vadd.f32 %v823, 1e-06
      %v832 = vadd.f32 %v824, 1e-06
      %v833 = vadd.f32 %v825, 1e-06
      %v834 = vrsqrt.pop %v826
      %v835 = vrsqrt.pop %v827
      %v836 = vrsqrt.pop %v828
      %v837 = vrsqrt.pop %v829
      %v838 = vrsqrt.pop %v830
      %v839 = vrsqrt.pop %v831
      %v840 = vrsqrt.pop %v832
      %v841 = vrsqrt.pop %v833
      %v842 = vmul.f32 %v778, %v834
      %v843 = vmul.f32 %v779, %v835
      %v844 = vmul.f32 %v780, %v836
      %v845 = vmul.f32 %v781, %v837
      %v846 = vmul.f32 %v782, %v838
      %v847 = vmul.f32 %v783, %v839
      %v848 = vmul.f32 %v784, %v840
      %v849 = vmul.f32 %v785, %v841
      %v851 = vlaneseq
      %v852 = vshrl.u32 %v851, 7
      %v853 = vsub.s32 0, %v852
      %v854 = vrot.slane %v592, %v853
      %v856 = vmul.f32 %v842, %v854
      %v857 = vmul.f32 %v843, %v854
      %v858 = vmul.f32 %v844, %v854
      %v859 = vmul.f32 %v845, %v854
      %v860 = vmul.f32 %v846, %v854
      %v861 = vmul.f32 %v847, %v854
      %v862 = vmul.f32 %v848, %v854
      %v863 = vmul.f32 %v849, %v854
      %v865 = vlaneseq
      %v866 = vshrl.u32 %v865, 7
      %v867 = vsub.s32 0, %v866
      %v868 = vrot.slane %v593, %v867
      %v870 = vadd.f32 %v856, %v868
      %v871 = vadd.f32 %v857, %v868
      %v872 = vadd.f32 %v858, %v868
      %v873 = vadd.f32 %v859, %v868
      %v874 = vadd.f32 %v860, %v868
      %v875 = vadd.f32 %v861, %v868
      %v876 = vadd.f32 %v862, %v868
      %v877 = vadd.f32 %v863, %v868
      %v878 = vpack.c.bf16 %v871, %v870
      %v879 = vpack.c.bf16 %v873, %v872
      %v880 = vpack.c.bf16 %v875, %v874
      %v881 = vpack.c.bf16 %v877, %v876
      %v883 = vlaneseq
      %v884 = vshrl.u32 %v883, 7
      %v885 = vsub.s32 0, %v884
      %v886 = vrot.slane %v598, %v885
      %v892 = vunpack.c.l.b16 %v594
      %v893 = vunpack.c.l.b16 %v595
      %v894 = vunpack.c.l.b16 %v596
      %v895 = vunpack.c.l.b16 %v597
      %v896 = vpack.c.b16 %v893, %v892
      %v897 = vpack.c.b16 %v895, %v894
      %v901 = vsel %vm744, %v878, 0
      %v904 = vsel %vm744, %v879, 0
      %v907 = vsel %vm744, %v880, 0
      %v910 = vsel %vm744, %v881, 0
      %912 = vmatprep.subr.bf16.mxu0 0
      %913 = vmatpush1.bf16.msra.mxu0 0
      %914 = vmatprep.subr.bf16.mxu0 0
      %915 = vmatpush1.bf16.msra.mxu0 0
      %916 = vmatprep.subr.bf16.mxu0 0
      %917 = vmatpush1.bf16.msra.mxu0 0
      %918 = vmatprep.subr.bf16.mxu0 0
      %919 = vmatpush1.bf16.msra.mxu0 0
      %920 = vmatprep.subr.bf16.mxu0 0
      %921 = vmatpush1.bf16.msra.mxu0 0
      %922 = vmatprep.subr.bf16.mxu0 0
      %923 = vmatpush1.bf16.msra.mxu0 0
      %924 = vmatprep.subr.bf16.mxu0 0
      %925 = vmatpush1.bf16.msra.mxu0 %v897
      %926 = vmatprep.subr.bf16.mxu0 0
      %927 = vmatpush1.bf16.msra.mxu0 %v896
      %928 = vmatprep.subr.bf16.mxu0 0
      %929 = vmatpush2.bf16.msra.mxu0 0
      %930 = vmatprep.subr.bf16.mxu0 0
      %931 = vmatpush2.bf16.msra.mxu0 0
      %932 = vmatprep.subr.bf16.mxu0 0
      %933 = vmatpush2.bf16.msra.mxu0 0
      %934 = vmatprep.subr.bf16.mxu0 0
      %935 = vmatpush2.bf16.msra.mxu0 0
      %936 = vmatprep.subr.bf16.mxu0 0
      %937 = vmatpush2.bf16.msra.mxu0 0
      %938 = vmatprep.subr.bf16.mxu0 0
      %939 = vmatpush2.bf16.msra.mxu0 0
      %940 = vmatprep.subr.bf16.mxu0 0
      %941 = vmatpush2.bf16.msra.mxu0 0
      %942 = vmatprep.subr.bf16.mxu0 0
      %943 = vmatpush2.bf16.msra.mxu0 0
      %944 = vmatprep.mubr.bf16.mxu0 0
      %945 = vmatmul.mubr.bf16.gmra.mxu0 %v901
      %v946 = vpop.f32.mrf.mxu0
      %v947 = vadd.f32 %v886, %v946
      %v948 = vpop.f32.mrf.mxu0
      %v949 = vpop.f32.mrf.mxu0
      %v950 = vadd.f32 %v886, %v949
      %v951 = vpop.f32.mrf.mxu0
      %952 = vmatprep.mubr.bf16.mxu0 0
      %953 = vmatmul.mubr.bf16.gmra.mxu0 %v904
      %v954 = vpop.f32.mrf.mxu0
      %v955 = vadd.f32 %v886, %v954
      %v956 = vpop.f32.mrf.mxu0
      %v957 = vpop.f32.mrf.mxu0
      %v958 = vadd.f32 %v886, %v957
      %v959 = vpop.f32.mrf.mxu0
      %960 = vmatprep.mubr.bf16.mxu0 0
      %961 = vmatmul.mubr.bf16.gmra.mxu0 %v907
      %v962 = vpop.f32.mrf.mxu0
      %v963 = vadd.f32 %v886, %v962
      %v964 = vpop.f32.mrf.mxu0
      %v965 = vpop.f32.mrf.mxu0
      %v966 = vadd.f32 %v886, %v965
      %v967 = vpop.f32.mrf.mxu0
      %968 = vmatprep.mubr.bf16.mxu0 0
      %969 = vmatmul.mubr.bf16.gmra.mxu0 %v910
      %v970 = vpop.f32.mrf.mxu0
      %v971 = vadd.f32 %v886, %v970
      %v972 = vpop.f32.mrf.mxu0
      %v973 = vpop.f32.mrf.mxu0
      %v974 = vadd.f32 %v886, %v973
      %v975 = vpop.f32.mrf.mxu0
      %976 = vdwg.mxu0
      %v977 = vpack.c.bf16 %v950, %v947
      %v978 = vpack.c.bf16 %v958, %v955
      %v979 = vpack.c.bf16 %v966, %v963
      %v980 = vpack.c.bf16 %v974, %v971
      %985 = vrot.lane.b32.xlu0 %v977, 96
      %v986 = vpop.permute.xlu0 %985
      %987 = vrot.lane.b32.xlu0 %v978, 96
      %v988 = vpop.permute.xlu0 %987
      %989 = vrot.lane.b32.xlu0 %v979, 96
      %v990 = vpop.permute.xlu0 %989
      %991 = vrot.lane.b32.xlu0 %v980, 96
      %v992 = vpop.permute.xlu0 %991
      %v994 = vsel %vm744, %v977, 0
      %v997 = vsel %vm744, %v978, 0
      %v1000 = vsel %vm744, %v979, 0
      %v1003 = vsel %vm744, %v980, 0
      %v1006 = vsel %vm744, %v986, 0
      %v1009 = vsel %vm744, %v988, 0
      %v1012 = vsel %vm744, %v990, 0
      %v1015 = vsel %vm744, %v992, 0
      %1017 = vmatprep.subr.bf16.mxu0 0
      %1018 = vmatpush1.bf16.xpose.msra.mxu0 0
      %1019 = vmatprep.subr.bf16.mxu0 0
      %1020 = vmatpush1.bf16.xpose.msra.mxu0 0
      %1021 = vmatprep.subr.bf16.mxu0 0
      %1022 = vmatpush1.bf16.xpose.msra.mxu0 0
      %1023 = vmatprep.subr.bf16.mxu0 0
      %1024 = vmatpush1.bf16.xpose.msra.mxu0 0
      %1025 = vmatprep.subr.bf16.mxu0 0
      %1026 = vmatpush1.bf16.xpose.msra.mxu0 %v1015
      %1027 = vmatprep.subr.bf16.mxu0 0
      %1028 = vmatpush1.bf16.xpose.msra.mxu0 %v1012
      %1029 = vmatprep.subr.bf16.mxu0 0
      %1030 = vmatpush1.bf16.xpose.msra.mxu0 %v1009
      %1031 = vmatprep.subr.bf16.mxu0 0
      %1032 = vmatpush1.bf16.xpose.msra.mxu0 %v1006
      %1033 = vmatprep.subr.bf16.mxu0 0
      %1034 = vmatpush2.bf16.xpose.msra.mxu0 0
      %1035 = vmatprep.subr.bf16.mxu0 0
      %1036 = vmatpush2.bf16.xpose.msra.mxu0 0
      %1037 = vmatprep.subr.bf16.mxu0 0
      %1038 = vmatpush2.bf16.xpose.msra.mxu0 0
      %1039 = vmatprep.subr.bf16.mxu0 0
      %1040 = vmatpush2.bf16.xpose.msra.mxu0 0
      %1041 = vmatprep.subr.bf16.mxu0 0
      %1042 = vmatpush2.bf16.xpose.msra.mxu0 0
      %1043 = vmatprep.subr.bf16.mxu0 0
      %1044 = vmatpush2.bf16.xpose.msra.mxu0 0
      %1045 = vmatprep.subr.bf16.mxu0 0
      %1046 = vmatpush2.bf16.xpose.msra.mxu0 0
      %1047 = vmatprep.subr.bf16.mxu0 0
      %1048 = vmatpush2.bf16.xpose.msra.mxu0 0
      %1049 = vmatprep.mubr.bf16.mxu0 0
      %1050 = vmatmul.mubr.bf16.gmra.mxu0 %v994
      %v1051 = vpop.f32.mrf.mxu0
      %v1052 = vadd.f32 0.0, %v1051
      %v1053 = vpop.f32.mrf.mxu0
      %v1054 = vpop.f32.mrf.mxu0
      %v1055 = vadd.f32 0.0, %v1054
      %v1056 = vpop.f32.mrf.mxu0
      %1057 = vmatprep.mubr.bf16.mxu0 0
      %1058 = vmatmul.mubr.bf16.gmra.mxu0 %v997
      %v1059 = vpop.f32.mrf.mxu0
      %v1060 = vadd.f32 0.0, %v1059
      %v1061 = vpop.f32.mrf.mxu0
      %v1062 = vpop.f32.mrf.mxu0
      %v1063 = vadd.f32 0.0, %v1062
      %v1064 = vpop.f32.mrf.mxu0
      %1065 = vmatprep.mubr.bf16.mxu0 0
      %1066 = vmatmul.mubr.bf16.gmra.mxu0 %v1000
      %v1067 = vpop.f32.mrf.mxu0
      %v1068 = vadd.f32 0.0, %v1067
      %v1069 = vpop.f32.mrf.mxu0
      %v1070 = vpop.f32.mrf.mxu0
      %v1071 = vadd.f32 0.0, %v1070
      %v1072 = vpop.f32.mrf.mxu0
      %1073 = vmatprep.mubr.bf16.mxu0 0
      %1074 = vmatmul.mubr.bf16.gmra.mxu0 %v1003
      %v1075 = vpop.f32.mrf.mxu0
      %v1076 = vadd.f32 0.0, %v1075
      %v1077 = vpop.f32.mrf.mxu0
      %v1078 = vpop.f32.mrf.mxu0
      %v1079 = vadd.f32 0.0, %v1078
      %v1080 = vpop.f32.mrf.mxu0
      %1081 = vdwg.mxu0
      %v1082 = vmul.f32 %v1052, 0.17677669
      %v1083 = vmul.f32 %v1055, 0.17677669
      %v1084 = vmul.f32 %v1060, 0.17677669
      %v1085 = vmul.f32 %v1063, 0.17677669
      %v1086 = vmul.f32 %v1068, 0.17677669
      %v1087 = vmul.f32 %v1071, 0.17677669
      %v1088 = vmul.f32 %v1076, 0.17677669
      %v1089 = vmul.f32 %v1079, 0.17677669
      %vm1090 = vcmask 523264
      %v1091 = vsel %vm1090, %v1082, -inf
      %1092 = vmax.xlane.f32.xlu0 %v1091
      %v1093 = vpop.xlane.xlu0 %1092
      %v1094 = vsel %vm1090, %v1083, -inf
      %1095 = vmax.xlane.f32.xlu0 %v1094
      %v1096 = vpop.xlane.xlu0 %1095
      %v1097 = vsel %vm1090, %v1084, -inf
      %1098 = vmax.xlane.f32.xlu0 %v1097
      %v1099 = vpop.xlane.xlu0 %1098
      %v1100 = vsel %vm1090, %v1085, -inf
      %1101 = vmax.xlane.f32.xlu0 %v1100
      %v1102 = vpop.xlane.xlu0 %1101
      %v1103 = vsel %vm1090, %v1086, -inf
      %1104 = vmax.xlane.f32.xlu0 %v1103
      %v1105 = vpop.xlane.xlu0 %1104
      %v1106 = vsel %vm1090, %v1087, -inf
      %1107 = vmax.xlane.f32.xlu0 %v1106
      %v1108 = vpop.xlane.xlu0 %1107
      %v1109 = vsel %vm1090, %v1088, -inf
      %1110 = vmax.xlane.f32.xlu0 %v1109
      %v1111 = vpop.xlane.xlu0 %1110
      %v1112 = vsel %vm1090, %v1089, -inf
      %1113 = vmax.xlane.f32.xlu0 %v1112
      %v1114 = vpop.xlane.xlu0 %1113
      %v1115 = vsub.f32 %v1082, %v1093
      %v1116 = vsub.f32 %v1083, %v1096
      %v1117 = vsub.f32 %v1084, %v1099
      %v1118 = vsub.f32 %v1085, %v1102
      %v1119 = vsub.f32 %v1086, %v1105
      %v1120 = vsub.f32 %v1087, %v1108
      %v1121 = vsub.f32 %v1088, %v1111
      %v1122 = vsub.f32 %v1089, %v1114
      %v1123 = vmul.f32 %v1115, 1.442695
      %v1124 = vpow.pop %v1123
      %v1125 = vmul.f32 %v1116, 1.442695
      %v1126 = vpow.pop %v1125
      %v1127 = vmul.f32 %v1117, 1.442695
      %v1128 = vpow.pop %v1127
      %v1129 = vmul.f32 %v1118, 1.442695
      %v1130 = vpow.pop %v1129
      %v1131 = vmul.f32 %v1119, 1.442695
      %v1132 = vpow.pop %v1131
      %v1133 = vmul.f32 %v1120, 1.442695
      %v1134 = vpow.pop %v1133
      %v1135 = vmul.f32 %v1121, 1.442695
      %v1136 = vpow.pop %v1135
      %v1137 = vmul.f32 %v1122, 1.442695
      %v1138 = vpow.pop %v1137
      %v1139 = vsel %vm1090, %v1124, 0.0
      %1140 = vadd.xlane.f32.xlu0 %v1139
      %v1141 = vpop.xlane.xlu0 %1140
      %v1142 = vsel %vm1090, %v1126, 0.0
      %1143 = vadd.xlane.f32.xlu0 %v1142
      %v1144 = vpop.xlane.xlu0 %1143
      %v1145 = vsel %vm1090, %v1128, 0.0
      %1146 = vadd.xlane.f32.xlu0 %v1145
      %v1147 = vpop.xlane.xlu0 %1146
      %v1148 = vsel %vm1090, %v1130, 0.0
      %1149 = vadd.xlane.f32.xlu0 %v1148
      %v1150 = vpop.xlane.xlu0 %1149
      %v1151 = vsel %vm1090, %v1132, 0.0
      %1152 = vadd.xlane.f32.xlu0 %v1151
      %v1153 = vpop.xlane.xlu0 %1152
      %v1154 = vsel %vm1090, %v1134, 0.0
      %1155 = vadd.xlane.f32.xlu0 %v1154
      %v1156 = vpop.xlane.xlu0 %1155
      %v1157 = vsel %vm1090, %v1136, 0.0
      %1158 = vadd.xlane.f32.xlu0 %v1157
      %v1159 = vpop.xlane.xlu0 %1158
      %v1160 = vsel %vm1090, %v1138, 0.0
      %1161 = vadd.xlane.f32.xlu0 %v1160
      %v1162 = vpop.xlane.xlu0 %1161
      %v1163 = vrcp.pop %v1141
      %v1164 = vrcp.pop %v1144
      %v1165 = vrcp.pop %v1147
      %v1166 = vrcp.pop %v1150
      %v1167 = vrcp.pop %v1153
      %v1168 = vrcp.pop %v1156
      %v1169 = vrcp.pop %v1159
      %v1170 = vrcp.pop %v1162
      %v1171 = vmul.f32 %v1124, %v1163
      %v1172 = vmul.f32 %v1126, %v1164
      %v1173 = vmul.f32 %v1128, %v1165
      %v1174 = vmul.f32 %v1130, %v1166
      %v1175 = vmul.f32 %v1132, %v1167
      %v1176 = vmul.f32 %v1134, %v1168
      %v1177 = vmul.f32 %v1136, %v1169
      %v1178 = vmul.f32 %v1138, %v1170
      %v1179 = vpack.c.bf16 %v1172, %v1171
      %v1180 = vpack.c.bf16 %v1174, %v1173
      %v1181 = vpack.c.bf16 %v1176, %v1175
      %v1182 = vpack.c.bf16 %v1178, %v1177
      %1183 = vrot.lane.b32.xlu0 %v977, 64
      %v1184 = vpop.permute.xlu0 %1183
      %1185 = vrot.lane.b32.xlu0 %v978, 64
      %v1186 = vpop.permute.xlu0 %1185
      %1187 = vrot.lane.b32.xlu0 %v979, 64
      %v1188 = vpop.permute.xlu0 %1187
      %1189 = vrot.lane.b32.xlu0 %v980, 64
      %v1190 = vpop.permute.xlu0 %1189
      %v1196 = vsel %vm1090, %v1179, 0
      %v1199 = vsel %vm1090, %v1180, 0
      %v1202 = vsel %vm1090, %v1181, 0
      %v1205 = vsel %vm1090, %v1182, 0
      %1207 = vmatprep.subr.bf16.mxu0 0
      %1208 = vmatpush1.bf16.msra.mxu0 0
      %1209 = vmatprep.subr.bf16.mxu0 0
      %1210 = vmatpush1.bf16.msra.mxu0 0
      %1211 = vmatprep.subr.bf16.mxu0 0
      %1212 = vmatpush1.bf16.msra.mxu0 0
      %1213 = vmatprep.subr.bf16.mxu0 0
      %1214 = vmatpush1.bf16.msra.mxu0 0
      %1215 = vmatprep.subr.bf16.mxu0 0
      %1216 = vmatpush1.bf16.msra.mxu0 %v1190
      %1217 = vmatprep.subr.bf16.mxu0 0
      %1218 = vmatpush1.bf16.msra.mxu0 %v1188
      %1219 = vmatprep.subr.bf16.mxu0 0
      %1220 = vmatpush1.bf16.msra.mxu0 %v1186
      %1221 = vmatprep.subr.bf16.mxu0 0
      %1222 = vmatpush1.bf16.msra.mxu0 %v1184
      %1223 = vmatprep.subr.bf16.mxu0 0
      %1224 = vmatpush2.bf16.msra.mxu0 0
      %1225 = vmatprep.subr.bf16.mxu0 0
      %1226 = vmatpush2.bf16.msra.mxu0 0
      %1227 = vmatprep.subr.bf16.mxu0 0
      %1228 = vmatpush2.bf16.msra.mxu0 0
      %1229 = vmatprep.subr.bf16.mxu0 0
      %1230 = vmatpush2.bf16.msra.mxu0 0
      %1231 = vmatprep.subr.bf16.mxu0 0
      %1232 = vmatpush2.bf16.msra.mxu0 0
      %1233 = vmatprep.subr.bf16.mxu0 0
      %1234 = vmatpush2.bf16.msra.mxu0 0
      %1235 = vmatprep.subr.bf16.mxu0 0
      %1236 = vmatpush2.bf16.msra.mxu0 0
      %1237 = vmatprep.subr.bf16.mxu0 0
      %1238 = vmatpush2.bf16.msra.mxu0 0
      %1239 = vmatprep.mubr.bf16.mxu0 0
      %1240 = vmatmul.mubr.bf16.gmra.mxu0 %v1196
      %v1241 = vpop.f32.mrf.mxu0
      %v1242 = vadd.f32 0.0, %v1241
      %v1243 = vpop.f32.mrf.mxu0
      %v1244 = vpop.f32.mrf.mxu0
      %v1245 = vadd.f32 0.0, %v1244
      %v1246 = vpop.f32.mrf.mxu0
      %1247 = vmatprep.mubr.bf16.mxu0 0
      %1248 = vmatmul.mubr.bf16.gmra.mxu0 %v1199
      %v1249 = vpop.f32.mrf.mxu0
      %v1250 = vadd.f32 0.0, %v1249
      %v1251 = vpop.f32.mrf.mxu0
      %v1252 = vpop.f32.mrf.mxu0
      %v1253 = vadd.f32 0.0, %v1252
      %v1254 = vpop.f32.mrf.mxu0
      %1255 = vmatprep.mubr.bf16.mxu0 0
      %1256 = vmatmul.mubr.bf16.gmra.mxu0 %v1202
      %v1257 = vpop.f32.mrf.mxu0
      %v1258 = vadd.f32 0.0, %v1257
      %v1259 = vpop.f32.mrf.mxu0
      %v1260 = vpop.f32.mrf.mxu0
      %v1261 = vadd.f32 0.0, %v1260
      %v1262 = vpop.f32.mrf.mxu0
      %1263 = vmatprep.mubr.bf16.mxu0 0
      %1264 = vmatmul.mubr.bf16.gmra.mxu0 %v1205
      %v1265 = vpop.f32.mrf.mxu0
      %v1266 = vadd.f32 0.0, %v1265
      %v1267 = vpop.f32.mrf.mxu0
      %v1268 = vpop.f32.mrf.mxu0
      %v1269 = vadd.f32 0.0, %v1268
      %v1270 = vpop.f32.mrf.mxu0
      %1271 = vdwg.mxu0
      %v1272 = vpack.c.bf16 %v1245, %v1242
      %v1273 = vpack.c.bf16 %v1253, %v1250
      %v1274 = vpack.c.bf16 %v1261, %v1258
      %v1275 = vpack.c.bf16 %v1269, %v1266
      %v1277 = vlaneseq
      %v1278 = vshrl.u32 %v1277, 7
      %v1279 = vsub.s32 0, %v1278
      %v1280 = vrot.slane %v603, %v1279
      %v1286 = vunpack.c.l.b16 %v599
      %v1287 = vunpack.c.l.b16 %v600
      %v1288 = vunpack.c.l.b16 %v601
      %v1289 = vunpack.c.l.b16 %v602
      %v1290 = vpack.c.b16 %v1287, %v1286
      %v1291 = vpack.c.b16 %v1289, %v1288
      %v1295 = vsel %vm744, %v1272, 0
      %v1298 = vsel %vm744, %v1273, 0
      %v1301 = vsel %vm744, %v1274, 0
      %v1304 = vsel %vm744, %v1275, 0
      %1306 = vmatprep.subr.bf16.mxu0 0
      %1307 = vmatpush1.bf16.msra.mxu0 0
      %1308 = vmatprep.subr.bf16.mxu0 0
      %1309 = vmatpush1.bf16.msra.mxu0 0
      %1310 = vmatprep.subr.bf16.mxu0 0
      %1311 = vmatpush1.bf16.msra.mxu0 0
      %1312 = vmatprep.subr.bf16.mxu0 0
      %1313 = vmatpush1.bf16.msra.mxu0 0
      %1314 = vmatprep.subr.bf16.mxu0 0
      %1315 = vmatpush1.bf16.msra.mxu0 0
      %1316 = vmatprep.subr.bf16.mxu0 0
      %1317 = vmatpush1.bf16.msra.mxu0 0
      %1318 = vmatprep.subr.bf16.mxu0 0
      %1319 = vmatpush1.bf16.msra.mxu0 %v1291
      %1320 = vmatprep.subr.bf16.mxu0 0
      %1321 = vmatpush1.bf16.msra.mxu0 %v1290
      %1322 = vmatprep.subr.bf16.mxu0 0
      %1323 = vmatpush2.bf16.msra.mxu0 0
      %1324 = vmatprep.subr.bf16.mxu0 0
      %1325 = vmatpush2.bf16.msra.mxu0 0
      %1326 = vmatprep.subr.bf16.mxu0 0
      %1327 = vmatpush2.bf16.msra.mxu0 0
      %1328 = vmatprep.subr.bf16.mxu0 0
      %1329 = vmatpush2.bf16.msra.mxu0 0
      %1330 = vmatprep.subr.bf16.mxu0 0
      %1331 = vmatpush2.bf16.msra.mxu0 0
      %1332 = vmatprep.subr.bf16.mxu0 0
      %1333 = vmatpush2.bf16.msra.mxu0 0
      %1334 = vmatprep.subr.bf16.mxu0 0
      %1335 = vmatpush2.bf16.msra.mxu0 0
      %1336 = vmatprep.subr.bf16.mxu0 0
      %1337 = vmatpush2.bf16.msra.mxu0 0
      %1338 = vmatprep.mubr.bf16.mxu0 0
      %1339 = vmatmul.mubr.bf16.gmra.mxu0 %v1295
      %v1340 = vpop.f32.mrf.mxu0
      %v1341 = vadd.f32 %v1280, %v1340
      %v1342 = vpop.f32.mrf.mxu0
      %v1343 = vpop.f32.mrf.mxu0
      %v1344 = vadd.f32 %v1280, %v1343
      %v1345 = vpop.f32.mrf.mxu0
      %1346 = vmatprep.mubr.bf16.mxu0 0
      %1347 = vmatmul.mubr.bf16.gmra.mxu0 %v1298
      %v1348 = vpop.f32.mrf.mxu0
      %v1349 = vadd.f32 %v1280, %v1348
      %v1350 = vpop.f32.mrf.mxu0
      %v1351 = vpop.f32.mrf.mxu0
      %v1352 = vadd.f32 %v1280, %v1351
      %v1353 = vpop.f32.mrf.mxu0
      %1354 = vmatprep.mubr.bf16.mxu0 0
      %1355 = vmatmul.mubr.bf16.gmra.mxu0 %v1301
      %v1356 = vpop.f32.mrf.mxu0
      %v1357 = vadd.f32 %v1280, %v1356
      %v1358 = vpop.f32.mrf.mxu0
      %v1359 = vpop.f32.mrf.mxu0
      %v1360 = vadd.f32 %v1280, %v1359
      %v1361 = vpop.f32.mrf.mxu0
      %1362 = vmatprep.mubr.bf16.mxu0 0
      %1363 = vmatmul.mubr.bf16.gmra.mxu0 %v1304
      %v1364 = vpop.f32.mrf.mxu0
      %v1365 = vadd.f32 %v1280, %v1364
      %v1366 = vpop.f32.mrf.mxu0
      %v1367 = vpop.f32.mrf.mxu0
      %v1368 = vadd.f32 %v1280, %v1367
      %v1369 = vpop.f32.mrf.mxu0
      %1370 = vdwg.mxu0
      %v1371 = vadd.f32 %v736, %v1341
      %v1372 = vadd.f32 %v737, %v1344
      %v1373 = vadd.f32 %v738, %v1349
      %v1374 = vadd.f32 %v739, %v1352
      %v1375 = vadd.f32 %v740, %v1357
      %v1376 = vadd.f32 %v741, %v1360
      %v1377 = vadd.f32 %v742, %v1365
      %v1378 = vadd.f32 %v743, %v1368
      %v1379 = vsel %vm744, %v1371, 0.0
      %1380 = vadd.xlane.f32.xlu0 %v1379
      %v1381 = vpop.xlane.xlu0 %1380
      %v1382 = vsel %vm744, %v1372, 0.0
      %1383 = vadd.xlane.f32.xlu0 %v1382
      %v1384 = vpop.xlane.xlu0 %1383
      %v1385 = vsel %vm744, %v1373, 0.0
      %1386 = vadd.xlane.f32.xlu0 %v1385
      %v1387 = vpop.xlane.xlu0 %1386
      %v1388 = vsel %vm744, %v1374, 0.0
      %1389 = vadd.xlane.f32.xlu0 %v1388
      %v1390 = vpop.xlane.xlu0 %1389
      %v1391 = vsel %vm744, %v1375, 0.0
      %1392 = vadd.xlane.f32.xlu0 %v1391
      %v1393 = vpop.xlane.xlu0 %1392
      %v1394 = vsel %vm744, %v1376, 0.0
      %1395 = vadd.xlane.f32.xlu0 %v1394
      %v1396 = vpop.xlane.xlu0 %1395
      %v1397 = vsel %vm744, %v1377, 0.0
      %1398 = vadd.xlane.f32.xlu0 %v1397
      %v1399 = vpop.xlane.xlu0 %1398
      %v1400 = vsel %vm744, %v1378, 0.0
      %1401 = vadd.xlane.f32.xlu0 %v1400
      %v1402 = vpop.xlane.xlu0 %1401
      %v1403 = vmul.f32 %v1381, %v769
      %v1404 = vmul.f32 %v1384, %v769
      %v1405 = vmul.f32 %v1387, %v769
      %v1406 = vmul.f32 %v1390, %v769
      %v1407 = vmul.f32 %v1393, %v769
      %v1408 = vmul.f32 %v1396, %v769
      %v1409 = vmul.f32 %v1399, %v769
      %v1410 = vmul.f32 %v1402, %v769
      %v1411 = vsub.f32 %v1371, %v1403
      %v1412 = vsub.f32 %v1372, %v1404
      %v1413 = vsub.f32 %v1373, %v1405
      %v1414 = vsub.f32 %v1374, %v1406
      %v1415 = vsub.f32 %v1375, %v1407
      %v1416 = vsub.f32 %v1376, %v1408
      %v1417 = vsub.f32 %v1377, %v1409
      %v1418 = vsub.f32 %v1378, %v1410
      %v1419 = vmul.f32 %v1411, %v1411
      %v1420 = vmul.f32 %v1412, %v1412
      %v1421 = vmul.f32 %v1413, %v1413
      %v1422 = vmul.f32 %v1414, %v1414
      %v1423 = vmul.f32 %v1415, %v1415
      %v1424 = vmul.f32 %v1416, %v1416
      %v1425 = vmul.f32 %v1417, %v1417
      %v1426 = vmul.f32 %v1418, %v1418
      %v1427 = vsel %vm744, %v1419, 0.0
      %1428 = vadd.xlane.f32.xlu0 %v1427
      %v1429 = vpop.xlane.xlu0 %1428
      %v1430 = vsel %vm744, %v1420, 0.0
      %1431 = vadd.xlane.f32.xlu0 %v1430
      %v1432 = vpop.xlane.xlu0 %1431
      %v1433 = vsel %vm744, %v1421, 0.0
      %1434 = vadd.xlane.f32.xlu0 %v1433
      %v1435 = vpop.xlane.xlu0 %1434
      %v1436 = vsel %vm744, %v1422, 0.0
      %1437 = vadd.xlane.f32.xlu0 %v1436
      %v1438 = vpop.xlane.xlu0 %1437
      %v1439 = vsel %vm744, %v1423, 0.0
      %1440 = vadd.xlane.f32.xlu0 %v1439
      %v1441 = vpop.xlane.xlu0 %1440
      %v1442 = vsel %vm744, %v1424, 0.0
      %1443 = vadd.xlane.f32.xlu0 %v1442
      %v1444 = vpop.xlane.xlu0 %1443
      %v1445 = vsel %vm744, %v1425, 0.0
      %1446 = vadd.xlane.f32.xlu0 %v1445
      %v1447 = vpop.xlane.xlu0 %1446
      %v1448 = vsel %vm744, %v1426, 0.0
      %1449 = vadd.xlane.f32.xlu0 %v1448
      %v1450 = vpop.xlane.xlu0 %1449
      %v1451 = vmul.f32 %v1429, %v769
      %v1452 = vmul.f32 %v1432, %v769
      %v1453 = vmul.f32 %v1435, %v769
      %v1454 = vmul.f32 %v1438, %v769
      %v1455 = vmul.f32 %v1441, %v769
      %v1456 = vmul.f32 %v1444, %v769
      %v1457 = vmul.f32 %v1447, %v769
      %v1458 = vmul.f32 %v1450, %v769
      %v1459 = vadd.f32 %v1451, 1e-06
      %v1460 = vadd.f32 %v1452, 1e-06
      %v1461 = vadd.f32 %v1453, 1e-06
      %v1462 = vadd.f32 %v1454, 1e-06
      %v1463 = vadd.f32 %v1455, 1e-06
      %v1464 = vadd.f32 %v1456, 1e-06
      %v1465 = vadd.f32 %v1457, 1e-06
      %v1466 = vadd.f32 %v1458, 1e-06
      %v1467 = vrsqrt.pop %v1459
      %v1468 = vrsqrt.pop %v1460
      %v1469 = vrsqrt.pop %v1461
      %v1470 = vrsqrt.pop %v1462
      %v1471 = vrsqrt.pop %v1463
      %v1472 = vrsqrt.pop %v1464
      %v1473 = vrsqrt.pop %v1465
      %v1474 = vrsqrt.pop %v1466
      %v1475 = vmul.f32 %v1411, %v1467
      %v1476 = vmul.f32 %v1412, %v1468
      %v1477 = vmul.f32 %v1413, %v1469
      %v1478 = vmul.f32 %v1414, %v1470
      %v1479 = vmul.f32 %v1415, %v1471
      %v1480 = vmul.f32 %v1416, %v1472
      %v1481 = vmul.f32 %v1417, %v1473
      %v1482 = vmul.f32 %v1418, %v1474
      %v1484 = vlaneseq
      %v1485 = vshrl.u32 %v1484, 7
      %v1486 = vsub.s32 0, %v1485
      %v1487 = vrot.slane %v604, %v1486
      %v1489 = vmul.f32 %v1475, %v1487
      %v1490 = vmul.f32 %v1476, %v1487
      %v1491 = vmul.f32 %v1477, %v1487
      %v1492 = vmul.f32 %v1478, %v1487
      %v1493 = vmul.f32 %v1479, %v1487
      %v1494 = vmul.f32 %v1480, %v1487
      %v1495 = vmul.f32 %v1481, %v1487
      %v1496 = vmul.f32 %v1482, %v1487
      %v1498 = vlaneseq
      %v1499 = vshrl.u32 %v1498, 7
      %v1500 = vsub.s32 0, %v1499
      %v1501 = vrot.slane %v605, %v1500
      %v1503 = vadd.f32 %v1489, %v1501
      %v1504 = vadd.f32 %v1490, %v1501
      %v1505 = vadd.f32 %v1491, %v1501
      %v1506 = vadd.f32 %v1492, %v1501
      %v1507 = vadd.f32 %v1493, %v1501
      %v1508 = vadd.f32 %v1494, %v1501
      %v1509 = vadd.f32 %v1495, %v1501
      %v1510 = vadd.f32 %v1496, %v1501
      %v1511 = vpack.c.bf16 %v1504, %v1503
      %v1512 = vpack.c.bf16 %v1506, %v1505
      %v1513 = vpack.c.bf16 %v1508, %v1507
      %v1514 = vpack.c.bf16 %v1510, %v1509
      %v1516 = vlaneseq
      %v1517 = vshrl.u32 %v1516, 7
      %v1518 = vsub.s32 0, %v1517
      %v1519 = vrot.slane %v610, %v1518
      %v1525 = vunpack.c.l.b16 %v606
      %v1526 = vunpack.c.l.b16 %v607
      %v1527 = vunpack.c.l.b16 %v608
      %v1528 = vunpack.c.l.b16 %v609
      %v1529 = vpack.c.b16 %v1526, %v1525
      %v1530 = vpack.c.b16 %v1528, %v1527
      %v1534 = vsel %vm744, %v1511, 0
      %v1537 = vsel %vm744, %v1512, 0
      %v1540 = vsel %vm744, %v1513, 0
      %v1543 = vsel %vm744, %v1514, 0
      %1545 = vmatprep.subr.bf16.mxu0 0
      %1546 = vmatpush1.bf16.msra.mxu0 0
      %1547 = vmatprep.subr.bf16.mxu0 0
      %1548 = vmatpush1.bf16.msra.mxu0 0
      %1549 = vmatprep.subr.bf16.mxu0 0
      %1550 = vmatpush1.bf16.msra.mxu0 0
      %1551 = vmatprep.subr.bf16.mxu0 0
      %1552 = vmatpush1.bf16.msra.mxu0 0
      %1553 = vmatprep.subr.bf16.mxu0 0
      %1554 = vmatpush1.bf16.msra.mxu0 0
      %1555 = vmatprep.subr.bf16.mxu0 0
      %1556 = vmatpush1.bf16.msra.mxu0 0
      %1557 = vmatprep.subr.bf16.mxu0 0
      %1558 = vmatpush1.bf16.msra.mxu0 %v1530
      %1559 = vmatprep.subr.bf16.mxu0 0
      %1560 = vmatpush1.bf16.msra.mxu0 %v1529
      %1561 = vmatprep.subr.bf16.mxu0 0
      %1562 = vmatpush2.bf16.msra.mxu0 0
      %1563 = vmatprep.subr.bf16.mxu0 0
      %1564 = vmatpush2.bf16.msra.mxu0 0
      %1565 = vmatprep.subr.bf16.mxu0 0
      %1566 = vmatpush2.bf16.msra.mxu0 0
      %1567 = vmatprep.subr.bf16.mxu0 0
      %1568 = vmatpush2.bf16.msra.mxu0 0
      %1569 = vmatprep.subr.bf16.mxu0 0
      %1570 = vmatpush2.bf16.msra.mxu0 0
      %1571 = vmatprep.subr.bf16.mxu0 0
      %1572 = vmatpush2.bf16.msra.mxu0 0
      %1573 = vmatprep.subr.bf16.mxu0 0
      %1574 = vmatpush2.bf16.msra.mxu0 0
      %1575 = vmatprep.subr.bf16.mxu0 0
      %1576 = vmatpush2.bf16.msra.mxu0 0
      %1577 = vmatprep.mubr.bf16.mxu0 0
      %1578 = vmatmul.mubr.bf16.gmra.mxu0 %v1534
      %v1579 = vpop.f32.mrf.mxu0
      %v1580 = vadd.f32 %v1519, %v1579
      %v1581 = vpop.f32.mrf.mxu0
      %v1582 = vpop.f32.mrf.mxu0
      %v1583 = vadd.f32 %v1519, %v1582
      %v1584 = vpop.f32.mrf.mxu0
      %1585 = vmatprep.mubr.bf16.mxu0 0
      %1586 = vmatmul.mubr.bf16.gmra.mxu0 %v1537
      %v1587 = vpop.f32.mrf.mxu0
      %v1588 = vadd.f32 %v1519, %v1587
      %v1589 = vpop.f32.mrf.mxu0
      %v1590 = vpop.f32.mrf.mxu0
      %v1591 = vadd.f32 %v1519, %v1590
      %v1592 = vpop.f32.mrf.mxu0
      %1593 = vmatprep.mubr.bf16.mxu0 0
      %1594 = vmatmul.mubr.bf16.gmra.mxu0 %v1540
      %v1595 = vpop.f32.mrf.mxu0
      %v1596 = vadd.f32 %v1519, %v1595
      %v1597 = vpop.f32.mrf.mxu0
      %v1598 = vpop.f32.mrf.mxu0
      %v1599 = vadd.f32 %v1519, %v1598
      %v1600 = vpop.f32.mrf.mxu0
      %1601 = vmatprep.mubr.bf16.mxu0 0
      %1602 = vmatmul.mubr.bf16.gmra.mxu0 %v1543
      %v1603 = vpop.f32.mrf.mxu0
      %v1604 = vadd.f32 %v1519, %v1603
      %v1605 = vpop.f32.mrf.mxu0
      %v1606 = vpop.f32.mrf.mxu0
      %v1607 = vadd.f32 %v1519, %v1606
      %v1608 = vpop.f32.mrf.mxu0
      %1609 = vdwg.mxu0
      %v1610 = vmul.f32 %v1580, %v1580
      %v1611 = vmul.f32 %v1583, %v1583
      %v1612 = vmul.f32 %v1588, %v1588
      %v1613 = vmul.f32 %v1591, %v1591
      %v1614 = vmul.f32 %v1596, %v1596
      %v1615 = vmul.f32 %v1599, %v1599
      %v1616 = vmul.f32 %v1604, %v1604
      %v1617 = vmul.f32 %v1607, %v1607
      %v1618 = vmul.f32 %v1580, %v1610
      %v1619 = vmul.f32 %v1583, %v1611
      %v1620 = vmul.f32 %v1588, %v1612
      %v1621 = vmul.f32 %v1591, %v1613
      %v1622 = vmul.f32 %v1596, %v1614
      %v1623 = vmul.f32 %v1599, %v1615
      %v1624 = vmul.f32 %v1604, %v1616
      %v1625 = vmul.f32 %v1607, %v1617
      %v1626 = vmul.f32 %v1618, 0.044715
      %v1627 = vmul.f32 %v1619, 0.044715
      %v1628 = vmul.f32 %v1620, 0.044715
      %v1629 = vmul.f32 %v1621, 0.044715
      %v1630 = vmul.f32 %v1622, 0.044715
      %v1631 = vmul.f32 %v1623, 0.044715
      %v1632 = vmul.f32 %v1624, 0.044715
      %v1633 = vmul.f32 %v1625, 0.044715
      %v1634 = vadd.f32 %v1580, %v1626
      %v1635 = vadd.f32 %v1583, %v1627
      %v1636 = vadd.f32 %v1588, %v1628
      %v1637 = vadd.f32 %v1591, %v1629
      %v1638 = vadd.f32 %v1596, %v1630
      %v1639 = vadd.f32 %v1599, %v1631
      %v1640 = vadd.f32 %v1604, %v1632
      %v1641 = vadd.f32 %v1607, %v1633
      %v1642 = vmul.f32 %v1634, 0.7978846
      %v1643 = vmul.f32 %v1635, 0.7978846
      %v1644 = vmul.f32 %v1636, 0.7978846
      %v1645 = vmul.f32 %v1637, 0.7978846
      %v1646 = vmul.f32 %v1638, 0.7978846
      %v1647 = vmul.f32 %v1639, 0.7978846
      %v1648 = vmul.f32 %v1640, 0.7978846
      %v1649 = vmul.f32 %v1641, 0.7978846
      %v1650 = vtanh.pop %v1642
      %v1651 = vtanh.pop %v1643
      %v1652 = vtanh.pop %v1644
      %v1653 = vtanh.pop %v1645
      %v1654 = vtanh.pop %v1646
      %v1655 = vtanh.pop %v1647
      %v1656 = vtanh.pop %v1648
      %v1657 = vtanh.pop %v1649
      %v1658 = vadd.f32 %v1650, 1.0
      %v1659 = vadd.f32 %v1651, 1.0
      %v1660 = vadd.f32 %v1652, 1.0
      %v1661 = vadd.f32 %v1653, 1.0
      %v1662 = vadd.f32 %v1654, 1.0
      %v1663 = vadd.f32 %v1655, 1.0
      %v1664 = vadd.f32 %v1656, 1.0
      %v1665 = vadd.f32 %v1657, 1.0
      %v1666 = vmul.f32 %v1658, 0.5
      %v1667 = vmul.f32 %v1659, 0.5
      %v1668 = vmul.f32 %v1660, 0.5
      %v1669 = vmul.f32 %v1661, 0.5
      %v1670 = vmul.f32 %v1662, 0.5
      %v1671 = vmul.f32 %v1663, 0.5
      %v1672 = vmul.f32 %v1664, 0.5
      %v1673 = vmul.f32 %v1665, 0.5
      %v1674 = vmul.f32 %v1580, %v1666
      %v1675 = vmul.f32 %v1583, %v1667
      %v1676 = vmul.f32 %v1588, %v1668
      %v1677 = vmul.f32 %v1591, %v1669
      %v1678 = vmul.f32 %v1596, %v1670
      %v1679 = vmul.f32 %v1599, %v1671
      %v1680 = vmul.f32 %v1604, %v1672
      %v1681 = vmul.f32 %v1607, %v1673
      %v1682 = vpack.c.bf16 %v1675, %v1674
      %v1683 = vpack.c.bf16 %v1677, %v1676
      %v1684 = vpack.c.bf16 %v1679, %v1678
      %v1685 = vpack.c.bf16 %v1681, %v1680
      %v1687 = vlaneseq
      %v1688 = vshrl.u32 %v1687, 7
      %v1689 = vsub.s32 0, %v1688
      %v1690 = vrot.slane %v619, %v1689
      %v1700 = vunpack.c.l.b16 %v611
      %v1701 = vunpack.c.l.b16 %v612
      %v1702 = vunpack.c.l.b16 %v613
      %v1703 = vunpack.c.l.b16 %v614
      %v1704 = vunpack.c.l.b16 %v615
      %v1705 = vunpack.c.l.b16 %v616
      %v1706 = vunpack.c.l.b16 %v617
      %v1707 = vunpack.c.l.b16 %v618
      %v1708 = vpack.c.b16 %v1701, %v1700
      %v1709 = vpack.c.b16 %v1703, %v1702
      %v1710 = vpack.c.b16 %v1705, %v1704
      %v1711 = vpack.c.b16 %v1707, %v1706
      %v1717 = vsel %vm1090, %v1682, 0
      %v1720 = vsel %vm1090, %v1683, 0
      %v1723 = vsel %vm1090, %v1684, 0
      %v1726 = vsel %vm1090, %v1685, 0
      %1728 = vmatprep.subr.bf16.mxu0 0
      %1729 = vmatpush1.bf16.msra.mxu0 0
      %1730 = vmatprep.subr.bf16.mxu0 0
      %1731 = vmatpush1.bf16.msra.mxu0 0
      %1732 = vmatprep.subr.bf16.mxu0 0
      %1733 = vmatpush1.bf16.msra.mxu0 0
      %1734 = vmatprep.subr.bf16.mxu0 0
      %1735 = vmatpush1.bf16.msra.mxu0 0
      %1736 = vmatprep.subr.bf16.mxu0 0
      %1737 = vmatpush1.bf16.msra.mxu0 %v1711
      %1738 = vmatprep.subr.bf16.mxu0 0
      %1739 = vmatpush1.bf16.msra.mxu0 %v1710
      %1740 = vmatprep.subr.bf16.mxu0 0
      %1741 = vmatpush1.bf16.msra.mxu0 %v1709
      %1742 = vmatprep.subr.bf16.mxu0 0
      %1743 = vmatpush1.bf16.msra.mxu0 %v1708
      %1744 = vmatprep.subr.bf16.mxu0 0
      %1745 = vmatpush2.bf16.msra.mxu0 0
      %1746 = vmatprep.subr.bf16.mxu0 0
      %1747 = vmatpush2.bf16.msra.mxu0 0
      %1748 = vmatprep.subr.bf16.mxu0 0
      %1749 = vmatpush2.bf16.msra.mxu0 0
      %1750 = vmatprep.subr.bf16.mxu0 0
      %1751 = vmatpush2.bf16.msra.mxu0 0
      %1752 = vmatprep.subr.bf16.mxu0 0
      %1753 = vmatpush2.bf16.msra.mxu0 0
      %1754 = vmatprep.subr.bf16.mxu0 0
      %1755 = vmatpush2.bf16.msra.mxu0 0
      %1756 = vmatprep.subr.bf16.mxu0 0
      %1757 = vmatpush2.bf16.msra.mxu0 0
      %1758 = vmatprep.subr.bf16.mxu0 0
      %1759 = vmatpush2.bf16.msra.mxu0 0
      %1760 = vmatprep.mubr.bf16.mxu0 0
      %1761 = vmatmul.mubr.bf16.gmra.mxu0 %v1717
      %v1762 = vpop.f32.mrf.mxu0
      %v1763 = vadd.f32 %v1690, %v1762
      %v1764 = vpop.f32.mrf.mxu0
      %v1765 = vpop.f32.mrf.mxu0
      %v1766 = vadd.f32 %v1690, %v1765
      %v1767 = vpop.f32.mrf.mxu0
      %1768 = vmatprep.mubr.bf16.mxu0 0
      %1769 = vmatmul.mubr.bf16.gmra.mxu0 %v1720
      %v1770 = vpop.f32.mrf.mxu0
      %v1771 = vadd.f32 %v1690, %v1770
      %v1772 = vpop.f32.mrf.mxu0
      %v1773 = vpop.f32.mrf.mxu0
      %v1774 = vadd.f32 %v1690, %v1773
      %v1775 = vpop.f32.mrf.mxu0
      %1776 = vmatprep.mubr.bf16.mxu0 0
      %1777 = vmatmul.mubr.bf16.gmra.mxu0 %v1723
      %v1778 = vpop.f32.mrf.mxu0
      %v1779 = vadd.f32 %v1690, %v1778
      %v1780 = vpop.f32.mrf.mxu0
      %v1781 = vpop.f32.mrf.mxu0
      %v1782 = vadd.f32 %v1690, %v1781
      %v1783 = vpop.f32.mrf.mxu0
      %1784 = vmatprep.mubr.bf16.mxu0 0
      %1785 = vmatmul.mubr.bf16.gmra.mxu0 %v1726
      %v1786 = vpop.f32.mrf.mxu0
      %v1787 = vadd.f32 %v1690, %v1786
      %v1788 = vpop.f32.mrf.mxu0
      %v1789 = vpop.f32.mrf.mxu0
      %v1790 = vadd.f32 %v1690, %v1789
      %v1791 = vpop.f32.mrf.mxu0
      %1792 = vdwg.mxu0
      %v1793 = vadd.f32 %v1371, %v1763
      %v1794 = vadd.f32 %v1372, %v1766
      %v1795 = vadd.f32 %v1373, %v1771
      %v1796 = vadd.f32 %v1374, %v1774
      %v1797 = vadd.f32 %v1375, %v1779
      %v1798 = vadd.f32 %v1376, %v1782
      %v1799 = vadd.f32 %v1377, %v1787
      %v1800 = vadd.f32 %v1378, %v1790
      %v1801 = vsel %vm744, %v1793, 0.0
      %1802 = vadd.xlane.f32.xlu0 %v1801
      %v1803 = vpop.xlane.xlu0 %1802
      %v1804 = vsel %vm744, %v1794, 0.0
      %1805 = vadd.xlane.f32.xlu0 %v1804
      %v1806 = vpop.xlane.xlu0 %1805
      %v1807 = vsel %vm744, %v1795, 0.0
      %1808 = vadd.xlane.f32.xlu0 %v1807
      %v1809 = vpop.xlane.xlu0 %1808
      %v1810 = vsel %vm744, %v1796, 0.0
      %1811 = vadd.xlane.f32.xlu0 %v1810
      %v1812 = vpop.xlane.xlu0 %1811
      %v1813 = vsel %vm744, %v1797, 0.0
      %1814 = vadd.xlane.f32.xlu0 %v1813
      %v1815 = vpop.xlane.xlu0 %1814
      %v1816 = vsel %vm744, %v1798, 0.0
      %1817 = vadd.xlane.f32.xlu0 %v1816
      %v1818 = vpop.xlane.xlu0 %1817
      %v1819 = vsel %vm744, %v1799, 0.0
      %1820 = vadd.xlane.f32.xlu0 %v1819
      %v1821 = vpop.xlane.xlu0 %1820
      %v1822 = vsel %vm744, %v1800, 0.0
      %1823 = vadd.xlane.f32.xlu0 %v1822
      %v1824 = vpop.xlane.xlu0 %1823
      %v1825 = vmul.f32 %v1803, %v769
      %v1826 = vmul.f32 %v1806, %v769
      %v1827 = vmul.f32 %v1809, %v769
      %v1828 = vmul.f32 %v1812, %v769
      %v1829 = vmul.f32 %v1815, %v769
      %v1830 = vmul.f32 %v1818, %v769
      %v1831 = vmul.f32 %v1821, %v769
      %v1832 = vmul.f32 %v1824, %v769
      %v1833 = vsub.f32 %v1793, %v1825
      %v1834 = vsub.f32 %v1794, %v1826
      %v1835 = vsub.f32 %v1795, %v1827
      %v1836 = vsub.f32 %v1796, %v1828
      %v1837 = vsub.f32 %v1797, %v1829
      %v1838 = vsub.f32 %v1798, %v1830
      %v1839 = vsub.f32 %v1799, %v1831
      %v1840 = vsub.f32 %v1800, %v1832
      %v1841 = vmul.f32 %v1833, %v1833
      %v1842 = vmul.f32 %v1834, %v1834
      %v1843 = vmul.f32 %v1835, %v1835
      %v1844 = vmul.f32 %v1836, %v1836
      %v1845 = vmul.f32 %v1837, %v1837
      %v1846 = vmul.f32 %v1838, %v1838
      %v1847 = vmul.f32 %v1839, %v1839
      %v1848 = vmul.f32 %v1840, %v1840
      %v1849 = vsel %vm744, %v1841, 0.0
      %1850 = vadd.xlane.f32.xlu0 %v1849
      %v1851 = vpop.xlane.xlu0 %1850
      %v1852 = vsel %vm744, %v1842, 0.0
      %1853 = vadd.xlane.f32.xlu0 %v1852
      %v1854 = vpop.xlane.xlu0 %1853
      %v1855 = vsel %vm744, %v1843, 0.0
      %1856 = vadd.xlane.f32.xlu0 %v1855
      %v1857 = vpop.xlane.xlu0 %1856
      %v1858 = vsel %vm744, %v1844, 0.0
      %1859 = vadd.xlane.f32.xlu0 %v1858
      %v1860 = vpop.xlane.xlu0 %1859
      %v1861 = vsel %vm744, %v1845, 0.0
      %1862 = vadd.xlane.f32.xlu0 %v1861
      %v1863 = vpop.xlane.xlu0 %1862
      %v1864 = vsel %vm744, %v1846, 0.0
      %1865 = vadd.xlane.f32.xlu0 %v1864
      %v1866 = vpop.xlane.xlu0 %1865
      %v1867 = vsel %vm744, %v1847, 0.0
      %1868 = vadd.xlane.f32.xlu0 %v1867
      %v1869 = vpop.xlane.xlu0 %1868
      %v1870 = vsel %vm744, %v1848, 0.0
      %1871 = vadd.xlane.f32.xlu0 %v1870
      %v1872 = vpop.xlane.xlu0 %1871
      %v1873 = vmul.f32 %v1851, %v769
      %v1874 = vmul.f32 %v1854, %v769
      %v1875 = vmul.f32 %v1857, %v769
      %v1876 = vmul.f32 %v1860, %v769
      %v1877 = vmul.f32 %v1863, %v769
      %v1878 = vmul.f32 %v1866, %v769
      %v1879 = vmul.f32 %v1869, %v769
      %v1880 = vmul.f32 %v1872, %v769
      %v1881 = vadd.f32 %v1873, 1e-06
      %v1882 = vadd.f32 %v1874, 1e-06
      %v1883 = vadd.f32 %v1875, 1e-06
      %v1884 = vadd.f32 %v1876, 1e-06
      %v1885 = vadd.f32 %v1877, 1e-06
      %v1886 = vadd.f32 %v1878, 1e-06
      %v1887 = vadd.f32 %v1879, 1e-06
      %v1888 = vadd.f32 %v1880, 1e-06
      %v1889 = vrsqrt.pop %v1881
      %v1890 = vrsqrt.pop %v1882
      %v1891 = vrsqrt.pop %v1883
      %v1892 = vrsqrt.pop %v1884
      %v1893 = vrsqrt.pop %v1885
      %v1894 = vrsqrt.pop %v1886
      %v1895 = vrsqrt.pop %v1887
      %v1896 = vrsqrt.pop %v1888
      %v1897 = vmul.f32 %v1833, %v1889
      %v1898 = vmul.f32 %v1834, %v1890
      %v1899 = vmul.f32 %v1835, %v1891
      %v1900 = vmul.f32 %v1836, %v1892
      %v1901 = vmul.f32 %v1837, %v1893
      %v1902 = vmul.f32 %v1838, %v1894
      %v1903 = vmul.f32 %v1839, %v1895
      %v1904 = vmul.f32 %v1840, %v1896
      %v1906 = vlaneseq
      %v1907 = vshrl.u32 %v1906, 7
      %v1908 = vsub.s32 0, %v1907
      %v1909 = vrot.slane %v620, %v1908
      %v1911 = vmul.f32 %v1897, %v1909
      %v1912 = vmul.f32 %v1898, %v1909
      %v1913 = vmul.f32 %v1899, %v1909
      %v1914 = vmul.f32 %v1900, %v1909
      %v1915 = vmul.f32 %v1901, %v1909
      %v1916 = vmul.f32 %v1902, %v1909
      %v1917 = vmul.f32 %v1903, %v1909
      %v1918 = vmul.f32 %v1904, %v1909
      %v1920 = vlaneseq
      %v1921 = vshrl.u32 %v1920, 7
      %v1922 = vsub.s32 0, %v1921
      %v1923 = vrot.slane %v621, %v1922
      %v1925 = vadd.f32 %v1911, %v1923
      %v1926 = vadd.f32 %v1912, %v1923
      %v1927 = vadd.f32 %v1913, %v1923
      %v1928 = vadd.f32 %v1914, %v1923
      %v1929 = vadd.f32 %v1915, %v1923
      %v1930 = vadd.f32 %v1916, %v1923
      %v1931 = vadd.f32 %v1917, %v1923
      %v1932 = vadd.f32 %v1918, %v1923
      %1933 = vst.msk [vmem:[%s575] sm:$0xff] %vm744, %v1925
      %1934 = vst.msk [vmem:[%s575 + $0x8] sm:$0xff] %vm744, %v1926
      %1935 = vst.msk [vmem:[%s575 + $0x10] sm:$0xff] %vm744, %v1927
      %1936 = vst.msk [vmem:[%s575 + $0x18] sm:$0xff] %vm744, %v1928
      %1937 = vst.msk [vmem:[%s575 + $0x20] sm:$0xff] %vm744, %v1929
      %1938 = vst.msk [vmem:[%s575 + $0x28] sm:$0xff] %vm744, %v1930
      %1939 = vst.msk [vmem:[%s575 + $0x30] sm:$0xff] %vm744, %v1931
      %1940 = vst.msk [vmem:[%s575 + $0x38] sm:$0xff] %vm744, %v1932
      %p1941 = scmp.lt.s32.totalorder %s29, 1
      %s1942 = scalar_select %p1941, %s29, 1
      %s1943 = smul.addr %s1942, 8
      %s1944 = smul.addr %s1943, 8
      %s1945 = scalar_lea.vmem %s18, %s1944
      // Predicated region
      $region93: #{medsam_lite_forward.3} parent=91 // pred_check
        %p1946 = pneg %p430
      $region94: #{medsam_lite_forward.3} parent=91 // pred_check_branch
        %1948 = sbr.rel (%p1946) target = $region96
      $region95: #{medsam_lite_forward.3} parent=91 // pred_region
        _
      $region96: #{medsam_lite_forward.3} parent=91 // pred_fallthru
        _
    $region92: #{medsam_lite_forward.3} parent=5 // pred_fallthru
      _
    %p1949 = scmp.le.s32.totalorder 2, %s24
    // Predicated region
    $region97: #{medsam_lite_forward.3} parent=5 // pred_check
      %p1950 = pneg %p1949
    $region98: #{medsam_lite_forward.3} parent=5 // pred_check_branch
      %1952 = sbr.rel (%p1950) target = $region100
    $region99: #{medsam_lite_forward.3} parent=5 // pred_region
      %s1953 = ssub.s32 %s24, 2
      // Predicated region
      $region101: #{medsam_lite_forward.3} parent=99 // pred_check
        %p1954 = pneg %p436
      $region102: #{medsam_lite_forward.3} parent=99 // pred_check_branch
        %1956 = sbr.rel (%p1954) target = $region104
      $region103: #{medsam_lite_forward.3} parent=99 // pred_region
        %p1957 = scmp.lt.s32.totalorder %s30, 1
        %s1958 = scalar_select %p1957, %s30, 1
        %s1959 = smul.addr %s1958, 8
        %s1960 = smul.addr %s1959, 8
        %s1961 = scalar_lea.vmem %s18, %s1960
      $region104: #{medsam_lite_forward.3} parent=99 // pred_fallthru
        _
    $region100: #{medsam_lite_forward.3} parent=5 // pred_fallthru
      _
  $region6: #{medsam_lite_forward.3} parent=0 // loop_footer
    %s28 = sadd.s32 1, %s24
  $region7: #{medsam_lite_forward.3} parent=0 // loop_footer_branch
    %23 = sbr.rel target = $region3
  $region8: #{medsam_lite_forward.3} parent=0 // loop_exit
    _

// kernel: medsam_lite_forward.5
$region0: #{medsam_lite_forward.5}
  #allocation0 [shape = 'u32[]', space=smem, size = 0x4, offset = 0x4, fixed_abs, tag = 'smem constant byte address 0x4 - core index']
  #allocation1 [shape = 'u32[144,128]{1,0:T(1,128)}', space=vmem, size = 0x12000, scoped, tag = 'internal scratch']
  %s0 = inlined_call_operand.smem [shape: u32[48], index: -1, kind: input, shape index: {}]
  %s1 = sld [smem:[%s0]]
  %s2 = scalar_lea.smem %s0, 1
  %s3 = sld [smem:[%s2]]
  %s4 = scalar_lea.smem %s0, 2
  %s5 = sld [smem:[%s4]]
  %s6 = scalar_lea.smem %s0, 3
  %s7 = sld [smem:[%s6]]
  %s8 = scalar_lea.smem %s0, 4
  %s9 = sld [smem:[%s8]]
  %s10 = scalar_lea.smem %s0, 5
  %s11 = sld [smem:[%s10]]
  %s12 = scalar_lea.smem %s0, 6
  %s13 = sld [smem:[%s12]]
  %s14 = scalar_lea.smem %s0, 7
  %s15 = sld [smem:[%s14]]
  %s16 = scalar_lea.smem %s0, 8
  %s17 = sld [smem:[%s16]]
  %s18 = scalar_lea.smem %s0, 9
  %s19 = sld [smem:[%s18]]
  %s20 = scalar_lea.smem %s0, 10
  %s21 = sld [smem:[%s20]]
  %s22 = scalar_lea.smem %s0, 11
  %s23 = sld [smem:[%s22]]
  %s24 = scalar_lea.smem %s0, 12
  %s25 = sld [smem:[%s24]]
  %s26 = scalar_lea.smem %s0, 13
  %s27 = sld [smem:[%s26]]
  %s28 = scalar_lea.smem %s0, 14
  %s29 = sld [smem:[%s28]]
  %s30 = scalar_lea.smem %s0, 15
  %s31 = sld [smem:[%s30]]
  %s32 = scalar_lea.smem %s0, 16
  %s33 = sld [smem:[%s32]]
  %s34 = scalar_lea.smem %s0, 17
  %s35 = sld [smem:[%s34]]
  %s36 = scalar_lea.smem %s0, 18
  %s37 = sld [smem:[%s36]]
  %s38 = scalar_lea.smem %s0, 19
  %s39 = sld [smem:[%s38]]
  %s40 = scalar_lea.smem %s0, 20
  %s41 = sld [smem:[%s40]]
  %s42 = scalar_lea.smem %s0, 21
  %s43 = sld [smem:[%s42]]
  %s44 = scalar_lea.smem %s0, 22
  %s45 = sld [smem:[%s44]]
  %s46 = scalar_lea.smem %s0, 23
  %s47 = sld [smem:[%s46]]
  %s48 = scalar_lea.smem %s0, 24
  %s49 = sld [smem:[%s48]]
  %s50 = scalar_lea.smem %s0, 25
  %s51 = sld [smem:[%s50]]
  %s52 = scalar_lea.smem %s0, 26
  %s53 = sld [smem:[%s52]]
  %s54 = scalar_lea.smem %s0, 27
  %s55 = sld [smem:[%s54]]
  %s56 = scalar_lea.smem %s0, 28
  %s57 = sld [smem:[%s56]]
  %s58 = scalar_lea.smem %s0, 29
  %s59 = sld [smem:[%s58]]
  %s60 = scalar_lea.smem %s0, 30
  %s61 = sld [smem:[%s60]]
  %s62 = scalar_lea.smem %s0, 31
  %s63 = sld [smem:[%s62]]
  %s64 = scalar_lea.smem %s0, 32
  %s65 = sld [smem:[%s64]]
  %s66 = scalar_lea.smem %s0, 33
  %s67 = sld [smem:[%s66]]
  %s68 = scalar_lea.smem %s0, 34
  %s69 = sld [smem:[%s68]]
  %s70 = scalar_lea.smem %s0, 35
  %s71 = sld [smem:[%s70]]
  %s72 = scalar_lea.smem %s0, 36
  %s73 = sld [smem:[%s72]]
  %s74 = scalar_lea.smem %s0, 37
  %s75 = sld [smem:[%s74]]
  %s76 = scalar_lea.smem %s0, 38
  %s77 = sld [smem:[%s76]]
  %s78 = scalar_lea.smem %s0, 39
  %s79 = sld [smem:[%s78]]
  %s80 = scalar_lea.smem %s0, 40
  %s81 = sld [smem:[%s80]]
  %s82 = scalar_lea.smem %s0, 41
  %s83 = sld [smem:[%s82]]
  %s84 = scalar_lea.smem %s0, 42
  %s85 = sld [smem:[%s84]]
  %s86 = scalar_lea.smem %s0, 43
  %s87 = sld [smem:[%s86]]
  %s88 = scalar_lea.smem %s0, 44
  %s89 = sld [smem:[%s88]]
  %s90 = scalar_lea.smem %s0, 45
  %s91 = sld [smem:[%s90]]
  %s92 = scalar_lea.smem %s0, 46
  %s93 = sld [smem:[%s92]]
  %s94 = scalar_lea.smem %s0, 47
  %s95 = sld [smem:[%s94]]
  %96 = xla_tuple %s87, %s89, %s91, %s93, %s95
  %s97 = sld [smem:[#allocation0]]
  $region297: #{medsam_lite_forward.5} parent=0
    _
  %s99 = ssub.s32 1, %s97
  %s100 = scalar_select 0, %s99, %s97
  $region1: #{medsam_lite_forward.5} parent=0
    #allocation2 [shape = 'u8[512]{0}', space=vmem, size = 0x400, scoped, tag = 'input window, operand 17, single buffered']
    #allocation3 [shape = 's32[2]{0}', space=sflag, size = 0x8, scoped, tag = 'scoped memory for medsam_lite_forward.5']
    #allocation4 [shape = 's32[2]{0}', space=sflag, size = 0x8, scoped, tag = 'scoped memory for medsam_lite_forward.5']
    #allocation5 [shape = 'u8[512]{0}', space=vmem, size = 0x400, scoped, tag = 'input window, operand 18, single buffered']
    #allocation6 [shape = 's32[1]{0}', space=sflag, size = 0x4, scoped, tag = 'scoped memory for medsam_lite_forward.5']
    #allocation7 [shape = 'u8[512]{0}', space=vmem, size = 0x400, scoped, tag = 'input window, operand 19, single buffered']
    #allocation8 [shape = 'u8[512]{0}', space=vmem, size = 0x400, scoped, tag = 'input window, operand 21, single buffered']
    #allocation9 [shape = 's32[1]{0}', space=sflag, size = 0x4, scoped, tag = 'scoped memory for medsam_lite_forward.5']
    #allocation10 [shape = 'u8[512]{0}', space=vmem, size = 0x400, scoped, tag = 'input window, operand 23, single buffered']
    #allocation11 [shape = 'u8[512]{0}', space=vmem, size = 0x400, scoped, tag = 'input window, operand 24, single buffered']
    #allocation12 [shape = 's32[1]{0}', space=sflag, size = 0x4, scoped, tag = 'scoped memory for medsam_lite_forward.5']
    #allocation13 [shape = 'u8[512]{0}', space=vmem, size = 0x400, scoped, tag = 'input window, operand 25, single buffered']
    #allocation14 [shape = 'u8[512]{0}', space=vmem, size = 0x400, scoped, tag = 'input window, operand 27, single buffered']
    #allocation15 [shape = 's32[1]{0}', space=sflag, size = 0x4, scoped, tag = 'scoped memory for medsam_lite_forward.5']
    #allocation16 [shape = 'u8[512]{0}', space=vmem, size = 0x400, scoped, tag = 'input window, operand 29, single buffered']
    #allocation17 [shape = 'u8[512]{0}', space=vmem, size = 0x400, scoped, tag = 'input window, operand 31, single buffered']
    #allocation18 [shape = 's32[1]{0}', space=sflag, size = 0x4, scoped, tag = 'scoped memory for medsam_lite_forward.5']
    #allocation19 [shape = 'u8[512]{0}', space=vmem, size = 0x400, scoped, tag = 'input window, operand 32, single buffered']
    #allocation20 [shape = 'u8[512]{0}', space=vmem, size = 0x400, scoped, tag = 'input window, operand 33, single buffered']
    #allocation21 [shape = 's32[1]{0}', space=sflag, size = 0x4, scoped, tag = 'scoped memory for medsam_lite_forward.5']
    #allocation22 [shape = 'u8[512]{0}', space=vmem, size = 0x400, scoped, tag = 'input window, operand 35, single buffered']
    #allocation23 [shape = 'u8[512]{0}', space=vmem, size = 0x400, scoped, tag = 'input window, operand 40, single buffered']
    #allocation24 [shape = 's32[1]{0}', space=sflag, size = 0x4, scoped, tag = 'scoped memory for medsam_lite_forward.5']
    #allocation25 [shape = 'u8[512]{0}', space=vmem, size = 0x400, scoped, tag = 'input window, operand 42, single buffered']
    #allocation26 [shape = 'u8[1024]{0}', space=vmem, size = 0x400, scoped, tag = 'output window, operand 2']
    #allocation27 [shape = 'u8[1024]{0}', space=vmem, size = 0x400, scoped, tag = 'output window, operand 3']
    #allocation28 [shape = 's32[2]{0}', space=sflag, size = 0x8, scoped, tag = 'scoped memory for medsam_lite_forward.5']
    #allocation29 [shape = 'u8[1024]{0}', space=vmem, size = 0x400, scoped, tag = 'output window, operand 4']
    %101 = vsyncpa [#allocation3], 0
    %102 = vsyncpa [#allocation6], 0
    %103 = vsyncpa [#allocation9], 0
    %104 = vsyncpa [#allocation12], 0
    %105 = vsyncpa [#allocation15], 0
    %106 = vsyncpa [#allocation18], 0
    %107 = vsyncpa [#allocation21], 0
    %108 = vsyncpa [#allocation24], 0
    %109 = vsyncpa [#allocation4], 0
    %s110 = scalar_lea.sflag [#allocation4], 1
    %111 = vsyncpa %s110, 0
    %112 = vsyncpa [#allocation28], 0
    %s113 = scalar_lea.sflag [#allocation28], 1
    %114 = vsyncpa %s113, 0
    loop: start=0, step=1, limit=4
    $region2: #{medsam_lite_forward.5} parent=1 // loop_pre_header
      _
    $region3: #{medsam_lite_forward.5} parent=1 // loop_header
      %s116 = sphi 0, %s120
      %p117 = scmp.ge.s32.totalorder %s116, 4
      %s126 = sphi 0, %s128
      %s129 = sphi 0, %s126
      %s130 = sphi 0, %s129
      %s146 = sphi 0, %s130
      %s152 = sphi 0, %s154
      %s155 = sphi 0, %s152
      %s156 = sphi 0, %s155
      %s172 = sphi 0, %s156
      %s178 = sphi 0, %s180
      %s181 = sphi 0, %s178
      %s182 = sphi 0, %s181
      %s198 = sphi 0, %s182
      %s202 = sphi 0, %s202
      %s204 = sphi 0, %s202
      %s205 = sphi 0, %s204
      %s219 = sphi 0, %s205
      %s223 = sphi 0, %s223
      %s225 = sphi 0, %s223
      %s226 = sphi 0, %s225
      %s240 = sphi 0, %s226
      %s244 = sphi 0, %s244
      %s246 = sphi 0, %s244
      %s247 = sphi 0, %s246
      %s261 = sphi 0, %s247
      %s265 = sphi 0, %s265
      %s267 = sphi 0, %s265
      %s268 = sphi 0, %s267
      %s282 = sphi 0, %s268
      %s286 = sphi 0, %s286
      %s288 = sphi 0, %s286
      %s289 = sphi 0, %s288
      %s303 = sphi 0, %s289
      %s307 = sphi 0, %s307
      %s309 = sphi 0, %s307
      %s310 = sphi 0, %s309
      %s324 = sphi 0, %s310
      %s328 = sphi 0, %s328
      %s330 = sphi 0, %s328
      %s331 = sphi 0, %s330
      %s345 = sphi 0, %s331
      %s349 = sphi 0, %s349
      %s351 = sphi 0, %s349
      %s352 = sphi 0, %s351
      %s366 = sphi 0, %s352
      %s370 = sphi 0, %s370
      %s372 = sphi 0, %s370
      %s373 = sphi 0, %s372
      %s387 = sphi 0, %s373
      %s391 = sphi 0, %s391
      %s393 = sphi 0, %s391
      %s394 = sphi 0, %s393
      %s408 = sphi 0, %s394
      %s412 = sphi 0, %s412
      %s414 = sphi 0, %s412
      %s415 = sphi 0, %s414
      %s429 = sphi 0, %s415
      %s433 = sphi 0, %s433
      %s435 = sphi 0, %s433
      %s436 = sphi 0, %s435
      %s450 = sphi 0, %s436
      %s454 = sphi 0, %s454
      %s456 = sphi 0, %s454
      %s457 = sphi 0, %s456
      %s471 = sphi 0, %s457
      %s475 = sphi 0, %s475
      %s477 = sphi 0, %s475
      %s478 = sphi 0, %s477
      %s492 = sphi 0, %s478
      %s496 = sphi 0, %s496
      %s498 = sphi 0, %s496
      %s499 = sphi 0, %s498
      %s513 = sphi 0, %s499
      %s517 = sphi 0, %s517
      %s519 = sphi 0, %s517
      %s520 = sphi 0, %s519
      %s534 = sphi 0, %s520
      %s538 = sphi 0, %s538
      %s540 = sphi 0, %s538
      %s541 = sphi 0, %s540
      %s555 = sphi 0, %s541
      %s559 = sphi 0, %s559
      %s561 = sphi 0, %s559
      %s562 = sphi 0, %s561
      %s576 = sphi 0, %s562
      %s580 = sphi 0, %s580
      %s582 = sphi 0, %s580
      %s583 = sphi 0, %s582
      %s597 = sphi 0, %s583
      %s601 = sphi 0, %s601
      %s603 = sphi 0, %s601
      %s604 = sphi 0, %s603
      %s618 = sphi 0, %s604
      %s622 = sphi 0, %s622
      %s624 = sphi 0, %s622
      %s625 = sphi 0, %s624
      %s639 = sphi 0, %s625
      %s643 = sphi 0, %s643
      %s645 = sphi 0, %s643
      %s646 = sphi 0, %s645
      %s660 = sphi 0, %s646
      %s664 = sphi 0, %s664
      %s666 = sphi 0, %s664
      %s667 = sphi 0, %s666
      %s681 = sphi 0, %s667
      %s685 = sphi 0, %s685
      %s687 = sphi 0, %s685
      %s688 = sphi 0, %s687
      %s702 = sphi 0, %s688
      %s706 = sphi 0, %s706
      %s708 = sphi 0, %s706
      %s709 = sphi 0, %s708
      %s723 = sphi 0, %s709
      %s727 = sphi 0, %s727
      %s729 = sphi 0, %s727
      %s730 = sphi 0, %s729
      %s744 = sphi 0, %s730
      %s748 = sphi 0, %s748
      %s750 = sphi 0, %s748
      %s751 = sphi 0, %s750
      %s765 = sphi 0, %s751
      %s769 = sphi 0, %s769
      %s771 = sphi 0, %s769
      %s772 = sphi 0, %s771
      %s786 = sphi 0, %s772
      %s790 = sphi 0, %s790
      %s792 = sphi 0, %s790
      %s793 = sphi 0, %s792
      %s807 = sphi 0, %s793
      %s811 = sphi 0, %s811
      %s813 = sphi 0, %s811
      %s814 = sphi 0, %s813
      %s828 = sphi 0, %s814
      %s832 = sphi 0, %s832
      %s834 = sphi 0, %s832
      %s835 = sphi 0, %s834
      %s849 = sphi 0, %s835
      %s853 = sphi 0, %s853
      %s855 = sphi 0, %s853
      %s856 = sphi 0, %s855
      %s870 = sphi 0, %s856
      %s874 = sphi 0, %s874
      %s876 = sphi 0, %s874
      %s877 = sphi 0, %s876
      %s891 = sphi 0, %s877
      %s895 = sphi 0, %s895
      %s897 = sphi 0, %s895
      %s898 = sphi 0, %s897
      %s912 = sphi 0, %s898
      %s916 = sphi 0, %s916
      %s918 = sphi 0, %s916
      %s919 = sphi 0, %s918
      %s933 = sphi 0, %s919
      %s937 = sphi 0, %s937
      %s939 = sphi 0, %s937
      %s940 = sphi 0, %s939
      %s954 = sphi 0, %s940
      %s958 = sphi 0, %s958
      %s960 = sphi 0, %s958
      %s961 = sphi 0, %s960
      %s975 = sphi 0, %s961
      %s979 = sphi 0, %s979
      %s981 = sphi 0, %s979
      %s982 = sphi 0, %s981
      %s996 = sphi 0, %s982
      %s1000 = sphi 0, %s1000
      %s1002 = sphi 0, %s1000
      %s1003 = sphi 0, %s1002
      %s1017 = sphi 0, %s1003
      %s1021 = sphi 0, %s1021
      %s1023 = sphi 0, %s1021
      %s1024 = sphi 0, %s1023
      %s1038 = sphi 0, %s1024
      %s1044 = sphi 0, %s1046
      %s1047 = sphi 0, %s1044
      %s1048 = sphi 0, %s1047
      %s1064 = sphi 0, %s1048
      %s1070 = sphi 0, %s1072
      %s1073 = sphi 0, %s1070
      %s1074 = sphi 0, %s1073
      %s1090 = sphi 0, %s1074
      %s1096 = sphi 0, %s1098
      %s1099 = sphi 0, %s1096
      %s1100 = sphi 0, %s1099
      %s1116 = sphi 0, %s1100
      %s1122 = sphi 0, %s1124
      %s1125 = sphi 0, %s1122
      %s1126 = sphi 0, %s1125
      %s1142 = sphi 0, %s1126
      %s1148 = sphi 0, %s1150
      %s1151 = sphi 0, %s1148
      %s1152 = sphi 0, %s1151
      %s1168 = sphi 0, %s1152
    $region4: #{medsam_lite_forward.5} parent=1 // loop_header_branch
      %119 = sbr.rel (%p117) target = $region8
    $region5: #{medsam_lite_forward.5} parent=1 // loop_body
      %s121 = ssub.s32 %s116, 1
      %s122 = ssub.s32 %s116, 2
      %s123 = sadd.s32 %s116, 1
      %s124 = ssub.s32 %s116, %s123
      %p125 = scmp.eq.s32.totalorder %s124, 0
      %s127 = sadd.s32 %s126, 1
      %s128 = scalar_select %p125, %s126, %s127
      %p131 = pneg %p125
      %p132 = scmp.eq.s32.totalorder %s116, 1
      %p133 = por %p131, %p132
      %p134 = scmp.ne.s32.totalorder %s126, %s129
      %p135 = scmp.eq.s32.totalorder %s116, 0
      %p136 = por %p134, %p135
      %p137 = scmp.ne.s32.totalorder %s126, %s129
      %p138 = scmp.eq.s32.totalorder %s121, 1
      %p139 = por %p137, %p138
      %p140 = scmp.ne.s32.totalorder %s129, %s130
      %p141 = scmp.eq.s32.totalorder %s121, 0
      %p142 = por %p140, %p141
      %p143 = scmp.ne.s32.totalorder %s129, %s130
      %p144 = scmp.eq.s32.totalorder %s122, 1
      %p145 = por %p143, %p144
      %p147 = scmp.ne.s32.totalorder %s130, %s146
      %p148 = scmp.eq.s32.totalorder %s122, 0
      %p149 = por %p147, %p148
      %s150 = ssub.s32 %s116, %s123
      %p151 = scmp.eq.s32.totalorder %s150, 0
      %s153 = sadd.s32 %s152, 1
      %s154 = scalar_select %p151, %s152, %s153
      %p157 = pneg %p151
      %p158 = scmp.eq.s32.totalorder %s116, 1
      %p159 = por %p157, %p158
      %p160 = scmp.ne.s32.totalorder %s152, %s155
      %p161 = scmp.eq.s32.totalorder %s116, 0
      %p162 = por %p160, %p161
      %p163 = scmp.ne.s32.totalorder %s152, %s155
      %p164 = scmp.eq.s32.totalorder %s121, 1
      %p165 = por %p163, %p164
      %p166 = scmp.ne.s32.totalorder %s155, %s156
      %p167 = scmp.eq.s32.totalorder %s121, 0
      %p168 = por %p166, %p167
      %p169 = scmp.ne.s32.totalorder %s155, %s156
      %p170 = scmp.eq.s32.totalorder %s122, 1
      %p171 = por %p169, %p170
      %p173 = scmp.ne.s32.totalorder %s156, %s172
      %p174 = scmp.eq.s32.totalorder %s122, 0
      %p175 = por %p173, %p174
      %s176 = ssub.s32 %s116, %s123
      %p177 = scmp.eq.s32.totalorder %s176, 0
      %s179 = sadd.s32 %s178, 1
      %s180 = scalar_select %p177, %s178, %s179
      %p183 = pneg %p177
      %p184 = scmp.eq.s32.totalorder %s116, 1
      %p185 = por %p183, %p184
      %p186 = scmp.ne.s32.totalorder %s178, %s181
      %p187 = scmp.eq.s32.totalorder %s116, 0
      %p188 = por %p186, %p187
      %p189 = scmp.ne.s32.totalorder %s178, %s181
      %p190 = scmp.eq.s32.totalorder %s121, 1
      %p191 = por %p189, %p190
      %p192 = scmp.ne.s32.totalorder %s181, %s182
      %p193 = scmp.eq.s32.totalorder %s121, 0
      %p194 = por %p192, %p193
      %p195 = scmp.ne.s32.totalorder %s181, %s182
      %p196 = scmp.eq.s32.totalorder %s122, 1
      %p197 = por %p195, %p196
      %p199 = scmp.ne.s32.totalorder %s182, %s198
      %p200 = scmp.eq.s32.totalorder %s122, 0
      %p201 = por %p199, %p200
      %s203 = sadd.s32 %s202, 1
      %p206 = scmp.eq.s32.totalorder %s116, 1
      %p207 = scmp.ne.s32.totalorder %s202, %s204
      %p208 = scmp.eq.s32.totalorder %s116, 0
      %p209 = por %p207, %p208
      %p210 = scmp.ne.s32.totalorder %s202, %s204
      %p211 = scmp.eq.s32.totalorder %s121, 1
      %p212 = por %p210, %p211
      %p213 = scmp.ne.s32.totalorder %s204, %s205
      %p214 = scmp.eq.s32.totalorder %s121, 0
      %p215 = por %p213, %p214
      %p216 = scmp.ne.s32.totalorder %s204, %s205
      %p217 = scmp.eq.s32.totalorder %s122, 1
      %p218 = por %p216, %p217
      %p220 = scmp.ne.s32.totalorder %s205, %s219
      %p221 = scmp.eq.s32.totalorder %s122, 0
      %p222 = por %p220, %p221
      %s224 = sadd.s32 %s223, 1
      %p227 = scmp.eq.s32.totalorder %s116, 1
      %p228 = scmp.ne.s32.totalorder %s223, %s225
      %p229 = scmp.eq.s32.totalorder %s116, 0
      %p230 = por %p228, %p229
      %p231 = scmp.ne.s32.totalorder %s223, %s225
      %p232 = scmp.eq.s32.totalorder %s121, 1
      %p233 = por %p231, %p232
      %p234 = scmp.ne.s32.totalorder %s225, %s226
      %p235 = scmp.eq.s32.totalorder %s121, 0
      %p236 = por %p234, %p235
      %p237 = scmp.ne.s32.totalorder %s225, %s226
      %p238 = scmp.eq.s32.totalorder %s122, 1
      %p239 = por %p237, %p238
      %p241 = scmp.ne.s32.totalorder %s226, %s240
      %p242 = scmp.eq.s32.totalorder %s122, 0
      %p243 = por %p241, %p242
      %s245 = sadd.s32 %s244, 1
      %p248 = scmp.eq.s32.totalorder %s116, 1
      %p249 = scmp.ne.s32.totalorder %s244, %s246
      %p250 = scmp.eq.s32.totalorder %s116, 0
      %p251 = por %p249, %p250
      %p252 = scmp.ne.s32.totalorder %s244, %s246
      %p253 = scmp.eq.s32.totalorder %s121, 1
      %p254 = por %p252, %p253
      %p255 = scmp.ne.s32.totalorder %s246, %s247
      %p256 = scmp.eq.s32.totalorder %s121, 0
      %p257 = por %p255, %p256
      %p258 = scmp.ne.s32.totalorder %s246, %s247
      %p259 = scmp.eq.s32.totalorder %s122, 1
      %p260 = por %p258, %p259
      %p262 = scmp.ne.s32.totalorder %s247, %s261
      %p263 = scmp.eq.s32.totalorder %s122, 0
      %p264 = por %p262, %p263
      %s266 = sadd.s32 %s265, 1
      %p269 = scmp.eq.s32.totalorder %s116, 1
      %p270 = scmp.ne.s32.totalorder %s265, %s267
      %p271 = scmp.eq.s32.totalorder %s116, 0
      %p272 = por %p270, %p271
      %p273 = scmp.ne.s32.totalorder %s265, %s267
      %p274 = scmp.eq.s32.totalorder %s121, 1
      %p275 = por %p273, %p274
      %p276 = scmp.ne.s32.totalorder %s267, %s268
      %p277 = scmp.eq.s32.totalorder %s121, 0
      %p278 = por %p276, %p277
      %p279 = scmp.ne.s32.totalorder %s267, %s268
      %p280 = scmp.eq.s32.totalorder %s122, 1
      %p281 = por %p279, %p280
      %p283 = scmp.ne.s32.totalorder %s268, %s282
      %p284 = scmp.eq.s32.totalorder %s122, 0
      %p285 = por %p283, %p284
      %s287 = sadd.s32 %s286, 1
      %p290 = scmp.eq.s32.totalorder %s116, 1
      %p291 = scmp.ne.s32.totalorder %s286, %s288
      %p292 = scmp.eq.s32.totalorder %s116, 0
      %p293 = por %p291, %p292
      %p294 = scmp.ne.s32.totalorder %s286, %s288
      %p295 = scmp.eq.s32.totalorder %s121, 1
      %p296 = por %p294, %p295
      %p297 = scmp.ne.s32.totalorder %s288, %s289
      %p298 = scmp.eq.s32.totalorder %s121, 0
      %p299 = por %p297, %p298
      %p300 = scmp.ne.s32.totalorder %s288, %s289
      %p301 = scmp.eq.s32.totalorder %s122, 1
      %p302 = por %p300, %p301
      %p304 = scmp.ne.s32.totalorder %s289, %s303
      %p305 = scmp.eq.s32.totalorder %s122, 0
      %p306 = por %p304, %p305
      %s308 = sadd.s32 %s307, 1
      %p311 = scmp.eq.s32.totalorder %s116, 1
      %p312 = scmp.ne.s32.totalorder %s307, %s309
      %p313 = scmp.eq.s32.totalorder %s116, 0
      %p314 = por %p312, %p313
      %p315 = scmp.ne.s32.totalorder %s307, %s309
      %p316 = scmp.eq.s32.totalorder %s121, 1
      %p317 = por %p315, %p316
      %p318 = scmp.ne.s32.totalorder %s309, %s310
      %p319 = scmp.eq.s32.totalorder %s121, 0
      %p320 = por %p318, %p319
      %p321 = scmp.ne.s32.totalorder %s309, %s310
      %p322 = scmp.eq.s32.totalorder %s122, 1
      %p323 = por %p321, %p322
      %p325 = scmp.ne.s32.totalorder %s310, %s324
      %p326 = scmp.eq.s32.totalorder %s122, 0
      %p327 = por %p325, %p326
      %s329 = sadd.s32 %s328, 1
      %p332 = scmp.eq.s32.totalorder %s116, 1
      %p333 = scmp.ne.s32.totalorder %s328, %s330
      %p334 = scmp.eq.s32.totalorder %s116, 0
      %p335 = por %p333, %p334
      %p336 = scmp.ne.s32.totalorder %s328, %s330
      %p337 = scmp.eq.s32.totalorder %s121, 1
      %p338 = por %p336, %p337
      %p339 = scmp.ne.s32.totalorder %s330, %s331
      %p340 = scmp.eq.s32.totalorder %s121, 0
      %p341 = por %p339, %p340
      %p342 = scmp.ne.s32.totalorder %s330, %s331
      %p343 = scmp.eq.s32.totalorder %s122, 1
      %p344 = por %p342, %p343
      %p346 = scmp.ne.s32.totalorder %s331, %s345
      %p347 = scmp.eq.s32.totalorder %s122, 0
      %p348 = por %p346, %p347
      %s350 = sadd.s32 %s349, 1
      %p353 = scmp.eq.s32.totalorder %s116, 1
      %p354 = scmp.ne.s32.totalorder %s349, %s351
      %p355 = scmp.eq.s32.totalorder %s116, 0
      %p356 = por %p354, %p355
      %p357 = scmp.ne.s32.totalorder %s349, %s351
      %p358 = scmp.eq.s32.totalorder %s121, 1
      %p359 = por %p357, %p358
      %p360 = scmp.ne.s32.totalorder %s351, %s352
      %p361 = scmp.eq.s32.totalorder %s121, 0
      %p362 = por %p360, %p361
      %p363 = scmp.ne.s32.totalorder %s351, %s352
      %p364 = scmp.eq.s32.totalorder %s122, 1
      %p365 = por %p363, %p364
      %p367 = scmp.ne.s32.totalorder %s352, %s366
      %p368 = scmp.eq.s32.totalorder %s122, 0
      %p369 = por %p367, %p368
      %s371 = sadd.s32 %s370, 1
      %p374 = scmp.eq.s32.totalorder %s116, 1
      %p375 = scmp.ne.s32.totalorder %s370, %s372
      %p376 = scmp.eq.s32.totalorder %s116, 0
      %p377 = por %p375, %p376
      %p378 = scmp.ne.s32.totalorder %s370, %s372
      %p379 = scmp.eq.s32.totalorder %s121, 1
      %p380 = por %p378, %p379
      %p381 = scmp.ne.s32.totalorder %s372, %s373
      %p382 = scmp.eq.s32.totalorder %s121, 0
      %p383 = por %p381, %p382
      %p384 = scmp.ne.s32.totalorder %s372, %s373
      %p385 = scmp.eq.s32.totalorder %s122, 1
      %p386 = por %p384, %p385
      %p388 = scmp.ne.s32.totalorder %s373, %s387
      %p389 = scmp.eq.s32.totalorder %s122, 0
      %p390 = por %p388, %p389
      %s392 = sadd.s32 %s391, 1
      %p395 = scmp.eq.s32.totalorder %s116, 1
      %p396 = scmp.ne.s32.totalorder %s391, %s393
      %p397 = scmp.eq.s32.totalorder %s116, 0
      %p398 = por %p396, %p397
      %p399 = scmp.ne.s32.totalorder %s391, %s393
      %p400 = scmp.eq.s32.totalorder %s121, 1
      %p401 = por %p399, %p400
      %p402 = scmp.ne.s32.totalorder %s393, %s394
      %p403 = scmp.eq.s32.totalorder %s121, 0
      %p404 = por %p402, %p403
      %p405 = scmp.ne.s32.totalorder %s393, %s394
      %p406 = scmp.eq.s32.totalorder %s122, 1
      %p407 = por %p405, %p406
      %p409 = scmp.ne.s32.totalorder %s394, %s408
      %p410 = scmp.eq.s32.totalorder %s122, 0
      %p411 = por %p409, %p410
      %s413 = sadd.s32 %s412, 1
      %p416 = scmp.eq.s32.totalorder %s116, 1
      %p417 = scmp.ne.s32.totalorder %s412, %s414
      %p418 = scmp.eq.s32.totalorder %s116, 0
      %p419 = por %p417, %p418
      %p420 = scmp.ne.s32.totalorder %s412, %s414
      %p421 = scmp.eq.s32.totalorder %s121, 1
      %p422 = por %p420, %p421
      %p423 = scmp.ne.s32.totalorder %s414, %s415
      %p424 = scmp.eq.s32.totalorder %s121, 0
      %p425 = por %p423, %p424
      %p426 = scmp.ne.s32.totalorder %s414, %s415
      %p427 = scmp.eq.s32.totalorder %s122, 1
      %p428 = por %p426, %p427
      %p430 = scmp.ne.s32.totalorder %s415, %s429
      %p431 = scmp.eq.s32.totalorder %s122, 0
      %p432 = por %p430, %p431
      %s434 = sadd.s32 %s433, 1
      %p437 = scmp.eq.s32.totalorder %s116, 1
      %p438 = scmp.ne.s32.totalorder %s433, %s435
      %p439 = scmp.eq.s32.totalorder %s116, 0
      %p440 = por %p438, %p439
      %p441 = scmp.ne.s32.totalorder %s433, %s435
      %p442 = scmp.eq.s32.totalorder %s121, 1
      %p443 = por %p441, %p442
      %p444 = scmp.ne.s32.totalorder %s435, %s436
      %p445 = scmp.eq.s32.totalorder %s121, 0
      %p446 = por %p444, %p445
      %p447 = scmp.ne.s32.totalorder %s435, %s436
      %p448 = scmp.eq.s32.totalorder %s122, 1
      %p449 = por %p447, %p448
      %p451 = scmp.ne.s32.totalorder %s436, %s450
      %p452 = scmp.eq.s32.totalorder %s122, 0
      %p453 = por %p451, %p452
      %s455 = sadd.s32 %s454, 1
      %p458 = scmp.eq.s32.totalorder %s116, 1
      %p459 = scmp.ne.s32.totalorder %s454, %s456
      %p460 = scmp.eq.s32.totalorder %s116, 0
      %p461 = por %p459, %p460
      %p462 = scmp.ne.s32.totalorder %s454, %s456
      %p463 = scmp.eq.s32.totalorder %s121, 1
      %p464 = por %p462, %p463
      %p465 = scmp.ne.s32.totalorder %s456, %s457
      %p466 = scmp.eq.s32.totalorder %s121, 0
      %p467 = por %p465, %p466
      %p468 = scmp.ne.s32.totalorder %s456, %s457
      %p469 = scmp.eq.s32.totalorder %s122, 1
      %p470 = por %p468, %p469
      %p472 = scmp.ne.s32.totalorder %s457, %s471
      %p473 = scmp.eq.s32.totalorder %s122, 0
      %p474 = por %p472, %p473
      %s476 = sadd.s32 %s475, 1
      %p479 = scmp.eq.s32.totalorder %s116, 1
      %p480 = scmp.ne.s32.totalorder %s475, %s477
      %p481 = scmp.eq.s32.totalorder %s116, 0
      %p482 = por %p480, %p481
      %p483 = scmp.ne.s32.totalorder %s475, %s477
      %p484 = scmp.eq.s32.totalorder %s121, 1
      %p485 = por %p483, %p484
      %p486 = scmp.ne.s32.totalorder %s477, %s478
      %p487 = scmp.eq.s32.totalorder %s121, 0
      %p488 = por %p486, %p487
      %p489 = scmp.ne.s32.totalorder %s477, %s478
      %p490 = scmp.eq.s32.totalorder %s122, 1
      %p491 = por %p489, %p490
      %p493 = scmp.ne.s32.totalorder %s478, %s492
      %p494 = scmp.eq.s32.totalorder %s122, 0
      %p495 = por %p493, %p494
      %s497 = sadd.s32 %s496, 1
      %p500 = scmp.eq.s32.totalorder %s116, 1
      %p501 = scmp.ne.s32.totalorder %s496, %s498
      %p502 = scmp.eq.s32.totalorder %s116, 0
      %p503 = por %p501, %p502
      %p504 = scmp.ne.s32.totalorder %s496, %s498
      %p505 = scmp.eq.s32.totalorder %s121, 1
      %p506 = por %p504, %p505
      %p507 = scmp.ne.s32.totalorder %s498, %s499
      %p508 = scmp.eq.s32.totalorder %s121, 0
      %p509 = por %p507, %p508
      %p510 = scmp.ne.s32.totalorder %s498, %s499
      %p511 = scmp.eq.s32.totalorder %s122, 1
      %p512 = por %p510, %p511
      %p514 = scmp.ne.s32.totalorder %s499, %s513
      %p515 = scmp.eq.s32.totalorder %s122, 0
      %p516 = por %p514, %p515
      %s518 = sadd.s32 %s517, 1
      %p521 = scmp.eq.s32.totalorder %s116, 1
      %p522 = scmp.ne.s32.totalorder %s517, %s519
      %p523 = scmp.eq.s32.totalorder %s116, 0
      %p524 = por %p522, %p523
      %p525 = scmp.ne.s32.totalorder %s517, %s519
      %p526 = scmp.eq.s32.totalorder %s121, 1
      %p527 = por %p525, %p526
      %p528 = scmp.ne.s32.totalorder %s519, %s520
      %p529 = scmp.eq.s32.totalorder %s121, 0
      %p530 = por %p528, %p529
      %p531 = scmp.ne.s32.totalorder %s519, %s520
      %p532 = scmp.eq.s32.totalorder %s122, 1
      %p533 = por %p531, %p532
      %p535 = scmp.ne.s32.totalorder %s520, %s534
      %p536 = scmp.eq.s32.totalorder %s122, 0
      %p537 = por %p535, %p536
      %s539 = sadd.s32 %s538, 1
      %p542 = scmp.eq.s32.totalorder %s116, 1
      %p543 = scmp.ne.s32.totalorder %s538, %s540
      %p544 = scmp.eq.s32.totalorder %s116, 0
      %p545 = por %p543, %p544
      %p546 = scmp.ne.s32.totalorder %s538, %s540
      %p547 = scmp.eq.s32.totalorder %s121, 1
      %p548 = por %p546, %p547
      %p549 = scmp.ne.s32.totalorder %s540, %s541
      %p550 = scmp.eq.s32.totalorder %s121, 0
      %p551 = por %p549, %p550
      %p552 = scmp.ne.s32.totalorder %s540, %s541
      %p553 = scmp.eq.s32.totalorder %s122, 1
      %p554 = por %p552, %p553
      %p556 = scmp.ne.s32.totalorder %s541, %s555
      %p557 = scmp.eq.s32.totalorder %s122, 0
      %p558 = por %p556, %p557
      %s560 = sadd.s32 %s559, 1
      %p563 = scmp.eq.s32.totalorder %s116, 1
      %p564 = scmp.ne.s32.totalorder %s559, %s561
      %p565 = scmp.eq.s32.totalorder %s116, 0
      %p566 = por %p564, %p565
      %p567 = scmp.ne.s32.totalorder %s559, %s561
      %p568 = scmp.eq.s32.totalorder %s121, 1
      %p569 = por %p567, %p568
      %p570 = scmp.ne.s32.totalorder %s561, %s562
      %p571 = scmp.eq.s32.totalorder %s121, 0
      %p572 = por %p570, %p571
      %p573 = scmp.ne.s32.totalorder %s561, %s562
      %p574 = scmp.eq.s32.totalorder %s122, 1
      %p575 = por %p573, %p574
      %p577 = scmp.ne.s32.totalorder %s562, %s576
      %p578 = scmp.eq.s32.totalorder %s122, 0
      %p579 = por %p577, %p578
      %s581 = sadd.s32 %s580, 1
      %p584 = scmp.eq.s32.totalorder %s116, 1
      %p585 = scmp.ne.s32.totalorder %s580, %s582
      %p586 = scmp.eq.s32.totalorder %s116, 0
      %p587 = por %p585, %p586
      %p588 = scmp.ne.s32.totalorder %s580, %s582
      %p589 = scmp.eq.s32.totalorder %s121, 1
      %p590 = por %p588, %p589
      %p591 = scmp.ne.s32.totalorder %s582, %s583
      %p592 = scmp.eq.s32.totalorder %s121, 0
      %p593 = por %p591, %p592
      %p594 = scmp.ne.s32.totalorder %s582, %s583
      %p595 = scmp.eq.s32.totalorder %s122, 1
      %p596 = por %p594, %p595
      %p598 = scmp.ne.s32.totalorder %s583, %s597
      %p599 = scmp.eq.s32.totalorder %s122, 0
      %p600 = por %p598, %p599
      %s602 = sadd.s32 %s601, 1
      %p605 = scmp.eq.s32.totalorder %s116, 1
      %p606 = scmp.ne.s32.totalorder %s601, %s603
      %p607 = scmp.eq.s32.totalorder %s116, 0
      %p608 = por %p606, %p607
      %p609 = scmp.ne.s32.totalorder %s601, %s603
      %p610 = scmp.eq.s32.totalorder %s121, 1
      %p611 = por %p609, %p610
      %p612 = scmp.ne.s32.totalorder %s603, %s604
      %p613 = scmp.eq.s32.totalorder %s121, 0
      %p614 = por %p612, %p613
      %p615 = scmp.ne.s32.totalorder %s603, %s604
      %p616 = scmp.eq.s32.totalorder %s122, 1
      %p617 = por %p615, %p616
      %p619 = scmp.ne.s32.totalorder %s604, %s618
      %p620 = scmp.eq.s32.totalorder %s122, 0
      %p621 = por %p619, %p620
      %s623 = sadd.s32 %s622, 1
      %p626 = scmp.eq.s32.totalorder %s116, 1
      %p627 = scmp.ne.s32.totalorder %s622, %s624
      %p628 = scmp.eq.s32.totalorder %s116, 0
      %p629 = por %p627, %p628
      %p630 = scmp.ne.s32.totalorder %s622, %s624
      %p631 = scmp.eq.s32.totalorder %s121, 1
      %p632 = por %p630, %p631
      %p633 = scmp.ne.s32.totalorder %s624, %s625
      %p634 = scmp.eq.s32.totalorder %s121, 0
      %p635 = por %p633, %p634
      %p636 = scmp.ne.s32.totalorder %s624, %s625
      %p637 = scmp.eq.s32.totalorder %s122, 1
      %p638 = por %p636, %p637
      %p640 = scmp.ne.s32.totalorder %s625, %s639
      %p641 = scmp.eq.s32.totalorder %s122, 0
      %p642 = por %p640, %p641
      %s644 = sadd.s32 %s643, 1
      %p647 = scmp.eq.s32.totalorder %s116, 1
      %p648 = scmp.ne.s32.totalorder %s643, %s645
      %p649 = scmp.eq.s32.totalorder %s116, 0
      %p650 = por %p648, %p649
      %p651 = scmp.ne.s32.totalorder %s643, %s645
      %p652 = scmp.eq.s32.totalorder %s121, 1
      %p653 = por %p651, %p652
      %p654 = scmp.ne.s32.totalorder %s645, %s646
      %p655 = scmp.eq.s32.totalorder %s121, 0
      %p656 = por %p654, %p655
      %p657 = scmp.ne.s32.totalorder %s645, %s646
      %p658 = scmp.eq.s32.totalorder %s122, 1
      %p659 = por %p657, %p658
      %p661 = scmp.ne.s32.totalorder %s646, %s660
      %p662 = scmp.eq.s32.totalorder %s122, 0
      %p663 = por %p661, %p662
      %s665 = sadd.s32 %s664, 1
      %p668 = scmp.eq.s32.totalorder %s116, 1
      %p669 = scmp.ne.s32.totalorder %s664, %s666
      %p670 = scmp.eq.s32.totalorder %s116, 0
      %p671 = por %p669, %p670
      %p672 = scmp.ne.s32.totalorder %s664, %s666
      %p673 = scmp.eq.s32.totalorder %s121, 1
      %p674 = por %p672, %p673
      %p675 = scmp.ne.s32.totalorder %s666, %s667
      %p676 = scmp.eq.s32.totalorder %s121, 0
      %p677 = por %p675, %p676
      %p678 = scmp.ne.s32.totalorder %s666, %s667
      %p679 = scmp.eq.s32.totalorder %s122, 1
      %p680 = por %p678, %p679
      %p682 = scmp.ne.s32.totalorder %s667, %s681
      %p683 = scmp.eq.s32.totalorder %s122, 0
      %p684 = por %p682, %p683
      %s686 = sadd.s32 %s685, 1
      %p689 = scmp.eq.s32.totalorder %s116, 1
      %p690 = scmp.ne.s32.totalorder %s685, %s687
      %p691 = scmp.eq.s32.totalorder %s116, 0
      %p692 = por %p690, %p691
      %p693 = scmp.ne.s32.totalorder %s685, %s687
      %p694 = scmp.eq.s32.totalorder %s121, 1
      %p695 = por %p693, %p694
      %p696 = scmp.ne.s32.totalorder %s687, %s688
      %p697 = scmp.eq.s32.totalorder %s121, 0
      %p698 = por %p696, %p697
      %p699 = scmp.ne.s32.totalorder %s687, %s688
      %p700 = scmp.eq.s32.totalorder %s122, 1
      %p701 = por %p699, %p700
      %p703 = scmp.ne.s32.totalorder %s688, %s702
      %p704 = scmp.eq.s32.totalorder %s122, 0
      %p705 = por %p703, %p704
      %s707 = sadd.s32 %s706, 1
      %p710 = scmp.eq.s32.totalorder %s116, 1
      %p711 = scmp.ne.s32.totalorder %s706, %s708
      %p712 = scmp.eq.s32.totalorder %s116, 0
      %p713 = por %p711, %p712
      %p714 = scmp.ne.s32.totalorder %s706, %s708
      %p715 = scmp.eq.s32.totalorder %s121, 1
      %p716 = por %p714, %p715
      %p717 = scmp.ne.s32.totalorder %s708, %s709
      %p718 = scmp.eq.s32.totalorder %s121, 0
      %p719 = por %p717, %p718
      %p720 = scmp.ne.s32.totalorder %s708, %s709
      %p721 = scmp.eq.s32.totalorder %s122, 1
      %p722 = por %p720, %p721
      %p724 = scmp.ne.s32.totalorder %s709, %s723
      %p725 = scmp.eq.s32.totalorder %s122, 0
      %p726 = por %p724, %p725
      %s728 = sadd.s32 %s727, 1
      %p731 = scmp.eq.s32.totalorder %s116, 1
      %p732 = scmp.ne.s32.totalorder %s727, %s729
      %p733 = scmp.eq.s32.totalorder %s116, 0
      %p734 = por %p732, %p733
      %p735 = scmp.ne.s32.totalorder %s727, %s729
      %p736 = scmp.eq.s32.totalorder %s121, 1
      %p737 = por %p735, %p736
      %p738 = scmp.ne.s32.totalorder %s729, %s730
      %p739 = scmp.eq.s32.totalorder %s121, 0
      %p740 = por %p738, %p739
      %p741 = scmp.ne.s32.totalorder %s729, %s730
      %p742 = scmp.eq.s32.totalorder %s122, 1
      %p743 = por %p741, %p742
      %p745 = scmp.ne.s32.totalorder %s730, %s744
      %p746 = scmp.eq.s32.totalorder %s122, 0
      %p747 = por %p745, %p746
      %s749 = sadd.s32 %s748, 1
      %p752 = scmp.eq.s32.totalorder %s116, 1
      %p753 = scmp.ne.s32.totalorder %s748, %s750
      %p754 = scmp.eq.s32.totalorder %s116, 0
      %p755 = por %p753, %p754
      %p756 = scmp.ne.s32.totalorder %s748, %s750
      %p757 = scmp.eq.s32.totalorder %s121, 1
      %p758 = por %p756, %p757
      %p759 = scmp.ne.s32.totalorder %s750, %s751
      %p760 = scmp.eq.s32.totalorder %s121, 0
      %p761 = por %p759, %p760
      %p762 = scmp.ne.s32.totalorder %s750, %s751
      %p763 = scmp.eq.s32.totalorder %s122, 1
      %p764 = por %p762, %p763
      %p766 = scmp.ne.s32.totalorder %s751, %s765
      %p767 = scmp.eq.s32.totalorder %s122, 0
      %p768 = por %p766, %p767
      %s770 = sadd.s32 %s769, 1
      %p773 = scmp.eq.s32.totalorder %s116, 1
      %p774 = scmp.ne.s32.totalorder %s769, %s771
      %p775 = scmp.eq.s32.totalorder %s116, 0
      %p776 = por %p774, %p775
      %p777 = scmp.ne.s32.totalorder %s769, %s771
      %p778 = scmp.eq.s32.totalorder %s121, 1
      %p779 = por %p777, %p778
      %p780 = scmp.ne.s32.totalorder %s771, %s772
      %p781 = scmp.eq.s32.totalorder %s121, 0
      %p782 = por %p780, %p781
      %p783 = scmp.ne.s32.totalorder %s771, %s772
      %p784 = scmp.eq.s32.totalorder %s122, 1
      %p785 = por %p783, %p784
      %p787 = scmp.ne.s32.totalorder %s772, %s786
      %p788 = scmp.eq.s32.totalorder %s122, 0
      %p789 = por %p787, %p788
      %s791 = sadd.s32 %s790, 1
      %p794 = scmp.eq.s32.totalorder %s116, 1
      %p795 = scmp.ne.s32.totalorder %s790, %s792
      %p796 = scmp.eq.s32.totalorder %s116, 0
      %p797 = por %p795, %p796
      %p798 = scmp.ne.s32.totalorder %s790, %s792
      %p799 = scmp.eq.s32.totalorder %s121, 1
      %p800 = por %p798, %p799
      %p801 = scmp.ne.s32.totalorder %s792, %s793
      %p802 = scmp.eq.s32.totalorder %s121, 0
      %p803 = por %p801, %p802
      %p804 = scmp.ne.s32.totalorder %s792, %s793
      %p805 = scmp.eq.s32.totalorder %s122, 1
      %p806 = por %p804, %p805
      %p808 = scmp.ne.s32.totalorder %s793, %s807
      %p809 = scmp.eq.s32.totalorder %s122, 0
      %p810 = por %p808, %p809
      %s812 = sadd.s32 %s811, 1
      %p815 = scmp.eq.s32.totalorder %s116, 1
      %p816 = scmp.ne.s32.totalorder %s811, %s813
      %p817 = scmp.eq.s32.totalorder %s116, 0
      %p818 = por %p816, %p817
      %p819 = scmp.ne.s32.totalorder %s811, %s813
      %p820 = scmp.eq.s32.totalorder %s121, 1
      %p821 = por %p819, %p820
      %p822 = scmp.ne.s32.totalorder %s813, %s814
      %p823 = scmp.eq.s32.totalorder %s121, 0
      %p824 = por %p822, %p823
      %p825 = scmp.ne.s32.totalorder %s813, %s814
      %p826 = scmp.eq.s32.totalorder %s122, 1
      %p827 = por %p825, %p826
      %p829 = scmp.ne.s32.totalorder %s814, %s828
      %p830 = scmp.eq.s32.totalorder %s122, 0
      %p831 = por %p829, %p830
      %s833 = sadd.s32 %s832, 1
      %p836 = scmp.eq.s32.totalorder %s116, 1
      %p837 = scmp.ne.s32.totalorder %s832, %s834
      %p838 = scmp.eq.s32.totalorder %s116, 0
      %p839 = por %p837, %p838
      %p840 = scmp.ne.s32.totalorder %s832, %s834
      %p841 = scmp.eq.s32.totalorder %s121, 1
      %p842 = por %p840, %p841
      %p843 = scmp.ne.s32.totalorder %s834, %s835
      %p844 = scmp.eq.s32.totalorder %s121, 0
      %p845 = por %p843, %p844
      %p846 = scmp.ne.s32.totalorder %s834, %s835
      %p847 = scmp.eq.s32.totalorder %s122, 1
      %p848 = por %p846, %p847
      %p850 = scmp.ne.s32.totalorder %s835, %s849
      %p851 = scmp.eq.s32.totalorder %s122, 0
      %p852 = por %p850, %p851
      %s854 = sadd.s32 %s853, 1
      %p857 = scmp.eq.s32.totalorder %s116, 1
      %p858 = scmp.ne.s32.totalorder %s853, %s855
      %p859 = scmp.eq.s32.totalorder %s116, 0
      %p860 = por %p858, %p859
      %p861 = scmp.ne.s32.totalorder %s853, %s855
      %p862 = scmp.eq.s32.totalorder %s121, 1
      %p863 = por %p861, %p862
      %p864 = scmp.ne.s32.totalorder %s855, %s856
      %p865 = scmp.eq.s32.totalorder %s121, 0
      %p866 = por %p864, %p865
      %p867 = scmp.ne.s32.totalorder %s855, %s856
      %p868 = scmp.eq.s32.totalorder %s122, 1
      %p869 = por %p867, %p868
      %p871 = scmp.ne.s32.totalorder %s856, %s870
      %p872 = scmp.eq.s32.totalorder %s122, 0
      %p873 = por %p871, %p872
      %s875 = sadd.s32 %s874, 1
      %p878 = scmp.eq.s32.totalorder %s116, 1
      %p879 = scmp.ne.s32.totalorder %s874, %s876
      %p880 = scmp.eq.s32.totalorder %s116, 0
      %p881 = por %p879, %p880
      %p882 = scmp.ne.s32.totalorder %s874, %s876
      %p883 = scmp.eq.s32.totalorder %s121, 1
      %p884 = por %p882, %p883
      %p885 = scmp.ne.s32.totalorder %s876, %s877
      %p886 = scmp.eq.s32.totalorder %s121, 0
      %p887 = por %p885, %p886
      %p888 = scmp.ne.s32.totalorder %s876, %s877
      %p889 = scmp.eq.s32.totalorder %s122, 1
      %p890 = por %p888, %p889
      %p892 = scmp.ne.s32.totalorder %s877, %s891
      %p893 = scmp.eq.s32.totalorder %s122, 0
      %p894 = por %p892, %p893
      %s896 = sadd.s32 %s895, 1
      %p899 = scmp.eq.s32.totalorder %s116, 1
      %p900 = scmp.ne.s32.totalorder %s895, %s897
      %p901 = scmp.eq.s32.totalorder %s116, 0
      %p902 = por %p900, %p901
      %p903 = scmp.ne.s32.totalorder %s895, %s897
      %p904 = scmp.eq.s32.totalorder %s121, 1
      %p905 = por %p903, %p904
      %p906 = scmp.ne.s32.totalorder %s897, %s898
      %p907 = scmp.eq.s32.totalorder %s121, 0
      %p908 = por %p906, %p907
      %p909 = scmp.ne.s32.totalorder %s897, %s898
      %p910 = scmp.eq.s32.totalorder %s122, 1
      %p911 = por %p909, %p910
      %p913 = scmp.ne.s32.totalorder %s898, %s912
      %p914 = scmp.eq.s32.totalorder %s122, 0
      %p915 = por %p913, %p914
      %s917 = sadd.s32 %s916, 1
      %p920 = scmp.eq.s32.totalorder %s116, 1
      %p921 = scmp.ne.s32.totalorder %s916, %s918
      %p922 = scmp.eq.s32.totalorder %s116, 0
      %p923 = por %p921, %p922
      %p924 = scmp.ne.s32.totalorder %s916, %s918
      %p925 = scmp.eq.s32.totalorder %s121, 1
      %p926 = por %p924, %p925
      %p927 = scmp.ne.s32.totalorder %s918, %s919
      %p928 = scmp.eq.s32.totalorder %s121, 0
      %p929 = por %p927, %p928
      %p930 = scmp.ne.s32.totalorder %s918, %s919
      %p931 = scmp.eq.s32.totalorder %s122, 1
      %p932 = por %p930, %p931
      %p934 = scmp.ne.s32.totalorder %s919, %s933
      %p935 = scmp.eq.s32.totalorder %s122, 0
      %p936 = por %p934, %p935
      %s938 = sadd.s32 %s937, 1
      %p941 = scmp.eq.s32.totalorder %s116, 1
      %p942 = scmp.ne.s32.totalorder %s937, %s939
      %p943 = scmp.eq.s32.totalorder %s116, 0
      %p944 = por %p942, %p943
      %p945 = scmp.ne.s32.totalorder %s937, %s939
      %p946 = scmp.eq.s32.totalorder %s121, 1
      %p947 = por %p945, %p946
      %p948 = scmp.ne.s32.totalorder %s939, %s940
      %p949 = scmp.eq.s32.totalorder %s121, 0
      %p950 = por %p948, %p949
      %p951 = scmp.ne.s32.totalorder %s939, %s940
      %p952 = scmp.eq.s32.totalorder %s122, 1
      %p953 = por %p951, %p952
      %p955 = scmp.ne.s32.totalorder %s940, %s954
      %p956 = scmp.eq.s32.totalorder %s122, 0
      %p957 = por %p955, %p956
      %s959 = sadd.s32 %s958, 1
      %p962 = scmp.eq.s32.totalorder %s116, 1
      %p963 = scmp.ne.s32.totalorder %s958, %s960
      %p964 = scmp.eq.s32.totalorder %s116, 0
      %p965 = por %p963, %p964
      %p966 = scmp.ne.s32.totalorder %s958, %s960
      %p967 = scmp.eq.s32.totalorder %s121, 1
      %p968 = por %p966, %p967
      %p969 = scmp.ne.s32.totalorder %s960, %s961
      %p970 = scmp.eq.s32.totalorder %s121, 0
      %p971 = por %p969, %p970
      %p972 = scmp.ne.s32.totalorder %s960, %s961
      %p973 = scmp.eq.s32.totalorder %s122, 1
      %p974 = por %p972, %p973
      %p976 = scmp.ne.s32.totalorder %s961, %s975
      %p977 = scmp.eq.s32.totalorder %s122, 0
      %p978 = por %p976, %p977
      %s980 = sadd.s32 %s979, 1
      %p983 = scmp.eq.s32.totalorder %s116, 1
      %p984 = scmp.ne.s32.totalorder %s979, %s981
      %p985 = scmp.eq.s32.totalorder %s116, 0
      %p986 = por %p984, %p985
      %p987 = scmp.ne.s32.totalorder %s979, %s981
      %p988 = scmp.eq.s32.totalorder %s121, 1
      %p989 = por %p987, %p988
      %p990 = scmp.ne.s32.totalorder %s981, %s982
      %p991 = scmp.eq.s32.totalorder %s121, 0
      %p992 = por %p990, %p991
      %p993 = scmp.ne.s32.totalorder %s981, %s982
      %p994 = scmp.eq.s32.totalorder %s122, 1
      %p995 = por %p993, %p994
      %p997 = scmp.ne.s32.totalorder %s982, %s996
      %p998 = scmp.eq.s32.totalorder %s122, 0
      %p999 = por %p997, %p998
      %s1001 = sadd.s32 %s1000, 1
      %p1004 = scmp.eq.s32.totalorder %s116, 1
      %p1005 = scmp.ne.s32.totalorder %s1000, %s1002
      %p1006 = scmp.eq.s32.totalorder %s116, 0
      %p1007 = por %p1005, %p1006
      %p1008 = scmp.ne.s32.totalorder %s1000, %s1002
      %p1009 = scmp.eq.s32.totalorder %s121, 1
      %p1010 = por %p1008, %p1009
      %p1011 = scmp.ne.s32.totalorder %s1002, %s1003
      %p1012 = scmp.eq.s32.totalorder %s121, 0
      %p1013 = por %p1011, %p1012
      %p1014 = scmp.ne.s32.totalorder %s1002, %s1003
      %p1015 = scmp.eq.s32.totalorder %s122, 1
      %p1016 = por %p1014, %p1015
      %p1018 = scmp.ne.s32.totalorder %s1003, %s1017
      %p1019 = scmp.eq.s32.totalorder %s122, 0
      %p1020 = por %p1018, %p1019
      %s1022 = sadd.s32 %s1021, 1
      %p1025 = scmp.eq.s32.totalorder %s116, 1
      %p1026 = scmp.ne.s32.totalorder %s1021, %s1023
      %p1027 = scmp.eq.s32.totalorder %s116, 0
      %p1028 = por %p1026, %p1027
      %p1029 = scmp.ne.s32.totalorder %s1021, %s1023
      %p1030 = scmp.eq.s32.totalorder %s121, 1
      %p1031 = por %p1029, %p1030
      %p1032 = scmp.ne.s32.totalorder %s1023, %s1024
      %p1033 = scmp.eq.s32.totalorder %s121, 0
      %p1034 = por %p1032, %p1033
      %p1035 = scmp.ne.s32.totalorder %s1023, %s1024
      %p1036 = scmp.eq.s32.totalorder %s122, 1
      %p1037 = por %p1035, %p1036
      %p1039 = scmp.ne.s32.totalorder %s1024, %s1038
      %p1040 = scmp.eq.s32.totalorder %s122, 0
      %p1041 = por %p1039, %p1040
      %s1042 = ssub.s32 %s116, %s123
      %p1043 = scmp.eq.s32.totalorder %s1042, 0
      %s1045 = sadd.s32 %s1044, 1
      %s1046 = scalar_select %p1043, %s1044, %s1045
      %p1049 = pneg %p1043
      %p1050 = scmp.eq.s32.totalorder %s116, 1
      %p1051 = por %p1049, %p1050
      %p1052 = scmp.ne.s32.totalorder %s1044, %s1047
      %p1053 = scmp.eq.s32.totalorder %s116, 0
      %p1054 = por %p1052, %p1053
      %p1055 = scmp.ne.s32.totalorder %s1044, %s1047
      %p1056 = scmp.eq.s32.totalorder %s121, 1
      %p1057 = por %p1055, %p1056
      %p1058 = scmp.ne.s32.totalorder %s1047, %s1048
      %p1059 = scmp.eq.s32.totalorder %s121, 0
      %p1060 = por %p1058, %p1059
      %p1061 = scmp.ne.s32.totalorder %s1047, %s1048
      %p1062 = scmp.eq.s32.totalorder %s122, 1
      %p1063 = por %p1061, %p1062
      %p1065 = scmp.ne.s32.totalorder %s1048, %s1064
      %p1066 = scmp.eq.s32.totalorder %s122, 0
      %p1067 = por %p1065, %p1066
      %s1068 = ssub.s32 %s116, %s123
      %p1069 = scmp.eq.s32.totalorder %s1068, 0
      %s1071 = sadd.s32 %s1070, 1
      %s1072 = scalar_select %p1069, %s1070, %s1071
      %p1075 = pneg %p1069
      %p1076 = scmp.eq.s32.totalorder %s116, 1
      %p1077 = por %p1075, %p1076
      %p1078 = scmp.ne.s32.totalorder %s1070, %s1073
      %p1079 = scmp.eq.s32.totalorder %s116, 0
      %p1080 = por %p1078, %p1079
      %p1081 = scmp.ne.s32.totalorder %s1070, %s1073
      %p1082 = scmp.eq.s32.totalorder %s121, 1
      %p1083 = por %p1081, %p1082
      %p1084 = scmp.ne.s32.totalorder %s1073, %s1074
      %p1085 = scmp.eq.s32.totalorder %s121, 0
      %p1086 = por %p1084, %p1085
      %p1087 = scmp.ne.s32.totalorder %s1073, %s1074
      %p1088 = scmp.eq.s32.totalorder %s122, 1
      %p1089 = por %p1087, %p1088
      %p1091 = scmp.ne.s32.totalorder %s1074, %s1090
      %p1092 = scmp.eq.s32.totalorder %s122, 0
      %p1093 = por %p1091, %p1092
      %s1094 = ssub.s32 %s116, %s123
      %p1095 = scmp.eq.s32.totalorder %s1094, 0
      %s1097 = sadd.s32 %s1096, 1
      %s1098 = scalar_select %p1095, %s1096, %s1097
      %p1101 = pneg %p1095
      %p1102 = scmp.eq.s32.totalorder %s116, 1
      %p1103 = por %p1101, %p1102
      %p1104 = scmp.ne.s32.totalorder %s1096, %s1099
      %p1105 = scmp.eq.s32.totalorder %s116, 0
      %p1106 = por %p1104, %p1105
      %p1107 = scmp.ne.s32.totalorder %s1096, %s1099
      %p1108 = scmp.eq.s32.totalorder %s121, 1
      %p1109 = por %p1107, %p1108
      %p1110 = scmp.ne.s32.totalorder %s1099, %s1100
      %p1111 = scmp.eq.s32.totalorder %s121, 0
      %p1112 = por %p1110, %p1111
      %p1113 = scmp.ne.s32.totalorder %s1099, %s1100
      %p1114 = scmp.eq.s32.totalorder %s122, 1
      %p1115 = por %p1113, %p1114
      %p1117 = scmp.ne.s32.totalorder %s1100, %s1116
      %p1118 = scmp.eq.s32.totalorder %s122, 0
      %p1119 = por %p1117, %p1118
      %s1120 = ssub.s32 %s116, %s123
      %p1121 = scmp.eq.s32.totalorder %s1120, 0
      %s1123 = sadd.s32 %s1122, 1
      %s1124 = scalar_select %p1121, %s1122, %s1123
      %p1127 = pneg %p1121
      %p1128 = scmp.eq.s32.totalorder %s116, 1
      %p1129 = por %p1127, %p1128
      %p1130 = scmp.ne.s32.totalorder %s1122, %s1125
      %p1131 = scmp.eq.s32.totalorder %s116, 0
      %p1132 = por %p1130, %p1131
      %p1133 = scmp.ne.s32.totalorder %s1122, %s1125
      %p1134 = scmp.eq.s32.totalorder %s121, 1
      %p1135 = por %p1133, %p1134
      %p1136 = scmp.ne.s32.totalorder %s1125, %s1126
      %p1137 = scmp.eq.s32.totalorder %s121, 0
      %p1138 = por %p1136, %p1137
      %p1139 = scmp.ne.s32.totalorder %s1125, %s1126
      %p1140 = scmp.eq.s32.totalorder %s122, 1
      %p1141 = por %p1139, %p1140
      %p1143 = scmp.ne.s32.totalorder %s1126, %s1142
      %p1144 = scmp.eq.s32.totalorder %s122, 0
      %p1145 = por %p1143, %p1144
      %s1146 = ssub.s32 %s116, %s123
      %p1147 = scmp.eq.s32.totalorder %s1146, 0
      %s1149 = sadd.s32 %s1148, 1
      %s1150 = scalar_select %p1147, %s1148, %s1149
      %p1153 = pneg %p1147
      %p1154 = scmp.eq.s32.totalorder %s116, 1
      %p1155 = por %p1153, %p1154
      %p1156 = scmp.ne.s32.totalorder %s1148, %s1151
      %p1157 = scmp.eq.s32.totalorder %s116, 0
      %p1158 = por %p1156, %p1157
      %p1159 = scmp.ne.s32.totalorder %s1148, %s1151
      %p1160 = scmp.eq.s32.totalorder %s121, 1
      %p1161 = por %p1159, %p1160
      %p1162 = scmp.ne.s32.totalorder %s1151, %s1152
      %p1163 = scmp.eq.s32.totalorder %s121, 0
      %p1164 = por %p1162, %p1163
      %p1165 = scmp.ne.s32.totalorder %s1151, %s1152
      %p1166 = scmp.eq.s32.totalorder %s122, 1
      %p1167 = por %p1165, %p1166
      %p1169 = scmp.ne.s32.totalorder %s1152, %s1168
      %p1170 = scmp.eq.s32.totalorder %s122, 0
      %p1171 = por %p1169, %p1170
      %p1172 = scmp.le.s32.totalorder 1, %s116
      %p1173 = scmp.lt.s32.totalorder %s116, 3
      %p1174 = pnand %p1172, %p1173
      %p1175 = pneg %p1174
      // Predicated region
      $region9: #{medsam_lite_forward.5} parent=5 // pred_check
        _
      $region10: #{medsam_lite_forward.5} parent=5 // pred_check_branch
        %1177 = sbr.rel (%p1174) target = $region12
      $region11: #{medsam_lite_forward.5} parent=5 // pred_region
        %s1178 = ssub.s32 %s116, 1
        // Predicated region
        $region13: #{medsam_lite_forward.5} parent=11 // pred_check
          %p1179 = pneg %p215
        $region14: #{medsam_lite_forward.5} parent=11 // pred_check_branch
          %1181 = sbr.rel (%p1179) target = $region16
        $region15: #{medsam_lite_forward.5} parent=11 // pred_region
          _
        $region16: #{medsam_lite_forward.5} parent=11 // pred_fallthru
          _
        // Predicated region
        $region17: #{medsam_lite_forward.5} parent=11 // pred_check
          %p1182 = pneg %p236
        $region18: #{medsam_lite_forward.5} parent=11 // pred_check_branch
          %1184 = sbr.rel (%p1182) target = $region20
        $region19: #{medsam_lite_forward.5} parent=11 // pred_region
          _
        $region20: #{medsam_lite_forward.5} parent=11 // pred_fallthru
          _
        // Predicated region
        $region21: #{medsam_lite_forward.5} parent=11 // pred_check
          %p1185 = pneg %p257
        $region22: #{medsam_lite_forward.5} parent=11 // pred_check_branch
          %1187 = sbr.rel (%p1185) target = $region24
        $region23: #{medsam_lite_forward.5} parent=11 // pred_region
          _
        $region24: #{medsam_lite_forward.5} parent=11 // pred_fallthru
          _
        // Predicated region
        $region25: #{medsam_lite_forward.5} parent=11 // pred_check
          %p1188 = pneg %p278
        $region26: #{medsam_lite_forward.5} parent=11 // pred_check_branch
          %1190 = sbr.rel (%p1188) target = $region28
        $region27: #{medsam_lite_forward.5} parent=11 // pred_region
          _
        $region28: #{medsam_lite_forward.5} parent=11 // pred_fallthru
          _
        // Predicated region
        $region29: #{medsam_lite_forward.5} parent=11 // pred_check
          %p1191 = pneg %p299
        $region30: #{medsam_lite_forward.5} parent=11 // pred_check_branch
          %1193 = sbr.rel (%p1191) target = $region32
        $region31: #{medsam_lite_forward.5} parent=11 // pred_region
          _
        $region32: #{medsam_lite_forward.5} parent=11 // pred_fallthru
          _
        // Predicated region
        $region33: #{medsam_lite_forward.5} parent=11 // pred_check
          %p1194 = pneg %p320
        $region34: #{medsam_lite_forward.5} parent=11 // pred_check_branch
          %1196 = sbr.rel (%p1194) target = $region36
        $region35: #{medsam_lite_forward.5} parent=11 // pred_region
          _
        $region36: #{medsam_lite_forward.5} parent=11 // pred_fallthru
          _
        // Predicated region
        $region37: #{medsam_lite_forward.5} parent=11 // pred_check
          %p1197 = pneg %p341
        $region38: #{medsam_lite_forward.5} parent=11 // pred_check_branch
          %1199 = sbr.rel (%p1197) target = $region40
        $region39: #{medsam_lite_forward.5} parent=11 // pred_region
          _
        $region40: #{medsam_lite_forward.5} parent=11 // pred_fallthru
          _
        // Predicated region
        $region41: #{medsam_lite_forward.5} parent=11 // pred_check
          %p1200 = pneg %p362
        $region42: #{medsam_lite_forward.5} parent=11 // pred_check_branch
          %1202 = sbr.rel (%p1200) target = $region44
        $region43: #{medsam_lite_forward.5} parent=11 // pred_region
          _
        $region44: #{medsam_lite_forward.5} parent=11 // pred_fallthru
          _
        // Predicated region
        $region45: #{medsam_lite_forward.5} parent=11 // pred_check
          %p1203 = pneg %p383
        $region46: #{medsam_lite_forward.5} parent=11 // pred_check_branch
          %1205 = sbr.rel (%p1203) target = $region48
        $region47: #{medsam_lite_forward.5} parent=11 // pred_region
          _
        $region48: #{medsam_lite_forward.5} parent=11 // pred_fallthru
          _
        // Predicated region
        $region49: #{medsam_lite_forward.5} parent=11 // pred_check
          %p1206 = pneg %p404
        $region50: #{medsam_lite_forward.5} parent=11 // pred_check_branch
          %1208 = sbr.rel (%p1206) target = $region52
        $region51: #{medsam_lite_forward.5} parent=11 // pred_region
          _
        $region52: #{medsam_lite_forward.5} parent=11 // pred_fallthru
          _
        // Predicated region
        $region53: #{medsam_lite_forward.5} parent=11 // pred_check
          %p1209 = pneg %p425
        $region54: #{medsam_lite_forward.5} parent=11 // pred_check_branch
          %1211 = sbr.rel (%p1209) target = $region56
        $region55: #{medsam_lite_forward.5} parent=11 // pred_region
          _
        $region56: #{medsam_lite_forward.5} parent=11 // pred_fallthru
          _
        // Predicated region
        $region57: #{medsam_lite_forward.5} parent=11 // pred_check
          %p1212 = pneg %p446
        $region58: #{medsam_lite_forward.5} parent=11 // pred_check_branch
          %1214 = sbr.rel (%p1212) target = $region60
        $region59: #{medsam_lite_forward.5} parent=11 // pred_region
          _
        $region60: #{medsam_lite_forward.5} parent=11 // pred_fallthru
          _
        // Predicated region
        $region61: #{medsam_lite_forward.5} parent=11 // pred_check
          %p1215 = pneg %p467
        $region62: #{medsam_lite_forward.5} parent=11 // pred_check_branch
          %1217 = sbr.rel (%p1215) target = $region64
        $region63: #{medsam_lite_forward.5} parent=11 // pred_region
          _
        $region64: #{medsam_lite_forward.5} parent=11 // pred_fallthru
          _
        // Predicated region
        $region65: #{medsam_lite_forward.5} parent=11 // pred_check
          %p1218 = pneg %p488
        $region66: #{medsam_lite_forward.5} parent=11 // pred_check_branch
          %1220 = sbr.rel (%p1218) target = $region68
        $region67: #{medsam_lite_forward.5} parent=11 // pred_region
          _
        $region68: #{medsam_lite_forward.5} parent=11 // pred_fallthru
          _
        // Predicated region
        $region69: #{medsam_lite_forward.5} parent=11 // pred_check
          %p1221 = pneg %p509
        $region70: #{medsam_lite_forward.5} parent=11 // pred_check_branch
          %1223 = sbr.rel (%p1221) target = $region72
        $region71: #{medsam_lite_forward.5} parent=11 // pred_region
          %s1225 = ssub.s32 16, 16
          %1226 = vsyncadd [#allocation3], %s1225
          %s1228 = sshll.u32 [#allocation2], 4
          %s1229 = int_to_ptr.vmem [resolvable:$true] %s1228
          %1231 = dma.hbm_to_vmem [thread:$0]  %s35, 16, %s1229, [#allocation3]
        $region72: #{medsam_lite_forward.5} parent=11 // pred_fallthru
          _
        // Predicated region
        $region73: #{medsam_lite_forward.5} parent=11 // pred_check
          %p1232 = pneg %p530
        $region74: #{medsam_lite_forward.5} parent=11 // pred_check_branch
          %1234 = sbr.rel (%p1232) target = $region76
        $region75: #{medsam_lite_forward.5} parent=11 // pred_region
          %s1236 = ssub.s32 16, 16
          %1237 = vsyncadd [#allocation6], %s1236
          %s1239 = sshll.u32 [#allocation5], 4
          %s1240 = int_to_ptr.vmem [resolvable:$true] %s1239
          %1242 = dma.hbm_to_vmem [thread:$0]  %s37, 16, %s1240, [#allocation6]
        $region76: #{medsam_lite_forward.5} parent=11 // pred_fallthru
          _
        // Predicated region
        $region77: #{medsam_lite_forward.5} parent=11 // pred_check
          %p1243 = pneg %p551
        $region78: #{medsam_lite_forward.5} parent=11 // pred_check_branch
          %1245 = sbr.rel (%p1243) target = $region80
        $region79: #{medsam_lite_forward.5} parent=11 // pred_region
          %s1247 = ssub.s32 16, 16
          %1248 = vsyncadd [#allocation6], %s1247
          %s1250 = sshll.u32 [#allocation7], 4
          %s1251 = int_to_ptr.vmem [resolvable:$true] %s1250
          %1253 = dma.hbm_to_vmem [thread:$0]  %s39, 16, %s1251, [#allocation6]
        $region80: #{medsam_lite_forward.5} parent=11 // pred_fallthru
          _
        // Predicated region
        $region81: #{medsam_lite_forward.5} parent=11 // pred_check
          %p1254 = pneg %p572
        $region82: #{medsam_lite_forward.5} parent=11 // pred_check_branch
          %1256 = sbr.rel (%p1254) target = $region84
        $region83: #{medsam_lite_forward.5} parent=11 // pred_region
          _
        $region84: #{medsam_lite_forward.5} parent=11 // pred_fallthru
          _
        // Predicated region
        $region85: #{medsam_lite_forward.5} parent=11 // pred_check
          %p1257 = pneg %p593
        $region86: #{medsam_lite_forward.5} parent=11 // pred_check_branch
          %1259 = sbr.rel (%p1257) target = $region88
        $region87: #{medsam_lite_forward.5} parent=11 // pred_region
          %s1261 = ssub.s32 16, 16
          %1262 = vsyncadd [#allocation9], %s1261
          %s1264 = sshll.u32 [#allocation8], 4
          %s1265 = int_to_ptr.vmem [resolvable:$true] %s1264
          %1267 = dma.hbm_to_vmem [thread:$0]  %s43, 16, %s1265, [#allocation9]
        $region88: #{medsam_lite_forward.5} parent=11 // pred_fallthru
          _
        // Predicated region
        $region89: #{medsam_lite_forward.5} parent=11 // pred_check
          %p1268 = pneg %p614
        $region90: #{medsam_lite_forward.5} parent=11 // pred_check_branch
          %1270 = sbr.rel (%p1268) target = $region92
        $region91: #{medsam_lite_forward.5} parent=11 // pred_region
          _
        $region92: #{medsam_lite_forward.5} parent=11 // pred_fallthru
          _
        // Predicated region
        $region93: #{medsam_lite_forward.5} parent=11 // pred_check
          %p1271 = pneg %p635
        $region94: #{medsam_lite_forward.5} parent=11 // pred_check_branch
          %1273 = sbr.rel (%p1271) target = $region96
        $region95: #{medsam_lite_forward.5} parent=11 // pred_region
          %s1275 = ssub.s32 16, 16
          %1276 = vsyncadd [#allocation9], %s1275
          %s1278 = sshll.u32 [#allocation10], 4
          %s1279 = int_to_ptr.vmem [resolvable:$true] %s1278
          %1281 = dma.hbm_to_vmem [thread:$0]  %s47, 16, %s1279, [#allocation9]
        $region96: #{medsam_lite_forward.5} parent=11 // pred_fallthru
          _
        // Predicated region
        $region97: #{medsam_lite_forward.5} parent=11 // pred_check
          %p1282 = pneg %p656
        $region98: #{medsam_lite_forward.5} parent=11 // pred_check_branch
          %1284 = sbr.rel (%p1282) target = $region100
        $region99: #{medsam_lite_forward.5} parent=11 // pred_region
          %s1286 = ssub.s32 16, 16
          %1287 = vsyncadd [#allocation12], %s1286
          %s1289 = sshll.u32 [#allocation11], 4
          %s1290 = int_to_ptr.vmem [resolvable:$true] %s1289
          %1292 = dma.hbm_to_vmem [thread:$0]  %s49, 16, %s1290, [#allocation12]
        $region100: #{medsam_lite_forward.5} parent=11 // pred_fallthru
          _
        // Predicated region
        $region101: #{medsam_lite_forward.5} parent=11 // pred_check
          %p1293 = pneg %p677
        $region102: #{medsam_lite_forward.5} parent=11 // pred_check_branch
          %1295 = sbr.rel (%p1293) target = $region104
        $region103: #{medsam_lite_forward.5} parent=11 // pred_region
          %s1297 = ssub.s32 16, 16
          %1298 = vsyncadd [#allocation12], %s1297
          %s1300 = sshll.u32 [#allocation13], 4
          %s1301 = int_to_ptr.vmem [resolvable:$true] %s1300
          %1303 = dma.hbm_to_vmem [thread:$0]  %s51, 16, %s1301, [#allocation12]
        $region104: #{medsam_lite_forward.5} parent=11 // pred_fallthru
          _
        // Predicated region
        $region105: #{medsam_lite_forward.5} parent=11 // pred_check
          %p1304 = pneg %p698
        $region106: #{medsam_lite_forward.5} parent=11 // pred_check_branch
          %1306 = sbr.rel (%p1304) target = $region108
        $region107: #{medsam_lite_forward.5} parent=11 // pred_region
          _
        $region108: #{medsam_lite_forward.5} parent=11 // pred_fallthru
          _
        // Predicated region
        $region109: #{medsam_lite_forward.5} parent=11 // pred_check
          %p1307 = pneg %p719
        $region110: #{medsam_lite_forward.5} parent=11 // pred_check_branch
          %1309 = sbr.rel (%p1307) target = $region112
        $region111: #{medsam_lite_forward.5} parent=11 // pred_region
          %s1311 = ssub.s32 16, 16
          %1312 = vsyncadd [#allocation15], %s1311
          %s1314 = sshll.u32 [#allocation14], 4
          %s1315 = int_to_ptr.vmem [resolvable:$true] %s1314
          %1317 = dma.hbm_to_vmem [thread:$0]  %s55, 16, %s1315, [#allocation15]
        $region112: #{medsam_lite_forward.5} parent=11 // pred_fallthru
          _
        // Predicated region
        $region113: #{medsam_lite_forward.5} parent=11 // pred_check
          %p1318 = pneg %p740
        $region114: #{medsam_lite_forward.5} parent=11 // pred_check_branch
          %1320 = sbr.rel (%p1318) target = $region116
        $region115: #{medsam_lite_forward.5} parent=11 // pred_region
          _
        $region116: #{medsam_lite_forward.5} parent=11 // pred_fallthru
          _
        // Predicated region
        $region117: #{medsam_lite_forward.5} parent=11 // pred_check
          %p1321 = pneg %p761
        $region118: #{medsam_lite_forward.5} parent=11 // pred_check_branch
          %1323 = sbr.rel (%p1321) target = $region120
        $region119: #{medsam_lite_forward.5} parent=11 // pred_region
          %s1325 = ssub.s32 16, 16
          %1326 = vsyncadd [#allocation15], %s1325
          %s1328 = sshll.u32 [#allocation16], 4
          %s1329 = int_to_ptr.vmem [resolvable:$true] %s1328
          %1331 = dma.hbm_to_vmem [thread:$0]  %s59, 16, %s1329, [#allocation15]
        $region120: #{medsam_lite_forward.5} parent=11 // pred_fallthru
          _
        // Predicated region
        $region121: #{medsam_lite_forward.5} parent=11 // pred_check
          %p1332 = pneg %p782
        $region122: #{medsam_lite_forward.5} parent=11 // pred_check_branch
          %1334 = sbr.rel (%p1332) target = $region124
        $region123: #{medsam_lite_forward.5} parent=11 // pred_region
          _
        $region124: #{medsam_lite_forward.5} parent=11 // pred_fallthru
          _
        // Predicated region
        $region125: #{medsam_lite_forward.5} parent=11 // pred_check
          %p1335 = pneg %p803
        $region126: #{medsam_lite_forward.5} parent=11 // pred_check_branch
          %1337 = sbr.rel (%p1335) target = $region128
        $region127: #{medsam_lite_forward.5} parent=11 // pred_region
          %s1339 = ssub.s32 16, 16
          %1340 = vsyncadd [#allocation18], %s1339
          %s1342 = sshll.u32 [#allocation17], 4
          %s1343 = int_to_ptr.vmem [resolvable:$true] %s1342
          %1345 = dma.hbm_to_vmem [thread:$0]  %s63, 16, %s1343, [#allocation18]
        $region128: #{medsam_lite_forward.5} parent=11 // pred_fallthru
          _
        // Predicated region
        $region129: #{medsam_lite_forward.5} parent=11 // pred_check
          %p1346 = pneg %p824
        $region130: #{medsam_lite_forward.5} parent=11 // pred_check_branch
          %1348 = sbr.rel (%p1346) target = $region132
        $region131: #{medsam_lite_forward.5} parent=11 // pred_region
          %s1350 = ssub.s32 16, 16
          %1351 = vsyncadd [#allocation18], %s1350
          %s1353 = sshll.u32 [#allocation19], 4
          %s1354 = int_to_ptr.vmem [resolvable:$true] %s1353
          %1356 = dma.hbm_to_vmem [thread:$0]  %s65, 16, %s1354, [#allocation18]
        $region132: #{medsam_lite_forward.5} parent=11 // pred_fallthru
          _
        // Predicated region
        $region133: #{medsam_lite_forward.5} parent=11 // pred_check
          %p1357 = pneg %p845
        $region134: #{medsam_lite_forward.5} parent=11 // pred_check_branch
          %1359 = sbr.rel (%p1357) target = $region136
        $region135: #{medsam_lite_forward.5} parent=11 // pred_region
          %s1361 = ssub.s32 16, 16
          %1362 = vsyncadd [#allocation21], %s1361
          %s1364 = sshll.u32 [#allocation20], 4
          %s1365 = int_to_ptr.vmem [resolvable:$true] %s1364
          %1367 = dma.hbm_to_vmem [thread:$0]  %s67, 16, %s1365, [#allocation21]
        $region136: #{medsam_lite_forward.5} parent=11 // pred_fallthru
          _
        // Predicated region
        $region137: #{medsam_lite_forward.5} parent=11 // pred_check
          %p1368 = pneg %p866
        $region138: #{medsam_lite_forward.5} parent=11 // pred_check_branch
          %1370 = sbr.rel (%p1368) target = $region140
        $region139: #{medsam_lite_forward.5} parent=11 // pred_region
          _
        $region140: #{medsam_lite_forward.5} parent=11 // pred_fallthru
          _
        // Predicated region
        $region141: #{medsam_lite_forward.5} parent=11 // pred_check
          %p1371 = pneg %p887
        $region142: #{medsam_lite_forward.5} parent=11 // pred_check_branch
          %1373 = sbr.rel (%p1371) target = $region144
        $region143: #{medsam_lite_forward.5} parent=11 // pred_region
          %s1375 = ssub.s32 16, 16
          %1376 = vsyncadd [#allocation21], %s1375
          %s1378 = sshll.u32 [#allocation22], 4
          %s1379 = int_to_ptr.vmem [resolvable:$true] %s1378
          %1381 = dma.hbm_to_vmem [thread:$0]  %s71, 16, %s1379, [#allocation21]
        $region144: #{medsam_lite_forward.5} parent=11 // pred_fallthru
          _
        // Predicated region
        $region145: #{medsam_lite_forward.5} parent=11 // pred_check
          %p1382 = pneg %p908
        $region146: #{medsam_lite_forward.5} parent=11 // pred_check_branch
          %1384 = sbr.rel (%p1382) target = $region148
        $region147: #{medsam_lite_forward.5} parent=11 // pred_region
          _
        $region148: #{medsam_lite_forward.5} parent=11 // pred_fallthru
          _
        // Predicated region
        $region149: #{medsam_lite_forward.5} parent=11 // pred_check
          %p1385 = pneg %p929
        $region150: #{medsam_lite_forward.5} parent=11 // pred_check_branch
          %1387 = sbr.rel (%p1385) target = $region152
        $region151: #{medsam_lite_forward.5} parent=11 // pred_region
          _
        $region152: #{medsam_lite_forward.5} parent=11 // pred_fallthru
          _
        // Predicated region
        $region153: #{medsam_lite_forward.5} parent=11 // pred_check
          %p1388 = pneg %p950
        $region154: #{medsam_lite_forward.5} parent=11 // pred_check_branch
          %1390 = sbr.rel (%p1388) target = $region156
        $region155: #{medsam_lite_forward.5} parent=11 // pred_region
          _
        $region156: #{medsam_lite_forward.5} parent=11 // pred_fallthru
          _
        // Predicated region
        $region157: #{medsam_lite_forward.5} parent=11 // pred_check
          %p1391 = pneg %p971
        $region158: #{medsam_lite_forward.5} parent=11 // pred_check_branch
          %1393 = sbr.rel (%p1391) target = $region160
        $region159: #{medsam_lite_forward.5} parent=11 // pred_region
          _
        $region160: #{medsam_lite_forward.5} parent=11 // pred_fallthru
          _
        // Predicated region
        $region161: #{medsam_lite_forward.5} parent=11 // pred_check
          %p1394 = pneg %p992
        $region162: #{medsam_lite_forward.5} parent=11 // pred_check_branch
          %1396 = sbr.rel (%p1394) target = $region164
        $region163: #{medsam_lite_forward.5} parent=11 // pred_region
          %s1398 = ssub.s32 16, 16
          %1399 = vsyncadd [#allocation24], %s1398
          %s1401 = sshll.u32 [#allocation23], 4
          %s1402 = int_to_ptr.vmem [resolvable:$true] %s1401
          %1404 = dma.hbm_to_vmem [thread:$0]  %s81, 16, %s1402, [#allocation24]
        $region164: #{medsam_lite_forward.5} parent=11 // pred_fallthru
          _
        // Predicated region
        $region165: #{medsam_lite_forward.5} parent=11 // pred_check
          %p1405 = pneg %p1013
        $region166: #{medsam_lite_forward.5} parent=11 // pred_check_branch
          %1407 = sbr.rel (%p1405) target = $region168
        $region167: #{medsam_lite_forward.5} parent=11 // pred_region
          _
        $region168: #{medsam_lite_forward.5} parent=11 // pred_fallthru
          _
        // Predicated region
        $region169: #{medsam_lite_forward.5} parent=11 // pred_check
          %p1408 = pneg %p1034
        $region170: #{medsam_lite_forward.5} parent=11 // pred_check_branch
          %1410 = sbr.rel (%p1408) target = $region172
        $region171: #{medsam_lite_forward.5} parent=11 // pred_region
          %s1412 = ssub.s32 16, 16
          %1413 = vsyncadd [#allocation24], %s1412
          %s1415 = sshll.u32 [#allocation25], 4
          %s1416 = int_to_ptr.vmem [resolvable:$true] %s1415
          %1418 = dma.hbm_to_vmem [thread:$0]  %s85, 16, %s1416, [#allocation24]
        $region172: #{medsam_lite_forward.5} parent=11 // pred_fallthru
          _
      $region12: #{medsam_lite_forward.5} parent=5 // pred_fallthru
        _
      %p1419 = scmp.lt.s32.totalorder %s116, 2
      // Predicated region
      $region173: #{medsam_lite_forward.5} parent=5 // pred_check
        %p1420 = pneg %p1419
      $region174: #{medsam_lite_forward.5} parent=5 // pred_check_branch
        %1422 = sbr.rel (%p1420) target = $region176
      $region175: #{medsam_lite_forward.5} parent=5 // pred_region
        // Predicated region
        $region177: #{medsam_lite_forward.5} parent=175 // pred_check
          %p1423 = pneg %p136
        $region178: #{medsam_lite_forward.5} parent=175 // pred_check_branch
          %1425 = sbr.rel (%p1423) target = $region180
        $region179: #{medsam_lite_forward.5} parent=175 // pred_region
          %p1426 = scmp.lt.s32.totalorder %s116, 1
          %s1427 = scalar_select %p1426, %s116, 1
          %s1428 = smul.addr %s1427, 2
          %s1429 = smul.addr %s1428, 8
          %s1430 = scalar_lea.vmem %s1, %s1429
        $region180: #{medsam_lite_forward.5} parent=175 // pred_fallthru
          _
        // Predicated region
        $region181: #{medsam_lite_forward.5} parent=175 // pred_check
          %p1431 = pneg %p162
        $region182: #{medsam_lite_forward.5} parent=175 // pred_check_branch
          %1433 = sbr.rel (%p1431) target = $region184
        $region183: #{medsam_lite_forward.5} parent=175 // pred_region
          %p1434 = scmp.lt.s32.totalorder %s116, 1
          %s1435 = scalar_select %p1434, %s116, 1
          %s1436 = smul.addr %s1435, 8
          %s1437 = smul.addr %s1436, 8
          %s1438 = scalar_lea.vmem %s3, %s1437
        $region184: #{medsam_lite_forward.5} parent=175 // pred_fallthru
          _
        // Predicated region
        $region185: #{medsam_lite_forward.5} parent=175 // pred_check
          %p1439 = pneg %p188
        $region186: #{medsam_lite_forward.5} parent=175 // pred_check_branch
          %1441 = sbr.rel (%p1439) target = $region188
        $region187: #{medsam_lite_forward.5} parent=175 // pred_region
          %p1442 = scmp.lt.s32.totalorder %s116, 1
          %s1443 = scalar_select %p1442, %s116, 1
          %s1444 = smul.addr %s1443, 8
          %s1445 = smul.addr %s1444, 8
          %s1446 = scalar_lea.vmem %s5, %s1445
        $region188: #{medsam_lite_forward.5} parent=175 // pred_fallthru
          _
      $region176: #{medsam_lite_forward.5} parent=5 // pred_fallthru
        _
      %p1447 = scmp.le.s32.totalorder 1, %s116
      %p1448 = scmp.lt.s32.totalorder %s116, 3
      %p1449 = pnand %p1447, %p1448
      %p1450 = pneg %p1449
      // Predicated region
      $region189: #{medsam_lite_forward.5} parent=5 // pred_check
        _
      $region190: #{medsam_lite_forward.5} parent=5 // pred_check_branch
        %1452 = sbr.rel (%p1449) target = $region192
      $region191: #{medsam_lite_forward.5} parent=5 // pred_region
        %s1453 = ssub.s32 %s116, 1
        // Predicated region
        $region193: #{medsam_lite_forward.5} parent=191 // pred_check
          %p1454 = pneg %p509
        $region194: #{medsam_lite_forward.5} parent=191 // pred_check_branch
          %1456 = sbr.rel (%p1454) target = $region196
        $region195: #{medsam_lite_forward.5} parent=191 // pred_region
          %1457 = dma.done [#allocation3], 16
        $region196: #{medsam_lite_forward.5} parent=191 // pred_fallthru
          _
        // Predicated region
        $region197: #{medsam_lite_forward.5} parent=191 // pred_check
          %p1458 = pneg %p530
        $region198: #{medsam_lite_forward.5} parent=191 // pred_check_branch
          %1460 = sbr.rel (%p1458) target = $region200
        $region199: #{medsam_lite_forward.5} parent=191 // pred_region
          %1461 = dma.done [#allocation6], 16
        $region200: #{medsam_lite_forward.5} parent=191 // pred_fallthru
          _
        // Predicated region
        $region201: #{medsam_lite_forward.5} parent=191 // pred_check
          %p1462 = pneg %p551
        $region202: #{medsam_lite_forward.5} parent=191 // pred_check_branch
          %1464 = sbr.rel (%p1462) target = $region204
        $region203: #{medsam_lite_forward.5} parent=191 // pred_region
          %1465 = dma.done [#allocation6], 16
        $region204: #{medsam_lite_forward.5} parent=191 // pred_fallthru
          _
        // Predicated region
        $region205: #{medsam_lite_forward.5} parent=191 // pred_check
          %p1466 = pneg %p593
        $region206: #{medsam_lite_forward.5} parent=191 // pred_check_branch
          %1468 = sbr.rel (%p1466) target = $region208
        $region207: #{medsam_lite_forward.5} parent=191 // pred_region
          %1469 = dma.done [#allocation9], 16
        $region208: #{medsam_lite_forward.5} parent=191 // pred_fallthru
          _
        // Predicated region
        $region209: #{medsam_lite_forward.5} parent=191 // pred_check
          %p1470 = pneg %p635
        $region210: #{medsam_lite_forward.5} parent=191 // pred_check_branch
          %1472 = sbr.rel (%p1470) target = $region212
        $region211: #{medsam_lite_forward.5} parent=191 // pred_region
          %1473 = dma.done [#allocation9], 16
        $region212: #{medsam_lite_forward.5} parent=191 // pred_fallthru
          _
        // Predicated region
        $region213: #{medsam_lite_forward.5} parent=191 // pred_check
          %p1474 = pneg %p656
        $region214: #{medsam_lite_forward.5} parent=191 // pred_check_branch
          %1476 = sbr.rel (%p1474) target = $region216
        $region215: #{medsam_lite_forward.5} parent=191 // pred_region
          %1477 = dma.done [#allocation12], 16
        $region216: #{medsam_lite_forward.5} parent=191 // pred_fallthru
          _
        // Predicated region
        $region217: #{medsam_lite_forward.5} parent=191 // pred_check
          %p1478 = pneg %p677
        $region218: #{medsam_lite_forward.5} parent=191 // pred_check_branch
          %1480 = sbr.rel (%p1478) target = $region220
        $region219: #{medsam_lite_forward.5} parent=191 // pred_region
          %1481 = dma.done [#allocation12], 16
        $region220: #{medsam_lite_forward.5} parent=191 // pred_fallthru
          _
        // Predicated region
        $region221: #{medsam_lite_forward.5} parent=191 // pred_check
          %p1482 = pneg %p719
        $region222: #{medsam_lite_forward.5} parent=191 // pred_check_branch
          %1484 = sbr.rel (%p1482) target = $region224
        $region223: #{medsam_lite_forward.5} parent=191 // pred_region
          %1485 = dma.done [#allocation15], 16
        $region224: #{medsam_lite_forward.5} parent=191 // pred_fallthru
          _
        // Predicated region
        $region225: #{medsam_lite_forward.5} parent=191 // pred_check
          %p1486 = pneg %p761
        $region226: #{medsam_lite_forward.5} parent=191 // pred_check_branch
          %1488 = sbr.rel (%p1486) target = $region228
        $region227: #{medsam_lite_forward.5} parent=191 // pred_region
          %1489 = dma.done [#allocation15], 16
        $region228: #{medsam_lite_forward.5} parent=191 // pred_fallthru
          _
        // Predicated region
        $region229: #{medsam_lite_forward.5} parent=191 // pred_check
          %p1490 = pneg %p803
        $region230: #{medsam_lite_forward.5} parent=191 // pred_check_branch
          %1492 = sbr.rel (%p1490) target = $region232
        $region231: #{medsam_lite_forward.5} parent=191 // pred_region
          %1493 = dma.done [#allocation18], 16
        $region232: #{medsam_lite_forward.5} parent=191 // pred_fallthru
          _
        // Predicated region
        $region233: #{medsam_lite_forward.5} parent=191 // pred_check
          %p1494 = pneg %p824
        $region234: #{medsam_lite_forward.5} parent=191 // pred_check_branch
          %1496 = sbr.rel (%p1494) target = $region236
        $region235: #{medsam_lite_forward.5} parent=191 // pred_region
          %1497 = dma.done [#allocation18], 16
        $region236: #{medsam_lite_forward.5} parent=191 // pred_fallthru
          _
        // Predicated region
        $region237: #{medsam_lite_forward.5} parent=191 // pred_check
          %p1498 = pneg %p845
        $region238: #{medsam_lite_forward.5} parent=191 // pred_check_branch
          %1500 = sbr.rel (%p1498) target = $region240
        $region239: #{medsam_lite_forward.5} parent=191 // pred_region
          %1501 = dma.done [#allocation21], 16
        $region240: #{medsam_lite_forward.5} parent=191 // pred_fallthru
          _
        // Predicated region
        $region241: #{medsam_lite_forward.5} parent=191 // pred_check
          %p1502 = pneg %p887
        $region242: #{medsam_lite_forward.5} parent=191 // pred_check_branch
          %1504 = sbr.rel (%p1502) target = $region244
        $region243: #{medsam_lite_forward.5} parent=191 // pred_region
          %1505 = dma.done [#allocation21], 16
        $region244: #{medsam_lite_forward.5} parent=191 // pred_fallthru
          _
        // Predicated region
        $region245: #{medsam_lite_forward.5} parent=191 // pred_check
          %p1506 = pneg %p992
        $region246: #{medsam_lite_forward.5} parent=191 // pred_check_branch
          %1508 = sbr.rel (%p1506) target = $region248
        $region247: #{medsam_lite_forward.5} parent=191 // pred_region
          %1509 = dma.done [#allocation24], 16
        $region248: #{medsam_lite_forward.5} parent=191 // pred_fallthru
          _
        // Predicated region
        $region249: #{medsam_lite_forward.5} parent=191 // pred_check
          %p1510 = pneg %p1034
        $region250: #{medsam_lite_forward.5} parent=191 // pred_check_branch
          %1512 = sbr.rel (%p1510) target = $region252
        $region251: #{medsam_lite_forward.5} parent=191 // pred_region
          %1513 = dma.done [#allocation24], 16
        $region252: #{medsam_lite_forward.5} parent=191 // pred_fallthru
          _
        %p1514 = scmp.lt.s32.totalorder %s121, 1
        %s1515 = scalar_select %p1514, %s121, 1
        %s1516 = smul.addr %s1515, 2
        %s1517 = smul.addr %s1516, 8
        %s1518 = scalar_lea.vmem %s1, %s1517
        %p1519 = pneg %p142
        %p1520 = pneg %p139
        %p1521 = scmp.lt.s32.totalorder %s121, 1
        %s1522 = scalar_select %p1521, %s121, 1
        %s1523 = smul.addr %s1522, 8
        %s1524 = smul.addr %s1523, 8
        %s1525 = scalar_lea.vmem %s3, %s1524
        %p1526 = pneg %p168
        %p1527 = pneg %p165
        %p1528 = scmp.lt.s32.totalorder %s121, 1
        %s1529 = scalar_select %p1528, %s121, 1
        %s1530 = smul.addr %s1529, 8
        %s1531 = smul.addr %s1530, 8
        %s1532 = scalar_lea.vmem %s5, %s1531
        %p1533 = pneg %p194
        %p1534 = pneg %p191
        %p1535 = pneg %p215
        %p1536 = pneg %p212
        %p1537 = pneg %p236
        %p1538 = pneg %p233
        %p1539 = pneg %p257
        %p1540 = pneg %p254
        %p1541 = pneg %p278
        %p1542 = pneg %p275
        %p1543 = pneg %p299
        %p1544 = pneg %p296
        %p1545 = pneg %p320
        %p1546 = pneg %p317
        %p1547 = pneg %p341
        %p1548 = pneg %p338
        %p1549 = pneg %p362
        %p1550 = pneg %p359
        %p1551 = pneg %p383
        %p1552 = pneg %p380
        %p1553 = pneg %p404
        %p1554 = pneg %p401
        %p1555 = pneg %p425
        %p1556 = pneg %p422
        %p1557 = pneg %p446
        %p1558 = pneg %p443
        %p1559 = pneg %p467
        %p1560 = pneg %p464
        %p1561 = pneg %p488
        %p1562 = pneg %p485
        %p1563 = pneg %p509
        %p1564 = pneg %p506
        %p1565 = pneg %p530
        %p1566 = pneg %p527
        %p1567 = pneg %p551
        %p1568 = pneg %p548
        %p1569 = pneg %p572
        %p1570 = pneg %p569
        %p1571 = pneg %p593
        %p1572 = pneg %p590
        %p1573 = pneg %p614
        %p1574 = pneg %p611
        %p1575 = pneg %p635
        %p1576 = pneg %p632
        %p1577 = pneg %p656
        %p1578 = pneg %p653
        %p1579 = pneg %p677
        %p1580 = pneg %p674
        %p1581 = pneg %p698
        %p1582 = pneg %p695
        %p1583 = pneg %p719
        %p1584 = pneg %p716
        %p1585 = pneg %p740
        %p1586 = pneg %p737
        %p1587 = pneg %p761
        %p1588 = pneg %p758
        %p1589 = pneg %p782
        %p1590 = pneg %p779
        %p1591 = pneg %p803
        %p1592 = pneg %p800
        %p1593 = pneg %p824
        %p1594 = pneg %p821
        %p1595 = pneg %p845
        %p1596 = pneg %p842
        %p1597 = pneg %p866
        %p1598 = pneg %p863
        %p1599 = pneg %p887
        %p1600 = pneg %p884
        %p1601 = pneg %p908
        %p1602 = pneg %p905
        %p1603 = pneg %p929
        %p1604 = pneg %p926
        %p1605 = pneg %p950
        %p1606 = pneg %p947
        %p1607 = pneg %p971
        %p1608 = pneg %p968
        %p1609 = pneg %p992
        %p1610 = pneg %p989
        %p1611 = pneg %p1013
        %p1612 = pneg %p1010
        %p1613 = pneg %p1034
        %p1614 = pneg %p1031
        %p1615 = pneg %p1060
        %p1616 = pneg %p1057
        %p1617 = scmp.lt.s32.totalorder %s121, 1
        %s1618 = scalar_select %p1617, %s121, 1
        %s1619 = smul.addr %s1618, 8
        %s1620 = smul.addr %s1619, 8
        %s1621 = scalar_lea.vmem %s87, %s1620
        %p1622 = pneg %p1086
        %p1623 = pneg %p1083
        %p1624 = scmp.lt.s32.totalorder %s121, 1
        %s1625 = scalar_select %p1624, %s121, 1
        %s1626 = scalar_lea.vmem %s89, %s1625
        %p1627 = pneg %p1112
        %p1628 = pneg %p1109
        %s1629 = sand.u32 %s1099, 1
        %s1630 = scalar_lea.sflag [#allocation4], %s1629
        %s1631 = sand.u32 %s1099, 1
        %s1632 = scalar_lea.vmem [#allocation26], %s1631
        %p1633 = pneg %p1138
        %p1634 = pneg %p1135
        %s1635 = sand.u32 %s121, 1
        %s1636 = scalar_lea.sflag [#allocation28], %s1635
        %s1637 = sand.u32 %s1125, 1
        %s1638 = scalar_lea.vmem [#allocation27], %s1637
        %p1639 = pneg %p1164
        %p1640 = pneg %p1161
        %s1641 = sand.u32 %s121, 1
        %s1642 = scalar_lea.sflag [#allocation28], %s1641
        %s1643 = sand.u32 %s1151, 1
        %s1644 = scalar_lea.vmem [#allocation29], %s1643
        %p1645 = scmp.lt.s32.totalorder %s121, 1
        %s1646 = scalar_select %p1645, %s121, 1
        %s1647 = smul.addr %s1646, 2
        %s1648 = smul.addr %s1647, 8
        %s1649 = scalar_lea.vmem %s1, %s1648
        %p1650 = scmp.lt.s32.totalorder %s121, 1
        %s1651 = scalar_select %p1650, %s121, 1
        %s1652 = smul.addr %s1651, 8
        %s1653 = smul.addr %s1652, 8
        %s1654 = scalar_lea.vmem %s3, %s1653
        %p1655 = scmp.lt.s32.totalorder %s121, 1
        %s1656 = scalar_select %p1655, %s121, 1
        %s1657 = smul.addr %s1656, 8
        %s1658 = smul.addr %s1657, 8
        %s1659 = scalar_lea.vmem %s5, %s1658
        %p1660 = scmp.lt.s32.totalorder %s121, 1
        %s1661 = scalar_select %p1660, %s121, 1
        %s1662 = smul.addr %s1661, 8
        %s1663 = smul.addr %s1662, 8
        %s1664 = scalar_lea.vmem %s87, %s1663
        %p1665 = scmp.lt.s32.totalorder %s121, 1
        %s1666 = scalar_select %p1665, %s121, 1
        %s1667 = scalar_lea.vmem %s89, %s1666
        %v1669 = vld [vmem:[%s7] sm:$0xff]
        %v1670 = vld [vmem:[%s7 + $0x8] sm:$0xff]
        %v1671 = vld [vmem:[%s7 + $0x10] sm:$0xff]
        %v1672 = vld [vmem:[%s7 + $0x18] sm:$0xff]
        %v1673 = vld [vmem:[%s7 + $0x20] sm:$0xff]
        %v1674 = vld [vmem:[%s7 + $0x28] sm:$0xff]
        %v1675 = vld [vmem:[%s7 + $0x30] sm:$0xff]
        %v1676 = vld [vmem:[%s7 + $0x38] sm:$0xff]
        %v1677 = vld [vmem:[%s9] sm:$0xf]
        %v1678 = vld [vmem:[%s9 + $0x4] sm:$0xf]
        %v1679 = vld [vmem:[%s9 + $0x8] sm:$0xf]
        %v1680 = vld [vmem:[%s9 + $0xc] sm:$0xf]
        %v1681 = vld [vmem:[%s11] sm:$0x1]
        %v1682 = vld [vmem:[%s13] sm:$0xf]
        %v1683 = vld [vmem:[%s13 + $0x4] sm:$0xf]
        %v1684 = vld [vmem:[%s13 + $0x8] sm:$0xf]
        %v1685 = vld [vmem:[%s13 + $0xc] sm:$0xf]
        %v1686 = vld [vmem:[%s15] sm:$0x1]
        %v1687 = vld [vmem:[%s17] sm:$0x1]
        %v1688 = vld [vmem:[%s19] sm:$0x1]
        %v1689 = vld [vmem:[%s21] sm:$0xf]
        %v1690 = vld [vmem:[%s21 + $0x4] sm:$0xf]
        %v1691 = vld [vmem:[%s21 + $0x8] sm:$0xf]
        %v1692 = vld [vmem:[%s21 + $0xc] sm:$0xf]
        %v1693 = vld [vmem:[%s23] sm:$0x1]
        %v1694 = vld [vmem:[%s25] sm:$0xf]
        %v1695 = vld [vmem:[%s25 + $0x4] sm:$0xf]
        %v1696 = vld [vmem:[%s25 + $0x8] sm:$0xf]
        %v1697 = vld [vmem:[%s25 + $0xc] sm:$0xf]
        %v1698 = vld [vmem:[%s27] sm:$0x1]
        %v1699 = vld [vmem:[%s29] sm:$0xf]
        %v1700 = vld [vmem:[%s29 + $0x4] sm:$0xf]
        %v1701 = vld [vmem:[%s29 + $0x8] sm:$0xf]
        %v1702 = vld [vmem:[%s29 + $0xc] sm:$0xf]
        %v1703 = vld [vmem:[%s31] sm:$0x1]
        %v1704 = vld [vmem:[%s33] sm:$0xf]
        %v1705 = vld [vmem:[%s33 + $0x4] sm:$0xf]
        %v1706 = vld [vmem:[%s33 + $0x8] sm:$0xf]
        %v1707 = vld [vmem:[%s33 + $0xc] sm:$0xf]
        %v1708 = vld [vmem:[#allocation2] sm:$0x1]
        %v1709 = vld [vmem:[#allocation5] sm:$0x1]
        %v1710 = vld [vmem:[#allocation7] sm:$0x1]
        %v1711 = vld [vmem:[%s41] sm:$0xf]
        %v1712 = vld [vmem:[%s41 + $0x4] sm:$0xf]
        %v1713 = vld [vmem:[%s41 + $0x8] sm:$0xf]
        %v1714 = vld [vmem:[%s41 + $0xc] sm:$0xf]
        %v1715 = vld [vmem:[#allocation8] sm:$0x1]
        %v1716 = vld [vmem:[%s45] sm:$0xf]
        %v1717 = vld [vmem:[%s45 + $0x4] sm:$0xf]
        %v1718 = vld [vmem:[%s45 + $0x8] sm:$0xf]
        %v1719 = vld [vmem:[%s45 + $0xc] sm:$0xf]
        %v1720 = vld [vmem:[%s45 + $0x10] sm:$0xf]
        %v1721 = vld [vmem:[%s45 + $0x14] sm:$0xf]
        %v1722 = vld [vmem:[%s45 + $0x18] sm:$0xf]
        %v1723 = vld [vmem:[%s45 + $0x1c] sm:$0xf]
        %v1724 = vld [vmem:[#allocation10] sm:$0x1]
        %v1725 = vld [vmem:[#allocation11] sm:$0x1]
        %v1726 = vld [vmem:[#allocation13] sm:$0x1]
        %v1727 = vld [vmem:[%s53] sm:$0xf]
        %v1728 = vld [vmem:[%s53 + $0x4] sm:$0xf]
        %v1729 = vld [vmem:[%s53 + $0x8] sm:$0xf]
        %v1730 = vld [vmem:[%s53 + $0xc] sm:$0xf]
        %v1731 = vld [vmem:[#allocation14] sm:$0x1]
        %v1732 = vld [vmem:[%s57] sm:$0xf]
        %v1733 = vld [vmem:[%s57 + $0x4] sm:$0xf]
        %v1734 = vld [vmem:[%s57 + $0x8] sm:$0xf]
        %v1735 = vld [vmem:[%s57 + $0xc] sm:$0xf]
        %v1736 = vld [vmem:[#allocation16] sm:$0x1]
        %v1737 = vld [vmem:[%s61] sm:$0xf]
        %v1738 = vld [vmem:[%s61 + $0x4] sm:$0xf]
        %v1739 = vld [vmem:[%s61 + $0x8] sm:$0xf]
        %v1740 = vld [vmem:[%s61 + $0xc] sm:$0xf]
        %v1741 = vld [vmem:[#allocation17] sm:$0x1]
        %v1742 = vld [vmem:[#allocation19] sm:$0x1]
        %v1743 = vld [vmem:[#allocation20] sm:$0x1]
        %v1744 = vld [vmem:[%s69] sm:$0xf]
        %v1745 = vld [vmem:[%s69 + $0x4] sm:$0xf]
        %v1746 = vld [vmem:[%s69 + $0x8] sm:$0xf]
        %v1747 = vld [vmem:[%s69 + $0xc] sm:$0xf]
        %v1748 = vld [vmem:[#allocation22] sm:$0x1]
        %v1749 = vld [vmem:[%s73] sm:$0xf]
        %v1750 = vld [vmem:[%s73 + $0x4] sm:$0xf]
        %v1751 = vld [vmem:[%s73 + $0x8] sm:$0xf]
        %v1752 = vld [vmem:[%s73 + $0xc] sm:$0xf]
        %v1753 = vld [vmem:[%s75] sm:$0xff]
        %v1754 = vld [vmem:[%s75 + $0x8] sm:$0xff]
        %v1755 = vld [vmem:[%s75 + $0x10] sm:$0xff]
        %v1756 = vld [vmem:[%s75 + $0x18] sm:$0xff]
        %v1757 = vld [vmem:[%s77] sm:$0x3]
        %v1758 = vld [vmem:[%s79] sm:$0xf]
        %v1759 = vld [vmem:[%s79 + $0x4] sm:$0xf]
        %v1760 = vld [vmem:[%s79 + $0x8] sm:$0xf]
        %v1761 = vld [vmem:[%s79 + $0xc] sm:$0xf]
        %v1762 = vld [vmem:[%s79 + $0x10] sm:$0xf]
        %v1763 = vld [vmem:[%s79 + $0x14] sm:$0xf]
        %v1764 = vld [vmem:[%s79 + $0x18] sm:$0xf]
        %v1765 = vld [vmem:[%s79 + $0x1c] sm:$0xf]
        %v1766 = vld [vmem:[%s79 + $0x20] sm:$0xf]
        %v1767 = vld [vmem:[%s79 + $0x24] sm:$0xf]
        %v1768 = vld [vmem:[%s79 + $0x28] sm:$0xf]
        %v1769 = vld [vmem:[%s79 + $0x2c] sm:$0xf]
        %v1770 = vld [vmem:[#allocation23] sm:$0x1]
        %v1771 = vld [vmem:[%s83] sm:$0xf]
        %v1772 = vld [vmem:[%s83 + $0x4] sm:$0xf]
        %v1773 = vld [vmem:[%s83 + $0x8] sm:$0xf]
        %v1774 = vld [vmem:[%s83 + $0xc] sm:$0xf]
        %v1775 = vld [vmem:[#allocation25] sm:$0x1]
        %v1776 = vld [vmem:[%s1649] sm:$0xff]
        %v1777 = vld [vmem:[%s1649 + $0x8] sm:$0x7]
        %v1778 = vld [vmem:[%s1654] sm:$0xff]
        %v1779 = vld [vmem:[%s1654 + $0x8] sm:$0xff]
        %v1780 = vld [vmem:[%s1654 + $0x10] sm:$0xff]
        %v1781 = vld [vmem:[%s1654 + $0x18] sm:$0xff]
        %v1782 = vld [vmem:[%s1654 + $0x20] sm:$0xff]
        %v1783 = vld [vmem:[%s1654 + $0x28] sm:$0xff]
        %v1784 = vld [vmem:[%s1654 + $0x30] sm:$0xff]
        %v1785 = vld [vmem:[%s1654 + $0x38] sm:$0xff]
        %v1786 = vld [vmem:[%s1659] sm:$0xff]
        %v1787 = vld [vmem:[%s1659 + $0x8] sm:$0xff]
        %v1788 = vld [vmem:[%s1659 + $0x10] sm:$0xff]
        %v1789 = vld [vmem:[%s1659 + $0x18] sm:$0xff]
        %v1790 = vld [vmem:[%s1659 + $0x20] sm:$0xff]
        %v1791 = vld [vmem:[%s1659 + $0x28] sm:$0xff]
        %v1792 = vld [vmem:[%s1659 + $0x30] sm:$0xff]
        %v1793 = vld [vmem:[%s1659 + $0x38] sm:$0xff]
        %v1794 = vadd.f32 %v1778, %v1786
        %v1795 = vadd.f32 %v1779, %v1787
        %v1796 = vadd.f32 %v1780, %v1788
        %v1797 = vadd.f32 %v1781, %v1789
        %v1798 = vadd.f32 %v1782, %v1790
        %v1799 = vadd.f32 %v1783, %v1791
        %v1800 = vadd.f32 %v1784, %v1792
        %v1801 = vadd.f32 %v1785, %v1793
        %v1802 = vadd.f32 %v1794, %v1669
        %v1803 = vadd.f32 %v1795, %v1670
        %v1804 = vadd.f32 %v1796, %v1671
        %v1805 = vadd.f32 %v1797, %v1672
        %v1806 = vadd.f32 %v1798, %v1673
        %v1807 = vadd.f32 %v1799, %v1674
        %v1808 = vadd.f32 %v1800, %v1675
        %v1809 = vadd.f32 %v1801, %v1676
        %v1810 = vpack.c.bf16 %v1777, %v1776
        %v1812 = vlaneseq
        %v1813 = vshrl.u32 %v1812, 7
        %v1814 = vsub.s32 0, %v1813
        %v1815 = vrot.slane %v1681, %v1814
        %v1821 = vunpack.c.l.b16 %v1677
        %v1822 = vunpack.c.l.b16 %v1678
        %v1823 = vunpack.c.l.b16 %v1679
        %v1824 = vunpack.c.l.b16 %v1680
        %v1825 = vpack.c.b16 %v1822, %v1821
        %v1826 = vpack.c.b16 %v1824, %v1823
        %vm1829 = vcmask 261120
        %v1831 = vsel %vm1829, %v1810, 0
        %1833 = vmatprep.subr.bf16.mxu0 0
        %1834 = vmatpush1.bf16.msra.mxu0 0
        %1835 = vmatprep.subr.bf16.mxu0 0
        %1836 = vmatpush1.bf16.msra.mxu0 0
        %1837 = vmatprep.subr.bf16.mxu0 0
        %1838 = vmatpush1.bf16.msra.mxu0 0
        %1839 = vmatprep.subr.bf16.mxu0 0
        %1840 = vmatpush1.bf16.msra.mxu0 0
        %1841 = vmatprep.subr.bf16.mxu0 0
        %1842 = vmatpush1.bf16.msra.mxu0 0
        %1843 = vmatprep.subr.bf16.mxu0 0
        %1844 = vmatpush1.bf16.msra.mxu0 0
        %1845 = vmatprep.subr.bf16.mxu0 0
        %1846 = vmatpush1.bf16.msra.mxu0 %v1826
        %1847 = vmatprep.subr.bf16.mxu0 0
        %1848 = vmatpush1.bf16.msra.mxu0 %v1825
        %1849 = vmatprep.subr.bf16.mxu0 0
        %1850 = vmatpush2.bf16.msra.mxu0 0
        %1851 = vmatprep.subr.bf16.mxu0 0
        %1852 = vmatpush2.bf16.msra.mxu0 0
        %1853 = vmatprep.subr.bf16.mxu0 0
        %1854 = vmatpush2.bf16.msra.mxu0 0
        %1855 = vmatprep.subr.bf16.mxu0 0
        %1856 = vmatpush2.bf16.msra.mxu0 0
        %1857 = vmatprep.subr.bf16.mxu0 0
        %1858 = vmatpush2.bf16.msra.mxu0 0
        %1859 = vmatprep.subr.bf16.mxu0 0
        %1860 = vmatpush2.bf16.msra.mxu0 0
        %1861 = vmatprep.subr.bf16.mxu0 0
        %1862 = vmatpush2.bf16.msra.mxu0 0
        %1863 = vmatprep.subr.bf16.mxu0 0
        %1864 = vmatpush2.bf16.msra.mxu0 0
        %1865 = vmatprep.mubr.bf16.mxu0 0
        %1866 = vmatmul.mubr.bf16.gmra.mxu0 %v1831
        %v1867 = vpop.f32.mrf.mxu0
        %v1868 = vadd.f32 %v1815, %v1867
        %v1869 = vpop.f32.mrf.mxu0
        %v1870 = vpop.f32.mrf.mxu0
        %v1871 = vadd.f32 %v1815, %v1870
        %v1872 = vpop.f32.mrf.mxu0
        %1873 = vdwg.mxu0
        %v1874 = vpack.c.bf16 %v1871, %v1868
        %1876 = vrot.lane.b32.xlu0 %v1874, 96
        %v1877 = vpop.permute.xlu0 %1876
        %v1879 = vsel %vm1829, %v1874, 0
        %v1882 = vsel %vm1829, %v1877, 0
        %1884 = vmatprep.subr.bf16.mxu0 0
        %1885 = vmatpush1.bf16.xpose.msra.mxu0 0
        %1886 = vmatprep.subr.bf16.mxu0 0
        %1887 = vmatpush1.bf16.xpose.msra.mxu0 0
        %1888 = vmatprep.subr.bf16.mxu0 0
        %1889 = vmatpush1.bf16.xpose.msra.mxu0 0
        %1890 = vmatprep.subr.bf16.mxu0 0
        %1891 = vmatpush1.bf16.xpose.msra.mxu0 0
        %1892 = vmatprep.subr.bf16.mxu0 0
        %1893 = vmatpush1.bf16.xpose.msra.mxu0 0
        %1894 = vmatprep.subr.bf16.mxu0 0
        %1895 = vmatpush1.bf16.xpose.msra.mxu0 0
        %1896 = vmatprep.subr.bf16.mxu0 0
        %1897 = vmatpush1.bf16.xpose.msra.mxu0 0
        %1898 = vmatprep.subr.bf16.mxu0 0
        %1899 = vmatpush1.bf16.xpose.msra.mxu0 %v1882
        %1900 = vmatprep.subr.bf16.mxu0 0
        %1901 = vmatpush2.bf16.xpose.msra.mxu0 0
        %1902 = vmatprep.subr.bf16.mxu0 0
        %1903 = vmatpush2.bf16.xpose.msra.mxu0 0
        %1904 = vmatprep.subr.bf16.mxu0 0
        %1905 = vmatpush2.bf16.xpose.msra.mxu0 0
        %1906 = vmatprep.subr.bf16.mxu0 0
        %1907 = vmatpush2.bf16.xpose.msra.mxu0 0
        %1908 = vmatprep.subr.bf16.mxu0 0
        %1909 = vmatpush2.bf16.xpose.msra.mxu0 0
        %1910 = vmatprep.subr.bf16.mxu0 0
        %1911 = vmatpush2.bf16.xpose.msra.mxu0 0
        %1912 = vmatprep.subr.bf16.mxu0 0
        %1913 = vmatpush2.bf16.xpose.msra.mxu0 0
        %1914 = vmatprep.subr.bf16.mxu0 0
        %1915 = vmatpush2.bf16.xpose.msra.mxu0 0
        %1916 = vmatprep.mubr.bf16.mxu0 0
        %1917 = vmatmul.mubr.bf16.gmra.mxu0 %v1879
        %v1918 = vpop.f32.mrf.mxu0
        %v1919 = vadd.f32 0.0, %v1918
        %v1920 = vpop.f32.mrf.mxu0
        %v1921 = vpop.f32.mrf.mxu0
        %v1922 = vadd.f32 0.0, %v1921
        %v1923 = vpop.f32.mrf.mxu0
        %1924 = vdwg.mxu0
        %v1925 = vmul.f32 %v1919, 0.17677669
        %v1926 = vmul.f32 %v1922, 0.17677669
        %vm1927 = vcmask 89088
        %v1928 = vsel %vm1927, %v1925, -inf
        %1929 = vmax.xlane.f32.xlu0 %v1928
        %v1930 = vpop.xlane.xlu0 %1929
        %vm1931 = vcmask 83968
        %v1932 = vsel %vm1931, %v1926, -inf
        %1933 = vmax.xlane.f32.xlu0 %v1932
        %v1934 = vpop.xlane.xlu0 %1933
        %v1935 = vsub.f32 %v1925, %v1930
        %v1936 = vsub.f32 %v1926, %v1934
        %v1937 = vmul.f32 %v1935, 1.442695
        %v1938 = vpow.pop %v1937
        %v1939 = vmul.f32 %v1936, 1.442695
        %v1940 = vpow.pop %v1939
        %v1941 = vsel %vm1927, %v1938, 0.0
        %1942 = vadd.xlane.f32.xlu0 %v1941
        %v1943 = vpop.xlane.xlu0 %1942
        %v1944 = vsel %vm1931, %v1940, 0.0
        %1945 = vadd.xlane.f32.xlu0 %v1944
        %v1946 = vpop.xlane.xlu0 %1945
        %v1947 = vrcp.pop %v1943
        %v1948 = vrcp.pop %v1946
        %v1949 = vmul.f32 %v1938, %v1947
        %v1950 = vmul.f32 %v1940, %v1948
        %v1951 = vpack.c.bf16 %v1950, %v1949
        %1952 = vrot.lane.b32.xlu0 %v1874, 64
        %v1953 = vpop.permute.xlu0 %1952
        %v1955 = vsel %vm1927, %v1951, 0
        %vm1957 = vcmask 1044480
        %vm1958 = vcmask 1045504
        %v1959 = vsel %vm1957, 4294967295, 65535
        %v1960 = vsel %vm1958, %v1959, 0
        %v1962 = vand.u32 %v1953, %v1960
        %1964 = vmatprep.subr.bf16.mxu0 0
        %1965 = vmatpush1.bf16.msra.mxu0 0
        %1966 = vmatprep.subr.bf16.mxu0 0
        %1967 = vmatpush1.bf16.msra.mxu0 0
        %1968 = vmatprep.subr.bf16.mxu0 0
        %1969 = vmatpush1.bf16.msra.mxu0 0
        %1970 = vmatprep.subr.bf16.mxu0 0
        %1971 = vmatpush1.bf16.msra.mxu0 0
        %1972 = vmatprep.subr.bf16.mxu0 0
        %1973 = vmatpush1.bf16.msra.mxu0 0
        %1974 = vmatprep.subr.bf16.mxu0 0
        %1975 = vmatpush1.bf16.msra.mxu0 0
        %1976 = vmatprep.subr.bf16.mxu0 0
        %1977 = vmatpush1.bf16.msra.mxu0 0
        %1978 = vmatprep.subr.bf16.mxu0 0
        %1979 = vmatpush1.bf16.msra.mxu0 %v1962
        %1980 = vmatprep.subr.bf16.mxu0 0
        %1981 = vmatpush2.bf16.msra.mxu0 0
        %1982 = vmatprep.subr.bf16.mxu0 0
        %1983 = vmatpush2.bf16.msra.mxu0 0
        %1984 = vmatprep.subr.bf16.mxu0 0
        %1985 = vmatpush2.bf16.msra.mxu0 0
        %1986 = vmatprep.subr.bf16.mxu0 0
        %1987 = vmatpush2.bf16.msra.mxu0 0
        %1988 = vmatprep.subr.bf16.mxu0 0
        %1989 = vmatpush2.bf16.msra.mxu0 0
        %1990 = vmatprep.subr.bf16.mxu0 0
        %1991 = vmatpush2.bf16.msra.mxu0 0
        %1992 = vmatprep.subr.bf16.mxu0 0
        %1993 = vmatpush2.bf16.msra.mxu0 0
        %1994 = vmatprep.subr.bf16.mxu0 0
        %1995 = vmatpush2.bf16.msra.mxu0 0
        %1996 = vmatprep.mubr.bf16.mxu0 0
        %1997 = vmatmul.mubr.bf16.gmra.mxu0 %v1955
        %v1998 = vpop.f32.mrf.mxu0
        %v1999 = vadd.f32 0.0, %v1998
        %v2000 = vpop.f32.mrf.mxu0
        %v2001 = vpop.f32.mrf.mxu0
        %v2002 = vadd.f32 0.0, %v2001
        %v2003 = vpop.f32.mrf.mxu0
        %2004 = vdwg.mxu0
        %v2005 = vpack.c.bf16 %v2002, %v1999
        %v2007 = vlaneseq
        %v2008 = vshrl.u32 %v2007, 7
        %v2009 = vsub.s32 0, %v2008
        %v2010 = vrot.slane %v1686, %v2009
        %v2016 = vunpack.c.l.b16 %v1682
        %v2017 = vunpack.c.l.b16 %v1683
        %v2018 = vunpack.c.l.b16 %v1684
        %v2019 = vunpack.c.l.b16 %v1685
        %v2020 = vpack.c.b16 %v2017, %v2016
        %v2021 = vpack.c.b16 %v2019, %v2018
        %v2025 = vsel %vm1829, %v2005, 0
        %2027 = vmatprep.subr.bf16.mxu0 0
        %2028 = vmatpush1.bf16.msra.mxu0 0
        %2029 = vmatprep.subr.bf16.mxu0 0
        %2030 = vmatpush1.bf16.msra.mxu0 0
        %2031 = vmatprep.subr.bf16.mxu0 0
        %2032 = vmatpush1.bf16.msra.mxu0 0
        %2033 = vmatprep.subr.bf16.mxu0 0
        %2034 = vmatpush1.bf16.msra.mxu0 0
        %2035 = vmatprep.subr.bf16.mxu0 0
        %2036 = vmatpush1.bf16.msra.mxu0 0
        %2037 = vmatprep.subr.bf16.mxu0 0
        %2038 = vmatpush1.bf16.msra.mxu0 0
        %2039 = vmatprep.subr.bf16.mxu0 0
        %2040 = vmatpush1.bf16.msra.mxu0 %v2021
        %2041 = vmatprep.subr.bf16.mxu0 0
        %2042 = vmatpush1.bf16.msra.mxu0 %v2020
        %2043 = vmatprep.subr.bf16.mxu0 0
        %2044 = vmatpush2.bf16.msra.mxu0 0
        %2045 = vmatprep.subr.bf16.mxu0 0
        %2046 = vmatpush2.bf16.msra.mxu0 0
        %2047 = vmatprep.subr.bf16.mxu0 0
        %2048 = vmatpush2.bf16.msra.mxu0 0
        %2049 = vmatprep.subr.bf16.mxu0 0
        %2050 = vmatpush2.bf16.msra.mxu0 0
        %2051 = vmatprep.subr.bf16.mxu0 0
        %2052 = vmatpush2.bf16.msra.mxu0 0
        %2053 = vmatprep.subr.bf16.mxu0 0
        %2054 = vmatpush2.bf16.msra.mxu0 0
        %2055 = vmatprep.subr.bf16.mxu0 0
        %2056 = vmatpush2.bf16.msra.mxu0 0
        %2057 = vmatprep.subr.bf16.mxu0 0
        %2058 = vmatpush2.bf16.msra.mxu0 0
        %2059 = vmatprep.mubr.bf16.mxu0 0
        %2060 = vmatmul.mubr.bf16.gmra.mxu0 %v2025
        %v2061 = vpop.f32.mrf.mxu0
        %v2062 = vadd.f32 %v2010, %v2061
        %v2063 = vpop.f32.mrf.mxu0
        %v2064 = vpop.f32.mrf.mxu0
        %v2065 = vadd.f32 %v2010, %v2064
        %v2066 = vpop.f32.mrf.mxu0
        %2067 = vdwg.mxu0
        %v2068 = vadd.f32 %v1776, %v2062
        %v2069 = vadd.f32 %v1777, %v2065
        %v2070 = vsel %vm1829, %v2068, 0.0
        %2071 = vadd.xlane.f32.xlu0 %v2070
        %v2072 = vpop.xlane.xlu0 %2071
        %vm2073 = vcmask 256000
        %v2074 = vsel %vm2073, %v2069, 0.0
        %2075 = vadd.xlane.f32.xlu0 %v2074
        %v2076 = vpop.xlane.xlu0 %2075
        %v2077 = vrcp.pop 32.0
        %v2078 = vmul.f32 %v2072, %v2077
        %v2079 = vmul.f32 %v2076, %v2077
        %v2080 = vsub.f32 %v2068, %v2078
        %v2081 = vsub.f32 %v2069, %v2079
        %v2082 = vmul.f32 %v2080, %v2080
        %v2083 = vmul.f32 %v2081, %v2081
        %v2084 = vsel %vm1829, %v2082, 0.0
        %2085 = vadd.xlane.f32.xlu0 %v2084
        %v2086 = vpop.xlane.xlu0 %2085
        %v2087 = vsel %vm2073, %v2083, 0.0
        %2088 = vadd.xlane.f32.xlu0 %v2087
        %v2089 = vpop.xlane.xlu0 %2088
        %v2090 = vmul.f32 %v2086, %v2077
        %v2091 = vmul.f32 %v2089, %v2077
        %v2092 = vadd.f32 %v2090, 1e-06
        %v2093 = vadd.f32 %v2091, 1e-06
        %v2094 = vrsqrt.pop %v2092
        %v2095 = vrsqrt.pop %v2093
        %v2096 = vmul.f32 %v2080, %v2094
        %v2097 = vmul.f32 %v2081, %v2095
        %v2099 = vlaneseq
        %v2100 = vshrl.u32 %v2099, 7
        %v2101 = vsub.s32 0, %v2100
        %v2102 = vrot.slane %v1687, %v2101
        %v2104 = vmul.f32 %v2096, %v2102
        %v2105 = vmul.f32 %v2097, %v2102
        %v2107 = vlaneseq
        %v2108 = vshrl.u32 %v2107, 7
        %v2109 = vsub.s32 0, %v2108
        %v2110 = vrot.slane %v1688, %v2109
        %v2112 = vadd.f32 %v2104, %v2110
        %v2113 = vadd.f32 %v2105, %v2110
        %v2114 = vpack.c.bf16 %v2113, %v2112
        %v2116 = vlaneseq
        %v2117 = vshrl.u32 %v2116, 7
        %v2118 = vsub.s32 0, %v2117
        %v2119 = vrot.slane %v1693, %v2118
        %v2125 = vunpack.c.l.b16 %v1689
        %v2126 = vunpack.c.l.b16 %v1690
        %v2127 = vunpack.c.l.b16 %v1691
        %v2128 = vunpack.c.l.b16 %v1692
        %v2129 = vpack.c.b16 %v2126, %v2125
        %v2130 = vpack.c.b16 %v2128, %v2127
        %v2134 = vsel %vm1829, %v2114, 0
        %2136 = vmatprep.subr.bf16.mxu0 0
        %2137 = vmatpush1.bf16.msra.mxu0 0
        %2138 = vmatprep.subr.bf16.mxu0 0
        %2139 = vmatpush1.bf16.msra.mxu0 0
        %2140 = vmatprep.subr.bf16.mxu0 0
        %2141 = vmatpush1.bf16.msra.mxu0 0
        %2142 = vmatprep.subr.bf16.mxu0 0
        %2143 = vmatpush1.bf16.msra.mxu0 0
        %2144 = vmatprep.subr.bf16.mxu0 0
        %2145 = vmatpush1.bf16.msra.mxu0 0
        %2146 = vmatprep.subr.bf16.mxu0 0
        %2147 = vmatpush1.bf16.msra.mxu0 0
        %2148 = vmatprep.subr.bf16.mxu0 0
        %2149 = vmatpush1.bf16.msra.mxu0 %v2130
        %2150 = vmatprep.subr.bf16.mxu0 0
        %2151 = vmatpush1.bf16.msra.mxu0 %v2129
        %2152 = vmatprep.subr.bf16.mxu0 0
        %2153 = vmatpush2.bf16.msra.mxu0 0
        %2154 = vmatprep.subr.bf16.mxu0 0
        %2155 = vmatpush2.bf16.msra.mxu0 0
        %2156 = vmatprep.subr.bf16.mxu0 0
        %2157 = vmatpush2.bf16.msra.mxu0 0
        %2158 = vmatprep.subr.bf16.mxu0 0
        %2159 = vmatpush2.bf16.msra.mxu0 0
        %2160 = vmatprep.subr.bf16.mxu0 0
        %2161 = vmatpush2.bf16.msra.mxu0 0
        %2162 = vmatprep.subr.bf16.mxu0 0
        %2163 = vmatpush2.bf16.msra.mxu0 0
        %2164 = vmatprep.subr.bf16.mxu0 0
        %2165 = vmatpush2.bf16.msra.mxu0 0
        %2166 = vmatprep.subr.bf16.mxu0 0
        %2167 = vmatpush2.bf16.msra.mxu0 0
        %2168 = vmatprep.mubr.bf16.mxu0 0
        %2169 = vmatmul.mubr.bf16.gmra.mxu0 %v2134
        %v2170 = vpop.f32.mrf.mxu0
        %v2171 = vadd.f32 %v2119, %v2170
        %v2172 = vpop.f32.mrf.mxu0
        %v2173 = vpop.f32.mrf.mxu0
        %v2174 = vadd.f32 %v2119, %v2173
        %v2175 = vpop.f32.mrf.mxu0
        %2176 = vdwg.mxu0
        %v2177 = vpack.c.bf16 %v1803, %v1802
        %v2178 = vpack.c.bf16 %v1805, %v1804
        %v2179 = vpack.c.bf16 %v1807, %v1806
        %v2180 = vpack.c.bf16 %v1809, %v1808
        %v2182 = vlaneseq
        %v2183 = vshrl.u32 %v2182, 7
        %v2184 = vsub.s32 0, %v2183
        %v2185 = vrot.slane %v1698, %v2184
        %v2191 = vunpack.c.l.b16 %v1694
        %v2192 = vunpack.c.l.b16 %v1695
        %v2193 = vunpack.c.l.b16 %v1696
        %v2194 = vunpack.c.l.b16 %v1697
        %v2195 = vpack.c.b16 %v2192, %v2191
        %v2196 = vpack.c.b16 %v2194, %v2193
        %v2200 = vsel %vm1829, %v2177, 0
        %v2203 = vsel %vm1829, %v2178, 0
        %v2206 = vsel %vm1829, %v2179, 0
        %v2209 = vsel %vm1829, %v2180, 0
        %2211 = vmatprep.subr.bf16.mxu0 0
        %2212 = vmatpush1.bf16.msra.mxu0 0
        %2213 = vmatprep.subr.bf16.mxu0 0
        %2214 = vmatpush1.bf16.msra.mxu0 0
        %2215 = vmatprep.subr.bf16.mxu0 0
        %2216 = vmatpush1.bf16.msra.mxu0 0
        %2217 = vmatprep.subr.bf16.mxu0 0
        %2218 = vmatpush1.bf16.msra.mxu0 0
        %2219 = vmatprep.subr.bf16.mxu0 0
        %2220 = vmatpush1.bf16.msra.mxu0 0
        %2221 = vmatprep.subr.bf16.mxu0 0
        %2222 = vmatpush1.bf16.msra.mxu0 0
        %2223 = vmatprep.subr.bf16.mxu0 0
        %2224 = vmatpush1.bf16.msra.mxu0 %v2196
        %2225 = vmatprep.subr.bf16.mxu0 0
        %2226 = vmatpush1.bf16.msra.mxu0 %v2195
        %2227 = vmatprep.subr.bf16.mxu0 0
        %2228 = vmatpush2.bf16.msra.mxu0 0
        %2229 = vmatprep.subr.bf16.mxu0 0
        %2230 = vmatpush2.bf16.msra.mxu0 0
        %2231 = vmatprep.subr.bf16.mxu0 0
        %2232 = vmatpush2.bf16.msra.mxu0 0
        %2233 = vmatprep.subr.bf16.mxu0 0
        %2234 = vmatpush2.bf16.msra.mxu0 0
        %2235 = vmatprep.subr.bf16.mxu0 0
        %2236 = vmatpush2.bf16.msra.mxu0 0
        %2237 = vmatprep.subr.bf16.mxu0 0
        %2238 = vmatpush2.bf16.msra.mxu0 0
        %2239 = vmatprep.subr.bf16.mxu0 0
        %2240 = vmatpush2.bf16.msra.mxu0 0
        %2241 = vmatprep.subr.bf16.mxu0 0
        %2242 = vmatpush2.bf16.msra.mxu0 0
        %2243 = vmatprep.mubr.bf16.mxu0 0
        %2244 = vmatmul.mubr.bf16.gmra.mxu0 %v2200
        %v2245 = vpop.f32.mrf.mxu0
        %v2246 = vadd.f32 %v2185, %v2245
        %v2247 = vpop.f32.mrf.mxu0
        %v2248 = vpop.f32.mrf.mxu0
        %v2249 = vadd.f32 %v2185, %v2248
        %v2250 = vpop.f32.mrf.mxu0
        %2251 = vmatprep.mubr.bf16.mxu0 0
        %2252 = vmatmul.mubr.bf16.gmra.mxu0 %v2203
        %v2253 = vpop.f32.mrf.mxu0
        %v2254 = vadd.f32 %v2185, %v2253
        %v2255 = vpop.f32.mrf.mxu0
        %v2256 = vpop.f32.mrf.mxu0
        %v2257 = vadd.f32 %v2185, %v2256
        %v2258 = vpop.f32.mrf.mxu0
        %2259 = vmatprep.mubr.bf16.mxu0 0
        %2260 = vmatmul.mubr.bf16.gmra.mxu0 %v2206
        %v2261 = vpop.f32.mrf.mxu0
        %v2262 = vadd.f32 %v2185, %v2261
        %v2263 = vpop.f32.mrf.mxu0
        %v2264 = vpop.f32.mrf.mxu0
        %v2265 = vadd.f32 %v2185, %v2264
        %v2266 = vpop.f32.mrf.mxu0
        %2267 = vmatprep.mubr.bf16.mxu0 0
        %2268 = vmatmul.mubr.bf16.gmra.mxu0 %v2209
        %v2269 = vpop.f32.mrf.mxu0
        %v2270 = vadd.f32 %v2185, %v2269
        %v2271 = vpop.f32.mrf.mxu0
        %v2272 = vpop.f32.mrf.mxu0
        %v2273 = vadd.f32 %v2185, %v2272
        %v2274 = vpop.f32.mrf.mxu0
        %2275 = vdwg.mxu0
        %v2276 = vpack.c.bf16 %v1795, %v1794
        %v2277 = vpack.c.bf16 %v1797, %v1796
        %v2278 = vpack.c.bf16 %v1799, %v1798
        %v2279 = vpack.c.bf16 %v1801, %v1800
        %v2281 = vlaneseq
        %v2282 = vshrl.u32 %v2281, 7
        %v2283 = vsub.s32 0, %v2282
        %v2284 = vrot.slane %v1703, %v2283
        %v2290 = vunpack.c.l.b16 %v1699
        %v2291 = vunpack.c.l.b16 %v1700
        %v2292 = vunpack.c.l.b16 %v1701
        %v2293 = vunpack.c.l.b16 %v1702
        %v2294 = vpack.c.b16 %v2291, %v2290
        %v2295 = vpack.c.b16 %v2293, %v2292
        %v2299 = vsel %vm1829, %v2276, 0
        %v2302 = vsel %vm1829, %v2277, 0
        %v2305 = vsel %vm1829, %v2278, 0
        %v2308 = vsel %vm1829, %v2279, 0
        %2310 = vmatprep.subr.bf16.mxu0 0
        %2311 = vmatpush1.bf16.msra.mxu0 0
        %2312 = vmatprep.subr.bf16.mxu0 0
        %2313 = vmatpush1.bf16.msra.mxu0 0
        %2314 = vmatprep.subr.bf16.mxu0 0
        %2315 = vmatpush1.bf16.msra.mxu0 0
        %2316 = vmatprep.subr.bf16.mxu0 0
        %2317 = vmatpush1.bf16.msra.mxu0 0
        %2318 = vmatprep.subr.bf16.mxu0 0
        %2319 = vmatpush1.bf16.msra.mxu0 0
        %2320 = vmatprep.subr.bf16.mxu0 0
        %2321 = vmatpush1.bf16.msra.mxu0 0
        %2322 = vmatprep.subr.bf16.mxu0 0
        %2323 = vmatpush1.bf16.msra.mxu0 %v2295
        %2324 = vmatprep.subr.bf16.mxu0 0
        %2325 = vmatpush1.bf16.msra.mxu0 %v2294
        %2326 = vmatprep.subr.bf16.mxu0 0
        %2327 = vmatpush2.bf16.msra.mxu0 0
        %2328 = vmatprep.subr.bf16.mxu0 0
        %2329 = vmatpush2.bf16.msra.mxu0 0
        %2330 = vmatprep.subr.bf16.mxu0 0
        %2331 = vmatpush2.bf16.msra.mxu0 0
        %2332 = vmatprep.subr.bf16.mxu0 0
        %2333 = vmatpush2.bf16.msra.mxu0 0
        %2334 = vmatprep.subr.bf16.mxu0 0
        %2335 = vmatpush2.bf16.msra.mxu0 0
        %2336 = vmatprep.subr.bf16.mxu0 0
        %2337 = vmatpush2.bf16.msra.mxu0 0
        %2338 = vmatprep.subr.bf16.mxu0 0
        %2339 = vmatpush2.bf16.msra.mxu0 0
        %2340 = vmatprep.subr.bf16.mxu0 0
        %2341 = vmatpush2.bf16.msra.mxu0 0
        %2342 = vmatprep.mubr.bf16.mxu0 0
        %2343 = vmatmul.mubr.bf16.gmra.mxu0 %v2299
        %v2344 = vpop.f32.mrf.mxu0
        %v2345 = vadd.f32 %v2284, %v2344
        %v2346 = vpop.f32.mrf.mxu0
        %v2347 = vpop.f32.mrf.mxu0
        %v2348 = vadd.f32 %v2284, %v2347
        %v2349 = vpop.f32.mrf.mxu0
        %2350 = vmatprep.mubr.bf16.mxu0 0
        %2351 = vmatmul.mubr.bf16.gmra.mxu0 %v2302
        %v2352 = vpop.f32.mrf.mxu0
        %v2353 = vadd.f32 %v2284, %v2352
        %v2354 = vpop.f32.mrf.mxu0
        %v2355 = vpop.f32.mrf.mxu0
        %v2356 = vadd.f32 %v2284, %v2355
        %v2357 = vpop.f32.mrf.mxu0
        %2358 = vmatprep.mubr.bf16.mxu0 0
        %2359 = vmatmul.mubr.bf16.gmra.mxu0 %v2305
        %v2360 = vpop.f32.mrf.mxu0
        %v2361 = vadd.f32 %v2284, %v2360
        %v2362 = vpop.f32.mrf.mxu0
        %v2363 = vpop.f32.mrf.mxu0
        %v2364 = vadd.f32 %v2284, %v2363
        %v2365 = vpop.f32.mrf.mxu0
        %2366 = vmatprep.mubr.bf16.mxu0 0
        %2367 = vmatmul.mubr.bf16.gmra.mxu0 %v2308
        %v2368 = vpop.f32.mrf.mxu0
        %v2369 = vadd.f32 %v2284, %v2368
        %v2370 = vpop.f32.mrf.mxu0
        %v2371 = vpop.f32.mrf.mxu0
        %v2372 = vadd.f32 %v2284, %v2371
        %v2373 = vpop.f32.mrf.mxu0
        %2374 = vdwg.mxu0
        %v2375 = vpack.c.bf16 %v2174, %v2171
        %v2376 = vpack.c.bf16 %v2249, %v2246
        %v2377 = vpack.c.bf16 %v2257, %v2254
        %v2378 = vpack.c.bf16 %v2265, %v2262
        %v2379 = vpack.c.bf16 %v2273, %v2270
        %v2381 = vsel %vm1829, %v2375, 0
        %v2384 = vsel %vm1829, %v2376, 0
        %v2387 = vsel %vm1829, %v2377, 0
        %v2390 = vsel %vm1829, %v2378, 0
        %v2393 = vsel %vm1829, %v2379, 0
        %2395 = vmatprep.subr.bf16.mxu0 0
        %2396 = vmatpush1.bf16.xpose.msra.mxu0 0
        %2397 = vmatprep.subr.bf16.mxu0 0
        %2398 = vmatpush1.bf16.xpose.msra.mxu0 0
        %2399 = vmatprep.subr.bf16.mxu0 0
        %2400 = vmatpush1.bf16.xpose.msra.mxu0 0
        %2401 = vmatprep.subr.bf16.mxu0 0
        %2402 = vmatpush1.bf16.xpose.msra.mxu0 0
        %2403 = vmatprep.subr.bf16.mxu0 0
        %2404 = vmatpush1.bf16.xpose.msra.mxu0 %v2393
        %2405 = vmatprep.subr.bf16.mxu0 0
        %2406 = vmatpush1.bf16.xpose.msra.mxu0 %v2390
        %2407 = vmatprep.subr.bf16.mxu0 0
        %2408 = vmatpush1.bf16.xpose.msra.mxu0 %v2387
        %2409 = vmatprep.subr.bf16.mxu0 0
        %2410 = vmatpush1.bf16.xpose.msra.mxu0 %v2384
        %2411 = vmatprep.subr.bf16.mxu0 0
        %2412 = vmatpush2.bf16.xpose.msra.mxu0 0
        %2413 = vmatprep.subr.bf16.mxu0 0
        %2414 = vmatpush2.bf16.xpose.msra.mxu0 0
        %2415 = vmatprep.subr.bf16.mxu0 0
        %2416 = vmatpush2.bf16.xpose.msra.mxu0 0
        %2417 = vmatprep.subr.bf16.mxu0 0
        %2418 = vmatpush2.bf16.xpose.msra.mxu0 0
        %2419 = vmatprep.subr.bf16.mxu0 0
        %2420 = vmatpush2.bf16.xpose.msra.mxu0 0
        %2421 = vmatprep.subr.bf16.mxu0 0
        %2422 = vmatpush2.bf16.xpose.msra.mxu0 0
        %2423 = vmatprep.subr.bf16.mxu0 0
        %2424 = vmatpush2.bf16.xpose.msra.mxu0 0
        %2425 = vmatprep.subr.bf16.mxu0 0
        %2426 = vmatpush2.bf16.xpose.msra.mxu0 0
        %2427 = vmatprep.mubr.bf16.mxu0 0
        %2428 = vmatmul.mubr.bf16.gmra.mxu0 %v2381
        %v2429 = vpop.f32.mrf.mxu0
        %v2430 = vadd.f32 0.0, %v2429
        %v2431 = vpop.f32.mrf.mxu0
        %v2432 = vpop.f32.mrf.mxu0
        %v2433 = vadd.f32 0.0, %v2432
        %v2434 = vpop.f32.mrf.mxu0
        %2435 = vdwg.mxu0
        %v2436 = vmul.f32 %v2430, 0.17677669
        %v2437 = vmul.f32 %v2433, 0.17677669
        %vm2438 = vcmask 523264
        %v2439 = vsel %vm2438, %v2436, -inf
        %2440 = vmax.xlane.f32.xlu0 %v2439
        %v2441 = vpop.xlane.xlu0 %2440
        %vm2442 = vcmask 518144
        %v2443 = vsel %vm2442, %v2437, -inf
        %2444 = vmax.xlane.f32.xlu0 %v2443
        %v2445 = vpop.xlane.xlu0 %2444
        %v2446 = vsub.f32 %v2436, %v2441
        %v2447 = vsub.f32 %v2437, %v2445
        %v2448 = vmul.f32 %v2446, 1.442695
        %v2449 = vpow.pop %v2448
        %v2450 = vmul.f32 %v2447, 1.442695
        %v2451 = vpow.pop %v2450
        %v2452 = vsel %vm2438, %v2449, 0.0
        %2453 = vadd.xlane.f32.xlu0 %v2452
        %v2454 = vpop.xlane.xlu0 %2453
        %v2455 = vsel %vm2442, %v2451, 0.0
        %2456 = vadd.xlane.f32.xlu0 %v2455
        %v2457 = vpop.xlane.xlu0 %2456
        %v2458 = vrcp.pop %v2454
        %v2459 = vrcp.pop %v2457
        %v2460 = vmul.f32 %v2449, %v2458
        %v2461 = vmul.f32 %v2451, %v2459
        %v2462 = vpack.c.bf16 %v2461, %v2460
        %v2463 = vpack.c.bf16 %v2348, %v2345
        %v2464 = vpack.c.bf16 %v2356, %v2353
        %v2465 = vpack.c.bf16 %v2364, %v2361
        %v2466 = vpack.c.bf16 %v2372, %v2369
        %v2468 = vsel %vm2438, %v2462, 0
        %2470 = vmatprep.subr.bf16.mxu0 0
        %2471 = vmatpush1.bf16.msra.mxu0 0
        %2472 = vmatprep.subr.bf16.mxu0 0
        %2473 = vmatpush1.bf16.msra.mxu0 0
        %2474 = vmatprep.subr.bf16.mxu0 0
        %2475 = vmatpush1.bf16.msra.mxu0 0
        %2476 = vmatprep.subr.bf16.mxu0 0
        %2477 = vmatpush1.bf16.msra.mxu0 0
        %2478 = vmatprep.subr.bf16.mxu0 0
        %2479 = vmatpush1.bf16.msra.mxu0 %v2466
        %2480 = vmatprep.subr.bf16.mxu0 0
        %2481 = vmatpush1.bf16.msra.mxu0 %v2465
        %2482 = vmatprep.subr.bf16.mxu0 0
        %2483 = vmatpush1.bf16.msra.mxu0 %v2464
        %2484 = vmatprep.subr.bf16.mxu0 0
        %2485 = vmatpush1.bf16.msra.mxu0 %v2463
        %2486 = vmatprep.subr.bf16.mxu0 0
        %2487 = vmatpush2.bf16.msra.mxu0 0
        %2488 = vmatprep.subr.bf16.mxu0 0
        %2489 = vmatpush2.bf16.msra.mxu0 0
        %2490 = vmatprep.subr.bf16.mxu0 0
        %2491 = vmatpush2.bf16.msra.mxu0 0
        %2492 = vmatprep.subr.bf16.mxu0 0
        %2493 = vmatpush2.bf16.msra.mxu0 0
        %2494 = vmatprep.subr.bf16.mxu0 0
        %2495 = vmatpush2.bf16.msra.mxu0 0
        %2496 = vmatprep.subr.bf16.mxu0 0
        %2497 = vmatpush2.bf16.msra.mxu0 0
        %2498 = vmatprep.subr.bf16.mxu0 0
        %2499 = vmatpush2.bf16.msra.mxu0 0
        %2500 = vmatprep.subr.bf16.mxu0 0
        %2501 = vmatpush2.bf16.msra.mxu0 0
        %2502 = vmatprep.mubr.bf16.mxu0 0
        %2503 = vmatmul.mubr.bf16.gmra.mxu0 %v2468
        %v2504 = vpop.f32.mrf.mxu0
        %v2505 = vadd.f32 0.0, %v2504
        %v2506 = vpop.f32.mrf.mxu0
        %v2507 = vpop.f32.mrf.mxu0
        %v2508 = vadd.f32 0.0, %v2507
        %v2509 = vpop.f32.mrf.mxu0
        %2510 = vdwg.mxu0
        %v2511 = vpack.c.bf16 %v2508, %v2505
        %v2513 = vlaneseq
        %v2514 = vshrl.u32 %v2513, 7
        %v2515 = vsub.s32 0, %v2514
        %v2516 = vrot.slane %v1708, %v2515
        %v2522 = vunpack.c.l.b16 %v1704
        %v2523 = vunpack.c.l.b16 %v1705
        %v2524 = vunpack.c.l.b16 %v1706
        %v2525 = vunpack.c.l.b16 %v1707
        %v2526 = vpack.c.b16 %v2523, %v2522
        %v2527 = vpack.c.b16 %v2525, %v2524
        %v2531 = vsel %vm1829, %v2511, 0
        %2533 = vmatprep.subr.bf16.mxu0 0
        %2534 = vmatpush1.bf16.msra.mxu0 0
        %2535 = vmatprep.subr.bf16.mxu0 0
        %2536 = vmatpush1.bf16.msra.mxu0 0
        %2537 = vmatprep.subr.bf16.mxu0 0
        %2538 = vmatpush1.bf16.msra.mxu0 0
        %2539 = vmatprep.subr.bf16.mxu0 0
        %2540 = vmatpush1.bf16.msra.mxu0 0
        %2541 = vmatprep.subr.bf16.mxu0 0
        %2542 = vmatpush1.bf16.msra.mxu0 0
        %2543 = vmatprep.subr.bf16.mxu0 0
        %2544 = vmatpush1.bf16.msra.mxu0 0
        %2545 = vmatprep.subr.bf16.mxu0 0
        %2546 = vmatpush1.bf16.msra.mxu0 %v2527
        %2547 = vmatprep.subr.bf16.mxu0 0
        %2548 = vmatpush1.bf16.msra.mxu0 %v2526
        %2549 = vmatprep.subr.bf16.mxu0 0
        %2550 = vmatpush2.bf16.msra.mxu0 0
        %2551 = vmatprep.subr.bf16.mxu0 0
        %2552 = vmatpush2.bf16.msra.mxu0 0
        %2553 = vmatprep.subr.bf16.mxu0 0
        %2554 = vmatpush2.bf16.msra.mxu0 0
        %2555 = vmatprep.subr.bf16.mxu0 0
        %2556 = vmatpush2.bf16.msra.mxu0 0
        %2557 = vmatprep.subr.bf16.mxu0 0
        %2558 = vmatpush2.bf16.msra.mxu0 0
        %2559 = vmatprep.subr.bf16.mxu0 0
        %2560 = vmatpush2.bf16.msra.mxu0 0
        %2561 = vmatprep.subr.bf16.mxu0 0
        %2562 = vmatpush2.bf16.msra.mxu0 0
        %2563 = vmatprep.subr.bf16.mxu0 0
        %2564 = vmatpush2.bf16.msra.mxu0 0
        %2565 = vmatprep.mubr.bf16.mxu0 0
        %2566 = vmatmul.mubr.bf16.gmra.mxu0 %v2531
        %v2567 = vpop.f32.mrf.mxu0
        %v2568 = vadd.f32 %v2516, %v2567
        %v2569 = vpop.f32.mrf.mxu0
        %v2570 = vpop.f32.mrf.mxu0
        %v2571 = vadd.f32 %v2516, %v2570
        %v2572 = vpop.f32.mrf.mxu0
        %2573 = vdwg.mxu0
        %v2574 = vadd.f32 %v2112, %v2568
        %v2575 = vadd.f32 %v2113, %v2571
        %v2576 = vsel %vm1829, %v2574, 0.0
        %2577 = vadd.xlane.f32.xlu0 %v2576
        %v2578 = vpop.xlane.xlu0 %2577
        %v2579 = vsel %vm2073, %v2575, 0.0
        %2580 = vadd.xlane.f32.xlu0 %v2579
        %v2581 = vpop.xlane.xlu0 %2580
        %v2582 = vmul.f32 %v2578, %v2077
        %v2583 = vmul.f32 %v2581, %v2077
        %v2584 = vsub.f32 %v2574, %v2582
        %v2585 = vsub.f32 %v2575, %v2583
        %v2586 = vmul.f32 %v2584, %v2584
        %v2587 = vmul.f32 %v2585, %v2585
        %v2588 = vsel %vm1829, %v2586, 0.0
        %2589 = vadd.xlane.f32.xlu0 %v2588
        %v2590 = vpop.xlane.xlu0 %2589
        %v2591 = vsel %vm2073, %v2587, 0.0
        %2592 = vadd.xlane.f32.xlu0 %v2591
        %v2593 = vpop.xlane.xlu0 %2592
        %v2594 = vmul.f32 %v2590, %v2077
        %v2595 = vmul.f32 %v2593, %v2077
        %v2596 = vadd.f32 %v2594, 1e-06
        %v2597 = vadd.f32 %v2595, 1e-06
        %v2598 = vrsqrt.pop %v2596
        %v2599 = vrsqrt.pop %v2597
        %v2600 = vmul.f32 %v2584, %v2598
        %v2601 = vmul.f32 %v2585, %v2599
        %v2603 = vlaneseq
        %v2604 = vshrl.u32 %v2603, 7
        %v2605 = vsub.s32 0, %v2604
        %v2606 = vrot.slane %v1709, %v2605
        %v2608 = vmul.f32 %v2600, %v2606
        %v2609 = vmul.f32 %v2601, %v2606
        %v2611 = vlaneseq
        %v2612 = vshrl.u32 %v2611, 7
        %v2613 = vsub.s32 0, %v2612
        %v2614 = vrot.slane %v1710, %v2613
        %v2616 = vadd.f32 %v2608, %v2614
        %v2617 = vadd.f32 %v2609, %v2614
        %v2618 = vpack.c.bf16 %v2617, %v2616
        %v2620 = vlaneseq
        %v2621 = vshrl.u32 %v2620, 7
        %v2622 = vsub.s32 0, %v2621
        %v2623 = vrot.slane %v1715, %v2622
        %v2629 = vunpack.c.l.b16 %v1711
        %v2630 = vunpack.c.l.b16 %v1712
        %v2631 = vunpack.c.l.b16 %v1713
        %v2632 = vunpack.c.l.b16 %v1714
        %v2633 = vpack.c.b16 %v2630, %v2629
        %v2634 = vpack.c.b16 %v2632, %v2631
        %v2638 = vsel %vm1829, %v2618, 0
        %2640 = vmatprep.subr.bf16.mxu0 0
        %2641 = vmatpush1.bf16.msra.mxu0 0
        %2642 = vmatprep.subr.bf16.mxu0 0
        %2643 = vmatpush1.bf16.msra.mxu0 0
        %2644 = vmatprep.subr.bf16.mxu0 0
        %2645 = vmatpush1.bf16.msra.mxu0 0
        %2646 = vmatprep.subr.bf16.mxu0 0
        %2647 = vmatpush1.bf16.msra.mxu0 0
        %2648 = vmatprep.subr.bf16.mxu0 0
        %2649 = vmatpush1.bf16.msra.mxu0 0
        %2650 = vmatprep.subr.bf16.mxu0 0
        %2651 = vmatpush1.bf16.msra.mxu0 0
        %2652 = vmatprep.subr.bf16.mxu0 0
        %2653 = vmatpush1.bf16.msra.mxu0 %v2634
        %2654 = vmatprep.subr.bf16.mxu0 0
        %2655 = vmatpush1.bf16.msra.mxu0 %v2633
        %2656 = vmatprep.subr.bf16.mxu0 0
        %2657 = vmatpush2.bf16.msra.mxu0 0
        %2658 = vmatprep.subr.bf16.mxu0 0
        %2659 = vmatpush2.bf16.msra.mxu0 0
        %2660 = vmatprep.subr.bf16.mxu0 0
        %2661 = vmatpush2.bf16.msra.mxu0 0
        %2662 = vmatprep.subr.bf16.mxu0 0
        %2663 = vmatpush2.bf16.msra.mxu0 0
        %2664 = vmatprep.subr.bf16.mxu0 0
        %2665 = vmatpush2.bf16.msra.mxu0 0
        %2666 = vmatprep.subr.bf16.mxu0 0
        %2667 = vmatpush2.bf16.msra.mxu0 0
        %2668 = vmatprep.subr.bf16.mxu0 0
        %2669 = vmatpush2.bf16.msra.mxu0 0
        %2670 = vmatprep.subr.bf16.mxu0 0
        %2671 = vmatpush2.bf16.msra.mxu0 0
        %2672 = vmatprep.mubr.bf16.mxu0 0
        %2673 = vmatmul.mubr.bf16.gmra.mxu0 %v2638
        %v2674 = vpop.f32.mrf.mxu0
        %v2675 = vadd.f32 %v2623, %v2674
        %v2676 = vpop.f32.mrf.mxu0
        %v2677 = vpop.f32.mrf.mxu0
        %v2678 = vadd.f32 %v2623, %v2677
        %v2679 = vpop.f32.mrf.mxu0
        %2680 = vdwg.mxu0
        %v2681 = vmax.f32 %v2675, 0.0
        %v2682 = vmax.f32 %v2678, 0.0
        %v2683 = vpack.c.bf16 %v2682, %v2681
        %v2685 = vlaneseq
        %v2686 = vshrl.u32 %v2685, 7
        %v2687 = vsub.s32 0, %v2686
        %v2688 = vrot.slane %v1724, %v2687
        %v2698 = vunpack.c.l.b16 %v1716
        %v2699 = vunpack.c.l.b16 %v1717
        %v2700 = vunpack.c.l.b16 %v1718
        %v2701 = vunpack.c.l.b16 %v1719
        %v2702 = vunpack.c.l.b16 %v1720
        %v2703 = vunpack.c.l.b16 %v1721
        %v2704 = vunpack.c.l.b16 %v1722
        %v2705 = vunpack.c.l.b16 %v1723
        %v2706 = vpack.c.b16 %v2699, %v2698
        %v2707 = vpack.c.b16 %v2701, %v2700
        %v2708 = vpack.c.b16 %v2703, %v2702
        %v2709 = vpack.c.b16 %v2705, %v2704
        %v2715 = vsel %vm2438, %v2683, 0
        %2717 = vmatprep.subr.bf16.mxu0 0
        %2718 = vmatpush1.bf16.msra.mxu0 0
        %2719 = vmatprep.subr.bf16.mxu0 0
        %2720 = vmatpush1.bf16.msra.mxu0 0
        %2721 = vmatprep.subr.bf16.mxu0 0
        %2722 = vmatpush1.bf16.msra.mxu0 0
        %2723 = vmatprep.subr.bf16.mxu0 0
        %2724 = vmatpush1.bf16.msra.mxu0 0
        %2725 = vmatprep.subr.bf16.mxu0 0
        %2726 = vmatpush1.bf16.msra.mxu0 %v2709
        %2727 = vmatprep.subr.bf16.mxu0 0
        %2728 = vmatpush1.bf16.msra.mxu0 %v2708
        %2729 = vmatprep.subr.bf16.mxu0 0
        %2730 = vmatpush1.bf16.msra.mxu0 %v2707
        %2731 = vmatprep.subr.bf16.mxu0 0
        %2732 = vmatpush1.bf16.msra.mxu0 %v2706
        %2733 = vmatprep.subr.bf16.mxu0 0
        %2734 = vmatpush2.bf16.msra.mxu0 0
        %2735 = vmatprep.subr.bf16.mxu0 0
        %2736 = vmatpush2.bf16.msra.mxu0 0
        %2737 = vmatprep.subr.bf16.mxu0 0
        %2738 = vmatpush2.bf16.msra.mxu0 0
        %2739 = vmatprep.subr.bf16.mxu0 0
        %2740 = vmatpush2.bf16.msra.mxu0 0
        %2741 = vmatprep.subr.bf16.mxu0 0
        %2742 = vmatpush2.bf16.msra.mxu0 0
        %2743 = vmatprep.subr.bf16.mxu0 0
        %2744 = vmatpush2.bf16.msra.mxu0 0
        %2745 = vmatprep.subr.bf16.mxu0 0
        %2746 = vmatpush2.bf16.msra.mxu0 0
        %2747 = vmatprep.subr.bf16.mxu0 0
        %2748 = vmatpush2.bf16.msra.mxu0 0
        %2749 = vmatprep.mubr.bf16.mxu0 0
        %2750 = vmatmul.mubr.bf16.gmra.mxu0 %v2715
        %v2751 = vpop.f32.mrf.mxu0
        %v2752 = vadd.f32 %v2688, %v2751
        %v2753 = vpop.f32.mrf.mxu0
        %v2754 = vpop.f32.mrf.mxu0
        %v2755 = vadd.f32 %v2688, %v2754
        %v2756 = vpop.f32.mrf.mxu0
        %2757 = vdwg.mxu0
        %v2758 = vadd.f32 %v2616, %v2752
        %v2759 = vadd.f32 %v2617, %v2755
        %v2760 = vsel %vm1829, %v2758, 0.0
        %2761 = vadd.xlane.f32.xlu0 %v2760
        %v2762 = vpop.xlane.xlu0 %2761
        %v2763 = vsel %vm2073, %v2759, 0.0
        %2764 = vadd.xlane.f32.xlu0 %v2763
        %v2765 = vpop.xlane.xlu0 %2764
        %v2766 = vmul.f32 %v2762, %v2077
        %v2767 = vmul.f32 %v2765, %v2077
        %v2768 = vsub.f32 %v2758, %v2766
        %v2769 = vsub.f32 %v2759, %v2767
        %v2770 = vmul.f32 %v2768, %v2768
        %v2771 = vmul.f32 %v2769, %v2769
        %v2772 = vsel %vm1829, %v2770, 0.0
        %2773 = vadd.xlane.f32.xlu0 %v2772
        %v2774 = vpop.xlane.xlu0 %2773
        %v2775 = vsel %vm2073, %v2771, 0.0
        %2776 = vadd.xlane.f32.xlu0 %v2775
        %v2777 = vpop.xlane.xlu0 %2776
        %v2778 = vmul.f32 %v2774, %v2077
        %v2779 = vmul.f32 %v2777, %v2077
        %v2780 = vadd.f32 %v2778, 1e-06
        %v2781 = vadd.f32 %v2779, 1e-06
        %v2782 = vrsqrt.pop %v2780
        %v2783 = vrsqrt.pop %v2781
        %v2784 = vmul.f32 %v2768, %v2782
        %v2785 = vmul.f32 %v2769, %v2783
        %v2787 = vlaneseq
        %v2788 = vshrl.u32 %v2787, 7
        %v2789 = vsub.s32 0, %v2788
        %v2790 = vrot.slane %v1725, %v2789
        %v2792 = vmul.f32 %v2784, %v2790
        %v2793 = vmul.f32 %v2785, %v2790
        %v2795 = vlaneseq
        %v2796 = vshrl.u32 %v2795, 7
        %v2797 = vsub.s32 0, %v2796
        %v2798 = vrot.slane %v1726, %v2797
        %v2800 = vadd.f32 %v2792, %v2798
        %v2801 = vadd.f32 %v2793, %v2798
        %v2803 = vlaneseq
        %v2804 = vshrl.u32 %v2803, 7
        %v2805 = vsub.s32 0, %v2804
        %v2806 = vrot.slane %v1731, %v2805
        %v2812 = vunpack.c.l.b16 %v1727
        %v2813 = vunpack.c.l.b16 %v1728
        %v2814 = vunpack.c.l.b16 %v1729
        %v2815 = vunpack.c.l.b16 %v1730
        %v2816 = vpack.c.b16 %v2813, %v2812
        %v2817 = vpack.c.b16 %v2815, %v2814
        %2820 = vmatprep.subr.bf16.mxu0 0
        %2821 = vmatpush1.bf16.msra.mxu0 0
        %2822 = vmatprep.subr.bf16.mxu0 0
        %2823 = vmatpush1.bf16.msra.mxu0 0
        %2824 = vmatprep.subr.bf16.mxu0 0
        %2825 = vmatpush1.bf16.msra.mxu0 0
        %2826 = vmatprep.subr.bf16.mxu0 0
        %2827 = vmatpush1.bf16.msra.mxu0 0
        %2828 = vmatprep.subr.bf16.mxu0 0
        %2829 = vmatpush1.bf16.msra.mxu0 0
        %2830 = vmatprep.subr.bf16.mxu0 0
        %2831 = vmatpush1.bf16.msra.mxu0 0
        %2832 = vmatprep.subr.bf16.mxu0 0
        %2833 = vmatpush1.bf16.msra.mxu0 %v2817
        %2834 = vmatprep.subr.bf16.mxu0 0
        %2835 = vmatpush1.bf16.msra.mxu0 %v2816
        %2836 = vmatprep.subr.bf16.mxu0 0
        %2837 = vmatpush2.bf16.msra.mxu0 0
        %2838 = vmatprep.subr.bf16.mxu0 0
        %2839 = vmatpush2.bf16.msra.mxu0 0
        %2840 = vmatprep.subr.bf16.mxu0 0
        %2841 = vmatpush2.bf16.msra.mxu0 0
        %2842 = vmatprep.subr.bf16.mxu0 0
        %2843 = vmatpush2.bf16.msra.mxu0 0
        %2844 = vmatprep.subr.bf16.mxu0 0
        %2845 = vmatpush2.bf16.msra.mxu0 0
        %2846 = vmatprep.subr.bf16.mxu0 0
        %2847 = vmatpush2.bf16.msra.mxu0 0
        %2848 = vmatprep.subr.bf16.mxu0 0
        %2849 = vmatpush2.bf16.msra.mxu0 0
        %2850 = vmatprep.subr.bf16.mxu0 0
        %2851 = vmatpush2.bf16.msra.mxu0 0
        %2852 = vmatprep.mubr.bf16.mxu0 0
        %2853 = vmatmul.mubr.bf16.gmra.mxu0 %v2200
        %v2854 = vpop.f32.mrf.mxu0
        %v2855 = vadd.f32 %v2806, %v2854
        %v2856 = vpop.f32.mrf.mxu0
        %v2857 = vpop.f32.mrf.mxu0
        %v2858 = vadd.f32 %v2806, %v2857
        %v2859 = vpop.f32.mrf.mxu0
        %2860 = vmatprep.mubr.bf16.mxu0 0
        %2861 = vmatmul.mubr.bf16.gmra.mxu0 %v2203
        %v2862 = vpop.f32.mrf.mxu0
        %v2863 = vadd.f32 %v2806, %v2862
        %v2864 = vpop.f32.mrf.mxu0
        %v2865 = vpop.f32.mrf.mxu0
        %v2866 = vadd.f32 %v2806, %v2865
        %v2867 = vpop.f32.mrf.mxu0
        %2868 = vmatprep.mubr.bf16.mxu0 0
        %2869 = vmatmul.mubr.bf16.gmra.mxu0 %v2206
        %v2870 = vpop.f32.mrf.mxu0
        %v2871 = vadd.f32 %v2806, %v2870
        %v2872 = vpop.f32.mrf.mxu0
        %v2873 = vpop.f32.mrf.mxu0
        %v2874 = vadd.f32 %v2806, %v2873
        %v2875 = vpop.f32.mrf.mxu0
        %2876 = vmatprep.mubr.bf16.mxu0 0
        %2877 = vmatmul.mubr.bf16.gmra.mxu0 %v2209
        %v2878 = vpop.f32.mrf.mxu0
        %v2879 = vadd.f32 %v2806, %v2878
        %v2880 = vpop.f32.mrf.mxu0
        %v2881 = vpop.f32.mrf.mxu0
        %v2882 = vadd.f32 %v2806, %v2881
        %v2883 = vpop.f32.mrf.mxu0
        %2884 = vdwg.mxu0
        %v2885 = vpack.c.bf16 %v2801, %v2800
        %v2887 = vlaneseq
        %v2888 = vshrl.u32 %v2887, 7
        %v2889 = vsub.s32 0, %v2888
        %v2890 = vrot.slane %v1736, %v2889
        %v2896 = vunpack.c.l.b16 %v1732
        %v2897 = vunpack.c.l.b16 %v1733
        %v2898 = vunpack.c.l.b16 %v1734
        %v2899 = vunpack.c.l.b16 %v1735
        %v2900 = vpack.c.b16 %v2897, %v2896
        %v2901 = vpack.c.b16 %v2899, %v2898
        %v2905 = vsel %vm1829, %v2885, 0
        %2907 = vmatprep.subr.bf16.mxu0 0
        %2908 = vmatpush1.bf16.msra.mxu0 0
        %2909 = vmatprep.subr.bf16.mxu0 0
        %2910 = vmatpush1.bf16.msra.mxu0 0
        %2911 = vmatprep.subr.bf16.mxu0 0
        %2912 = vmatpush1.bf16.msra.mxu0 0
        %2913 = vmatprep.subr.bf16.mxu0 0
        %2914 = vmatpush1.bf16.msra.mxu0 0
        %2915 = vmatprep.subr.bf16.mxu0 0
        %2916 = vmatpush1.bf16.msra.mxu0 0
        %2917 = vmatprep.subr.bf16.mxu0 0
        %2918 = vmatpush1.bf16.msra.mxu0 0
        %2919 = vmatprep.subr.bf16.mxu0 0
        %2920 = vmatpush1.bf16.msra.mxu0 %v2901
        %2921 = vmatprep.subr.bf16.mxu0 0
        %2922 = vmatpush1.bf16.msra.mxu0 %v2900
        %2923 = vmatprep.subr.bf16.mxu0 0
        %2924 = vmatpush2.bf16.msra.mxu0 0
        %2925 = vmatprep.subr.bf16.mxu0 0
        %2926 = vmatpush2.bf16.msra.mxu0 0
        %2927 = vmatprep.subr.bf16.mxu0 0
        %2928 = vmatpush2.bf16.msra.mxu0 0
        %2929 = vmatprep.subr.bf16.mxu0 0
        %2930 = vmatpush2.bf16.msra.mxu0 0
        %2931 = vmatprep.subr.bf16.mxu0 0
        %2932 = vmatpush2.bf16.msra.mxu0 0
        %2933 = vmatprep.subr.bf16.mxu0 0
        %2934 = vmatpush2.bf16.msra.mxu0 0
        %2935 = vmatprep.subr.bf16.mxu0 0
        %2936 = vmatpush2.bf16.msra.mxu0 0
        %2937 = vmatprep.subr.bf16.mxu0 0
        %2938 = vmatpush2.bf16.msra.mxu0 0
        %2939 = vmatprep.mubr.bf16.mxu0 0
        %2940 = vmatmul.mubr.bf16.gmra.mxu0 %v2905
        %v2941 = vpop.f32.mrf.mxu0
        %v2942 = vadd.f32 %v2890, %v2941
        %v2943 = vpop.f32.mrf.mxu0
        %v2944 = vpop.f32.mrf.mxu0
        %v2945 = vadd.f32 %v2890, %v2944
        %v2946 = vpop.f32.mrf.mxu0
        %2947 = vdwg.mxu0
        %v2948 = vpack.c.bf16 %v2858, %v2855
        %v2949 = vpack.c.bf16 %v2866, %v2863
        %v2950 = vpack.c.bf16 %v2874, %v2871
        %v2951 = vpack.c.bf16 %v2882, %v2879
        %v2952 = vpack.c.bf16 %v2945, %v2942
        %v2954 = vsel %vm1829, %v2948, 0
        %v2957 = vsel %vm1829, %v2949, 0
        %v2960 = vsel %vm1829, %v2950, 0
        %v2963 = vsel %vm1829, %v2951, 0
        %v2966 = vsel %vm1829, %v2952, 0
        %2968 = vmatprep.subr.bf16.mxu0 0
        %2969 = vmatpush1.bf16.xpose.msra.mxu0 0
        %2970 = vmatprep.subr.bf16.mxu0 0
        %2971 = vmatpush1.bf16.xpose.msra.mxu0 0
        %2972 = vmatprep.subr.bf16.mxu0 0
        %2973 = vmatpush1.bf16.xpose.msra.mxu0 0
        %2974 = vmatprep.subr.bf16.mxu0 0
        %2975 = vmatpush1.bf16.xpose.msra.mxu0 0
        %2976 = vmatprep.subr.bf16.mxu0 0
        %2977 = vmatpush1.bf16.xpose.msra.mxu0 0
        %2978 = vmatprep.subr.bf16.mxu0 0
        %2979 = vmatpush1.bf16.xpose.msra.mxu0 0
        %2980 = vmatprep.subr.bf16.mxu0 0
        %2981 = vmatpush1.bf16.xpose.msra.mxu0 0
        %2982 = vmatprep.subr.bf16.mxu0 0
        %2983 = vmatpush1.bf16.xpose.msra.mxu0 %v2966
        %2984 = vmatprep.subr.bf16.mxu0 0
        %2985 = vmatpush2.bf16.xpose.msra.mxu0 0
        %2986 = vmatprep.subr.bf16.mxu0 0
        %2987 = vmatpush2.bf16.xpose.msra.mxu0 0
        %2988 = vmatprep.subr.bf16.mxu0 0
        %2989 = vmatpush2.bf16.xpose.msra.mxu0 0
        %2990 = vmatprep.subr.bf16.mxu0 0
        %2991 = vmatpush2.bf16.xpose.msra.mxu0 0
        %2992 = vmatprep.subr.bf16.mxu0 0
        %2993 = vmatpush2.bf16.xpose.msra.mxu0 0
        %2994 = vmatprep.subr.bf16.mxu0 0
        %2995 = vmatpush2.bf16.xpose.msra.mxu0 0
        %2996 = vmatprep.subr.bf16.mxu0 0
        %2997 = vmatpush2.bf16.xpose.msra.mxu0 0
        %2998 = vmatprep.subr.bf16.mxu0 0
        %2999 = vmatpush2.bf16.xpose.msra.mxu0 0
        %3000 = vmatprep.mubr.bf16.mxu0 0
        %3001 = vmatmul.mubr.bf16.gmra.mxu0 %v2954
        %v3002 = vpop.f32.mrf.mxu0
        %v3003 = vadd.f32 0.0, %v3002
        %v3004 = vpop.f32.mrf.mxu0
        %v3005 = vpop.f32.mrf.mxu0
        %v3006 = vadd.f32 0.0, %v3005
        %v3007 = vpop.f32.mrf.mxu0
        %3008 = vmatprep.mubr.bf16.mxu0 0
        %3009 = vmatmul.mubr.bf16.gmra.mxu0 %v2957
        %v3010 = vpop.f32.mrf.mxu0
        %v3011 = vadd.f32 0.0, %v3010
        %v3012 = vpop.f32.mrf.mxu0
        %v3013 = vpop.f32.mrf.mxu0
        %v3014 = vadd.f32 0.0, %v3013
        %v3015 = vpop.f32.mrf.mxu0
        %3016 = vmatprep.mubr.bf16.mxu0 0
        %3017 = vmatmul.mubr.bf16.gmra.mxu0 %v2960
        %v3018 = vpop.f32.mrf.mxu0
        %v3019 = vadd.f32 0.0, %v3018
        %v3020 = vpop.f32.mrf.mxu0
        %v3021 = vpop.f32.mrf.mxu0
        %v3022 = vadd.f32 0.0, %v3021
        %v3023 = vpop.f32.mrf.mxu0
        %3024 = vmatprep.mubr.bf16.mxu0 0
        %3025 = vmatmul.mubr.bf16.gmra.mxu0 %v2963
        %v3026 = vpop.f32.mrf.mxu0
        %v3027 = vadd.f32 0.0, %v3026
        %v3028 = vpop.f32.mrf.mxu0
        %v3029 = vpop.f32.mrf.mxu0
        %v3030 = vadd.f32 0.0, %v3029
        %v3031 = vpop.f32.mrf.mxu0
        %3032 = vdwg.mxu0
        %v3033 = vmul.f32 %v3003, 0.17677669
        %v3034 = vmul.f32 %v3006, 0.17677669
        %v3035 = vmul.f32 %v3011, 0.17677669
        %v3036 = vmul.f32 %v3014, 0.17677669
        %v3037 = vmul.f32 %v3019, 0.17677669
        %v3038 = vmul.f32 %v3022, 0.17677669
        %v3039 = vmul.f32 %v3027, 0.17677669
        %v3040 = vmul.f32 %v3030, 0.17677669
        %v3041 = vsel %vm1927, %v3033, -inf
        %3042 = vmax.xlane.f32.xlu0 %v3041
        %v3043 = vpop.xlane.xlu0 %3042
        %v3044 = vsel %vm1927, %v3034, -inf
        %3045 = vmax.xlane.f32.xlu0 %v3044
        %v3046 = vpop.xlane.xlu0 %3045
        %v3047 = vsel %vm1927, %v3035, -inf
        %3048 = vmax.xlane.f32.xlu0 %v3047
        %v3049 = vpop.xlane.xlu0 %3048
        %v3050 = vsel %vm1927, %v3036, -inf
        %3051 = vmax.xlane.f32.xlu0 %v3050
        %v3052 = vpop.xlane.xlu0 %3051
        %v3053 = vsel %vm1927, %v3037, -inf
        %3054 = vmax.xlane.f32.xlu0 %v3053
        %v3055 = vpop.xlane.xlu0 %3054
        %v3056 = vsel %vm1927, %v3038, -inf
        %3057 = vmax.xlane.f32.xlu0 %v3056
        %v3058 = vpop.xlane.xlu0 %3057
        %v3059 = vsel %vm1927, %v3039, -inf
        %3060 = vmax.xlane.f32.xlu0 %v3059
        %v3061 = vpop.xlane.xlu0 %3060
        %v3062 = vsel %vm1927, %v3040, -inf
        %3063 = vmax.xlane.f32.xlu0 %v3062
        %v3064 = vpop.xlane.xlu0 %3063
        %v3065 = vsub.f32 %v3033, %v3043
        %v3066 = vsub.f32 %v3034, %v3046
        %v3067 = vsub.f32 %v3035, %v3049
        %v3068 = vsub.f32 %v3036, %v3052
        %v3069 = vsub.f32 %v3037, %v3055
        %v3070 = vsub.f32 %v3038, %v3058
        %v3071 = vsub.f32 %v3039, %v3061
        %v3072 = vsub.f32 %v3040, %v3064
        %v3073 = vmul.f32 %v3065, 1.442695
        %v3074 = vpow.pop %v3073
        %v3075 = vmul.f32 %v3066, 1.442695
        %v3076 = vpow.pop %v3075
        %v3077 = vmul.f32 %v3067, 1.442695
        %v3078 = vpow.pop %v3077
        %v3079 = vmul.f32 %v3068, 1.442695
        %v3080 = vpow.pop %v3079
        %v3081 = vmul.f32 %v3069, 1.442695
        %v3082 = vpow.pop %v3081
        %v3083 = vmul.f32 %v3070, 1.442695
        %v3084 = vpow.pop %v3083
        %v3085 = vmul.f32 %v3071, 1.442695
        %v3086 = vpow.pop %v3085
        %v3087 = vmul.f32 %v3072, 1.442695
        %v3088 = vpow.pop %v3087
        %v3089 = vsel %vm1927, %v3074, 0.0
        %3090 = vadd.xlane.f32.xlu0 %v3089
        %v3091 = vpop.xlane.xlu0 %3090
        %v3092 = vsel %vm1927, %v3076, 0.0
        %3093 = vadd.xlane.f32.xlu0 %v3092
        %v3094 = vpop.xlane.xlu0 %3093
        %v3095 = vsel %vm1927, %v3078, 0.0
        %3096 = vadd.xlane.f32.xlu0 %v3095
        %v3097 = vpop.xlane.xlu0 %3096
        %v3098 = vsel %vm1927, %v3080, 0.0
        %3099 = vadd.xlane.f32.xlu0 %v3098
        %v3100 = vpop.xlane.xlu0 %3099
        %v3101 = vsel %vm1927, %v3082, 0.0
        %3102 = vadd.xlane.f32.xlu0 %v3101
        %v3103 = vpop.xlane.xlu0 %3102
        %v3104 = vsel %vm1927, %v3084, 0.0
        %3105 = vadd.xlane.f32.xlu0 %v3104
        %v3106 = vpop.xlane.xlu0 %3105
        %v3107 = vsel %vm1927, %v3086, 0.0
        %3108 = vadd.xlane.f32.xlu0 %v3107
        %v3109 = vpop.xlane.xlu0 %3108
        %v3110 = vsel %vm1927, %v3088, 0.0
        %3111 = vadd.xlane.f32.xlu0 %v3110
        %v3112 = vpop.xlane.xlu0 %3111
        %v3113 = vrcp.pop %v3091
        %v3114 = vrcp.pop %v3094
        %v3115 = vrcp.pop %v3097
        %v3116 = vrcp.pop %v3100
        %v3117 = vrcp.pop %v3103
        %v3118 = vrcp.pop %v3106
        %v3119 = vrcp.pop %v3109
        %v3120 = vrcp.pop %v3112
        %v3121 = vmul.f32 %v3074, %v3113
        %v3122 = vmul.f32 %v3076, %v3114
        %v3123 = vmul.f32 %v3078, %v3115
        %v3124 = vmul.f32 %v3080, %v3116
        %v3125 = vmul.f32 %v3082, %v3117
        %v3126 = vmul.f32 %v3084, %v3118
        %v3127 = vmul.f32 %v3086, %v3119
        %v3128 = vmul.f32 %v3088, %v3120
        %v3129 = vpack.c.bf16 %v3122, %v3121
        %v3130 = vpack.c.bf16 %v3124, %v3123
        %v3131 = vpack.c.bf16 %v3126, %v3125
        %v3132 = vpack.c.bf16 %v3128, %v3127
        %3134 = vrot.lane.b32.xlu0 %v2952, 96
        %v3135 = vpop.permute.xlu0 %3134
        %v3137 = vsel %vm1927, %v3129, 0
        %v3140 = vsel %vm1927, %v3130, 0
        %v3143 = vsel %vm1927, %v3131, 0
        %v3146 = vsel %vm1927, %v3132, 0
        %v3149 = vand.u32 %v3135, %v1960
        %3151 = vmatprep.subr.bf16.mxu0 0
        %3152 = vmatpush1.bf16.msra.mxu0 0
        %3153 = vmatprep.subr.bf16.mxu0 0
        %3154 = vmatpush1.bf16.msra.mxu0 0
        %3155 = vmatprep.subr.bf16.mxu0 0
        %3156 = vmatpush1.bf16.msra.mxu0 0
        %3157 = vmatprep.subr.bf16.mxu0 0
        %3158 = vmatpush1.bf16.msra.mxu0 0
        %3159 = vmatprep.subr.bf16.mxu0 0
        %3160 = vmatpush1.bf16.msra.mxu0 0
        %3161 = vmatprep.subr.bf16.mxu0 0
        %3162 = vmatpush1.bf16.msra.mxu0 0
        %3163 = vmatprep.subr.bf16.mxu0 0
        %3164 = vmatpush1.bf16.msra.mxu0 0
        %3165 = vmatprep.subr.bf16.mxu0 0
        %3166 = vmatpush1.bf16.msra.mxu0 %v3149
        %3167 = vmatprep.subr.bf16.mxu0 0
        %3168 = vmatpush2.bf16.msra.mxu0 0
        %3169 = vmatprep.subr.bf16.mxu0 0
        %3170 = vmatpush2.bf16.msra.mxu0 0
        %3171 = vmatprep.subr.bf16.mxu0 0
        %3172 = vmatpush2.bf16.msra.mxu0 0
        %3173 = vmatprep.subr.bf16.mxu0 0
        %3174 = vmatpush2.bf16.msra.mxu0 0
        %3175 = vmatprep.subr.bf16.mxu0 0
        %3176 = vmatpush2.bf16.msra.mxu0 0
        %3177 = vmatprep.subr.bf16.mxu0 0
        %3178 = vmatpush2.bf16.msra.mxu0 0
        %3179 = vmatprep.subr.bf16.mxu0 0
        %3180 = vmatpush2.bf16.msra.mxu0 0
        %3181 = vmatprep.subr.bf16.mxu0 0
        %3182 = vmatpush2.bf16.msra.mxu0 0
        %3183 = vmatprep.mubr.bf16.mxu0 0
        %3184 = vmatmul.mubr.bf16.gmra.mxu0 %v3137
        %v3185 = vpop.f32.mrf.mxu0
        %v3186 = vadd.f32 0.0, %v3185
        %v3187 = vpop.f32.mrf.mxu0
        %v3188 = vpop.f32.mrf.mxu0
        %v3189 = vadd.f32 0.0, %v3188
        %v3190 = vpop.f32.mrf.mxu0
        %3191 = vmatprep.mubr.bf16.mxu0 0
        %3192 = vmatmul.mubr.bf16.gmra.mxu0 %v3140
        %v3193 = vpop.f32.mrf.mxu0
        %v3194 = vadd.f32 0.0, %v3193
        %v3195 = vpop.f32.mrf.mxu0
        %v3196 = vpop.f32.mrf.mxu0
        %v3197 = vadd.f32 0.0, %v3196
        %v3198 = vpop.f32.mrf.mxu0
        %3199 = vmatprep.mubr.bf16.mxu0 0
        %3200 = vmatmul.mubr.bf16.gmra.mxu0 %v3143
        %v3201 = vpop.f32.mrf.mxu0
        %v3202 = vadd.f32 0.0, %v3201
        %v3203 = vpop.f32.mrf.mxu0
        %v3204 = vpop.f32.mrf.mxu0
        %v3205 = vadd.f32 0.0, %v3204
        %v3206 = vpop.f32.mrf.mxu0
        %3207 = vmatprep.mubr.bf16.mxu0 0
        %3208 = vmatmul.mubr.bf16.gmra.mxu0 %v3146
        %v3209 = vpop.f32.mrf.mxu0
        %v3210 = vadd.f32 0.0, %v3209
        %v3211 = vpop.f32.mrf.mxu0
        %v3212 = vpop.f32.mrf.mxu0
        %v3213 = vadd.f32 0.0, %v3212
        %v3214 = vpop.f32.mrf.mxu0
        %3215 = vdwg.mxu0
        %v3216 = vpack.c.bf16 %v3189, %v3186
        %v3217 = vpack.c.bf16 %v3197, %v3194
        %v3218 = vpack.c.bf16 %v3205, %v3202
        %v3219 = vpack.c.bf16 %v3213, %v3210
        %v3221 = vlaneseq
        %v3222 = vshrl.u32 %v3221, 7
        %v3223 = vsub.s32 0, %v3222
        %v3224 = vrot.slane %v1741, %v3223
        %v3230 = vunpack.c.l.b16 %v1737
        %v3231 = vunpack.c.l.b16 %v1738
        %v3232 = vunpack.c.l.b16 %v1739
        %v3233 = vunpack.c.l.b16 %v1740
        %v3234 = vpack.c.b16 %v3231, %v3230
        %v3235 = vpack.c.b16 %v3233, %v3232
        %v3239 = vsel %vm1829, %v3216, 0
        %v3242 = vsel %vm1829, %v3217, 0
        %v3245 = vsel %vm1829, %v3218, 0
        %v3248 = vsel %vm1829, %v3219, 0
        %3250 = vmatprep.subr.bf16.mxu0 0
        %3251 = vmatpush1.bf16.msra.mxu0 0
        %3252 = vmatprep.subr.bf16.mxu0 0
        %3253 = vmatpush1.bf16.msra.mxu0 0
        %3254 = vmatprep.subr.bf16.mxu0 0
        %3255 = vmatpush1.bf16.msra.mxu0 0
        %3256 = vmatprep.subr.bf16.mxu0 0
        %3257 = vmatpush1.bf16.msra.mxu0 0
        %3258 = vmatprep.subr.bf16.mxu0 0
        %3259 = vmatpush1.bf16.msra.mxu0 0
        %3260 = vmatprep.subr.bf16.mxu0 0
        %3261 = vmatpush1.bf16.msra.mxu0 0
        %3262 = vmatprep.subr.bf16.mxu0 0
        %3263 = vmatpush1.bf16.msra.mxu0 %v3235
        %3264 = vmatprep.subr.bf16.mxu0 0
        %3265 = vmatpush1.bf16.msra.mxu0 %v3234
        %3266 = vmatprep.subr.bf16.mxu0 0
        %3267 = vmatpush2.bf16.msra.mxu0 0
        %3268 = vmatprep.subr.bf16.mxu0 0
        %3269 = vmatpush2.bf16.msra.mxu0 0
        %3270 = vmatprep.subr.bf16.mxu0 0
        %3271 = vmatpush2.bf16.msra.mxu0 0
        %3272 = vmatprep.subr.bf16.mxu0 0
        %3273 = vmatpush2.bf16.msra.mxu0 0
        %3274 = vmatprep.subr.bf16.mxu0 0
        %3275 = vmatpush2.bf16.msra.mxu0 0
        %3276 = vmatprep.subr.bf16.mxu0 0
        %3277 = vmatpush2.bf16.msra.mxu0 0
        %3278 = vmatprep.subr.bf16.mxu0 0
        %3279 = vmatpush2.bf16.msra.mxu0 0
        %3280 = vmatprep.subr.bf16.mxu0 0
        %3281 = vmatpush2.bf16.msra.mxu0 0
        %3282 = vmatprep.mubr.bf16.mxu0 0
        %3283 = vmatmul.mubr.bf16.gmra.mxu0 %v3239
        %v3284 = vpop.f32.mrf.mxu0
        %v3285 = vadd.f32 %v3224, %v3284
        %v3286 = vpop.f32.mrf.mxu0
        %v3287 = vpop.f32.mrf.mxu0
        %v3288 = vadd.f32 %v3224, %v3287
        %v3289 = vpop.f32.mrf.mxu0
        %3290 = vmatprep.mubr.bf16.mxu0 0
        %3291 = vmatmul.mubr.bf16.gmra.mxu0 %v3242
        %v3292 = vpop.f32.mrf.mxu0
        %v3293 = vadd.f32 %v3224, %v3292
        %v3294 = vpop.f32.mrf.mxu0
        %v3295 = vpop.f32.mrf.mxu0
        %v3296 = vadd.f32 %v3224, %v3295
        %v3297 = vpop.f32.mrf.mxu0
        %3298 = vmatprep.mubr.bf16.mxu0 0
        %3299 = vmatmul.mubr.bf16.gmra.mxu0 %v3245
        %v3300 = vpop.f32.mrf.mxu0
        %v3301 = vadd.f32 %v3224, %v3300
        %v3302 = vpop.f32.mrf.mxu0
        %v3303 = vpop.f32.mrf.mxu0
        %v3304 = vadd.f32 %v3224, %v3303
        %v3305 = vpop.f32.mrf.mxu0
        %3306 = vmatprep.mubr.bf16.mxu0 0
        %3307 = vmatmul.mubr.bf16.gmra.mxu0 %v3248
        %v3308 = vpop.f32.mrf.mxu0
        %v3309 = vadd.f32 %v3224, %v3308
        %v3310 = vpop.f32.mrf.mxu0
        %v3311 = vpop.f32.mrf.mxu0
        %v3312 = vadd.f32 %v3224, %v3311
        %v3313 = vpop.f32.mrf.mxu0
        %3314 = vdwg.mxu0
        %v3315 = vadd.f32 %v1794, %v3285
        %v3316 = vadd.f32 %v1795, %v3288
        %v3317 = vadd.f32 %v1796, %v3293
        %v3318 = vadd.f32 %v1797, %v3296
        %v3319 = vadd.f32 %v1798, %v3301
        %v3320 = vadd.f32 %v1799, %v3304
        %v3321 = vadd.f32 %v1800, %v3309
        %v3322 = vadd.f32 %v1801, %v3312
        %v3323 = vsel %vm1829, %v3315, 0.0
        %3324 = vadd.xlane.f32.xlu0 %v3323
        %v3325 = vpop.xlane.xlu0 %3324
        %v3326 = vsel %vm1829, %v3316, 0.0
        %3327 = vadd.xlane.f32.xlu0 %v3326
        %v3328 = vpop.xlane.xlu0 %3327
        %v3329 = vsel %vm1829, %v3317, 0.0
        %3330 = vadd.xlane.f32.xlu0 %v3329
        %v3331 = vpop.xlane.xlu0 %3330
        %v3332 = vsel %vm1829, %v3318, 0.0
        %3333 = vadd.xlane.f32.xlu0 %v3332
        %v3334 = vpop.xlane.xlu0 %3333
        %v3335 = vsel %vm1829, %v3319, 0.0
        %3336 = vadd.xlane.f32.xlu0 %v3335
        %v3337 = vpop.xlane.xlu0 %3336
        %v3338 = vsel %vm1829, %v3320, 0.0
        %3339 = vadd.xlane.f32.xlu0 %v3338
        %v3340 = vpop.xlane.xlu0 %3339
        %v3341 = vsel %vm1829, %v3321, 0.0
        %3342 = vadd.xlane.f32.xlu0 %v3341
        %v3343 = vpop.xlane.xlu0 %3342
        %v3344 = vsel %vm1829, %v3322, 0.0
        %3345 = vadd.xlane.f32.xlu0 %v3344
        %v3346 = vpop.xlane.xlu0 %3345
        %v3347 = vmul.f32 %v3325, %v2077
        %v3348 = vmul.f32 %v3328, %v2077
        %v3349 = vmul.f32 %v3331, %v2077
        %v3350 = vmul.f32 %v3334, %v2077
        %v3351 = vmul.f32 %v3337, %v2077
        %v3352 = vmul.f32 %v3340, %v2077
        %v3353 = vmul.f32 %v3343, %v2077
        %v3354 = vmul.f32 %v3346, %v2077
        %v3355 = vsub.f32 %v3315, %v3347
        %v3356 = vsub.f32 %v3316, %v3348
        %v3357 = vsub.f32 %v3317, %v3349
        %v3358 = vsub.f32 %v3318, %v3350
        %v3359 = vsub.f32 %v3319, %v3351
        %v3360 = vsub.f32 %v3320, %v3352
        %v3361 = vsub.f32 %v3321, %v3353
        %v3362 = vsub.f32 %v3322, %v3354
        %v3363 = vmul.f32 %v3355, %v3355
        %v3364 = vmul.f32 %v3356, %v3356
        %v3365 = vmul.f32 %v3357, %v3357
        %v3366 = vmul.f32 %v3358, %v3358
        %v3367 = vmul.f32 %v3359, %v3359
        %v3368 = vmul.f32 %v3360, %v3360
        %v3369 = vmul.f32 %v3361, %v3361
        %v3370 = vmul.f32 %v3362, %v3362
        %v3371 = vsel %vm1829, %v3363, 0.0
        %3372 = vadd.xlane.f32.xlu0 %v3371
        %v3373 = vpop.xlane.xlu0 %3372
        %v3374 = vsel %vm1829, %v3364, 0.0
        %3375 = vadd.xlane.f32.xlu0 %v3374
        %v3376 = vpop.xlane.xlu0 %3375
        %v3377 = vsel %vm1829, %v3365, 0.0
        %3378 = vadd.xlane.f32.xlu0 %v3377
        %v3379 = vpop.xlane.xlu0 %3378
        %v3380 = vsel %vm1829, %v3366, 0.0
        %3381 = vadd.xlane.f32.xlu0 %v3380
        %v3382 = vpop.xlane.xlu0 %3381
        %v3383 = vsel %vm1829, %v3367, 0.0
        %3384 = vadd.xlane.f32.xlu0 %v3383
        %v3385 = vpop.xlane.xlu0 %3384
        %v3386 = vsel %vm1829, %v3368, 0.0
        %3387 = vadd.xlane.f32.xlu0 %v3386
        %v3388 = vpop.xlane.xlu0 %3387
        %v3389 = vsel %vm1829, %v3369, 0.0
        %3390 = vadd.xlane.f32.xlu0 %v3389
        %v3391 = vpop.xlane.xlu0 %3390
        %v3392 = vsel %vm1829, %v3370, 0.0
        %3393 = vadd.xlane.f32.xlu0 %v3392
        %v3394 = vpop.xlane.xlu0 %3393
        %v3395 = vmul.f32 %v3373, %v2077
        %v3396 = vmul.f32 %v3376, %v2077
        %v3397 = vmul.f32 %v3379, %v2077
        %v3398 = vmul.f32 %v3382, %v2077
        %v3399 = vmul.f32 %v3385, %v2077
        %v3400 = vmul.f32 %v3388, %v2077
        %v3401 = vmul.f32 %v3391, %v2077
        %v3402 = vmul.f32 %v3394, %v2077
        %v3403 = vadd.f32 %v3395, 1e-06
        %v3404 = vadd.f32 %v3396, 1e-06
        %v3405 = vadd.f32 %v3397, 1e-06
        %v3406 = vadd.f32 %v3398, 1e-06
        %v3407 = vadd.f32 %v3399, 1e-06
        %v3408 = vadd.f32 %v3400, 1e-06
        %v3409 = vadd.f32 %v3401, 1e-06
        %v3410 = vadd.f32 %v3402, 1e-06
        %v3411 = vrsqrt.pop %v3403
        %v3412 = vrsqrt.pop %v3404
        %v3413 = vrsqrt.pop %v3405
        %v3414 = vrsqrt.pop %v3406
        %v3415 = vrsqrt.pop %v3407
        %v3416 = vrsqrt.pop %v3408
        %v3417 = vrsqrt.pop %v3409
        %v3418 = vrsqrt.pop %v3410
        %v3419 = vmul.f32 %v3355, %v3411
        %v3420 = vmul.f32 %v3356, %v3412
        %v3421 = vmul.f32 %v3357, %v3413
        %v3422 = vmul.f32 %v3358, %v3414
        %v3423 = vmul.f32 %v3359, %v3415
        %v3424 = vmul.f32 %v3360, %v3416
        %v3425 = vmul.f32 %v3361, %v3417
        %v3426 = vmul.f32 %v3362, %v3418
        %v3428 = vlaneseq
        %v3429 = vshrl.u32 %v3428, 7
        %v3430 = vsub.s32 0, %v3429
        %v3431 = vrot.slane %v1742, %v3430
        %v3433 = vmul.f32 %v3419, %v3431
        %v3434 = vmul.f32 %v3420, %v3431
        %v3435 = vmul.f32 %v3421, %v3431
        %v3436 = vmul.f32 %v3422, %v3431
        %v3437 = vmul.f32 %v3423, %v3431
        %v3438 = vmul.f32 %v3424, %v3431
        %v3439 = vmul.f32 %v3425, %v3431
        %v3440 = vmul.f32 %v3426, %v3431
        %v3442 = vlaneseq
        %v3443 = vshrl.u32 %v3442, 7
        %v3444 = vsub.s32 0, %v3443
        %v3445 = vrot.slane %v1743, %v3444
        %v3447 = vadd.f32 %v3433, %v3445
        %v3448 = vadd.f32 %v3434, %v3445
        %v3449 = vadd.f32 %v3435, %v3445
        %v3450 = vadd.f32 %v3436, %v3445
        %v3451 = vadd.f32 %v3437, %v3445
        %v3452 = vadd.f32 %v3438, %v3445
        %v3453 = vadd.f32 %v3439, %v3445
        %v3454 = vadd.f32 %v3440, %v3445
        %v3455 = vpack.c.bf16 %v2800, %v2800
        %v3457 = vlaneseq
        %v3458 = vshrl.u32 %v3457, 7
        %v3459 = vsub.s32 0, %v3458
        %v3460 = vrot.slane %v1757, %v3459
        %v3461 = vlaneseq
        %v3462 = vshrl.u32 %v3461, 7
        %v3463 = vsub.s32 1, %v3462
        %v3464 = vrot.slane %v1757, %v3463
        %v3471 = vunpack.c.l.b16 %v1753
        %v3472 = vunpack.c.h.b16 %v1753
        %v3473 = vunpack.c.l.b16 %v1754
        %v3474 = vunpack.c.h.b16 %v1754
        %v3475 = vunpack.c.l.b16 %v1755
        %v3476 = vunpack.c.h.b16 %v1755
        %v3477 = vunpack.c.l.b16 %v1756
        %v3478 = vunpack.c.h.b16 %v1756
        %v3479 = vpack.c.b16 %v3473, %v3471
        %v3480 = vpack.c.b16 %v3474, %v3472
        %v3481 = vpack.c.b16 %v3477, %v3475
        %v3482 = vpack.c.b16 %v3478, %v3476
        %v3488 = vsel %vm1829, %v3455, 0
        %3490 = vmatprep.subr.bf16.mxu0 0
        %3491 = vmatpush1.bf16.msra.mxu0 0
        %3492 = vmatprep.subr.bf16.mxu0 0
        %3493 = vmatpush1.bf16.msra.mxu0 0
        %3494 = vmatprep.subr.bf16.mxu0 0
        %3495 = vmatpush1.bf16.msra.mxu0 0
        %3496 = vmatprep.subr.bf16.mxu0 0
        %3497 = vmatpush1.bf16.msra.mxu0 0
        %3498 = vmatprep.subr.bf16.mxu0 0
        %3499 = vmatpush1.bf16.msra.mxu0 0
        %3500 = vmatprep.subr.bf16.mxu0 0
        %3501 = vmatpush1.bf16.msra.mxu0 0
        %3502 = vmatprep.subr.bf16.mxu0 %v3482
        %3503 = vmatpush1.bf16.msra.mxu0 %v3481
        %3504 = vmatprep.subr.bf16.mxu0 %v3480
        %3505 = vmatpush1.bf16.msra.mxu0 %v3479
        %3506 = vmatprep.subr.bf16.mxu0 0
        %3507 = vmatpush2.bf16.msra.mxu0 0
        %3508 = vmatprep.subr.bf16.mxu0 0
        %3509 = vmatpush2.bf16.msra.mxu0 0
        %3510 = vmatprep.subr.bf16.mxu0 0
        %3511 = vmatpush2.bf16.msra.mxu0 0
        %3512 = vmatprep.subr.bf16.mxu0 0
        %3513 = vmatpush2.bf16.msra.mxu0 0
        %3514 = vmatprep.subr.bf16.mxu0 0
        %3515 = vmatpush2.bf16.msra.mxu0 0
        %3516 = vmatprep.subr.bf16.mxu0 0
        %3517 = vmatpush2.bf16.msra.mxu0 0
        %3518 = vmatprep.subr.bf16.mxu0 0
        %3519 = vmatpush2.bf16.msra.mxu0 0
        %3520 = vmatprep.subr.bf16.mxu0 0
        %3521 = vmatpush2.bf16.msra.mxu0 0
        %3522 = vmatprep.mubr.bf16.mxu0 0
        %3523 = vmatmul.mubr.bf16.gmra.mxu0 %v3488
        %v3524 = vpop.f32.mrf.mxu0
        %v3525 = vadd.f32 %v3460, %v3524
        %v3526 = vpop.f32.mrf.mxu0
        %v3527 = vadd.f32 %v3464, %v3526
        %v3528 = vpop.f32.mrf.mxu0
        %v3529 = vpop.f32.mrf.mxu0
        %3530 = vdwg.mxu0
        %v3531 = vmax.f32 %v3525, 0.0
        %v3532 = vpack.c.bf16 %v3531, %v3531
        %v3534 = vlaneseq
        %v3535 = vshrl.u32 %v3534, 7
        %v3536 = vsub.s32 0, %v3535
        %v3537 = vrot.slane %v1770, %v3536
        %v3551 = vunpack.c.l.b16 %v1758
        %v3552 = vunpack.c.l.b16 %v1759
        %v3553 = vunpack.c.l.b16 %v1760
        %v3554 = vunpack.c.l.b16 %v1761
        %v3555 = vunpack.c.l.b16 %v1762
        %v3556 = vunpack.c.l.b16 %v1763
        %v3557 = vunpack.c.l.b16 %v1764
        %v3558 = vunpack.c.l.b16 %v1765
        %v3559 = vunpack.c.l.b16 %v1766
        %v3560 = vunpack.c.l.b16 %v1767
        %v3561 = vunpack.c.l.b16 %v1768
        %v3562 = vunpack.c.l.b16 %v1769
        %v3563 = vpack.c.b16 %v3552, %v3551
        %v3564 = vpack.c.b16 %v3554, %v3553
        %v3565 = vpack.c.b16 %v3556, %v3555
        %v3566 = vpack.c.b16 %v3558, %v3557
        %v3567 = vpack.c.b16 %v3560, %v3559
        %v3568 = vpack.c.b16 %v3562, %v3561
        %vm3575 = vcmask 785408
        %v3577 = vsel %vm3575, %v3532, 0
        %3579 = vmatprep.subr.bf16.mxu0 0
        %3580 = vmatpush1.bf16.msra.mxu0 0
        %3581 = vmatprep.subr.bf16.mxu0 0
        %3582 = vmatpush1.bf16.msra.mxu0 0
        %3583 = vmatprep.subr.bf16.mxu0 0
        %3584 = vmatpush1.bf16.msra.mxu0 %v3568
        %3585 = vmatprep.subr.bf16.mxu0 0
        %3586 = vmatpush1.bf16.msra.mxu0 %v3567
        %3587 = vmatprep.subr.bf16.mxu0 0
        %3588 = vmatpush1.bf16.msra.mxu0 %v3566
        %3589 = vmatprep.subr.bf16.mxu0 0
        %3590 = vmatpush1.bf16.msra.mxu0 %v3565
        %3591 = vmatprep.subr.bf16.mxu0 0
        %3592 = vmatpush1.bf16.msra.mxu0 %v3564
        %3593 = vmatprep.subr.bf16.mxu0 0
        %3594 = vmatpush1.bf16.msra.mxu0 %v3563
        %3595 = vmatprep.subr.bf16.mxu0 0
        %3596 = vmatpush2.bf16.msra.mxu0 0
        %3597 = vmatprep.subr.bf16.mxu0 0
        %3598 = vmatpush2.bf16.msra.mxu0 0
        %3599 = vmatprep.subr.bf16.mxu0 0
        %3600 = vmatpush2.bf16.msra.mxu0 0
        %3601 = vmatprep.subr.bf16.mxu0 0
        %3602 = vmatpush2.bf16.msra.mxu0 0
        %3603 = vmatprep.subr.bf16.mxu0 0
        %3604 = vmatpush2.bf16.msra.mxu0 0
        %3605 = vmatprep.subr.bf16.mxu0 0
        %3606 = vmatpush2.bf16.msra.mxu0 0
        %3607 = vmatprep.subr.bf16.mxu0 0
        %3608 = vmatpush2.bf16.msra.mxu0 0
        %3609 = vmatprep.subr.bf16.mxu0 0
        %3610 = vmatpush2.bf16.msra.mxu0 0
        %3611 = vmatprep.mubr.bf16.mxu0 0
        %3612 = vmatmul.mubr.bf16.gmra.mxu0 %v3577
        %v3613 = vpop.f32.mrf.mxu0
        %v3614 = vadd.f32 %v3537, %v3613
        %v3615 = vpop.f32.mrf.mxu0
        %v3616 = vpop.f32.mrf.mxu0
        %v3617 = vpop.f32.mrf.mxu0
        %3618 = vdwg.mxu0
        %vm3619 = vcmask 0
        %3620 = vst.msk [vmem:[%s1667] sm:$0x1] %vm3619, %v3614
        %3622 = vrot.lane.b32.xlu0 %v3614, 119
        %v3623 = vpop.permute.xlu0 %3622
        %vm3625 = vcmask 26626
        %3626 = vst.msk [vmem:[%s1632 - $0x2] sm:$0x4] %vm3625, %v3623
        %3629 = vrot.lane.b32.xlu0 %v3525, 32
        %v3630 = vpop.permute.xlu0 %3629
        %3631 = vrot.lane.b32.xlu0 %v3527, 32
        %v3632 = vpop.permute.xlu0 %3631
        %v3633 = vsel %vm1829, %v3630, %v3632
        %vm3635 = vcmask 519171
        %3636 = vst.msk [vmem:[%s1638 - $0x3] sm:$0x8] %vm3635, %v3633
        %v3637 = vsel %vm1829, %v3447, 0.0
        %v3638 = vsel %vm1829, %v3448, 0.0
        %v3639 = vadd.f32 %v3637, %v3638
        %v3640 = vsel %vm1829, %v3449, 0.0
        %v3641 = vadd.f32 %v3639, %v3640
        %v3642 = vsel %vm1829, %v3450, 0.0
        %v3643 = vadd.f32 %v3641, %v3642
        %v3644 = vsel %vm1829, %v3451, 0.0
        %v3645 = vadd.f32 %v3643, %v3644
        %v3646 = vsel %vm1829, %v3452, 0.0
        %v3647 = vadd.f32 %v3645, %v3646
        %v3648 = vsel %vm1829, %v3453, 0.0
        %v3649 = vadd.f32 %v3647, %v3648
        %v3650 = vsel %vm1829, %v3454, 0.0
        %v3651 = vadd.f32 %v3649, %v3650
        %v3652 = vrot.slane %v3651, 4
        %v3653 = vadd.f32 %v3651, %v3652
        %v3654 = vrot.slane %v3653, 2
        %v3655 = vadd.f32 %v3653, %v3654
        %v3656 = vrot.slane %v3655, 1
        %v3657 = vadd.f32 %v3655, %v3656
        %v3658 = vrcp.pop 64.0
        %v3659 = vmul.f32 %v3657, %v3658
        %v3660 = vpack.c.bf16 %v3659, %v3659
        %v3665 = vunpack.c.l.b16 %v1771
        %v3666 = vunpack.c.l.b16 %v1772
        %v3667 = vunpack.c.l.b16 %v1773
        %v3668 = vunpack.c.l.b16 %v1774
        %v3669 = vpack.c.b16 %v3666, %v3665
        %v3670 = vpack.c.b16 %v3668, %v3667
        %v3674 = vsel %vm1829, %v3660, 0
        %3676 = vmatprep.subr.bf16.mxu0 0
        %3677 = vmatpush1.bf16.msra.mxu0 0
        %3678 = vmatprep.subr.bf16.mxu0 0
        %3679 = vmatpush1.bf16.msra.mxu0 0
        %3680 = vmatprep.subr.bf16.mxu0 0
        %3681 = vmatpush1.bf16.msra.mxu0 0
        %3682 = vmatprep.subr.bf16.mxu0 0
        %3683 = vmatpush1.bf16.msra.mxu0 0
        %3684 = vmatprep.subr.bf16.mxu0 0
        %3685 = vmatpush1.bf16.msra.mxu0 0
        %3686 = vmatprep.subr.bf16.mxu0 0
        %3687 = vmatpush1.bf16.msra.mxu0 0
        %3688 = vmatprep.subr.bf16.mxu0 0
        %3689 = vmatpush1.bf16.msra.mxu0 %v3670
        %3690 = vmatprep.subr.bf16.mxu0 0
        %3691 = vmatpush1.bf16.msra.mxu0 %v3669
        %3692 = vmatprep.subr.bf16.mxu0 0
        %3693 = vmatpush2.bf16.msra.mxu0 0
        %3694 = vmatprep.subr.bf16.mxu0 0
        %3695 = vmatpush2.bf16.msra.mxu0 0
        %3696 = vmatprep.subr.bf16.mxu0 0
        %3697 = vmatpush2.bf16.msra.mxu0 0
        %3698 = vmatprep.subr.bf16.mxu0 0
        %3699 = vmatpush2.bf16.msra.mxu0 0
        %3700 = vmatprep.subr.bf16.mxu0 0
        %3701 = vmatpush2.bf16.msra.mxu0 0
        %3702 = vmatprep.subr.bf16.mxu0 0
        %3703 = vmatpush2.bf16.msra.mxu0 0
        %3704 = vmatprep.subr.bf16.mxu0 0
        %3705 = vmatpush2.bf16.msra.mxu0 0
        %3706 = vmatprep.subr.bf16.mxu0 0
        %3707 = vmatpush2.bf16.msra.mxu0 0
        %3708 = vmatprep.mubr.bf16.mxu0 0
        %3709 = vmatmul.mubr.bf16.gmra.mxu0 %v3674
        %v3710 = vpop.f32.mrf.mxu0
        %v3711 = vadd.f32 %v1775, %v3710
        %v3712 = vpop.f32.mrf.mxu0
        %v3713 = vpop.f32.mrf.mxu0
        %v3714 = vpop.f32.mrf.mxu0
        %3715 = vdwg.mxu0
        %vm3716 = vcmask 516096
        %3717 = vst.msk [vmem:[%s1644] sm:$0x1] %vm3716, %v3711
        %v3718 = vpack.c.bf16 %v3448, %v3447
        %v3719 = vpack.c.bf16 %v3450, %v3449
        %v3720 = vpack.c.bf16 %v3452, %v3451
        %v3721 = vpack.c.bf16 %v3454, %v3453
        %v3723 = vlaneseq
        %v3724 = vshrl.u32 %v3723, 7
        %v3725 = vsub.s32 0, %v3724
        %v3726 = vrot.slane %v1748, %v3725
        %v3732 = vunpack.c.l.b16 %v1744
        %v3733 = vunpack.c.l.b16 %v1745
        %v3734 = vunpack.c.l.b16 %v1746
        %v3735 = vunpack.c.l.b16 %v1747
        %v3736 = vpack.c.b16 %v3733, %v3732
        %v3737 = vpack.c.b16 %v3735, %v3734
        %v3741 = vsel %vm1829, %v3718, 0
        %v3744 = vsel %vm1829, %v3719, 0
        %v3747 = vsel %vm1829, %v3720, 0
        %v3750 = vsel %vm1829, %v3721, 0
        %3752 = vmatprep.subr.bf16.mxu0 0
        %3753 = vmatpush1.bf16.msra.mxu0 0
        %3754 = vmatprep.subr.bf16.mxu0 0
        %3755 = vmatpush1.bf16.msra.mxu0 0
        %3756 = vmatprep.subr.bf16.mxu0 0
        %3757 = vmatpush1.bf16.msra.mxu0 0
        %3758 = vmatprep.subr.bf16.mxu0 0
        %3759 = vmatpush1.bf16.msra.mxu0 0
        %3760 = vmatprep.subr.bf16.mxu0 0
        %3761 = vmatpush1.bf16.msra.mxu0 0
        %3762 = vmatprep.subr.bf16.mxu0 0
        %3763 = vmatpush1.bf16.msra.mxu0 0
        %3764 = vmatprep.subr.bf16.mxu0 0
        %3765 = vmatpush1.bf16.msra.mxu0 %v3737
        %3766 = vmatprep.subr.bf16.mxu0 0
        %3767 = vmatpush1.bf16.msra.mxu0 %v3736
        %3768 = vmatprep.subr.bf16.mxu0 0
        %3769 = vmatpush2.bf16.msra.mxu0 0
        %3770 = vmatprep.subr.bf16.mxu0 0
        %3771 = vmatpush2.bf16.msra.mxu0 0
        %3772 = vmatprep.subr.bf16.mxu0 0
        %3773 = vmatpush2.bf16.msra.mxu0 0
        %3774 = vmatprep.subr.bf16.mxu0 0
        %3775 = vmatpush2.bf16.msra.mxu0 0
        %3776 = vmatprep.subr.bf16.mxu0 0
        %3777 = vmatpush2.bf16.msra.mxu0 0
        %3778 = vmatprep.subr.bf16.mxu0 0
        %3779 = vmatpush2.bf16.msra.mxu0 0
        %3780 = vmatprep.subr.bf16.mxu0 0
        %3781 = vmatpush2.bf16.msra.mxu0 0
        %3782 = vmatprep.subr.bf16.mxu0 0
        %3783 = vmatpush2.bf16.msra.mxu0 0
        %3784 = vmatprep.mubr.bf16.mxu0 0
        %3785 = vmatmul.mubr.bf16.gmra.mxu0 %v3741
        %v3786 = vpop.f32.mrf.mxu0
        %v3787 = vadd.f32 %v3726, %v3786
        %v3788 = vpop.f32.mrf.mxu0
        %v3789 = vpop.f32.mrf.mxu0
        %v3790 = vadd.f32 %v3726, %v3789
        %v3791 = vpop.f32.mrf.mxu0
        %3792 = vmatprep.mubr.bf16.mxu0 0
        %3793 = vmatmul.mubr.bf16.gmra.mxu0 %v3744
        %v3794 = vpop.f32.mrf.mxu0
        %v3795 = vadd.f32 %v3726, %v3794
        %v3796 = vpop.f32.mrf.mxu0
        %v3797 = vpop.f32.mrf.mxu0
        %v3798 = vadd.f32 %v3726, %v3797
        %v3799 = vpop.f32.mrf.mxu0
        %3800 = vmatprep.mubr.bf16.mxu0 0
        %3801 = vmatmul.mubr.bf16.gmra.mxu0 %v3747
        %v3802 = vpop.f32.mrf.mxu0
        %v3803 = vadd.f32 %v3726, %v3802
        %v3804 = vpop.f32.mrf.mxu0
        %v3805 = vpop.f32.mrf.mxu0
        %v3806 = vadd.f32 %v3726, %v3805
        %v3807 = vpop.f32.mrf.mxu0
        %3808 = vmatprep.mubr.bf16.mxu0 0
        %3809 = vmatmul.mubr.bf16.gmra.mxu0 %v3750
        %v3810 = vpop.f32.mrf.mxu0
        %v3811 = vadd.f32 %v3726, %v3810
        %v3812 = vpop.f32.mrf.mxu0
        %v3813 = vpop.f32.mrf.mxu0
        %v3814 = vadd.f32 %v3726, %v3813
        %v3815 = vpop.f32.mrf.mxu0
        %3816 = vdwg.mxu0
        %v3817 = vmul.f32 %v3787, %v3787
        %v3818 = vmul.f32 %v3790, %v3790
        %v3819 = vmul.f32 %v3795, %v3795
        %v3820 = vmul.f32 %v3798, %v3798
        %v3821 = vmul.f32 %v3803, %v3803
        %v3822 = vmul.f32 %v3806, %v3806
        %v3823 = vmul.f32 %v3811, %v3811
        %v3824 = vmul.f32 %v3814, %v3814
        %v3825 = vmul.f32 %v3787, %v3817
        %v3826 = vmul.f32 %v3790, %v3818
        %v3827 = vmul.f32 %v3795, %v3819
        %v3828 = vmul.f32 %v3798, %v3820
        %v3829 = vmul.f32 %v3803, %v3821
        %v3830 = vmul.f32 %v3806, %v3822
        %v3831 = vmul.f32 %v3811, %v3823
        %v3832 = vmul.f32 %v3814, %v3824
        %v3833 = vmul.f32 %v3825, 0.044715
        %v3834 = vmul.f32 %v3826, 0.044715
        %v3835 = vmul.f32 %v3827, 0.044715
        %v3836 = vmul.f32 %v3828, 0.044715
        %v3837 = vmul.f32 %v3829, 0.044715
        %v3838 = vmul.f32 %v3830, 0.044715
        %v3839 = vmul.f32 %v3831, 0.044715
        %v3840 = vmul.f32 %v3832, 0.044715
        %v3841 = vadd.f32 %v3787, %v3833
        %v3842 = vadd.f32 %v3790, %v3834
        %v3843 = vadd.f32 %v3795, %v3835
        %v3844 = vadd.f32 %v3798, %v3836
        %v3845 = vadd.f32 %v3803, %v3837
        %v3846 = vadd.f32 %v3806, %v3838
        %v3847 = vadd.f32 %v3811, %v3839
        %v3848 = vadd.f32 %v3814, %v3840
        %v3849 = vmul.f32 %v3841, 0.7978846
        %v3850 = vmul.f32 %v3842, 0.7978846
        %v3851 = vmul.f32 %v3843, 0.7978846
        %v3852 = vmul.f32 %v3844, 0.7978846
        %v3853 = vmul.f32 %v3845, 0.7978846
        %v3854 = vmul.f32 %v3846, 0.7978846
        %v3855 = vmul.f32 %v3847, 0.7978846
        %v3856 = vmul.f32 %v3848, 0.7978846
        %v3857 = vtanh.pop %v3849
        %v3858 = vtanh.pop %v3850
        %v3859 = vtanh.pop %v3851
        %v3860 = vtanh.pop %v3852
        %v3861 = vtanh.pop %v3853
        %v3862 = vtanh.pop %v3854
        %v3863 = vtanh.pop %v3855
        %v3864 = vtanh.pop %v3856
        %v3865 = vadd.f32 %v3857, 1.0
        %v3866 = vadd.f32 %v3858, 1.0
        %v3867 = vadd.f32 %v3859, 1.0
        %v3868 = vadd.f32 %v3860, 1.0
        %v3869 = vadd.f32 %v3861, 1.0
        %v3870 = vadd.f32 %v3862, 1.0
        %v3871 = vadd.f32 %v3863, 1.0
        %v3872 = vadd.f32 %v3864, 1.0
        %v3873 = vmul.f32 %v3865, 0.5
        %v3874 = vmul.f32 %v3866, 0.5
        %v3875 = vmul.f32 %v3867, 0.5
        %v3876 = vmul.f32 %v3868, 0.5
        %v3877 = vmul.f32 %v3869, 0.5
        %v3878 = vmul.f32 %v3870, 0.5
        %v3879 = vmul.f32 %v3871, 0.5
        %v3880 = vmul.f32 %v3872, 0.5
        %v3881 = vmul.f32 %v3787, %v3873
        %v3882 = vmul.f32 %v3790, %v3874
        %v3883 = vmul.f32 %v3795, %v3875
        %v3884 = vmul.f32 %v3798, %v3876
        %v3885 = vmul.f32 %v3803, %v3877
        %v3886 = vmul.f32 %v3806, %v3878
        %v3887 = vmul.f32 %v3811, %v3879
        %v3888 = vmul.f32 %v3814, %v3880
        %3889 = vrot.lane.b32.xlu0 %v3614, 127
        %v3890 = vpop.permute.xlu0 %3889
        %3892 = vrot.lane.b32.xlu0 %v3614, 7
        %v3893 = vpop.permute.xlu0 %3892
        %3895 = vrot.lane.b32.xlu0 %v3614, 15
        %v3896 = vpop.permute.xlu0 %3895
        %3898 = vrot.lane.b32.xlu0 %v3614, 23
        %v3899 = vpop.permute.xlu0 %3898
        %vm3901 = vcmask 64512
        %v3902 = vsel %vm3901, %v3890, %v3893
        %vm3903 = vcmask 130048
        %v3904 = vsel %vm3903, %v3902, %v3896
        %vm3905 = vcmask 195584
        %v3906 = vsel %vm3905, %v3904, %v3899
        %v3907 = vlaneseq
        %v3908 = vshrl.u32 %v3907, 7
        %v3909 = vsub.s32 1, %v3908
        %v3910 = vrot.slane %v3906, %v3909
        %v3911 = vmul.f32 %v3881, %v3910
        %v3912 = vmul.f32 %v3882, %v3910
        %v3913 = vmul.f32 %v3883, %v3910
        %v3914 = vmul.f32 %v3884, %v3910
        %v3915 = vmul.f32 %v3885, %v3910
        %v3916 = vmul.f32 %v3886, %v3910
        %v3917 = vmul.f32 %v3887, %v3910
        %v3918 = vmul.f32 %v3888, %v3910
        %v3919 = vpack.c.bf16 %v3912, %v3911
        %v3920 = vpack.c.bf16 %v3914, %v3913
        %v3921 = vpack.c.bf16 %v3916, %v3915
        %v3922 = vpack.c.bf16 %v3918, %v3917
        %v3927 = vunpack.c.l.b16 %v1749
        %v3928 = vunpack.c.l.b16 %v1750
        %v3929 = vunpack.c.l.b16 %v1751
        %v3930 = vunpack.c.l.b16 %v1752
        %v3931 = vpack.c.b16 %v3928, %v3927
        %v3932 = vpack.c.b16 %v3930, %v3929
        %v3936 = vsel %vm1829, %v3919, 0
        %v3939 = vsel %vm1829, %v3920, 0
        %v3942 = vsel %vm1829, %v3921, 0
        %v3945 = vsel %vm1829, %v3922, 0
        %3947 = vmatprep.subr.bf16.mxu0 0
        %3948 = vmatpush1.bf16.msra.mxu0 0
        %3949 = vmatprep.subr.bf16.mxu0 0
        %3950 = vmatpush1.bf16.msra.mxu0 0
        %3951 = vmatprep.subr.bf16.mxu0 0
        %3952 = vmatpush1.bf16.msra.mxu0 0
        %3953 = vmatprep.subr.bf16.mxu0 0
        %3954 = vmatpush1.bf16.msra.mxu0 0
        %3955 = vmatprep.subr.bf16.mxu0 0
        %3956 = vmatpush1.bf16.msra.mxu0 0
        %3957 = vmatprep.subr.bf16.mxu0 0
        %3958 = vmatpush1.bf16.msra.mxu0 0
        %3959 = vmatprep.subr.bf16.mxu0 0
        %3960 = vmatpush1.bf16.msra.mxu0 %v3932
        %3961 = vmatprep.subr.bf16.mxu0 0
        %3962 = vmatpush1.bf16.msra.mxu0 %v3931
        %3963 = vmatprep.subr.bf16.mxu0 0
        %3964 = vmatpush2.bf16.msra.mxu0 0
        %3965 = vmatprep.subr.bf16.mxu0 0
        %3966 = vmatpush2.bf16.msra.mxu0 0
        %3967 = vmatprep.subr.bf16.mxu0 0
        %3968 = vmatpush2.bf16.msra.mxu0 0
        %3969 = vmatprep.subr.bf16.mxu0 0
        %3970 = vmatpush2.bf16.msra.mxu0 0
        %3971 = vmatprep.subr.bf16.mxu0 0
        %3972 = vmatpush2.bf16.msra.mxu0 0
        %3973 = vmatprep.subr.bf16.mxu0 0
        %3974 = vmatpush2.bf16.msra.mxu0 0
        %3975 = vmatprep.subr.bf16.mxu0 0
        %3976 = vmatpush2.bf16.msra.mxu0 0
        %3977 = vmatprep.subr.bf16.mxu0 0
        %3978 = vmatpush2.bf16.msra.mxu0 0
        %3979 = vmatprep.mubr.bf16.mxu0 0
        %3980 = vmatmul.mubr.bf16.gmra.mxu0 %v3936
        %v3981 = vpop.f32.mrf.mxu0
        %v3982 = vadd.f32 0.0, %v3981
        %v3983 = vpop.f32.mrf.mxu0
        %v3984 = vpop.f32.mrf.mxu0
        %v3985 = vadd.f32 0.0, %v3984
        %v3986 = vpop.f32.mrf.mxu0
        %3987 = vmatprep.mubr.bf16.mxu0 0
        %3988 = vmatmul.mubr.bf16.gmra.mxu0 %v3939
        %v3989 = vpop.f32.mrf.mxu0
        %v3990 = vadd.f32 0.0, %v3989
        %v3991 = vpop.f32.mrf.mxu0
        %v3992 = vpop.f32.mrf.mxu0
        %v3993 = vadd.f32 0.0, %v3992
        %v3994 = vpop.f32.mrf.mxu0
        %3995 = vmatprep.mubr.bf16.mxu0 0
        %3996 = vmatmul.mubr.bf16.gmra.mxu0 %v3942
        %v3997 = vpop.f32.mrf.mxu0
        %v3998 = vadd.f32 0.0, %v3997
        %v3999 = vpop.f32.mrf.mxu0
        %v4000 = vpop.f32.mrf.mxu0
        %v4001 = vadd.f32 0.0, %v4000
        %v4002 = vpop.f32.mrf.mxu0
        %4003 = vmatprep.mubr.bf16.mxu0 0
        %4004 = vmatmul.mubr.bf16.gmra.mxu0 %v3945
        %v4005 = vpop.f32.mrf.mxu0
        %v4006 = vadd.f32 0.0, %v4005
        %v4007 = vpop.f32.mrf.mxu0
        %v4008 = vpop.f32.mrf.mxu0
        %v4009 = vadd.f32 0.0, %v4008
        %v4010 = vpop.f32.mrf.mxu0
        %4011 = vdwg.mxu0
        %vm4012 = vcmask 31744
        %4013 = vst.msk [vmem:[%s1664] sm:$0xff] %vm4012, %v3982
        %4014 = vst.msk [vmem:[%s1664 + $0x8] sm:$0xff] %vm4012, %v3985
        %4015 = vst.msk [vmem:[%s1664 + $0x10] sm:$0xff] %vm4012, %v3990
        %4016 = vst.msk [vmem:[%s1664 + $0x18] sm:$0xff] %vm4012, %v3993
        %4017 = vst.msk [vmem:[%s1664 + $0x20] sm:$0xff] %vm4012, %v3998
        %4018 = vst.msk [vmem:[%s1664 + $0x28] sm:$0xff] %vm4012, %v4001
        %4019 = vst.msk [vmem:[%s1664 + $0x30] sm:$0xff] %vm4012, %v4006
        %4020 = vst.msk [vmem:[%s1664 + $0x38] sm:$0xff] %vm4012, %v4009
        %p4021 = scmp.lt.s32.totalorder %s121, 1
        %s4022 = scalar_select %p4021, %s121, 1
        %s4023 = smul.addr %s4022, 8
        %s4024 = smul.addr %s4023, 8
        %s4025 = scalar_lea.vmem %s87, %s4024
        %p4026 = scmp.lt.s32.totalorder %s121, 1
        %s4027 = scalar_select %p4026, %s121, 1
        %s4028 = scalar_lea.vmem %s89, %s4027
        %s4029 = sand.u32 %s1099, 1
        %s4030 = scalar_lea.sflag [#allocation4], %s4029
        %s4031 = sand.u32 %s1099, 1
        %s4032 = scalar_lea.vmem [#allocation26], %s4031
        %s4033 = sand.u32 %s121, 1
        %s4034 = scalar_lea.sflag [#allocation28], %s4033
        %s4035 = sand.u32 %s1125, 1
        %s4036 = scalar_lea.vmem [#allocation27], %s4035
        %s4037 = sand.u32 %s121, 1
        %s4038 = scalar_lea.sflag [#allocation28], %s4037
        %s4039 = sand.u32 %s1151, 1
        %s4040 = scalar_lea.vmem [#allocation29], %s4039
        // Predicated region
        $region253: #{medsam_lite_forward.5} parent=191 // pred_check
          %p4041 = pneg %p1057
        $region254: #{medsam_lite_forward.5} parent=191 // pred_check_branch
          %4043 = sbr.rel (%p4041) target = $region256
        $region255: #{medsam_lite_forward.5} parent=191 // pred_region
          _
        $region256: #{medsam_lite_forward.5} parent=191 // pred_fallthru
          _
        // Predicated region
        $region257: #{medsam_lite_forward.5} parent=191 // pred_check
          %p4044 = pneg %p1083
        $region258: #{medsam_lite_forward.5} parent=191 // pred_check_branch
          %4046 = sbr.rel (%p4044) target = $region260
        $region259: #{medsam_lite_forward.5} parent=191 // pred_region
          _
        $region260: #{medsam_lite_forward.5} parent=191 // pred_fallthru
          _
        // Predicated region
        $region261: #{medsam_lite_forward.5} parent=191 // pred_check
          %p4047 = pneg %p1109
        $region262: #{medsam_lite_forward.5} parent=191 // pred_check_branch
          %4049 = sbr.rel (%p4047) target = $region264
        $region263: #{medsam_lite_forward.5} parent=191 // pred_region
          %s4051 = ssub.s32 16, 16
          %4052 = vsyncadd %s4030, %s4051
          %s4053 = smul.addr %s121, 16
          %s4054 = scalar_lea.hbm %s91, %s4053
          %s4056 = sshll.u32 %s4032, 4
          %s4057 = int_to_ptr.vmem [resolvable:$true] %s4056
          %4059 = dma.vmem_to_hbm [thread:$0]  %s4057, 16, %s4054, %s4030
        $region264: #{medsam_lite_forward.5} parent=191 // pred_fallthru
          _
        // Predicated region
        $region265: #{medsam_lite_forward.5} parent=191 // pred_check
          %p4060 = pneg %p1135
        $region266: #{medsam_lite_forward.5} parent=191 // pred_check_branch
          %4062 = sbr.rel (%p4060) target = $region268
        $region267: #{medsam_lite_forward.5} parent=191 // pred_region
          %s4064 = ssub.s32 16, 16
          %4065 = vsyncadd %s4034, %s4064
          %s4066 = smul.addr %s121, 16
          %s4067 = scalar_lea.hbm %s93, %s4066
          %s4069 = sshll.u32 %s4036, 4
          %s4070 = int_to_ptr.vmem [resolvable:$true] %s4069
          %4072 = dma.vmem_to_hbm [thread:$0]  %s4070, 16, %s4067, %s4034
        $region268: #{medsam_lite_forward.5} parent=191 // pred_fallthru
          _
        // Predicated region
        $region269: #{medsam_lite_forward.5} parent=191 // pred_check
          %p4073 = pneg %p1161
        $region270: #{medsam_lite_forward.5} parent=191 // pred_check_branch
          %4075 = sbr.rel (%p4073) target = $region272
        $region271: #{medsam_lite_forward.5} parent=191 // pred_region
          %s4077 = ssub.s32 16, 16
          %4078 = vsyncadd %s4038, %s4077
          %s4079 = smul.addr %s121, 16
          %s4080 = scalar_lea.hbm %s95, %s4079
          %s4082 = sshll.u32 %s4040, 4
          %s4083 = int_to_ptr.vmem [resolvable:$true] %s4082
          %4085 = dma.vmem_to_hbm [thread:$0]  %s4083, 16, %s4080, %s4038
        $region272: #{medsam_lite_forward.5} parent=191 // pred_fallthru
          _
      $region192: #{medsam_lite_forward.5} parent=5 // pred_fallthru
        _
      %p4086 = scmp.le.s32.totalorder 2, %s116
      // Predicated region
      $region273: #{medsam_lite_forward.5} parent=5 // pred_check
        %p4087 = pneg %p4086
      $region274: #{medsam_lite_forward.5} parent=5 // pred_check_branch
        %4089 = sbr.rel (%p4087) target = $region276
      $region275: #{medsam_lite_forward.5} parent=5 // pred_region
        %s4090 = ssub.s32 %s116, 2
        // Predicated region
        $region277: #{medsam_lite_forward.5} parent=275 // pred_check
          %p4091 = pneg %p1063
        $region278: #{medsam_lite_forward.5} parent=275 // pred_check_branch
          %4093 = sbr.rel (%p4091) target = $region280
        $region279: #{medsam_lite_forward.5} parent=275 // pred_region
          %p4094 = scmp.lt.s32.totalorder %s122, 1
          %s4095 = scalar_select %p4094, %s122, 1
          %s4096 = smul.addr %s4095, 8
          %s4097 = smul.addr %s4096, 8
          %s4098 = scalar_lea.vmem %s87, %s4097
        $region280: #{medsam_lite_forward.5} parent=275 // pred_fallthru
          _
        // Predicated region
        $region281: #{medsam_lite_forward.5} parent=275 // pred_check
          %p4099 = pneg %p1089
        $region282: #{medsam_lite_forward.5} parent=275 // pred_check_branch
          %4101 = sbr.rel (%p4099) target = $region284
        $region283: #{medsam_lite_forward.5} parent=275 // pred_region
          %p4102 = scmp.lt.s32.totalorder %s122, 1
          %s4103 = scalar_select %p4102, %s122, 1
          %s4104 = scalar_lea.vmem %s89, %s4103
        $region284: #{medsam_lite_forward.5} parent=275 // pred_fallthru
          _
        // Predicated region
        $region285: #{medsam_lite_forward.5} parent=275 // pred_check
          %p4105 = pneg %p1115
        $region286: #{medsam_lite_forward.5} parent=275 // pred_check_branch
          %4107 = sbr.rel (%p4105) target = $region288
        $region287: #{medsam_lite_forward.5} parent=275 // pred_region
          %s4108 = sand.u32 %s1100, 1
          %s4109 = scalar_lea.sflag [#allocation4], %s4108
          %s4110 = sand.u32 %s1100, 1
          %s4111 = scalar_lea.vmem [#allocation26], %s4110
          %4112 = dma.done %s4109, 16
        $region288: #{medsam_lite_forward.5} parent=275 // pred_fallthru
          _
        // Predicated region
        $region289: #{medsam_lite_forward.5} parent=275 // pred_check
          %p4113 = pneg %p1141
        $region290: #{medsam_lite_forward.5} parent=275 // pred_check_branch
          %4115 = sbr.rel (%p4113) target = $region292
        $region291: #{medsam_lite_forward.5} parent=275 // pred_region
          %s4116 = sand.u32 %s122, 1
          %s4117 = scalar_lea.sflag [#allocation28], %s4116
          %s4118 = sand.u32 %s1126, 1
          %s4119 = scalar_lea.vmem [#allocation27], %s4118
          %4120 = dma.done %s4117, 16
        $region292: #{medsam_lite_forward.5} parent=275 // pred_fallthru
          _
        // Predicated region
        $region293: #{medsam_lite_forward.5} parent=275 // pred_check
          %p4121 = pneg %p1167
        $region294: #{medsam_lite_forward.5} parent=275 // pred_check_branch
          %4123 = sbr.rel (%p4121) target = $region296
        $region295: #{medsam_lite_forward.5} parent=275 // pred_region
          %s4124 = sand.u32 %s122, 1
          %s4125 = scalar_lea.sflag [#allocation28], %s4124
          %s4126 = sand.u32 %s1152, 1
          %s4127 = scalar_lea.vmem [#allocation29], %s4126
          %4128 = dma.done %s4125, 16
        $region296: #{medsam_lite_forward.5} parent=275 // pred_fallthru
          _
      $region276: #{medsam_lite_forward.5} parent=5 // pred_fallthru
        _
    $region6: #{medsam_lite_forward.5} parent=1 // loop_footer
      %s120 = sadd.s32 1, %s116
    $region7: #{medsam_lite_forward.5} parent=1 // loop_footer_branch
      %115 = sbr.rel target = $region3
    $region8: #{medsam_lite_forward.5} parent=1 // loop_exit
      _
    %4129 = vsyncpa [#allocation3], 1
    %s4130 = scalar_lea.sflag [#allocation3], 1
    %4131 = vsyncpa %s4130, 1
    %4132 = vsyncpa [#allocation6], 1
    %4133 = vsyncpa [#allocation9], 1
    %4134 = vsyncpa [#allocation12], 1
    %4135 = vsyncpa [#allocation15], 1
    %4136 = vsyncpa [#allocation18], 1
    %4137 = vsyncpa [#allocation21], 1
    %4138 = vsyncpa [#allocation24], 1
    %4139 = vsyncpa [#allocation4], 1
    %s4140 = scalar_lea.sflag [#allocation4], 1
    %4141 = vsyncpa %s4140, 1
    %4142 = vsyncpa [#allocation28], 1
    %s4143 = scalar_lea.sflag [#allocation28], 1
    %4144 = vsyncpa %s4143, 1

</llo_original>
